<compile_context>
chip_gen: v7x
topology: tpu7x:2x2x1
jax: 0.10.0
libtpu: 0.0.40
codegen_flags: <defaults>
</compile_context>

<pallas_src>
import functools

import jax
import jax.numpy as jnp
from jax.experimental import pallas as pl
from jax.experimental.pallas import tpu as pltpu


# ----------------------------- small helpers --------------------------------


def _rup(x, m):
    return ((x + m - 1) // m) * m


def _silu(z):
    # SiLU with the sigmoid's divide pushed onto the EUP (approx reciprocal).
    return z * pl.reciprocal(1.0 + jnp.exp(-z), approx=True)


def _mm(a, w):
    # Activations cast to bf16; weights are already bf16; f32 MXU accumulation.
    return jnp.dot(a.astype(jnp.bfloat16), w, preferred_element_type=jnp.float32)


def _padw(w, r, c):
    # Weights stored in bf16 (matmuls cast anyway): halves DMA + VMEM.
    return jnp.pad(w, ((0, r - w.shape[0]), (0, c - w.shape[1]))).astype(jnp.bfloat16)


def _pads(s, c):  # scale: pad with 1.0, keep f32
    s = s.reshape(1, -1)
    return jnp.pad(s, ((0, 0), (0, c - s.shape[1])), constant_values=1.0)


def _padb(b, c):  # bias: pad with 0.0, keep f32
    b = b.reshape(1, -1)
    return jnp.pad(b, ((0, 0), (0, c - b.shape[1])))


def _vmem_cap_bytes():
    try:
        cap = getattr(pltpu.get_tpu_info(), "vmem_capacity_bytes", 0)
        if cap:
            return int(cap)
    except Exception:
        pass
    return 64 * 1024 * 1024  # conservative (v7x)


# ----------------------------- Pallas kernel ---------------------------------


def _csp_kernel(x_ref, cv1w_ref, cv1s_ref, cv1b_ref,
                bw1_ref, bs1_ref, bb1_ref, bw2_ref, bs2_ref, bb2_ref,
                cv3w_ref, cv2w_ref, bn1s_ref, bn1b_ref, bn2s_ref, bn2b_ref,
                w4_ref, cv4s_ref, cv4b_ref,
                o_ref, hp_ref, *, width, adds, pad):
    """Full BottleneckCSP for one image, entirely VMEM-resident."""
    hw = x_ref.shape[0]
    cp = cv1w_ref.shape[1]
    cols = hp_ref.shape[1]          # 3 * cp (three dw-shifted bands)

    # Zero ONLY the halo rows once.  Per-block stores below either avoid the
    # halo or deposit zeros into it (edge masks), so it stays zero.
    hp_ref[pl.ds(0, pad + 1), :] = jnp.zeros((pad + 1, cols), hp_ref.dtype)
    hp_ref[pl.ds(pad + hw - 1, pad + 1), :] = (
        jnp.zeros((pad + 1, cols), hp_ref.dtype))

    # Image-column validity masks, computed in-kernel (no lane-1 HBM operand).
    col = jax.lax.broadcasted_iota(jnp.int32, (hw, 1), 0) % width
    not_first = (col != 0).astype(jnp.float32)           # w != 0
    not_last = (col != width - 1).astype(jnp.float32)    # w != W-1

    x = x_ref[...]                                        # (hw, c1p) bf16
    # CSP cv1 (1x1 + BN + SiLU)
    t = _silu(_mm(x, cv1w_ref[...]) * cv1s_ref[...] + cv1b_ref[...])

    def bottleneck(r, t, add):
        # Bottleneck.cv1 (1x1 + BN + SiLU)
        h1 = _silu(_mm(t, bw1_ref[r]) * bs1_ref[r] + bb1_ref[r])
        # Bottleneck.cv2 (3x3 + BN + SiLU): write the three dw-shifted bands
        # (dw = -1, 0, +1) of the zero-haloed bf16 scratch, then three static,
        # aligned (hw, 3*cp) @ (3*cp, cp) matmuls (one per dh).
        hp_ref[pl.ds(pad, hw), cp:2 * cp] = h1.astype(hp_ref.dtype)
        hp_ref[pl.ds(pad + 1, hw), 0:cp] = (h1 * not_last).astype(hp_ref.dtype)
        hp_ref[pl.ds(pad - 1, hw), 2 * cp:3 * cp] = (
            (h1 * not_first).astype(hp_ref.dtype))
        acc = None
        for kh in range(3):                               # static offsets
            sh = hp_ref[pl.ds(pad + (kh - 1) * width, hw), :]
            part = jnp.dot(sh, bw2_ref[3 * r + kh],
                           preferred_element_type=jnp.float32)
            acc = part if acc is None else acc + part
        z = _silu(acc * bs2_ref[r] + bb2_ref[r])
        return z + t if add else z

    if len(set(adds)) <= 1:
        # Uniform shortcut flag (always the case for BottleneckCSP): rolled
        # loop keeps live ranges / code size bounded for large `repeat`.
        add = bool(adds[0]) if adds else True
        t = jax.lax.fori_loop(0, len(adds),
                              lambda r, tt: bottleneck(r, tt, add), t)
    else:
        for r in range(len(adds)):
            t = bottleneck(r, t, bool(adds[r]))

    # --- fused CSP tail: cv3, cv2, concat + BN + SiLU, cv4 (+BN+SiLU) -------
    a1 = _silu(_mm(t, cv3w_ref[...]) * bn1s_ref[...] + bn1b_ref[...])
    a2 = _silu(_mm(x, cv2w_ref[...]) * bn2s_ref[...] + bn2b_ref[...])
    za = jnp.concatenate([a1.astype(jnp.bfloat16), a2.astype(jnp.bfloat16)],
                         axis=-1)                          # (hw, 2*cp)
    z = jnp.dot(za, w4_ref[...], preferred_element_type=jnp.float32)
    o_ref[...] = _silu(z * cv4s_ref[...] + cv4b_ref[...]).astype(o_ref.dtype)


# ----------------------------- pallas_call wrapper ---------------------------


def bottleneck_csp(x3p, cv1w, cv1s, cv1b, bw1, bs1, bb1, bw2, bs2, bb2,
                   cv3w, cv2w, bn1s, bn1b, bn2s, bn2b, w4, cv4s, cv4b,
                   *, width, adds):
    n, hw, c1p = x3p.shape
    cp = cv1w.shape[1]
    c2p = w4.shape[1]
    rep = len(adds)
    r3 = bw2.shape[0]
    pad = max(8, _rup(width, 8))     # halo rows (>= width, sublane aligned)

    kern = functools.partial(_csp_kernel, width=width, adds=tuple(adds),
                             pad=pad)

    def cspec(shape):
        zeros = (0,) * len(shape)
        return pl.BlockSpec(shape, lambda i: zeros)

    in_specs = [
        pl.BlockSpec((None, hw, c1p), lambda i: (i, 0, 0)),   # x (per image)
        cspec((c1p, cp)), cspec((1, cp)), cspec((1, cp)),     # cv1
        cspec((rep, cp, cp)), cspec((rep, 1, cp)), cspec((rep, 1, cp)),
        cspec((r3, 3 * cp, cp)), cspec((rep, 1, cp)), cspec((rep, 1, cp)),
        cspec((cp, cp)), cspec((c1p, cp)),                    # cv3, cv2
        cspec((1, cp)), cspec((1, cp)), cspec((1, cp)), cspec((1, cp)),
        cspec((2 * cp, c2p)), cspec((1, c2p)), cspec((1, c2p)),  # cv4
    ]

    # Derive the VMEM limit from the actual per-step footprint.
    wbytes = sum(int(a.size) * a.dtype.itemsize
                 for a in (cv1w, cv1s, cv1b, bw1, bs1, bb1, bw2, bs2, bb2,
                           cv3w, cv2w, bn1s, bn1b, bn2s, bn2b, w4, cv4s, cv4b))
    io_bytes = hw * c1p * 2 + hw * c2p * 4
    scratch_bytes = (hw + 2 * pad) * (3 * cp) * 2
    est = (2 * (wbytes + io_bytes) + scratch_bytes
           + 8 * hw * cp * 4 + (4 << 20))
    vmem_limit = int(min(max(est, 32 << 20), _vmem_cap_bytes() - (2 << 20)))

    return pl.pallas_call(
        kern,
        out_shape=jax.ShapeDtypeStruct((n, hw, c2p), jnp.float32),
        grid_spec=pltpu.PrefetchScalarGridSpec(
            num_scalar_prefetch=0,
            grid=(n,),
            in_specs=in_specs,
            out_specs=pl.BlockSpec((None, hw, c2p), lambda i: (i, 0, 0)),
            scratch_shapes=[pltpu.VMEM((hw + 2 * pad, 3 * cp), jnp.bfloat16)],
        ),
        compiler_params=pltpu.CompilerParams(
            dimension_semantics=("parallel",),
            vmem_limit_bytes=vmem_limit,
        ),
    )(x3p, cv1w, cv1s, cv1b, bw1, bs1, bb1, bw2, bs2, bb2,
      cv3w, cv2w, bn1s, bn1b, bn2s, bn2b, w4, cv4s, cv4b)


# ----------------------------- parameters ------------------------------------


def init_params(key, c1, c2, repeat=1, shortcut=True, expansion=0.5):
    """Deterministic synthetic parameters matching BottleneckCSP shapes."""
    c_ = int(c2 * expansion)
    keys = iter(jax.random.split(key, 16 + 8 * repeat))

    def w(*shape):
        return 0.1 * jax.random.normal(next(keys), shape, jnp.float32)

    def bn(c, eps=1e-5):
        kg, kb, km, kv = jax.random.split(next(keys), 4)
        gamma = 1.0 + 0.1 * jax.random.normal(kg, (c,), jnp.float32)
        beta = 0.1 * jax.random.normal(kb, (c,), jnp.float32)
        mean = 0.1 * jax.random.normal(km, (c,), jnp.float32)
        var = jnp.abs(1.0 + 0.1 * jax.random.normal(kv, (c,), jnp.float32))
        s = gamma / jnp.sqrt(var + eps)
        return s, beta - mean * s

    p = {"c_": c_, "c2": c2}
    p["cv1_w"] = w(c1, c_)                       # Conv(c1, c_, 1)
    p["cv1_s"], p["cv1_b"] = bn(c_)
    p["cv2_w"] = w(c1, c_)                       # plain Conv2d(c1, c_, 1)
    p["cv3_w"] = w(c_, c_)                       # plain Conv2d(c_, c_, 1)
    p["cv4_w"] = w(2 * c_, c2)                   # Conv(2c_, c2, 1)
    p["cv4_s"], p["cv4_b"] = bn(c2)
    p["bn_s"], p["bn_b"] = bn(2 * c_)            # BN after concat
    blocks = []
    for _ in range(repeat):                      # Bottleneck(c_, c_, e=1.0)
        blk = {"cv1_w": w(c_, c_)}
        blk["cv1_s"], blk["cv1_b"] = bn(c_)
        blk["cv2_w"] = w(3, 3, c_, c_)           # 3x3, HWIO
        blk["cv2_s"], blk["cv2_b"] = bn(c_)
        blk["add"] = bool(shortcut)              # middle == output channels
        blocks.append(blk)
    p["m"] = blocks
    return p


# ----------------------------- forward passes --------------------------------


def forward_pallas(x_nchw, p):
    n, c1, hh, ww = x_nchw.shape
    c_, c2 = p["c_"], p["c2"]
    hw = hh * ww
    c1p, cp, c2p = _rup(c1, 128), _rup(c_, 128), _rup(c2, 128)

    # NCHW -> NHWC -> (N, HW, C); channel axis zero-padded to 128 lanes; bf16.
    x3 = jnp.transpose(x_nchw, (0, 2, 3, 1)).reshape(n, hw, c1)
    x3p = jnp.pad(x3, ((0, 0), (0, 0), (0, c1p - c1))).astype(jnp.bfloat16)

    # ---- body params (padded / stacked / bf16 weights) ----
    cv1w = _padw(p["cv1_w"], c1p, cp)
    cv1s, cv1b = _pads(p["cv1_s"], cp), _padb(p["cv1_b"], cp)
    bw1 = jnp.stack([_padw(b["cv1_w"], cp, cp) for b in p["m"]])
    bs1 = jnp.stack([_pads(b["cv1_s"], cp) for b in p["m"]])
    bb1 = jnp.stack([_padb(b["cv1_b"], cp) for b in p["m"]])
    # 3x3 weights stacked as (repeat*3, 3*cp, cp): for each kh the three kw
    # taps are stacked along K to match the dw-banded halo scratch layout.
    bw2 = jnp.stack([
        jnp.concatenate([_padw(b["cv2_w"][kh, kw], cp, cp) for kw in range(3)],
                        axis=0)
        for b in p["m"] for kh in range(3)])
    bs2 = jnp.stack([_pads(b["cv2_s"], cp) for b in p["m"]])
    bb2 = jnp.stack([_padb(b["cv2_b"], cp) for b in p["m"]])
    adds = tuple(bool(b["add"]) for b in p["m"])

    # ---- tail params ----
    cv3w = _padw(p["cv3_w"], cp, cp)
    cv2w = _padw(p["cv2_w"], c1p, cp)
    bn1s, bn1b = _pads(p["bn_s"][:c_], cp), _padb(p["bn_b"][:c_], cp)
    bn2s, bn2b = _pads(p["bn_s"][c_:], cp), _padb(p["bn_b"][c_:], cp)
    w4 = jnp.concatenate([_padw(p["cv4_w"][:c_], cp, c2p),
                          _padw(p["cv4_w"][c_:], cp, c2p)], axis=0)
    cv4s, cv4b = _pads(p["cv4_s"], c2p), _padb(p["cv4_b"], c2p)

    o3 = bottleneck_csp(x3p, cv1w, cv1s, cv1b, bw1, bs1, bb1, bw2, bs2, bb2,
                        cv3w, cv2w, bn1s, bn1b, bn2s, bn2b, w4, cv4s, cv4b,
                        width=ww, adds=adds)

    o = o3.reshape(n, hh, ww, c2p)[..., :c2]
    return jnp.transpose(o, (0, 3, 1, 2))  # back to NCHW


def forward_reference(x_nchw, p):
    """Pure-JAX reference (same folded-BN semantics and bf16 matmul operand
    policy as the kernel; 3x3 conv via lax.conv for an independent check)."""
    bf = lambda a: a.astype(jnp.bfloat16)

    def mm(a, w):
        return jnp.dot(bf(a), bf(w), preferred_element_type=jnp.float32)

    def silu(z):
        return z * jax.nn.sigmoid(z)

    n, c1, hh, ww = x_nchw.shape
    c_, c2 = p["c_"], p["c2"]
    x2 = jnp.transpose(x_nchw, (0, 2, 3, 1)).reshape(n * hh * ww, c1)

    t = silu(mm(x2, p["cv1_w"]) * p["cv1_s"] + p["cv1_b"])
    for blk in p["m"]:
        h1 = silu(mm(t, blk["cv1_w"]) * blk["cv1_s"] + blk["cv1_b"])
        conv = jax.lax.conv_general_dilated(
            bf(h1.reshape(n, hh, ww, c_)), bf(blk["cv2_w"]),
            window_strides=(1, 1), padding="SAME",
            dimension_numbers=("NHWC", "HWIO", "NHWC"),
            preferred_element_type=jnp.float32)
        z = silu(conv.reshape(n * hh * ww, c_) * blk["cv2_s"] + blk["cv2_b"])
        t = z + t if blk["add"] else z

    y1 = mm(t, p["cv3_w"])
    y2 = mm(x2, p["cv2_w"])
    y = silu(jnp.concatenate([y1, y2], axis=-1) * p["bn_s"] + p["bn_b"])
    o2 = silu(mm(y, p["cv4_w"]) * p["cv4_s"] + p["cv4_b"])
    return o2.reshape(n, hh, ww, c2).transpose(0, 3, 1, 2)


# ----------------------------- main ------------------------------------------


if __name__ == "__main__":
    key = jax.random.PRNGKey(0)
    kx, kp = jax.random.split(key)

    N, C1, H, W = 2, 4, 16, 16
    C2 = 4
    REPEAT = 2

    x = jax.random.normal(kx, (N, C1, H, W), jnp.float32)
    params = init_params(kp, C1, C2, repeat=REPEAT, shortcut=True,
                         expansion=0.5)

    out = jax.block_until_ready(forward_pallas(x, params))
    ref = forward_reference(x, params)

    assert out.shape == (N, C2, H, W), out.shape
    # tolerance covers the in-kernel approximate-reciprocal SiLU
    assert jnp.allclose(out, ref, atol=2e-2, rtol=2e-2), "mismatch vs JAX reference"

    print("KERNEL_OK")
</pallas_src>

<mosaic_0001>
module attributes {stable_mosaic.version = 11 : i64} {
  func.func @_csp_kernel(%arg0: i32, %arg1: memref<1x256x128xbf16, #tpu.memory_space<vmem>>, %arg2: memref<128x128xbf16, #tpu.memory_space<vmem>>, %arg3: memref<1x128xf32, #tpu.memory_space<vmem>>, %arg4: memref<1x128xf32, #tpu.memory_space<vmem>>, %arg5: memref<2x128x128xbf16, #tpu.memory_space<vmem>>, %arg6: memref<2x1x128xf32, #tpu.memory_space<vmem>>, %arg7: memref<2x1x128xf32, #tpu.memory_space<vmem>>, %arg8: memref<6x384x128xbf16, #tpu.memory_space<vmem>>, %arg9: memref<2x1x128xf32, #tpu.memory_space<vmem>>, %arg10: memref<2x1x128xf32, #tpu.memory_space<vmem>>, %arg11: memref<128x128xbf16, #tpu.memory_space<vmem>>, %arg12: memref<128x128xbf16, #tpu.memory_space<vmem>>, %arg13: memref<1x128xf32, #tpu.memory_space<vmem>>, %arg14: memref<1x128xf32, #tpu.memory_space<vmem>>, %arg15: memref<1x128xf32, #tpu.memory_space<vmem>>, %arg16: memref<1x128xf32, #tpu.memory_space<vmem>>, %arg17: memref<256x128xbf16, #tpu.memory_space<vmem>>, %arg18: memref<1x128xf32, #tpu.memory_space<vmem>>, %arg19: memref<1x128xf32, #tpu.memory_space<vmem>>, %arg20: memref<1x256x128xf32, #tpu.memory_space<vmem>>, %arg21: memref<288x384xbf16, #tpu.memory_space<vmem>>) attributes {dimension_semantics = [#tpu.dimension_semantics<parallel>], iteration_bounds = array<i64: 2>, scalar_prefetch = 0 : i64, scratch_operands = 1 : i64, tpu.core_type = #tpu.core_type<tc>, window_params = [{transform_indices = @transform_0, window_bounds = array<i64: 1, 256, 128>}, {pipeline_mode = #tpu.pipeline_mode<synchronous>, transform_indices = @transform_1, window_bounds = array<i64: 128, 128>}, {pipeline_mode = #tpu.pipeline_mode<synchronous>, transform_indices = @transform_2, window_bounds = array<i64: 1, 128>}, {pipeline_mode = #tpu.pipeline_mode<synchronous>, transform_indices = @transform_3, window_bounds = array<i64: 1, 128>}, {pipeline_mode = #tpu.pipeline_mode<synchronous>, transform_indices = @transform_4, window_bounds = array<i64: 2, 128, 128>}, {pipeline_mode = #tpu.pipeline_mode<synchronous>, transform_indices = @transform_5, window_bounds = array<i64: 2, 1, 128>}, {pipeline_mode = #tpu.pipeline_mode<synchronous>, transform_indices = @transform_6, window_bounds = array<i64: 2, 1, 128>}, {pipeline_mode = #tpu.pipeline_mode<synchronous>, transform_indices = @transform_7, window_bounds = array<i64: 6, 384, 128>}, {pipeline_mode = #tpu.pipeline_mode<synchronous>, transform_indices = @transform_8, window_bounds = array<i64: 2, 1, 128>}, {pipeline_mode = #tpu.pipeline_mode<synchronous>, transform_indices = @transform_9, window_bounds = array<i64: 2, 1, 128>}, {pipeline_mode = #tpu.pipeline_mode<synchronous>, transform_indices = @transform_10, window_bounds = array<i64: 128, 128>}, {pipeline_mode = #tpu.pipeline_mode<synchronous>, transform_indices = @transform_11, window_bounds = array<i64: 128, 128>}, {pipeline_mode = #tpu.pipeline_mode<synchronous>, transform_indices = @transform_12, window_bounds = array<i64: 1, 128>}, {pipeline_mode = #tpu.pipeline_mode<synchronous>, transform_indices = @transform_13, window_bounds = array<i64: 1, 128>}, {pipeline_mode = #tpu.pipeline_mode<synchronous>, transform_indices = @transform_14, window_bounds = array<i64: 1, 128>}, {pipeline_mode = #tpu.pipeline_mode<synchronous>, transform_indices = @transform_15, window_bounds = array<i64: 1, 128>}, {pipeline_mode = #tpu.pipeline_mode<synchronous>, transform_indices = @transform_16, window_bounds = array<i64: 256, 128>}, {pipeline_mode = #tpu.pipeline_mode<synchronous>, transform_indices = @transform_17, window_bounds = array<i64: 1, 128>}, {pipeline_mode = #tpu.pipeline_mode<synchronous>, transform_indices = @transform_18, window_bounds = array<i64: 1, 128>}, {transform_indices = @transform_19, window_bounds = array<i64: 1, 256, 128>}]} {
    %cst = arith.constant 0.000000e+00 : bf16
    %0 = vector.broadcast %cst : bf16 to vector<17x384xbf16>
    %c0 = arith.constant 0 : index
    %c0_0 = arith.constant 0 : index
    %1 = vector.load %arg21[%c0, %c0_0] : memref<288x384xbf16, #tpu.memory_space<vmem>>, vector<17x384xbf16>
    tpu.vector_store %arg21[%c0, %c0_0], %0 {strides = array<i32>} : memref<288x384xbf16, #tpu.memory_space<vmem>>, vector<17x384xbf16>,
    %cst_1 = arith.constant 0.000000e+00 : bf16
    %2 = vector.broadcast %cst_1 : bf16 to vector<17x384xbf16>
    %c271 = arith.constant 271 : index
    %c0_2 = arith.constant 0 : index
    %3 = vector.load %arg21[%c271, %c0_2] : memref<288x384xbf16, #tpu.memory_space<vmem>>, vector<17x384xbf16>
    tpu.vector_store %arg21[%c271, %c0_2], %2 {strides = array<i32>} : memref<288x384xbf16, #tpu.memory_space<vmem>>, vector<17x384xbf16>,
    %4 = tpu.iota {dimensions = array<i32: 0>} : vector<256x1xi32>
    %c16_i32 = arith.constant 16 : i32
    %c0_i32 = arith.constant 0 : i32
    %5 = arith.cmpi eq, %c16_i32, %c0_i32 : i32
    %c1_i32 = arith.constant 1 : i32
    %6 = arith.select %5, %c1_i32, %c16_i32 : i32
    %7 = vector.broadcast %6 : i32 to vector<256x1xi32>
    %8 = arith.remsi %4, %7 : vector<256x1xi32>
    %c0_i32_3 = arith.constant 0 : i32
    %9 = vector.broadcast %c0_i32_3 : i32 to vector<256x1xi32>
    %10 = arith.cmpi ne, %8, %9 : vector<256x1xi32>
    %c0_i32_4 = arith.constant 0 : i32
    %11 = vector.broadcast %c0_i32_4 : i32 to vector<256x1xi32>
    %12 = arith.cmpi slt, %8, %11 : vector<256x1xi32>
    %c0_i32_5 = arith.constant 0 : i32
    %13 = arith.cmpi slt, %6, %c0_i32_5 : i32
    %14 = vector.broadcast %13 : i1 to vector<256x1xi1>
    %15 = vector.broadcast %14 : vector<256x1xi1> to vector<256x1xi1>
    %16 = arith.xori %12, %15 : vector<256x1xi1>
    %17 = arith.andi %16, %10 : vector<256x1xi1>
    %18 = vector.broadcast %6 : i32 to vector<256x1xi32>
    %19 = arith.addi %8, %18 : vector<256x1xi32>
    %20 = arith.select %17, %19, %8 : vector<256x1xi1>, vector<256x1xi32>
    %c0_i32_6 = arith.constant 0 : i32
    %21 = vector.broadcast %c0_i32_6 : i32 to vector<256x1xi32>
    %22 = arith.cmpi ne, %20, %21 : vector<256x1xi32>
    %23 = arith.extui %22 : vector<256x1xi1> to vector<256x1xi32>
    %24 = arith.sitofp %23 : vector<256x1xi32> to vector<256x1xf32>
    %c15_i32 = arith.constant 15 : i32
    %25 = vector.broadcast %c15_i32 : i32 to vector<256x1xi32>
    %26 = arith.cmpi ne, %20, %25 : vector<256x1xi32>
    %27 = arith.extui %26 : vector<256x1xi1> to vector<256x1xi32>
    %28 = arith.sitofp %27 : vector<256x1xi32> to vector<256x1xf32>
    %c0_7 = arith.constant 0 : index
    %c0_8 = arith.constant 0 : index
    %c0_9 = arith.constant 0 : index
    %29 = vector.load %arg1[%c0_7, %c0_8, %c0_9] : memref<1x256x128xbf16, #tpu.memory_space<vmem>>, vector<1x256x128xbf16>
    %30 = vector.shape_cast %29 : vector<1x256x128xbf16> to vector<256x128xbf16>
    %c0_10 = arith.constant 0 : index
    %c0_11 = arith.constant 0 : index
    %31 = vector.load %arg2[%c0_10, %c0_11] : memref<128x128xbf16, #tpu.memory_space<vmem>>, vector<128x128xbf16>
    %cst_12 = arith.constant dense<0.000000e+00> : vector<256x128xf32>
    %32 = tpu.matmul %30, %31, %cst_12 {dimension_numbers = #tpu.dot_dimension_numbers<[1], [0], [0], [1], [0, 0, 1, 1], [], []>} : vector<256x128xbf16>, vector<128x128xbf16>, vector<256x128xf32> -> vector<256x128xf32>
    %c0_13 = arith.constant 0 : index
    %c0_14 = arith.constant 0 : index
    %33 = vector.load %arg3[%c0_13, %c0_14] : memref<1x128xf32, #tpu.memory_space<vmem>>, vector<1x128xf32>
    %34 = vector.broadcast %33 : vector<1x128xf32> to vector<256x128xf32>
    %35 = arith.mulf %32, %34 : vector<256x128xf32>
    %c0_15 = arith.constant 0 : index
    %c0_16 = arith.constant 0 : index
    %36 = vector.load %arg4[%c0_15, %c0_16] : memref<1x128xf32, #tpu.memory_space<vmem>>, vector<1x128xf32>
    %37 = vector.broadcast %36 : vector<1x128xf32> to vector<256x128xf32>
    %38 = arith.addf %35, %37 : vector<256x128xf32>
    %cst_17 = arith.constant 0.000000e+00 : f32
    %39 = vector.broadcast %cst_17 : f32 to vector<256x128xf32>
    %40 = arith.subf %39, %38 : vector<256x128xf32>
    %41 = math.exp %40 : vector<256x128xf32>
    %cst_18 = arith.constant 1.000000e+00 : f32
    %42 = vector.broadcast %cst_18 : f32 to vector<256x128xf32>
    %43 = arith.addf %42, %41 : vector<256x128xf32>
    %44 = tpu.reciprocal %43 {approx = true} : vector<256x128xf32> -> vector<256x128xf32>
    %45 = arith.mulf %38, %44 : vector<256x128xf32>
    %c0_i32_19 = arith.constant 0 : i32
    %c2_i32 = arith.constant 2 : i32
    %46 = arith.addi %c0_i32_19, %c2_i32 : i32
    %c1_i32_20 = arith.constant 1 : i32
    %47 = scf.for %arg22 = %c0_i32_19 to %46 step %c1_i32_20 iter_args(%arg23 = %45) -> (vector<256x128xf32>)  : i32 {
      %100 = arith.index_cast %arg22 : i32 to index
      %c0_52 = arith.constant 0 : index
      %c0_53 = arith.constant 0 : index
      %101 = vector.load %arg5[%100, %c0_52, %c0_53] : memref<2x128x128xbf16, #tpu.memory_space<vmem>>, vector<1x128x128xbf16>
      %102 = vector.shape_cast %101 : vector<1x128x128xbf16> to vector<128x128xbf16>
      %103 = arith.truncf %arg23 : vector<256x128xf32> to vector<256x128xbf16>
      %cst_54 = arith.constant dense<0.000000e+00> : vector<256x128xf32>
      %104 = tpu.matmul %103, %102, %cst_54 {dimension_numbers = #tpu.dot_dimension_numbers<[1], [0], [0], [1], [0, 0, 1, 1], [], []>} : vector<256x128xbf16>, vector<128x128xbf16>, vector<256x128xf32> -> vector<256x128xf32>
      %105 = arith.index_cast %arg22 : i32 to index
      %c0_55 = arith.constant 0 : index
      %c0_56 = arith.constant 0 : index
      %106 = vector.load %arg6[%105, %c0_55, %c0_56] : memref<2x1x128xf32, #tpu.memory_space<vmem>>, vector<1x1x128xf32>
      %107 = vector.shape_cast %106 : vector<1x1x128xf32> to vector<1x128xf32>
      %108 = vector.broadcast %107 : vector<1x128xf32> to vector<256x128xf32>
      %109 = arith.mulf %104, %108 : vector<256x128xf32>
      %110 = arith.index_cast %arg22 : i32 to index
      %c0_57 = arith.constant 0 : index
      %c0_58 = arith.constant 0 : index
      %111 = vector.load %arg7[%110, %c0_57, %c0_58] : memref<2x1x128xf32, #tpu.memory_space<vmem>>, vector<1x1x128xf32>
      %112 = vector.shape_cast %111 : vector<1x1x128xf32> to vector<1x128xf32>
      %113 = vector.broadcast %112 : vector<1x128xf32> to vector<256x128xf32>
      %114 = arith.addf %109, %113 : vector<256x128xf32>
      %cst_59 = arith.constant 0.000000e+00 : f32
      %115 = vector.broadcast %cst_59 : f32 to vector<256x128xf32>
      %116 = arith.subf %115, %114 : vector<256x128xf32>
      %117 = math.exp %116 : vector<256x128xf32>
      %cst_60 = arith.constant 1.000000e+00 : f32
      %118 = vector.broadcast %cst_60 : f32 to vector<256x128xf32>
      %119 = arith.addf %118, %117 : vector<256x128xf32>
      %120 = tpu.reciprocal %119 {approx = true} : vector<256x128xf32> -> vector<256x128xf32>
      %121 = arith.mulf %114, %120 : vector<256x128xf32>
      %122 = arith.truncf %121 : vector<256x128xf32> to vector<256x128xbf16>
      %c16 = arith.constant 16 : index
      %c128 = arith.constant 128 : index
      %123 = vector.load %arg21[%c16, %c128] : memref<288x384xbf16, #tpu.memory_space<vmem>>, vector<256x128xbf16>
      tpu.vector_store %arg21[%c16, %c128], %122 {strides = array<i32>} : memref<288x384xbf16, #tpu.memory_space<vmem>>, vector<256x128xbf16>,
      %124 = vector.broadcast %28 : vector<256x1xf32> to vector<256x128xf32>
      %125 = arith.mulf %121, %124 : vector<256x128xf32>
      %126 = arith.truncf %125 : vector<256x128xf32> to vector<256x128xbf16>
      %c17 = arith.constant 17 : index
      %c0_61 = arith.constant 0 : index
      %127 = vector.load %arg21[%c17, %c0_61] : memref<288x384xbf16, #tpu.memory_space<vmem>>, vector<256x128xbf16>
      tpu.vector_store %arg21[%c17, %c0_61], %126 {strides = array<i32>} : memref<288x384xbf16, #tpu.memory_space<vmem>>, vector<256x128xbf16>,
      %128 = vector.broadcast %24 : vector<256x1xf32> to vector<256x128xf32>
      %129 = arith.mulf %121, %128 : vector<256x128xf32>
      %130 = arith.truncf %129 : vector<256x128xf32> to vector<256x128xbf16>
      %c15 = arith.constant 15 : index
      %c256 = arith.constant 256 : index
      %131 = vector.load %arg21[%c15, %c256] : memref<288x384xbf16, #tpu.memory_space<vmem>>, vector<256x128xbf16>
      tpu.vector_store %arg21[%c15, %c256], %130 {strides = array<i32>} : memref<288x384xbf16, #tpu.memory_space<vmem>>, vector<256x128xbf16>,
      %c0_62 = arith.constant 0 : index
      %c0_63 = arith.constant 0 : index
      %132 = vector.load %arg21[%c0_62, %c0_63] : memref<288x384xbf16, #tpu.memory_space<vmem>>, vector<256x384xbf16>
      %c3_i32 = arith.constant 3 : i32
      %133 = arith.muli %c3_i32, %arg22 : i32
      %c0_i32_64 = arith.constant 0 : i32
      %134 = arith.addi %133, %c0_i32_64 : i32
      %135 = arith.index_cast %134 : i32 to index
      %c0_65 = arith.constant 0 : index
      %c0_66 = arith.constant 0 : index
      %136 = vector.load %arg8[%135, %c0_65, %c0_66] : memref<6x384x128xbf16, #tpu.memory_space<vmem>>, vector<1x384x128xbf16>
      %137 = vector.shape_cast %136 : vector<1x384x128xbf16> to vector<384x128xbf16>
      %cst_67 = arith.constant dense<0.000000e+00> : vector<256x128xf32>
      %138 = tpu.matmul %132, %137, %cst_67 {dimension_numbers = #tpu.dot_dimension_numbers<[1], [0], [0], [1], [0, 0, 1, 1], [], []>} : vector<256x384xbf16>, vector<384x128xbf16>, vector<256x128xf32> -> vector<256x128xf32>
      %c16_68 = arith.constant 16 : index
      %c0_69 = arith.constant 0 : index
      %139 = vector.load %arg21[%c16_68, %c0_69] : memref<288x384xbf16, #tpu.memory_space<vmem>>, vector<256x384xbf16>
      %c3_i32_70 = arith.constant 3 : i32
      %140 = arith.muli %c3_i32_70, %arg22 : i32
      %c1_i32_71 = arith.constant 1 : i32
      %141 = arith.addi %140, %c1_i32_71 : i32
      %142 = arith.index_cast %141 : i32 to index
      %c0_72 = arith.constant 0 : index
      %c0_73 = arith.constant 0 : index
      %143 = vector.load %arg8[%142, %c0_72, %c0_73] : memref<6x384x128xbf16, #tpu.memory_space<vmem>>, vector<1x384x128xbf16>
      %144 = vector.shape_cast %143 : vector<1x384x128xbf16> to vector<384x128xbf16>
      %cst_74 = arith.constant dense<0.000000e+00> : vector<256x128xf32>
      %145 = tpu.matmul %139, %144, %cst_74 {dimension_numbers = #tpu.dot_dimension_numbers<[1], [0], [0], [1], [0, 0, 1, 1], [], []>} : vector<256x384xbf16>, vector<384x128xbf16>, vector<256x128xf32> -> vector<256x128xf32>
      %146 = arith.addf %138, %145 : vector<256x128xf32>
      %c32 = arith.constant 32 : index
      %c0_75 = arith.constant 0 : index
      %147 = vector.load %arg21[%c32, %c0_75] : memref<288x384xbf16, #tpu.memory_space<vmem>>, vector<256x384xbf16>
      %c3_i32_76 = arith.constant 3 : i32
      %148 = arith.muli %c3_i32_76, %arg22 : i32
      %c2_i32_77 = arith.constant 2 : i32
      %149 = arith.addi %148, %c2_i32_77 : i32
      %150 = arith.index_cast %149 : i32 to index
      %c0_78 = arith.constant 0 : index
      %c0_79 = arith.constant 0 : index
      %151 = vector.load %arg8[%150, %c0_78, %c0_79] : memref<6x384x128xbf16, #tpu.memory_space<vmem>>, vector<1x384x128xbf16>
      %152 = vector.shape_cast %151 : vector<1x384x128xbf16> to vector<384x128xbf16>
      %cst_80 = arith.constant dense<0.000000e+00> : vector<256x128xf32>
      %153 = tpu.matmul %147, %152, %cst_80 {dimension_numbers = #tpu.dot_dimension_numbers<[1], [0], [0], [1], [0, 0, 1, 1], [], []>} : vector<256x384xbf16>, vector<384x128xbf16>, vector<256x128xf32> -> vector<256x128xf32>
      %154 = arith.addf %146, %153 : vector<256x128xf32>
      %155 = arith.index_cast %arg22 : i32 to index
      %c0_81 = arith.constant 0 : index
      %c0_82 = arith.constant 0 : index
      %156 = vector.load %arg9[%155, %c0_81, %c0_82] : memref<2x1x128xf32, #tpu.memory_space<vmem>>, vector<1x1x128xf32>
      %157 = vector.shape_cast %156 : vector<1x1x128xf32> to vector<1x128xf32>
      %158 = vector.broadcast %157 : vector<1x128xf32> to vector<256x128xf32>
      %159 = arith.mulf %154, %158 : vector<256x128xf32>
      %160 = arith.index_cast %arg22 : i32 to index
      %c0_83 = arith.constant 0 : index
      %c0_84 = arith.constant 0 : index
      %161 = vector.load %arg10[%160, %c0_83, %c0_84] : memref<2x1x128xf32, #tpu.memory_space<vmem>>, vector<1x1x128xf32>
      %162 = vector.shape_cast %161 : vector<1x1x128xf32> to vector<1x128xf32>
      %163 = vector.broadcast %162 : vector<1x128xf32> to vector<256x128xf32>
      %164 = arith.addf %159, %163 : vector<256x128xf32>
      %cst_85 = arith.constant 0.000000e+00 : f32
      %165 = vector.broadcast %cst_85 : f32 to vector<256x128xf32>
      %166 = arith.subf %165, %164 : vector<256x128xf32>
      %167 = math.exp %166 : vector<256x128xf32>
      %cst_86 = arith.constant 1.000000e+00 : f32
      %168 = vector.broadcast %cst_86 : f32 to vector<256x128xf32>
      %169 = arith.addf %168, %167 : vector<256x128xf32>
      %170 = tpu.reciprocal %169 {approx = true} : vector<256x128xf32> -> vector<256x128xf32>
      %171 = arith.mulf %164, %170 : vector<256x128xf32>
      %172 = arith.addf %171, %arg23 : vector<256x128xf32>
      scf.yield %172 : vector<256x128xf32>
    }
    %c2_i32_21 = arith.constant 2 : i32
    %c0_22 = arith.constant 0 : index
    %c0_23 = arith.constant 0 : index
    %48 = vector.load %arg11[%c0_22, %c0_23] : memref<128x128xbf16, #tpu.memory_space<vmem>>, vector<128x128xbf16>
    %49 = arith.truncf %47 : vector<256x128xf32> to vector<256x128xbf16>
    %cst_24 = arith.constant dense<0.000000e+00> : vector<256x128xf32>
    %50 = tpu.matmul %49, %48, %cst_24 {dimension_numbers = #tpu.dot_dimension_numbers<[1], [0], [0], [1], [0, 0, 1, 1], [], []>} : vector<256x128xbf16>, vector<128x128xbf16>, vector<256x128xf32> -> vector<256x128xf32>
    %c0_25 = arith.constant 0 : index
    %c0_26 = arith.constant 0 : index
    %51 = vector.load %arg13[%c0_25, %c0_26] : memref<1x128xf32, #tpu.memory_space<vmem>>, vector<1x128xf32>
    %52 = vector.broadcast %51 : vector<1x128xf32> to vector<256x128xf32>
    %53 = arith.mulf %50, %52 : vector<256x128xf32>
    %c0_27 = arith.constant 0 : index
    %c0_28 = arith.constant 0 : index
    %54 = vector.load %arg14[%c0_27, %c0_28] : memref<1x128xf32, #tpu.memory_space<vmem>>, vector<1x128xf32>
    %55 = vector.broadcast %54 : vector<1x128xf32> to vector<256x128xf32>
    %56 = arith.addf %53, %55 : vector<256x128xf32>
    %cst_29 = arith.constant 0.000000e+00 : f32
    %57 = vector.broadcast %cst_29 : f32 to vector<256x128xf32>
    %58 = arith.subf %57, %56 : vector<256x128xf32>
    %59 = math.exp %58 : vector<256x128xf32>
    %cst_30 = arith.constant 1.000000e+00 : f32
    %60 = vector.broadcast %cst_30 : f32 to vector<256x128xf32>
    %61 = arith.addf %60, %59 : vector<256x128xf32>
    %62 = tpu.reciprocal %61 {approx = true} : vector<256x128xf32> -> vector<256x128xf32>
    %63 = arith.mulf %56, %62 : vector<256x128xf32>
    %c0_31 = arith.constant 0 : index
    %c0_32 = arith.constant 0 : index
    %64 = vector.load %arg12[%c0_31, %c0_32] : memref<128x128xbf16, #tpu.memory_space<vmem>>, vector<128x128xbf16>
    %cst_33 = arith.constant dense<0.000000e+00> : vector<256x128xf32>
    %65 = tpu.matmul %30, %64, %cst_33 {dimension_numbers = #tpu.dot_dimension_numbers<[1], [0], [0], [1], [0, 0, 1, 1], [], []>} : vector<256x128xbf16>, vector<128x128xbf16>, vector<256x128xf32> -> vector<256x128xf32>
    %c0_34 = arith.constant 0 : index
    %c0_35 = arith.constant 0 : index
    %66 = vector.load %arg15[%c0_34, %c0_35] : memref<1x128xf32, #tpu.memory_space<vmem>>, vector<1x128xf32>
    %67 = vector.broadcast %66 : vector<1x128xf32> to vector<256x128xf32>
    %68 = arith.mulf %65, %67 : vector<256x128xf32>
    %c0_36 = arith.constant 0 : index
    %c0_37 = arith.constant 0 : index
    %69 = vector.load %arg16[%c0_36, %c0_37] : memref<1x128xf32, #tpu.memory_space<vmem>>, vector<1x128xf32>
    %70 = vector.broadcast %69 : vector<1x128xf32> to vector<256x128xf32>
    %71 = arith.addf %68, %70 : vector<256x128xf32>
    %cst_38 = arith.constant 0.000000e+00 : f32
    %72 = vector.broadcast %cst_38 : f32 to vector<256x128xf32>
    %73 = arith.subf %72, %71 : vector<256x128xf32>
    %74 = math.exp %73 : vector<256x128xf32>
    %cst_39 = arith.constant 1.000000e+00 : f32
    %75 = vector.broadcast %cst_39 : f32 to vector<256x128xf32>
    %76 = arith.addf %75, %74 : vector<256x128xf32>
    %77 = tpu.reciprocal %76 {approx = true} : vector<256x128xf32> -> vector<256x128xf32>
    %78 = arith.mulf %71, %77 : vector<256x128xf32>
    %79 = arith.truncf %63 : vector<256x128xf32> to vector<256x128xbf16>
    %80 = arith.truncf %78 : vector<256x128xf32> to vector<256x128xbf16>
    %81 = tpu.concatenate %79, %80 in 1 : vector<256x128xbf16>, vector<256x128xbf16> -> vector<256x256xbf16>
    %c0_40 = arith.constant 0 : index
    %c0_41 = arith.constant 0 : index
    %82 = vector.load %arg17[%c0_40, %c0_41] : memref<256x128xbf16, #tpu.memory_space<vmem>>, vector<256x128xbf16>
    %cst_42 = arith.constant dense<0.000000e+00> : vector<256x128xf32>
    %83 = tpu.matmul %81, %82, %cst_42 {dimension_numbers = #tpu.dot_dimension_numbers<[1], [0], [0], [1], [0, 0, 1, 1], [], []>} : vector<256x256xbf16>, vector<256x128xbf16>, vector<256x128xf32> -> vector<256x128xf32>
    %c0_43 = arith.constant 0 : index
    %c0_44 = arith.constant 0 : index
    %84 = vector.load %arg18[%c0_43, %c0_44] : memref<1x128xf32, #tpu.memory_space<vmem>>, vector<1x128xf32>
    %85 = vector.broadcast %84 : vector<1x128xf32> to vector<256x128xf32>
    %86 = arith.mulf %83, %85 : vector<256x128xf32>
    %c0_45 = arith.constant 0 : index
    %c0_46 = arith.constant 0 : index
    %87 = vector.load %arg19[%c0_45, %c0_46] : memref<1x128xf32, #tpu.memory_space<vmem>>, vector<1x128xf32>
    %88 = vector.broadcast %87 : vector<1x128xf32> to vector<256x128xf32>
    %89 = arith.addf %86, %88 : vector<256x128xf32>
    %cst_47 = arith.constant 0.000000e+00 : f32
    %90 = vector.broadcast %cst_47 : f32 to vector<256x128xf32>
    %91 = arith.subf %90, %89 : vector<256x128xf32>
    %92 = math.exp %91 : vector<256x128xf32>
    %cst_48 = arith.constant 1.000000e+00 : f32
    %93 = vector.broadcast %cst_48 : f32 to vector<256x128xf32>
    %94 = arith.addf %93, %92 : vector<256x128xf32>
    %95 = tpu.reciprocal %94 {approx = true} : vector<256x128xf32> -> vector<256x128xf32>
    %96 = arith.mulf %89, %95 : vector<256x128xf32>
    %c0_49 = arith.constant 0 : index
    %c0_50 = arith.constant 0 : index
    %c0_51 = arith.constant 0 : index
    %97 = vector.load %arg20[%c0_49, %c0_50, %c0_51] : memref<1x256x128xf32, #tpu.memory_space<vmem>>, vector<1x256x128xf32>
    %98 = vector.shape_cast %97 : vector<1x256x128xf32> to vector<256x128xf32>
    %99 = vector.shape_cast %96 : vector<256x128xf32> to vector<1x256x128xf32>
    tpu.vector_store %arg20[%c0_49, %c0_50, %c0_51], %99 {strides = array<i32>} : memref<1x256x128xf32, #tpu.memory_space<vmem>>, vector<1x256x128xf32>,
    return
  }
  func.func @transform_0(%arg0: i32) -> (i32, i32, i32) {
    %c0_i32 = arith.constant 0 : i32
    %c0_i32_0 = arith.constant 0 : i32
    %c0_i32_1 = arith.constant 0 : i32
    return %arg0, %c0_i32, %c0_i32_0 : i32, i32, i32
  }
  func.func @transform_1(%arg0: i32) -> (i32, i32) {
    %c0_i32 = arith.constant 0 : i32
    %c0_i32_0 = arith.constant 0 : i32
    %c0_i32_1 = arith.constant 0 : i32
    return %c0_i32, %c0_i32_0 : i32, i32
  }
  func.func @transform_2(%arg0: i32) -> (i32, i32) {
    %c0_i32 = arith.constant 0 : i32
    %c0_i32_0 = arith.constant 0 : i32
    %c0_i32_1 = arith.constant 0 : i32
    return %c0_i32, %c0_i32_0 : i32, i32
  }
  func.func @transform_3(%arg0: i32) -> (i32, i32) {
    %c0_i32 = arith.constant 0 : i32
    %c0_i32_0 = arith.constant 0 : i32
    %c0_i32_1 = arith.constant 0 : i32
    return %c0_i32, %c0_i32_0 : i32, i32
  }
  func.func @transform_4(%arg0: i32) -> (i32, i32, i32) {
    %c0_i32 = arith.constant 0 : i32
    %c0_i32_0 = arith.constant 0 : i32
    %c0_i32_1 = arith.constant 0 : i32
    %c0_i32_2 = arith.constant 0 : i32
    return %c0_i32, %c0_i32_0, %c0_i32_1 : i32, i32, i32
  }
  func.func @transform_5(%arg0: i32) -> (i32, i32, i32) {
    %c0_i32 = arith.constant 0 : i32
    %c0_i32_0 = arith.constant 0 : i32
    %c0_i32_1 = arith.constant 0 : i32
    %c0_i32_2 = arith.constant 0 : i32
    return %c0_i32, %c0_i32_0, %c0_i32_1 : i32, i32, i32
  }
  func.func @transform_6(%arg0: i32) -> (i32, i32, i32) {
    %c0_i32 = arith.constant 0 : i32
    %c0_i32_0 = arith.constant 0 : i32
    %c0_i32_1 = arith.constant 0 : i32
    %c0_i32_2 = arith.constant 0 : i32
    return %c0_i32, %c0_i32_0, %c0_i32_1 : i32, i32, i32
  }
  func.func @transform_7(%arg0: i32) -> (i32, i32, i32) {
    %c0_i32 = arith.constant 0 : i32
    %c0_i32_0 = arith.constant 0 : i32
    %c0_i32_1 = arith.constant 0 : i32
    %c0_i32_2 = arith.constant 0 : i32
    return %c0_i32, %c0_i32_0, %c0_i32_1 : i32, i32, i32
  }
  func.func @transform_8(%arg0: i32) -> (i32, i32, i32) {
    %c0_i32 = arith.constant 0 : i32
    %c0_i32_0 = arith.constant 0 : i32
    %c0_i32_1 = arith.constant 0 : i32
    %c0_i32_2 = arith.constant 0 : i32
    return %c0_i32, %c0_i32_0, %c0_i32_1 : i32, i32, i32
  }
  func.func @transform_9(%arg0: i32) -> (i32, i32, i32) {
    %c0_i32 = arith.constant 0 : i32
    %c0_i32_0 = arith.constant 0 : i32
    %c0_i32_1 = arith.constant 0 : i32
    %c0_i32_2 = arith.constant 0 : i32
    return %c0_i32, %c0_i32_0, %c0_i32_1 : i32, i32, i32
  }
  func.func @transform_10(%arg0: i32) -> (i32, i32) {
    %c0_i32 = arith.constant 0 : i32
    %c0_i32_0 = arith.constant 0 : i32
    %c0_i32_1 = arith.constant 0 : i32
    return %c0_i32, %c0_i32_0 : i32, i32
  }
  func.func @transform_11(%arg0: i32) -> (i32, i32) {
    %c0_i32 = arith.constant 0 : i32
    %c0_i32_0 = arith.constant 0 : i32
    %c0_i32_1 = arith.constant 0 : i32
    return %c0_i32, %c0_i32_0 : i32, i32
  }
  func.func @transform_12(%arg0: i32) -> (i32, i32) {
    %c0_i32 = arith.constant 0 : i32
    %c0_i32_0 = arith.constant 0 : i32
    %c0_i32_1 = arith.constant 0 : i32
    return %c0_i32, %c0_i32_0 : i32, i32
  }
  func.func @transform_13(%arg0: i32) -> (i32, i32) {
    %c0_i32 = arith.constant 0 : i32
    %c0_i32_0 = arith.constant 0 : i32
    %c0_i32_1 = arith.constant 0 : i32
    return %c0_i32, %c0_i32_0 : i32, i32
  }
  func.func @transform_14(%arg0: i32) -> (i32, i32) {
    %c0_i32 = arith.constant 0 : i32
    %c0_i32_0 = arith.constant 0 : i32
    %c0_i32_1 = arith.constant 0 : i32
    return %c0_i32, %c0_i32_0 : i32, i32
  }
  func.func @transform_15(%arg0: i32) -> (i32, i32) {
    %c0_i32 = arith.constant 0 : i32
    %c0_i32_0 = arith.constant 0 : i32
    %c0_i32_1 = arith.constant 0 : i32
    return %c0_i32, %c0_i32_0 : i32, i32
  }
  func.func @transform_16(%arg0: i32) -> (i32, i32) {
    %c0_i32 = arith.constant 0 : i32
    %c0_i32_0 = arith.constant 0 : i32
    %c0_i32_1 = arith.constant 0 : i32
    return %c0_i32, %c0_i32_0 : i32, i32
  }
  func.func @transform_17(%arg0: i32) -> (i32, i32) {
    %c0_i32 = arith.constant 0 : i32
    %c0_i32_0 = arith.constant 0 : i32
    %c0_i32_1 = arith.constant 0 : i32
    return %c0_i32, %c0_i32_0 : i32, i32
  }
  func.func @transform_18(%arg0: i32) -> (i32, i32) {
    %c0_i32 = arith.constant 0 : i32
    %c0_i32_0 = arith.constant 0 : i32
    %c0_i32_1 = arith.constant 0 : i32
    return %c0_i32, %c0_i32_0 : i32, i32
  }
  func.func @transform_19(%arg0: i32) -> (i32, i32, i32) {
    %c0_i32 = arith.constant 0 : i32
    %c0_i32_0 = arith.constant 0 : i32
    %c0_i32_1 = arith.constant 0 : i32
    return %arg0, %c0_i32, %c0_i32_0 : i32, i32, i32
  }
}

</mosaic_0001>

<llo_original>
// kernel: tpu_custom_call.1
$region0: #{tpu_custom_call.1}
  #allocation0 [shape = 'u32[]', space=smem, size = 0x4, offset = 0x4, fixed_abs, tag = 'smem constant byte address 0x4 - core index']
  #allocation1 [shape = 'u32[144,128]{1,0:T(1,128)}', space=vmem, size = 0x12000, scoped, tag = 'internal scratch']
  #allocation2 [shape = 'bf16[288,384]{1,0:T(16,128)(2,1)}', space=vmem, size = 0x36000, scoped, tag = 'scratch operand']
  %s0 = inlined_call_operand.hbm [shape: bf16[2,256,128], index: 0, kind: input, shape index: {}]
  %s1 = inlined_call_operand.hbm [shape: bf16[128,128], index: 1, kind: input, shape index: {}]
  %s2 = inlined_call_operand.vmem [shape: f32[1,128], index: 2, kind: input, shape index: {}]
  %s3 = inlined_call_operand.vmem [shape: f32[1,128], index: 3, kind: input, shape index: {}]
  %s4 = inlined_call_operand.hbm [shape: bf16[2,128,128], index: 4, kind: input, shape index: {}]
  %s5 = inlined_call_operand.vmem [shape: f32[2,1,128], index: 5, kind: input, shape index: {}]
  %s6 = inlined_call_operand.vmem [shape: f32[2,1,128], index: 6, kind: input, shape index: {}]
  %s7 = inlined_call_operand.hbm [shape: bf16[6,384,128], index: 7, kind: input, shape index: {}]
  %s8 = inlined_call_operand.vmem [shape: f32[2,1,128], index: 8, kind: input, shape index: {}]
  %s9 = inlined_call_operand.vmem [shape: f32[2,1,128], index: 9, kind: input, shape index: {}]
  %s10 = inlined_call_operand.hbm [shape: bf16[128,128], index: 10, kind: input, shape index: {}]
  %s11 = inlined_call_operand.hbm [shape: bf16[128,128], index: 11, kind: input, shape index: {}]
  %s12 = inlined_call_operand.vmem [shape: f32[1,128], index: 12, kind: input, shape index: {}]
  %s13 = inlined_call_operand.vmem [shape: f32[1,128], index: 13, kind: input, shape index: {}]
  %s14 = inlined_call_operand.vmem [shape: f32[1,128], index: 14, kind: input, shape index: {}]
  %s15 = inlined_call_operand.vmem [shape: f32[1,128], index: 15, kind: input, shape index: {}]
  %s16 = inlined_call_operand.hbm [shape: bf16[256,128], index: 16, kind: input, shape index: {}]
  %s17 = inlined_call_operand.vmem [shape: f32[1,128], index: 17, kind: input, shape index: {}]
  %s18 = inlined_call_operand.vmem [shape: f32[1,128], index: 18, kind: input, shape index: {}]
  %s19 = inlined_call_operand.hbm [shape: f32[2,256,128], index: 19, kind: output, shape index: {}]
  %s20 = sld [smem:[#allocation0]]
  $region144: #{tpu_custom_call.1} parent=0
    _
  %s22 = ssub.s32 1, %s20
  %s23 = scalar_select 0, %s22, %s20
  $region1: #{tpu_custom_call.1} parent=0
    #allocation3 [shape = 'u8[131072]{0}', space=vmem, size = 0x20000, scoped, tag = 'input window, operand 0']
    #allocation4 [shape = 's32[2]{0}', space=sflag, size = 0x8, scoped, tag = 'scoped memory for tpu_custom_call.1']
    #allocation5 [shape = 's32[2]{0}', space=sflag, size = 0x8, scoped, tag = 'scoped memory for tpu_custom_call.1']
    #allocation6 [shape = 'u8[32768]{0}', space=vmem, size = 0x8000, scoped, tag = 'input window, operand 1, single buffered']
    #allocation7 [shape = 's32[1]{0}', space=sflag, size = 0x4, scoped, tag = 'scoped memory for tpu_custom_call.1']
    #allocation8 [shape = 'u8[65536]{0}', space=vmem, size = 0x10000, scoped, tag = 'input window, operand 4, single buffered']
    #allocation9 [shape = 'u8[589824]{0}', space=vmem, size = 0x90000, scoped, tag = 'input window, operand 7, single buffered']
    #allocation10 [shape = 's32[1]{0}', space=sflag, size = 0x4, scoped, tag = 'scoped memory for tpu_custom_call.1']
    #allocation11 [shape = 'u8[32768]{0}', space=vmem, size = 0x8000, scoped, tag = 'input window, operand 10, single buffered']
    #allocation12 [shape = 'u8[32768]{0}', space=vmem, size = 0x8000, scoped, tag = 'input window, operand 11, single buffered']
    #allocation13 [shape = 's32[1]{0}', space=sflag, size = 0x4, scoped, tag = 'scoped memory for tpu_custom_call.1']
    #allocation14 [shape = 'u8[65536]{0}', space=vmem, size = 0x10000, scoped, tag = 'input window, operand 16, single buffered']
    #allocation15 [shape = 'u8[262144]{0}', space=vmem, size = 0x40000, scoped, tag = 'output window, operand 0']
    %24 = vsyncpa [#allocation4], 0
    %s25 = scalar_lea.sflag [#allocation4], 1
    %26 = vsyncpa %s25, 0
    %27 = vsyncpa [#allocation7], 0
    %28 = vsyncpa [#allocation10], 0
    %29 = vsyncpa [#allocation13], 0
    %30 = vsyncpa [#allocation5], 0
    %s31 = scalar_lea.sflag [#allocation5], 1
    %32 = vsyncpa %s31, 0
    loop: start=0, step=1, limit=4
    $region2: #{tpu_custom_call.1} parent=1 // loop_pre_header
      _
    $region3: #{tpu_custom_call.1} parent=1 // loop_header
      %s34 = sphi 0, %s38
      %p35 = scmp.ge.s32.totalorder %s34, 4
      %s44 = sphi 0, %s46
      %s47 = sphi 0, %s44
      %s48 = sphi 0, %s47
      %s64 = sphi 0, %s48
      %s68 = sphi 0, %s68
      %s70 = sphi 0, %s68
      %s71 = sphi 0, %s70
      %s85 = sphi 0, %s71
      %s89 = sphi 0, %s89
      %s91 = sphi 0, %s89
      %s92 = sphi 0, %s91
      %s106 = sphi 0, %s92
      %s110 = sphi 0, %s110
      %s112 = sphi 0, %s110
      %s113 = sphi 0, %s112
      %s127 = sphi 0, %s113
      %s131 = sphi 0, %s131
      %s133 = sphi 0, %s131
      %s134 = sphi 0, %s133
      %s148 = sphi 0, %s134
      %s152 = sphi 0, %s152
      %s154 = sphi 0, %s152
      %s155 = sphi 0, %s154
      %s169 = sphi 0, %s155
      %s173 = sphi 0, %s173
      %s175 = sphi 0, %s173
      %s176 = sphi 0, %s175
      %s190 = sphi 0, %s176
      %s194 = sphi 0, %s194
      %s196 = sphi 0, %s194
      %s197 = sphi 0, %s196
      %s211 = sphi 0, %s197
      %s215 = sphi 0, %s215
      %s217 = sphi 0, %s215
      %s218 = sphi 0, %s217
      %s232 = sphi 0, %s218
      %s236 = sphi 0, %s236
      %s238 = sphi 0, %s236
      %s239 = sphi 0, %s238
      %s253 = sphi 0, %s239
      %s257 = sphi 0, %s257
      %s259 = sphi 0, %s257
      %s260 = sphi 0, %s259
      %s274 = sphi 0, %s260
      %s278 = sphi 0, %s278
      %s280 = sphi 0, %s278
      %s281 = sphi 0, %s280
      %s295 = sphi 0, %s281
      %s299 = sphi 0, %s299
      %s301 = sphi 0, %s299
      %s302 = sphi 0, %s301
      %s316 = sphi 0, %s302
      %s320 = sphi 0, %s320
      %s322 = sphi 0, %s320
      %s323 = sphi 0, %s322
      %s337 = sphi 0, %s323
      %s341 = sphi 0, %s341
      %s343 = sphi 0, %s341
      %s344 = sphi 0, %s343
      %s358 = sphi 0, %s344
      %s362 = sphi 0, %s362
      %s364 = sphi 0, %s362
      %s365 = sphi 0, %s364
      %s379 = sphi 0, %s365
      %s383 = sphi 0, %s383
      %s385 = sphi 0, %s383
      %s386 = sphi 0, %s385
      %s400 = sphi 0, %s386
      %s404 = sphi 0, %s404
      %s406 = sphi 0, %s404
      %s407 = sphi 0, %s406
      %s421 = sphi 0, %s407
      %s425 = sphi 0, %s425
      %s427 = sphi 0, %s425
      %s428 = sphi 0, %s427
      %s442 = sphi 0, %s428
      %s448 = sphi 0, %s450
      %s451 = sphi 0, %s448
      %s452 = sphi 0, %s451
      %s468 = sphi 0, %s452
    $region4: #{tpu_custom_call.1} parent=1 // loop_header_branch
      %37 = sbr.rel (%p35) target = $region8
    $region5: #{tpu_custom_call.1} parent=1 // loop_body
      %s39 = ssub.s32 %s34, 1
      %s40 = ssub.s32 %s34, 2
      %s41 = sadd.s32 %s34, 1
      %s42 = ssub.s32 %s34, %s41
      %p43 = scmp.eq.s32.totalorder %s42, 0
      %s45 = sadd.s32 %s44, 1
      %s46 = scalar_select %p43, %s44, %s45
      %p49 = pneg %p43
      %p50 = scmp.eq.s32.totalorder %s34, 1
      %p51 = por %p49, %p50
      %p52 = scmp.ne.s32.totalorder %s44, %s47
      %p53 = scmp.eq.s32.totalorder %s34, 0
      %p54 = por %p52, %p53
      %p55 = scmp.ne.s32.totalorder %s44, %s47
      %p56 = scmp.eq.s32.totalorder %s39, 1
      %p57 = por %p55, %p56
      %p58 = scmp.ne.s32.totalorder %s47, %s48
      %p59 = scmp.eq.s32.totalorder %s39, 0
      %p60 = por %p58, %p59
      %p61 = scmp.ne.s32.totalorder %s47, %s48
      %p62 = scmp.eq.s32.totalorder %s40, 1
      %p63 = por %p61, %p62
      %p65 = scmp.ne.s32.totalorder %s48, %s64
      %p66 = scmp.eq.s32.totalorder %s40, 0
      %p67 = por %p65, %p66
      %s69 = sadd.s32 %s68, 1
      %p72 = scmp.eq.s32.totalorder %s34, 1
      %p73 = scmp.ne.s32.totalorder %s68, %s70
      %p74 = scmp.eq.s32.totalorder %s34, 0
      %p75 = por %p73, %p74
      %p76 = scmp.ne.s32.totalorder %s68, %s70
      %p77 = scmp.eq.s32.totalorder %s39, 1
      %p78 = por %p76, %p77
      %p79 = scmp.ne.s32.totalorder %s70, %s71
      %p80 = scmp.eq.s32.totalorder %s39, 0
      %p81 = por %p79, %p80
      %p82 = scmp.ne.s32.totalorder %s70, %s71
      %p83 = scmp.eq.s32.totalorder %s40, 1
      %p84 = por %p82, %p83
      %p86 = scmp.ne.s32.totalorder %s71, %s85
      %p87 = scmp.eq.s32.totalorder %s40, 0
      %p88 = por %p86, %p87
      %s90 = sadd.s32 %s89, 1
      %p93 = scmp.eq.s32.totalorder %s34, 1
      %p94 = scmp.ne.s32.totalorder %s89, %s91
      %p95 = scmp.eq.s32.totalorder %s34, 0
      %p96 = por %p94, %p95
      %p97 = scmp.ne.s32.totalorder %s89, %s91
      %p98 = scmp.eq.s32.totalorder %s39, 1
      %p99 = por %p97, %p98
      %p100 = scmp.ne.s32.totalorder %s91, %s92
      %p101 = scmp.eq.s32.totalorder %s39, 0
      %p102 = por %p100, %p101
      %p103 = scmp.ne.s32.totalorder %s91, %s92
      %p104 = scmp.eq.s32.totalorder %s40, 1
      %p105 = por %p103, %p104
      %p107 = scmp.ne.s32.totalorder %s92, %s106
      %p108 = scmp.eq.s32.totalorder %s40, 0
      %p109 = por %p107, %p108
      %s111 = sadd.s32 %s110, 1
      %p114 = scmp.eq.s32.totalorder %s34, 1
      %p115 = scmp.ne.s32.totalorder %s110, %s112
      %p116 = scmp.eq.s32.totalorder %s34, 0
      %p117 = por %p115, %p116
      %p118 = scmp.ne.s32.totalorder %s110, %s112
      %p119 = scmp.eq.s32.totalorder %s39, 1
      %p120 = por %p118, %p119
      %p121 = scmp.ne.s32.totalorder %s112, %s113
      %p122 = scmp.eq.s32.totalorder %s39, 0
      %p123 = por %p121, %p122
      %p124 = scmp.ne.s32.totalorder %s112, %s113
      %p125 = scmp.eq.s32.totalorder %s40, 1
      %p126 = por %p124, %p125
      %p128 = scmp.ne.s32.totalorder %s113, %s127
      %p129 = scmp.eq.s32.totalorder %s40, 0
      %p130 = por %p128, %p129
      %s132 = sadd.s32 %s131, 1
      %p135 = scmp.eq.s32.totalorder %s34, 1
      %p136 = scmp.ne.s32.totalorder %s131, %s133
      %p137 = scmp.eq.s32.totalorder %s34, 0
      %p138 = por %p136, %p137
      %p139 = scmp.ne.s32.totalorder %s131, %s133
      %p140 = scmp.eq.s32.totalorder %s39, 1
      %p141 = por %p139, %p140
      %p142 = scmp.ne.s32.totalorder %s133, %s134
      %p143 = scmp.eq.s32.totalorder %s39, 0
      %p144 = por %p142, %p143
      %p145 = scmp.ne.s32.totalorder %s133, %s134
      %p146 = scmp.eq.s32.totalorder %s40, 1
      %p147 = por %p145, %p146
      %p149 = scmp.ne.s32.totalorder %s134, %s148
      %p150 = scmp.eq.s32.totalorder %s40, 0
      %p151 = por %p149, %p150
      %s153 = sadd.s32 %s152, 1
      %p156 = scmp.eq.s32.totalorder %s34, 1
      %p157 = scmp.ne.s32.totalorder %s152, %s154
      %p158 = scmp.eq.s32.totalorder %s34, 0
      %p159 = por %p157, %p158
      %p160 = scmp.ne.s32.totalorder %s152, %s154
      %p161 = scmp.eq.s32.totalorder %s39, 1
      %p162 = por %p160, %p161
      %p163 = scmp.ne.s32.totalorder %s154, %s155
      %p164 = scmp.eq.s32.totalorder %s39, 0
      %p165 = por %p163, %p164
      %p166 = scmp.ne.s32.totalorder %s154, %s155
      %p167 = scmp.eq.s32.totalorder %s40, 1
      %p168 = por %p166, %p167
      %p170 = scmp.ne.s32.totalorder %s155, %s169
      %p171 = scmp.eq.s32.totalorder %s40, 0
      %p172 = por %p170, %p171
      %s174 = sadd.s32 %s173, 1
      %p177 = scmp.eq.s32.totalorder %s34, 1
      %p178 = scmp.ne.s32.totalorder %s173, %s175
      %p179 = scmp.eq.s32.totalorder %s34, 0
      %p180 = por %p178, %p179
      %p181 = scmp.ne.s32.totalorder %s173, %s175
      %p182 = scmp.eq.s32.totalorder %s39, 1
      %p183 = por %p181, %p182
      %p184 = scmp.ne.s32.totalorder %s175, %s176
      %p185 = scmp.eq.s32.totalorder %s39, 0
      %p186 = por %p184, %p185
      %p187 = scmp.ne.s32.totalorder %s175, %s176
      %p188 = scmp.eq.s32.totalorder %s40, 1
      %p189 = por %p187, %p188
      %p191 = scmp.ne.s32.totalorder %s176, %s190
      %p192 = scmp.eq.s32.totalorder %s40, 0
      %p193 = por %p191, %p192
      %s195 = sadd.s32 %s194, 1
      %p198 = scmp.eq.s32.totalorder %s34, 1
      %p199 = scmp.ne.s32.totalorder %s194, %s196
      %p200 = scmp.eq.s32.totalorder %s34, 0
      %p201 = por %p199, %p200
      %p202 = scmp.ne.s32.totalorder %s194, %s196
      %p203 = scmp.eq.s32.totalorder %s39, 1
      %p204 = por %p202, %p203
      %p205 = scmp.ne.s32.totalorder %s196, %s197
      %p206 = scmp.eq.s32.totalorder %s39, 0
      %p207 = por %p205, %p206
      %p208 = scmp.ne.s32.totalorder %s196, %s197
      %p209 = scmp.eq.s32.totalorder %s40, 1
      %p210 = por %p208, %p209
      %p212 = scmp.ne.s32.totalorder %s197, %s211
      %p213 = scmp.eq.s32.totalorder %s40, 0
      %p214 = por %p212, %p213
      %s216 = sadd.s32 %s215, 1
      %p219 = scmp.eq.s32.totalorder %s34, 1
      %p220 = scmp.ne.s32.totalorder %s215, %s217
      %p221 = scmp.eq.s32.totalorder %s34, 0
      %p222 = por %p220, %p221
      %p223 = scmp.ne.s32.totalorder %s215, %s217
      %p224 = scmp.eq.s32.totalorder %s39, 1
      %p225 = por %p223, %p224
      %p226 = scmp.ne.s32.totalorder %s217, %s218
      %p227 = scmp.eq.s32.totalorder %s39, 0
      %p228 = por %p226, %p227
      %p229 = scmp.ne.s32.totalorder %s217, %s218
      %p230 = scmp.eq.s32.totalorder %s40, 1
      %p231 = por %p229, %p230
      %p233 = scmp.ne.s32.totalorder %s218, %s232
      %p234 = scmp.eq.s32.totalorder %s40, 0
      %p235 = por %p233, %p234
      %s237 = sadd.s32 %s236, 1
      %p240 = scmp.eq.s32.totalorder %s34, 1
      %p241 = scmp.ne.s32.totalorder %s236, %s238
      %p242 = scmp.eq.s32.totalorder %s34, 0
      %p243 = por %p241, %p242
      %p244 = scmp.ne.s32.totalorder %s236, %s238
      %p245 = scmp.eq.s32.totalorder %s39, 1
      %p246 = por %p244, %p245
      %p247 = scmp.ne.s32.totalorder %s238, %s239
      %p248 = scmp.eq.s32.totalorder %s39, 0
      %p249 = por %p247, %p248
      %p250 = scmp.ne.s32.totalorder %s238, %s239
      %p251 = scmp.eq.s32.totalorder %s40, 1
      %p252 = por %p250, %p251
      %p254 = scmp.ne.s32.totalorder %s239, %s253
      %p255 = scmp.eq.s32.totalorder %s40, 0
      %p256 = por %p254, %p255
      %s258 = sadd.s32 %s257, 1
      %p261 = scmp.eq.s32.totalorder %s34, 1
      %p262 = scmp.ne.s32.totalorder %s257, %s259
      %p263 = scmp.eq.s32.totalorder %s34, 0
      %p264 = por %p262, %p263
      %p265 = scmp.ne.s32.totalorder %s257, %s259
      %p266 = scmp.eq.s32.totalorder %s39, 1
      %p267 = por %p265, %p266
      %p268 = scmp.ne.s32.totalorder %s259, %s260
      %p269 = scmp.eq.s32.totalorder %s39, 0
      %p270 = por %p268, %p269
      %p271 = scmp.ne.s32.totalorder %s259, %s260
      %p272 = scmp.eq.s32.totalorder %s40, 1
      %p273 = por %p271, %p272
      %p275 = scmp.ne.s32.totalorder %s260, %s274
      %p276 = scmp.eq.s32.totalorder %s40, 0
      %p277 = por %p275, %p276
      %s279 = sadd.s32 %s278, 1
      %p282 = scmp.eq.s32.totalorder %s34, 1
      %p283 = scmp.ne.s32.totalorder %s278, %s280
      %p284 = scmp.eq.s32.totalorder %s34, 0
      %p285 = por %p283, %p284
      %p286 = scmp.ne.s32.totalorder %s278, %s280
      %p287 = scmp.eq.s32.totalorder %s39, 1
      %p288 = por %p286, %p287
      %p289 = scmp.ne.s32.totalorder %s280, %s281
      %p290 = scmp.eq.s32.totalorder %s39, 0
      %p291 = por %p289, %p290
      %p292 = scmp.ne.s32.totalorder %s280, %s281
      %p293 = scmp.eq.s32.totalorder %s40, 1
      %p294 = por %p292, %p293
      %p296 = scmp.ne.s32.totalorder %s281, %s295
      %p297 = scmp.eq.s32.totalorder %s40, 0
      %p298 = por %p296, %p297
      %s300 = sadd.s32 %s299, 1
      %p303 = scmp.eq.s32.totalorder %s34, 1
      %p304 = scmp.ne.s32.totalorder %s299, %s301
      %p305 = scmp.eq.s32.totalorder %s34, 0
      %p306 = por %p304, %p305
      %p307 = scmp.ne.s32.totalorder %s299, %s301
      %p308 = scmp.eq.s32.totalorder %s39, 1
      %p309 = por %p307, %p308
      %p310 = scmp.ne.s32.totalorder %s301, %s302
      %p311 = scmp.eq.s32.totalorder %s39, 0
      %p312 = por %p310, %p311
      %p313 = scmp.ne.s32.totalorder %s301, %s302
      %p314 = scmp.eq.s32.totalorder %s40, 1
      %p315 = por %p313, %p314
      %p317 = scmp.ne.s32.totalorder %s302, %s316
      %p318 = scmp.eq.s32.totalorder %s40, 0
      %p319 = por %p317, %p318
      %s321 = sadd.s32 %s320, 1
      %p324 = scmp.eq.s32.totalorder %s34, 1
      %p325 = scmp.ne.s32.totalorder %s320, %s322
      %p326 = scmp.eq.s32.totalorder %s34, 0
      %p327 = por %p325, %p326
      %p328 = scmp.ne.s32.totalorder %s320, %s322
      %p329 = scmp.eq.s32.totalorder %s39, 1
      %p330 = por %p328, %p329
      %p331 = scmp.ne.s32.totalorder %s322, %s323
      %p332 = scmp.eq.s32.totalorder %s39, 0
      %p333 = por %p331, %p332
      %p334 = scmp.ne.s32.totalorder %s322, %s323
      %p335 = scmp.eq.s32.totalorder %s40, 1
      %p336 = por %p334, %p335
      %p338 = scmp.ne.s32.totalorder %s323, %s337
      %p339 = scmp.eq.s32.totalorder %s40, 0
      %p340 = por %p338, %p339
      %s342 = sadd.s32 %s341, 1
      %p345 = scmp.eq.s32.totalorder %s34, 1
      %p346 = scmp.ne.s32.totalorder %s341, %s343
      %p347 = scmp.eq.s32.totalorder %s34, 0
      %p348 = por %p346, %p347
      %p349 = scmp.ne.s32.totalorder %s341, %s343
      %p350 = scmp.eq.s32.totalorder %s39, 1
      %p351 = por %p349, %p350
      %p352 = scmp.ne.s32.totalorder %s343, %s344
      %p353 = scmp.eq.s32.totalorder %s39, 0
      %p354 = por %p352, %p353
      %p355 = scmp.ne.s32.totalorder %s343, %s344
      %p356 = scmp.eq.s32.totalorder %s40, 1
      %p357 = por %p355, %p356
      %p359 = scmp.ne.s32.totalorder %s344, %s358
      %p360 = scmp.eq.s32.totalorder %s40, 0
      %p361 = por %p359, %p360
      %s363 = sadd.s32 %s362, 1
      %p366 = scmp.eq.s32.totalorder %s34, 1
      %p367 = scmp.ne.s32.totalorder %s362, %s364
      %p368 = scmp.eq.s32.totalorder %s34, 0
      %p369 = por %p367, %p368
      %p370 = scmp.ne.s32.totalorder %s362, %s364
      %p371 = scmp.eq.s32.totalorder %s39, 1
      %p372 = por %p370, %p371
      %p373 = scmp.ne.s32.totalorder %s364, %s365
      %p374 = scmp.eq.s32.totalorder %s39, 0
      %p375 = por %p373, %p374
      %p376 = scmp.ne.s32.totalorder %s364, %s365
      %p377 = scmp.eq.s32.totalorder %s40, 1
      %p378 = por %p376, %p377
      %p380 = scmp.ne.s32.totalorder %s365, %s379
      %p381 = scmp.eq.s32.totalorder %s40, 0
      %p382 = por %p380, %p381
      %s384 = sadd.s32 %s383, 1
      %p387 = scmp.eq.s32.totalorder %s34, 1
      %p388 = scmp.ne.s32.totalorder %s383, %s385
      %p389 = scmp.eq.s32.totalorder %s34, 0
      %p390 = por %p388, %p389
      %p391 = scmp.ne.s32.totalorder %s383, %s385
      %p392 = scmp.eq.s32.totalorder %s39, 1
      %p393 = por %p391, %p392
      %p394 = scmp.ne.s32.totalorder %s385, %s386
      %p395 = scmp.eq.s32.totalorder %s39, 0
      %p396 = por %p394, %p395
      %p397 = scmp.ne.s32.totalorder %s385, %s386
      %p398 = scmp.eq.s32.totalorder %s40, 1
      %p399 = por %p397, %p398
      %p401 = scmp.ne.s32.totalorder %s386, %s400
      %p402 = scmp.eq.s32.totalorder %s40, 0
      %p403 = por %p401, %p402
      %s405 = sadd.s32 %s404, 1
      %p408 = scmp.eq.s32.totalorder %s34, 1
      %p409 = scmp.ne.s32.totalorder %s404, %s406
      %p410 = scmp.eq.s32.totalorder %s34, 0
      %p411 = por %p409, %p410
      %p412 = scmp.ne.s32.totalorder %s404, %s406
      %p413 = scmp.eq.s32.totalorder %s39, 1
      %p414 = por %p412, %p413
      %p415 = scmp.ne.s32.totalorder %s406, %s407
      %p416 = scmp.eq.s32.totalorder %s39, 0
      %p417 = por %p415, %p416
      %p418 = scmp.ne.s32.totalorder %s406, %s407
      %p419 = scmp.eq.s32.totalorder %s40, 1
      %p420 = por %p418, %p419
      %p422 = scmp.ne.s32.totalorder %s407, %s421
      %p423 = scmp.eq.s32.totalorder %s40, 0
      %p424 = por %p422, %p423
      %s426 = sadd.s32 %s425, 1
      %p429 = scmp.eq.s32.totalorder %s34, 1
      %p430 = scmp.ne.s32.totalorder %s425, %s427
      %p431 = scmp.eq.s32.totalorder %s34, 0
      %p432 = por %p430, %p431
      %p433 = scmp.ne.s32.totalorder %s425, %s427
      %p434 = scmp.eq.s32.totalorder %s39, 1
      %p435 = por %p433, %p434
      %p436 = scmp.ne.s32.totalorder %s427, %s428
      %p437 = scmp.eq.s32.totalorder %s39, 0
      %p438 = por %p436, %p437
      %p439 = scmp.ne.s32.totalorder %s427, %s428
      %p440 = scmp.eq.s32.totalorder %s40, 1
      %p441 = por %p439, %p440
      %p443 = scmp.ne.s32.totalorder %s428, %s442
      %p444 = scmp.eq.s32.totalorder %s40, 0
      %p445 = por %p443, %p444
      %s446 = ssub.s32 %s34, %s41
      %p447 = scmp.eq.s32.totalorder %s446, 0
      %s449 = sadd.s32 %s448, 1
      %s450 = scalar_select %p447, %s448, %s449
      %p453 = pneg %p447
      %p454 = scmp.eq.s32.totalorder %s34, 1
      %p455 = por %p453, %p454
      %p456 = scmp.ne.s32.totalorder %s448, %s451
      %p457 = scmp.eq.s32.totalorder %s34, 0
      %p458 = por %p456, %p457
      %p459 = scmp.ne.s32.totalorder %s448, %s451
      %p460 = scmp.eq.s32.totalorder %s39, 1
      %p461 = por %p459, %p460
      %p462 = scmp.ne.s32.totalorder %s451, %s452
      %p463 = scmp.eq.s32.totalorder %s39, 0
      %p464 = por %p462, %p463
      %p465 = scmp.ne.s32.totalorder %s451, %s452
      %p466 = scmp.eq.s32.totalorder %s40, 1
      %p467 = por %p465, %p466
      %p469 = scmp.ne.s32.totalorder %s452, %s468
      %p470 = scmp.eq.s32.totalorder %s40, 0
      %p471 = por %p469, %p470
      %p472 = scmp.le.s32.totalorder 1, %s34
      %p473 = scmp.lt.s32.totalorder %s34, 3
      %p474 = pnand %p472, %p473
      %p475 = pneg %p474
      // Predicated region
      $region9: #{tpu_custom_call.1} parent=5 // pred_check
        _
      $region10: #{tpu_custom_call.1} parent=5 // pred_check_branch
        %477 = sbr.rel (%p474) target = $region12
      $region11: #{tpu_custom_call.1} parent=5 // pred_region
        %s478 = ssub.s32 %s34, 1
        // Predicated region
        $region13: #{tpu_custom_call.1} parent=11 // pred_check
          %p479 = pneg %p81
        $region14: #{tpu_custom_call.1} parent=11 // pred_check_branch
          %481 = sbr.rel (%p479) target = $region16
        $region15: #{tpu_custom_call.1} parent=11 // pred_region
          %s483 = ssub.s32 1024, 1024
          %484 = vsyncadd [#allocation7], %s483
          %s485 = sshll.u32 [#allocation6], 4
          %s486 = int_to_ptr.vmem [resolvable:$true] %s485
          %491 = dma.hbm_to_vmem [thread:$0]  %s1, 1024, %s486, [#allocation7], 64, 64, 4
        $region16: #{tpu_custom_call.1} parent=11 // pred_fallthru
          _
        // Predicated region
        $region17: #{tpu_custom_call.1} parent=11 // pred_check
          %p492 = pneg %p102
        $region18: #{tpu_custom_call.1} parent=11 // pred_check_branch
          %494 = sbr.rel (%p492) target = $region20
        $region19: #{tpu_custom_call.1} parent=11 // pred_region
          _
        $region20: #{tpu_custom_call.1} parent=11 // pred_fallthru
          _
        // Predicated region
        $region21: #{tpu_custom_call.1} parent=11 // pred_check
          %p495 = pneg %p123
        $region22: #{tpu_custom_call.1} parent=11 // pred_check_branch
          %497 = sbr.rel (%p495) target = $region24
        $region23: #{tpu_custom_call.1} parent=11 // pred_region
          _
        $region24: #{tpu_custom_call.1} parent=11 // pred_fallthru
          _
        // Predicated region
        $region25: #{tpu_custom_call.1} parent=11 // pred_check
          %p498 = pneg %p144
        $region26: #{tpu_custom_call.1} parent=11 // pred_check_branch
          %500 = sbr.rel (%p498) target = $region28
        $region27: #{tpu_custom_call.1} parent=11 // pred_region
          %s502 = ssub.s32 2048, 2048
          %503 = vsyncadd [#allocation7], %s502
          %s504 = sshll.u32 [#allocation8], 4
          %s505 = int_to_ptr.vmem [resolvable:$true] %s504
          %510 = dma.hbm_to_vmem [thread:$0]  %s4, 2048, %s505, [#allocation7], 64, 64, 4
        $region28: #{tpu_custom_call.1} parent=11 // pred_fallthru
          _
        // Predicated region
        $region29: #{tpu_custom_call.1} parent=11 // pred_check
          %p511 = pneg %p165
        $region30: #{tpu_custom_call.1} parent=11 // pred_check_branch
          %513 = sbr.rel (%p511) target = $region32
        $region31: #{tpu_custom_call.1} parent=11 // pred_region
          _
        $region32: #{tpu_custom_call.1} parent=11 // pred_fallthru
          _
        // Predicated region
        $region33: #{tpu_custom_call.1} parent=11 // pred_check
          %p514 = pneg %p186
        $region34: #{tpu_custom_call.1} parent=11 // pred_check_branch
          %516 = sbr.rel (%p514) target = $region36
        $region35: #{tpu_custom_call.1} parent=11 // pred_region
          _
        $region36: #{tpu_custom_call.1} parent=11 // pred_fallthru
          _
        // Predicated region
        $region37: #{tpu_custom_call.1} parent=11 // pred_check
          %p517 = pneg %p207
        $region38: #{tpu_custom_call.1} parent=11 // pred_check_branch
          %519 = sbr.rel (%p517) target = $region40
        $region39: #{tpu_custom_call.1} parent=11 // pred_region
          %s521 = ssub.s32 18432, 18432
          %522 = vsyncadd [#allocation10], %s521
          %s523 = sshll.u32 [#allocation9], 4
          %s524 = int_to_ptr.vmem [resolvable:$true] %s523
          %529 = dma.hbm_to_vmem [thread:$0]  %s7, 18432, %s524, [#allocation10], 64, 64, 4
        $region40: #{tpu_custom_call.1} parent=11 // pred_fallthru
          _
        // Predicated region
        $region41: #{tpu_custom_call.1} parent=11 // pred_check
          %p530 = pneg %p228
        $region42: #{tpu_custom_call.1} parent=11 // pred_check_branch
          %532 = sbr.rel (%p530) target = $region44
        $region43: #{tpu_custom_call.1} parent=11 // pred_region
          _
        $region44: #{tpu_custom_call.1} parent=11 // pred_fallthru
          _
        // Predicated region
        $region45: #{tpu_custom_call.1} parent=11 // pred_check
          %p533 = pneg %p249
        $region46: #{tpu_custom_call.1} parent=11 // pred_check_branch
          %535 = sbr.rel (%p533) target = $region48
        $region47: #{tpu_custom_call.1} parent=11 // pred_region
          _
        $region48: #{tpu_custom_call.1} parent=11 // pred_fallthru
          _
        // Predicated region
        $region49: #{tpu_custom_call.1} parent=11 // pred_check
          %p536 = pneg %p270
        $region50: #{tpu_custom_call.1} parent=11 // pred_check_branch
          %538 = sbr.rel (%p536) target = $region52
        $region51: #{tpu_custom_call.1} parent=11 // pred_region
          %s540 = ssub.s32 1024, 1024
          %541 = vsyncadd [#allocation10], %s540
          %s542 = sshll.u32 [#allocation11], 4
          %s543 = int_to_ptr.vmem [resolvable:$true] %s542
          %548 = dma.hbm_to_vmem [thread:$0]  %s10, 1024, %s543, [#allocation10], 64, 64, 4
        $region52: #{tpu_custom_call.1} parent=11 // pred_fallthru
          _
        // Predicated region
        $region53: #{tpu_custom_call.1} parent=11 // pred_check
          %p549 = pneg %p291
        $region54: #{tpu_custom_call.1} parent=11 // pred_check_branch
          %551 = sbr.rel (%p549) target = $region56
        $region55: #{tpu_custom_call.1} parent=11 // pred_region
          %s553 = ssub.s32 1024, 1024
          %554 = vsyncadd [#allocation13], %s553
          %s555 = sshll.u32 [#allocation12], 4
          %s556 = int_to_ptr.vmem [resolvable:$true] %s555
          %561 = dma.hbm_to_vmem [thread:$0]  %s11, 1024, %s556, [#allocation13], 64, 64, 4
        $region56: #{tpu_custom_call.1} parent=11 // pred_fallthru
          _
        // Predicated region
        $region57: #{tpu_custom_call.1} parent=11 // pred_check
          %p562 = pneg %p312
        $region58: #{tpu_custom_call.1} parent=11 // pred_check_branch
          %564 = sbr.rel (%p562) target = $region60
        $region59: #{tpu_custom_call.1} parent=11 // pred_region
          _
        $region60: #{tpu_custom_call.1} parent=11 // pred_fallthru
          _
        // Predicated region
        $region61: #{tpu_custom_call.1} parent=11 // pred_check
          %p565 = pneg %p333
        $region62: #{tpu_custom_call.1} parent=11 // pred_check_branch
          %567 = sbr.rel (%p565) target = $region64
        $region63: #{tpu_custom_call.1} parent=11 // pred_region
          _
        $region64: #{tpu_custom_call.1} parent=11 // pred_fallthru
          _
        // Predicated region
        $region65: #{tpu_custom_call.1} parent=11 // pred_check
          %p568 = pneg %p354
        $region66: #{tpu_custom_call.1} parent=11 // pred_check_branch
          %570 = sbr.rel (%p568) target = $region68
        $region67: #{tpu_custom_call.1} parent=11 // pred_region
          _
        $region68: #{tpu_custom_call.1} parent=11 // pred_fallthru
          _
        // Predicated region
        $region69: #{tpu_custom_call.1} parent=11 // pred_check
          %p571 = pneg %p375
        $region70: #{tpu_custom_call.1} parent=11 // pred_check_branch
          %573 = sbr.rel (%p571) target = $region72
        $region71: #{tpu_custom_call.1} parent=11 // pred_region
          _
        $region72: #{tpu_custom_call.1} parent=11 // pred_fallthru
          _
        // Predicated region
        $region73: #{tpu_custom_call.1} parent=11 // pred_check
          %p574 = pneg %p396
        $region74: #{tpu_custom_call.1} parent=11 // pred_check_branch
          %576 = sbr.rel (%p574) target = $region76
        $region75: #{tpu_custom_call.1} parent=11 // pred_region
          %s578 = ssub.s32 2048, 2048
          %579 = vsyncadd [#allocation13], %s578
          %s580 = sshll.u32 [#allocation14], 4
          %s581 = int_to_ptr.vmem [resolvable:$true] %s580
          %586 = dma.hbm_to_vmem [thread:$0]  %s16, 2048, %s581, [#allocation13], 64, 64, 4
        $region76: #{tpu_custom_call.1} parent=11 // pred_fallthru
          _
        // Predicated region
        $region77: #{tpu_custom_call.1} parent=11 // pred_check
          %p587 = pneg %p417
        $region78: #{tpu_custom_call.1} parent=11 // pred_check_branch
          %589 = sbr.rel (%p587) target = $region80
        $region79: #{tpu_custom_call.1} parent=11 // pred_region
          _
        $region80: #{tpu_custom_call.1} parent=11 // pred_fallthru
          _
        // Predicated region
        $region81: #{tpu_custom_call.1} parent=11 // pred_check
          %p590 = pneg %p438
        $region82: #{tpu_custom_call.1} parent=11 // pred_check_branch
          %592 = sbr.rel (%p590) target = $region84
        $region83: #{tpu_custom_call.1} parent=11 // pred_region
          _
        $region84: #{tpu_custom_call.1} parent=11 // pred_fallthru
          _
      $region12: #{tpu_custom_call.1} parent=5 // pred_fallthru
        _
      %p593 = scmp.lt.s32.totalorder %s34, 2
      // Predicated region
      $region85: #{tpu_custom_call.1} parent=5 // pred_check
        %p594 = pneg %p593
      $region86: #{tpu_custom_call.1} parent=5 // pred_check_branch
        %596 = sbr.rel (%p594) target = $region88
      $region87: #{tpu_custom_call.1} parent=5 // pred_region
        // Predicated region
        $region89: #{tpu_custom_call.1} parent=87 // pred_check
          %p597 = pneg %p54
        $region90: #{tpu_custom_call.1} parent=87 // pred_check_branch
          %599 = sbr.rel (%p597) target = $region92
        $region91: #{tpu_custom_call.1} parent=87 // pred_region
          %s600 = sand.u32 %s44, 1
          %s601 = scalar_lea.sflag [#allocation4], %s600
          %s602 = sand.u32 %s44, 1
          %s603 = smul.addr %s602, 128
          %s604 = scalar_lea.vmem [#allocation3], %s603
          %s606 = ssub.s32 2048, 2048
          %607 = vsyncadd %s601, %s606
          %s608 = smul.addr %s34, 32
          %s609 = smul.addr %s608, 64
          %s610 = scalar_lea.hbm %s0, %s609
          %s611 = sshll.u32 %s604, 4
          %s612 = int_to_ptr.vmem [resolvable:$true] %s611
          %617 = dma.hbm_to_vmem [thread:$0]  %s610, 2048, %s612, %s601, 64, 64, 4
        $region92: #{tpu_custom_call.1} parent=87 // pred_fallthru
          _
      $region88: #{tpu_custom_call.1} parent=5 // pred_fallthru
        _
      %p618 = scmp.le.s32.totalorder 1, %s34
      %p619 = scmp.lt.s32.totalorder %s34, 3
      %p620 = pnand %p618, %p619
      %p621 = pneg %p620
      // Predicated region
      $region93: #{tpu_custom_call.1} parent=5 // pred_check
        _
      $region94: #{tpu_custom_call.1} parent=5 // pred_check_branch
        %623 = sbr.rel (%p620) target = $region96
      $region95: #{tpu_custom_call.1} parent=5 // pred_region
        %s624 = ssub.s32 %s34, 1
        %s625 = sand.u32 %s47, 1
        %s626 = scalar_lea.sflag [#allocation4], %s625
        %s627 = sand.u32 %s47, 1
        %s628 = smul.addr %s627, 128
        %s629 = scalar_lea.vmem [#allocation3], %s628
        // Predicated region
        $region97: #{tpu_custom_call.1} parent=95 // pred_check
          %p630 = pneg %p60
        $region98: #{tpu_custom_call.1} parent=95 // pred_check_branch
          %632 = sbr.rel (%p630) target = $region100
        $region99: #{tpu_custom_call.1} parent=95 // pred_region
          %633 = dma.done %s626, 2048
        $region100: #{tpu_custom_call.1} parent=95 // pred_fallthru
          _
        // Predicated region
        $region101: #{tpu_custom_call.1} parent=95 // pred_check
          %p634 = pneg %p81
        $region102: #{tpu_custom_call.1} parent=95 // pred_check_branch
          %636 = sbr.rel (%p634) target = $region104
        $region103: #{tpu_custom_call.1} parent=95 // pred_region
          %637 = dma.done [#allocation7], 1024
        $region104: #{tpu_custom_call.1} parent=95 // pred_fallthru
          _
        // Predicated region
        $region105: #{tpu_custom_call.1} parent=95 // pred_check
          %p638 = pneg %p144
        $region106: #{tpu_custom_call.1} parent=95 // pred_check_branch
          %640 = sbr.rel (%p638) target = $region108
        $region107: #{tpu_custom_call.1} parent=95 // pred_region
          %641 = dma.done [#allocation7], 2048
        $region108: #{tpu_custom_call.1} parent=95 // pred_fallthru
          _
        // Predicated region
        $region109: #{tpu_custom_call.1} parent=95 // pred_check
          %p642 = pneg %p207
        $region110: #{tpu_custom_call.1} parent=95 // pred_check_branch
          %644 = sbr.rel (%p642) target = $region112
        $region111: #{tpu_custom_call.1} parent=95 // pred_region
          %645 = dma.done [#allocation10], 18432
        $region112: #{tpu_custom_call.1} parent=95 // pred_fallthru
          _
        // Predicated region
        $region113: #{tpu_custom_call.1} parent=95 // pred_check
          %p646 = pneg %p270
        $region114: #{tpu_custom_call.1} parent=95 // pred_check_branch
          %648 = sbr.rel (%p646) target = $region116
        $region115: #{tpu_custom_call.1} parent=95 // pred_region
          %649 = dma.done [#allocation10], 1024
        $region116: #{tpu_custom_call.1} parent=95 // pred_fallthru
          _
        // Predicated region
        $region117: #{tpu_custom_call.1} parent=95 // pred_check
          %p650 = pneg %p291
        $region118: #{tpu_custom_call.1} parent=95 // pred_check_branch
          %652 = sbr.rel (%p650) target = $region120
        $region119: #{tpu_custom_call.1} parent=95 // pred_region
          %653 = dma.done [#allocation13], 1024
        $region120: #{tpu_custom_call.1} parent=95 // pred_fallthru
          _
        // Predicated region
        $region121: #{tpu_custom_call.1} parent=95 // pred_check
          %p654 = pneg %p396
        $region122: #{tpu_custom_call.1} parent=95 // pred_check_branch
          %656 = sbr.rel (%p654) target = $region124
        $region123: #{tpu_custom_call.1} parent=95 // pred_region
          %657 = dma.done [#allocation13], 2048
        $region124: #{tpu_custom_call.1} parent=95 // pred_fallthru
          _
        %s658 = sand.u32 %s47, 1
        %s659 = scalar_lea.sflag [#allocation4], %s658
        %s660 = sand.u32 %s47, 1
        %s661 = smul.addr %s660, 128
        %s662 = scalar_lea.vmem [#allocation3], %s661
        %p663 = pneg %p60
        %p664 = pneg %p57
        %p665 = pneg %p81
        %p666 = pneg %p78
        %p667 = pneg %p102
        %p668 = pneg %p99
        %p669 = pneg %p123
        %p670 = pneg %p120
        %p671 = pneg %p144
        %p672 = pneg %p141
        %p673 = pneg %p165
        %p674 = pneg %p162
        %p675 = pneg %p186
        %p676 = pneg %p183
        %p677 = pneg %p207
        %p678 = pneg %p204
        %p679 = pneg %p228
        %p680 = pneg %p225
        %p681 = pneg %p249
        %p682 = pneg %p246
        %p683 = pneg %p270
        %p684 = pneg %p267
        %p685 = pneg %p291
        %p686 = pneg %p288
        %p687 = pneg %p312
        %p688 = pneg %p309
        %p689 = pneg %p333
        %p690 = pneg %p330
        %p691 = pneg %p354
        %p692 = pneg %p351
        %p693 = pneg %p375
        %p694 = pneg %p372
        %p695 = pneg %p396
        %p696 = pneg %p393
        %p697 = pneg %p417
        %p698 = pneg %p414
        %p699 = pneg %p438
        %p700 = pneg %p435
        %p701 = pneg %p464
        %p702 = pneg %p461
        %s703 = sand.u32 %s451, 1
        %s704 = scalar_lea.sflag [#allocation5], %s703
        %s705 = sand.u32 %s451, 1
        %s706 = smul.addr %s705, 256
        %s707 = scalar_lea.vmem [#allocation15], %s706
        %709 = vst [vmem:[#allocation2] sm:$0xff] 0
        %710 = vst [vmem:[#allocation2 + $0x8] sm:$0xff] 0
        %711 = vst [vmem:[#allocation2 + $0x10] sm:$0xff] 0
        %vm712 = vcmask 1040384
        %vm713 = vsmask.f32 256
        %vm714 = vmand %vm712, %vm713
        %v715 = vld [vmem:[#allocation2 + $0x18] sm:$0x1]
        %v716 = vsel %vm714, 0, %v715
        %717 = vst [vmem:[#allocation2 + $0x18] sm:$0x1] %v716
        %v718 = vld [vmem:[#allocation2 + $0x20] sm:$0x1]
        %v719 = vsel %vm714, 0, %v718
        %720 = vst [vmem:[#allocation2 + $0x20] sm:$0x1] %v719
        %v721 = vld [vmem:[#allocation2 + $0x28] sm:$0x1]
        %v722 = vsel %vm714, 0, %v721
        %723 = vst [vmem:[#allocation2 + $0x28] sm:$0x1] %v722
        %vm724 = vcmask 1047559
        %vm725 = vsmask.f32 7966
        %vm726 = vmand %vm724, %vm725
        %v727 = vld [vmem:[#allocation2 + $0x180] sm:$0x80]
        %v728 = vsel %vm726, 0, %v727
        %729 = vst [vmem:[#allocation2 + $0x180] sm:$0x80] %v728
        %v730 = vld [vmem:[#allocation2 + $0x188] sm:$0x80]
        %v731 = vsel %vm726, 0, %v730
        %732 = vst [vmem:[#allocation2 + $0x188] sm:$0x80] %v731
        %v733 = vld [vmem:[#allocation2 + $0x190] sm:$0x80]
        %v734 = vsel %vm726, 0, %v733
        %735 = vst [vmem:[#allocation2 + $0x190] sm:$0x80] %v734
        %736 = vst [vmem:[#allocation2 + $0x198] sm:$0xff] 0
        %737 = vst [vmem:[#allocation2 + $0x1a0] sm:$0xff] 0
        %738 = vst [vmem:[#allocation2 + $0x1a8] sm:$0xff] 0
        %v739 = vlaneseq
        %v740 = vshrl.u32 %v739, 7
        %v741 = vadd.s32 %v740, 8
        %v742 = vadd.s32 %v740, 16
        %v743 = vadd.s32 %v740, 24
        %v744 = vadd.s32 %v740, 32
        %v745 = vadd.s32 %v740, 40
        %v746 = vadd.s32 %v740, 48
        %v747 = vadd.s32 %v740, 56
        %v748 = vadd.s32 %v740, 64
        %v749 = vadd.s32 %v740, 72
        %v750 = vadd.s32 %v740, 80
        %v751 = vadd.s32 %v740, 88
        %v752 = vadd.s32 %v740, 96
        %v753 = vadd.s32 %v740, 104
        %v754 = vadd.s32 %v740, 112
        %v755 = vadd.s32 %v740, 120
        %v756 = vadd.s32 %v740, 128
        %v757 = vadd.s32 %v740, 136
        %v758 = vadd.s32 %v740, 144
        %v759 = vadd.s32 %v740, 152
        %v760 = vadd.s32 %v740, 160
        %v761 = vadd.s32 %v740, 168
        %v762 = vadd.s32 %v740, 176
        %v763 = vadd.s32 %v740, 184
        %v764 = vadd.s32 %v740, 192
        %v765 = vadd.s32 %v740, 200
        %v766 = vadd.s32 %v740, 208
        %v767 = vadd.s32 %v740, 216
        %v768 = vadd.s32 %v740, 224
        %v769 = vadd.s32 %v740, 232
        %v770 = vadd.s32 %v740, 240
        %v771 = vadd.s32 %v740, 248
        %vm772 = vcmp.lt.s32.totalorder %v740, 0
        %v773 = vsub.s32 0, %v740
        %v774 = vsel %vm772, %v773, %v740
        %v775 = vshrl.u32 %v774, 4
        %v776 = vand.u32 %v774, 15
        %v777 = vsub.s32 0, %v776
        %v778 = vsel %vm772, %v777, %v776
        %vm779 = vcmp.lt.s32.totalorder %v741, 0
        %v780 = vsub.s32 0, %v741
        %v781 = vsel %vm779, %v780, %v741
        %v782 = vshrl.u32 %v781, 4
        %v783 = vand.u32 %v781, 15
        %v784 = vsub.s32 0, %v783
        %v785 = vsel %vm779, %v784, %v783
        %vm786 = vcmp.lt.s32.totalorder %v742, 0
        %v787 = vsub.s32 0, %v742
        %v788 = vsel %vm786, %v787, %v742
        %v789 = vshrl.u32 %v788, 4
        %v790 = vand.u32 %v788, 15
        %v791 = vsub.s32 0, %v790
        %v792 = vsel %vm786, %v791, %v790
        %vm793 = vcmp.lt.s32.totalorder %v743, 0
        %v794 = vsub.s32 0, %v743
        %v795 = vsel %vm793, %v794, %v743
        %v796 = vshrl.u32 %v795, 4
        %v797 = vand.u32 %v795, 15
        %v798 = vsub.s32 0, %v797
        %v799 = vsel %vm793, %v798, %v797
        %vm800 = vcmp.lt.s32.totalorder %v744, 0
        %v801 = vsub.s32 0, %v744
        %v802 = vsel %vm800, %v801, %v744
        %v803 = vshrl.u32 %v802, 4
        %v804 = vand.u32 %v802, 15
        %v805 = vsub.s32 0, %v804
        %v806 = vsel %vm800, %v805, %v804
        %vm807 = vcmp.lt.s32.totalorder %v745, 0
        %v808 = vsub.s32 0, %v745
        %v809 = vsel %vm807, %v808, %v745
        %v810 = vshrl.u32 %v809, 4
        %v811 = vand.u32 %v809, 15
        %v812 = vsub.s32 0, %v811
        %v813 = vsel %vm807, %v812, %v811
        %vm814 = vcmp.lt.s32.totalorder %v746, 0
        %v815 = vsub.s32 0, %v746
        %v816 = vsel %vm814, %v815, %v746
        %v817 = vshrl.u32 %v816, 4
        %v818 = vand.u32 %v816, 15
        %v819 = vsub.s32 0, %v818
        %v820 = vsel %vm814, %v819, %v818
        %vm821 = vcmp.lt.s32.totalorder %v747, 0
        %v822 = vsub.s32 0, %v747
        %v823 = vsel %vm821, %v822, %v747
        %v824 = vshrl.u32 %v823, 4
        %v825 = vand.u32 %v823, 15
        %v826 = vsub.s32 0, %v825
        %v827 = vsel %vm821, %v826, %v825
        %vm828 = vcmp.lt.s32.totalorder %v748, 0
        %v829 = vsub.s32 0, %v748
        %v830 = vsel %vm828, %v829, %v748
        %v831 = vshrl.u32 %v830, 4
        %v832 = vand.u32 %v830, 15
        %v833 = vsub.s32 0, %v832
        %v834 = vsel %vm828, %v833, %v832
        %vm835 = vcmp.lt.s32.totalorder %v749, 0
        %v836 = vsub.s32 0, %v749
        %v837 = vsel %vm835, %v836, %v749
        %v838 = vshrl.u32 %v837, 4
        %v839 = vand.u32 %v837, 15
        %v840 = vsub.s32 0, %v839
        %v841 = vsel %vm835, %v840, %v839
        %vm842 = vcmp.lt.s32.totalorder %v750, 0
        %v843 = vsub.s32 0, %v750
        %v844 = vsel %vm842, %v843, %v750
        %v845 = vshrl.u32 %v844, 4
        %v846 = vand.u32 %v844, 15
        %v847 = vsub.s32 0, %v846
        %v848 = vsel %vm842, %v847, %v846
        %vm849 = vcmp.lt.s32.totalorder %v751, 0
        %v850 = vsub.s32 0, %v751
        %v851 = vsel %vm849, %v850, %v751
        %v852 = vshrl.u32 %v851, 4
        %v853 = vand.u32 %v851, 15
        %v854 = vsub.s32 0, %v853
        %v855 = vsel %vm849, %v854, %v853
        %vm856 = vcmp.lt.s32.totalorder %v752, 0
        %v857 = vsub.s32 0, %v752
        %v858 = vsel %vm856, %v857, %v752
        %v859 = vshrl.u32 %v858, 4
        %v860 = vand.u32 %v858, 15
        %v861 = vsub.s32 0, %v860
        %v862 = vsel %vm856, %v861, %v860
        %vm863 = vcmp.lt.s32.totalorder %v753, 0
        %v864 = vsub.s32 0, %v753
        %v865 = vsel %vm863, %v864, %v753
        %v866 = vshrl.u32 %v865, 4
        %v867 = vand.u32 %v865, 15
        %v868 = vsub.s32 0, %v867
        %v869 = vsel %vm863, %v868, %v867
        %vm870 = vcmp.lt.s32.totalorder %v754, 0
        %v871 = vsub.s32 0, %v754
        %v872 = vsel %vm870, %v871, %v754
        %v873 = vshrl.u32 %v872, 4
        %v874 = vand.u32 %v872, 15
        %v875 = vsub.s32 0, %v874
        %v876 = vsel %vm870, %v875, %v874
        %vm877 = vcmp.lt.s32.totalorder %v755, 0
        %v878 = vsub.s32 0, %v755
        %v879 = vsel %vm877, %v878, %v755
        %v880 = vshrl.u32 %v879, 4
        %v881 = vand.u32 %v879, 15
        %v882 = vsub.s32 0, %v881
        %v883 = vsel %vm877, %v882, %v881
        %vm884 = vcmp.lt.s32.totalorder %v756, 0
        %v885 = vsub.s32 0, %v756
        %v886 = vsel %vm884, %v885, %v756
        %v887 = vshrl.u32 %v886, 4
        %v888 = vand.u32 %v886, 15
        %v889 = vsub.s32 0, %v888
        %v890 = vsel %vm884, %v889, %v888
        %vm891 = vcmp.lt.s32.totalorder %v757, 0
        %v892 = vsub.s32 0, %v757
        %v893 = vsel %vm891, %v892, %v757
        %v894 = vshrl.u32 %v893, 4
        %v895 = vand.u32 %v893, 15
        %v896 = vsub.s32 0, %v895
        %v897 = vsel %vm891, %v896, %v895
        %vm898 = vcmp.lt.s32.totalorder %v758, 0
        %v899 = vsub.s32 0, %v758
        %v900 = vsel %vm898, %v899, %v758
        %v901 = vshrl.u32 %v900, 4
        %v902 = vand.u32 %v900, 15
        %v903 = vsub.s32 0, %v902
        %v904 = vsel %vm898, %v903, %v902
        %vm905 = vcmp.lt.s32.totalorder %v759, 0
        %v906 = vsub.s32 0, %v759
        %v907 = vsel %vm905, %v906, %v759
        %v908 = vshrl.u32 %v907, 4
        %v909 = vand.u32 %v907, 15
        %v910 = vsub.s32 0, %v909
        %v911 = vsel %vm905, %v910, %v909
        %vm912 = vcmp.lt.s32.totalorder %v760, 0
        %v913 = vsub.s32 0, %v760
        %v914 = vsel %vm912, %v913, %v760
        %v915 = vshrl.u32 %v914, 4
        %v916 = vand.u32 %v914, 15
        %v917 = vsub.s32 0, %v916
        %v918 = vsel %vm912, %v917, %v916
        %vm919 = vcmp.lt.s32.totalorder %v761, 0
        %v920 = vsub.s32 0, %v761
        %v921 = vsel %vm919, %v920, %v761
        %v922 = vshrl.u32 %v921, 4
        %v923 = vand.u32 %v921, 15
        %v924 = vsub.s32 0, %v923
        %v925 = vsel %vm919, %v924, %v923
        %vm926 = vcmp.lt.s32.totalorder %v762, 0
        %v927 = vsub.s32 0, %v762
        %v928 = vsel %vm926, %v927, %v762
        %v929 = vshrl.u32 %v928, 4
        %v930 = vand.u32 %v928, 15
        %v931 = vsub.s32 0, %v930
        %v932 = vsel %vm926, %v931, %v930
        %vm933 = vcmp.lt.s32.totalorder %v763, 0
        %v934 = vsub.s32 0, %v763
        %v935 = vsel %vm933, %v934, %v763
        %v936 = vshrl.u32 %v935, 4
        %v937 = vand.u32 %v935, 15
        %v938 = vsub.s32 0, %v937
        %v939 = vsel %vm933, %v938, %v937
        %vm940 = vcmp.lt.s32.totalorder %v764, 0
        %v941 = vsub.s32 0, %v764
        %v942 = vsel %vm940, %v941, %v764
        %v943 = vshrl.u32 %v942, 4
        %v944 = vand.u32 %v942, 15
        %v945 = vsub.s32 0, %v944
        %v946 = vsel %vm940, %v945, %v944
        %vm947 = vcmp.lt.s32.totalorder %v765, 0
        %v948 = vsub.s32 0, %v765
        %v949 = vsel %vm947, %v948, %v765
        %v950 = vshrl.u32 %v949, 4
        %v951 = vand.u32 %v949, 15
        %v952 = vsub.s32 0, %v951
        %v953 = vsel %vm947, %v952, %v951
        %vm954 = vcmp.lt.s32.totalorder %v766, 0
        %v955 = vsub.s32 0, %v766
        %v956 = vsel %vm954, %v955, %v766
        %v957 = vshrl.u32 %v956, 4
        %v958 = vand.u32 %v956, 15
        %v959 = vsub.s32 0, %v958
        %v960 = vsel %vm954, %v959, %v958
        %vm961 = vcmp.lt.s32.totalorder %v767, 0
        %v962 = vsub.s32 0, %v767
        %v963 = vsel %vm961, %v962, %v767
        %v964 = vshrl.u32 %v963, 4
        %v965 = vand.u32 %v963, 15
        %v966 = vsub.s32 0, %v965
        %v967 = vsel %vm961, %v966, %v965
        %vm968 = vcmp.lt.s32.totalorder %v768, 0
        %v969 = vsub.s32 0, %v768
        %v970 = vsel %vm968, %v969, %v768
        %v971 = vshrl.u32 %v970, 4
        %v972 = vand.u32 %v970, 15
        %v973 = vsub.s32 0, %v972
        %v974 = vsel %vm968, %v973, %v972
        %vm975 = vcmp.lt.s32.totalorder %v769, 0
        %v976 = vsub.s32 0, %v769
        %v977 = vsel %vm975, %v976, %v769
        %v978 = vshrl.u32 %v977, 4
        %v979 = vand.u32 %v977, 15
        %v980 = vsub.s32 0, %v979
        %v981 = vsel %vm975, %v980, %v979
        %vm982 = vcmp.lt.s32.totalorder %v770, 0
        %v983 = vsub.s32 0, %v770
        %v984 = vsel %vm982, %v983, %v770
        %v985 = vshrl.u32 %v984, 4
        %v986 = vand.u32 %v984, 15
        %v987 = vsub.s32 0, %v986
        %v988 = vsel %vm982, %v987, %v986
        %vm989 = vcmp.lt.s32.totalorder %v771, 0
        %v990 = vsub.s32 0, %v771
        %v991 = vsel %vm989, %v990, %v771
        %v992 = vshrl.u32 %v991, 4
        %v993 = vand.u32 %v991, 15
        %v994 = vsub.s32 0, %v993
        %v995 = vsel %vm989, %v994, %v993
        %vm996 = vcmp.ne.s32.totalorder %v778, 0
        %vm997 = vcmp.ne.s32.totalorder %v785, 0
        %vm998 = vcmp.ne.s32.totalorder %v792, 0
        %vm999 = vcmp.ne.s32.totalorder %v799, 0
        %vm1000 = vcmp.ne.s32.totalorder %v806, 0
        %vm1001 = vcmp.ne.s32.totalorder %v813, 0
        %vm1002 = vcmp.ne.s32.totalorder %v820, 0
        %vm1003 = vcmp.ne.s32.totalorder %v827, 0
        %vm1004 = vcmp.ne.s32.totalorder %v834, 0
        %vm1005 = vcmp.ne.s32.totalorder %v841, 0
        %vm1006 = vcmp.ne.s32.totalorder %v848, 0
        %vm1007 = vcmp.ne.s32.totalorder %v855, 0
        %vm1008 = vcmp.ne.s32.totalorder %v862, 0
        %vm1009 = vcmp.ne.s32.totalorder %v869, 0
        %vm1010 = vcmp.ne.s32.totalorder %v876, 0
        %vm1011 = vcmp.ne.s32.totalorder %v883, 0
        %vm1012 = vcmp.ne.s32.totalorder %v890, 0
        %vm1013 = vcmp.ne.s32.totalorder %v897, 0
        %vm1014 = vcmp.ne.s32.totalorder %v904, 0
        %vm1015 = vcmp.ne.s32.totalorder %v911, 0
        %vm1016 = vcmp.ne.s32.totalorder %v918, 0
        %vm1017 = vcmp.ne.s32.totalorder %v925, 0
        %vm1018 = vcmp.ne.s32.totalorder %v932, 0
        %vm1019 = vcmp.ne.s32.totalorder %v939, 0
        %vm1020 = vcmp.ne.s32.totalorder %v946, 0
        %vm1021 = vcmp.ne.s32.totalorder %v953, 0
        %vm1022 = vcmp.ne.s32.totalorder %v960, 0
        %vm1023 = vcmp.ne.s32.totalorder %v967, 0
        %vm1024 = vcmp.ne.s32.totalorder %v974, 0
        %vm1025 = vcmp.ne.s32.totalorder %v981, 0
        %vm1026 = vcmp.ne.s32.totalorder %v988, 0
        %vm1027 = vcmp.ne.s32.totalorder %v995, 0
        %vm1028 = vcmp.lt.s32.totalorder %v778, 0
        %vm1029 = vcmp.lt.s32.totalorder %v785, 0
        %vm1030 = vcmp.lt.s32.totalorder %v792, 0
        %vm1031 = vcmp.lt.s32.totalorder %v799, 0
        %vm1032 = vcmp.lt.s32.totalorder %v806, 0
        %vm1033 = vcmp.lt.s32.totalorder %v813, 0
        %vm1034 = vcmp.lt.s32.totalorder %v820, 0
        %vm1035 = vcmp.lt.s32.totalorder %v827, 0
        %vm1036 = vcmp.lt.s32.totalorder %v834, 0
        %vm1037 = vcmp.lt.s32.totalorder %v841, 0
        %vm1038 = vcmp.lt.s32.totalorder %v848, 0
        %vm1039 = vcmp.lt.s32.totalorder %v855, 0
        %vm1040 = vcmp.lt.s32.totalorder %v862, 0
        %vm1041 = vcmp.lt.s32.totalorder %v869, 0
        %vm1042 = vcmp.lt.s32.totalorder %v876, 0
        %vm1043 = vcmp.lt.s32.totalorder %v883, 0
        %vm1044 = vcmp.lt.s32.totalorder %v890, 0
        %vm1045 = vcmp.lt.s32.totalorder %v897, 0
        %vm1046 = vcmp.lt.s32.totalorder %v904, 0
        %vm1047 = vcmp.lt.s32.totalorder %v911, 0
        %vm1048 = vcmp.lt.s32.totalorder %v918, 0
        %vm1049 = vcmp.lt.s32.totalorder %v925, 0
        %vm1050 = vcmp.lt.s32.totalorder %v932, 0
        %vm1051 = vcmp.lt.s32.totalorder %v939, 0
        %vm1052 = vcmp.lt.s32.totalorder %v946, 0
        %vm1053 = vcmp.lt.s32.totalorder %v953, 0
        %vm1054 = vcmp.lt.s32.totalorder %v960, 0
        %vm1055 = vcmp.lt.s32.totalorder %v967, 0
        %vm1056 = vcmp.lt.s32.totalorder %v974, 0
        %vm1057 = vcmp.lt.s32.totalorder %v981, 0
        %vm1058 = vcmp.lt.s32.totalorder %v988, 0
        %vm1059 = vcmp.lt.s32.totalorder %v995, 0
        %vm1060 = vmand %vm1028, %vm996
        %vm1061 = vmand %vm1029, %vm997
        %vm1062 = vmand %vm1030, %vm998
        %vm1063 = vmand %vm1031, %vm999
        %vm1064 = vmand %vm1032, %vm1000
        %vm1065 = vmand %vm1033, %vm1001
        %vm1066 = vmand %vm1034, %vm1002
        %vm1067 = vmand %vm1035, %vm1003
        %vm1068 = vmand %vm1036, %vm1004
        %vm1069 = vmand %vm1037, %vm1005
        %vm1070 = vmand %vm1038, %vm1006
        %vm1071 = vmand %vm1039, %vm1007
        %vm1072 = vmand %vm1040, %vm1008
        %vm1073 = vmand %vm1041, %vm1009
        %vm1074 = vmand %vm1042, %vm1010
        %vm1075 = vmand %vm1043, %vm1011
        %vm1076 = vmand %vm1044, %vm1012
        %vm1077 = vmand %vm1045, %vm1013
        %vm1078 = vmand %vm1046, %vm1014
        %vm1079 = vmand %vm1047, %vm1015
        %vm1080 = vmand %vm1048, %vm1016
        %vm1081 = vmand %vm1049, %vm1017
        %vm1082 = vmand %vm1050, %vm1018
        %vm1083 = vmand %vm1051, %vm1019
        %vm1084 = vmand %vm1052, %vm1020
        %vm1085 = vmand %vm1053, %vm1021
        %vm1086 = vmand %vm1054, %vm1022
        %vm1087 = vmand %vm1055, %vm1023
        %vm1088 = vmand %vm1056, %vm1024
        %vm1089 = vmand %vm1057, %vm1025
        %vm1090 = vmand %vm1058, %vm1026
        %vm1091 = vmand %vm1059, %vm1027
        %v1092 = vadd.s32 %v778, 16
        %v1093 = vadd.s32 %v785, 16
        %v1094 = vadd.s32 %v792, 16
        %v1095 = vadd.s32 %v799, 16
        %v1096 = vadd.s32 %v806, 16
        %v1097 = vadd.s32 %v813, 16
        %v1098 = vadd.s32 %v820, 16
        %v1099 = vadd.s32 %v827, 16
        %v1100 = vadd.s32 %v834, 16
        %v1101 = vadd.s32 %v841, 16
        %v1102 = vadd.s32 %v848, 16
        %v1103 = vadd.s32 %v855, 16
        %v1104 = vadd.s32 %v862, 16
        %v1105 = vadd.s32 %v869, 16
        %v1106 = vadd.s32 %v876, 16
        %v1107 = vadd.s32 %v883, 16
        %v1108 = vadd.s32 %v890, 16
        %v1109 = vadd.s32 %v897, 16
        %v1110 = vadd.s32 %v904, 16
        %v1111 = vadd.s32 %v911, 16
        %v1112 = vadd.s32 %v918, 16
        %v1113 = vadd.s32 %v925, 16
        %v1114 = vadd.s32 %v932, 16
        %v1115 = vadd.s32 %v939, 16
        %v1116 = vadd.s32 %v946, 16
        %v1117 = vadd.s32 %v953, 16
        %v1118 = vadd.s32 %v960, 16
        %v1119 = vadd.s32 %v967, 16
        %v1120 = vadd.s32 %v974, 16
        %v1121 = vadd.s32 %v981, 16
        %v1122 = vadd.s32 %v988, 16
        %v1123 = vadd.s32 %v995, 16
        %v1124 = vsel %vm1060, %v1092, %v778
        %v1125 = vsel %vm1061, %v1093, %v785
        %v1126 = vsel %vm1062, %v1094, %v792
        %v1127 = vsel %vm1063, %v1095, %v799
        %v1128 = vsel %vm1064, %v1096, %v806
        %v1129 = vsel %vm1065, %v1097, %v813
        %v1130 = vsel %vm1066, %v1098, %v820
        %v1131 = vsel %vm1067, %v1099, %v827
        %v1132 = vsel %vm1068, %v1100, %v834
        %v1133 = vsel %vm1069, %v1101, %v841
        %v1134 = vsel %vm1070, %v1102, %v848
        %v1135 = vsel %vm1071, %v1103, %v855
        %v1136 = vsel %vm1072, %v1104, %v862
        %v1137 = vsel %vm1073, %v1105, %v869
        %v1138 = vsel %vm1074, %v1106, %v876
        %v1139 = vsel %vm1075, %v1107, %v883
        %v1140 = vsel %vm1076, %v1108, %v890
        %v1141 = vsel %vm1077, %v1109, %v897
        %v1142 = vsel %vm1078, %v1110, %v904
        %v1143 = vsel %vm1079, %v1111, %v911
        %v1144 = vsel %vm1080, %v1112, %v918
        %v1145 = vsel %vm1081, %v1113, %v925
        %v1146 = vsel %vm1082, %v1114, %v932
        %v1147 = vsel %vm1083, %v1115, %v939
        %v1148 = vsel %vm1084, %v1116, %v946
        %v1149 = vsel %vm1085, %v1117, %v953
        %v1150 = vsel %vm1086, %v1118, %v960
        %v1151 = vsel %vm1087, %v1119, %v967
        %v1152 = vsel %vm1088, %v1120, %v974
        %v1153 = vsel %vm1089, %v1121, %v981
        %v1154 = vsel %vm1090, %v1122, %v988
        %v1155 = vsel %vm1091, %v1123, %v995
        %vm1156 = vcmp.ne.s32.totalorder %v1124, 0
        %vm1157 = vcmp.ne.s32.totalorder %v1125, 0
        %vm1158 = vcmp.ne.s32.totalorder %v1126, 0
        %vm1159 = vcmp.ne.s32.totalorder %v1127, 0
        %vm1160 = vcmp.ne.s32.totalorder %v1128, 0
        %vm1161 = vcmp.ne.s32.totalorder %v1129, 0
        %vm1162 = vcmp.ne.s32.totalorder %v1130, 0
        %vm1163 = vcmp.ne.s32.totalorder %v1131, 0
        %vm1164 = vcmp.ne.s32.totalorder %v1132, 0
        %vm1165 = vcmp.ne.s32.totalorder %v1133, 0
        %vm1166 = vcmp.ne.s32.totalorder %v1134, 0
        %vm1167 = vcmp.ne.s32.totalorder %v1135, 0
        %vm1168 = vcmp.ne.s32.totalorder %v1136, 0
        %vm1169 = vcmp.ne.s32.totalorder %v1137, 0
        %vm1170 = vcmp.ne.s32.totalorder %v1138, 0
        %vm1171 = vcmp.ne.s32.totalorder %v1139, 0
        %vm1172 = vcmp.ne.s32.totalorder %v1140, 0
        %vm1173 = vcmp.ne.s32.totalorder %v1141, 0
        %vm1174 = vcmp.ne.s32.totalorder %v1142, 0
        %vm1175 = vcmp.ne.s32.totalorder %v1143, 0
        %vm1176 = vcmp.ne.s32.totalorder %v1144, 0
        %vm1177 = vcmp.ne.s32.totalorder %v1145, 0
        %vm1178 = vcmp.ne.s32.totalorder %v1146, 0
        %vm1179 = vcmp.ne.s32.totalorder %v1147, 0
        %vm1180 = vcmp.ne.s32.totalorder %v1148, 0
        %vm1181 = vcmp.ne.s32.totalorder %v1149, 0
        %vm1182 = vcmp.ne.s32.totalorder %v1150, 0
        %vm1183 = vcmp.ne.s32.totalorder %v1151, 0
        %vm1184 = vcmp.ne.s32.totalorder %v1152, 0
        %vm1185 = vcmp.ne.s32.totalorder %v1153, 0
        %vm1186 = vcmp.ne.s32.totalorder %v1154, 0
        %vm1187 = vcmp.ne.s32.totalorder %v1155, 0
        %v1188 = vsel %vm1156, 1, 0
        %v1189 = vsel %vm1157, 1, 0
        %v1190 = vsel %vm1158, 1, 0
        %v1191 = vsel %vm1159, 1, 0
        %v1192 = vsel %vm1160, 1, 0
        %v1193 = vsel %vm1161, 1, 0
        %v1194 = vsel %vm1162, 1, 0
        %v1195 = vsel %vm1163, 1, 0
        %v1196 = vsel %vm1164, 1, 0
        %v1197 = vsel %vm1165, 1, 0
        %v1198 = vsel %vm1166, 1, 0
        %v1199 = vsel %vm1167, 1, 0
        %v1200 = vsel %vm1168, 1, 0
        %v1201 = vsel %vm1169, 1, 0
        %v1202 = vsel %vm1170, 1, 0
        %v1203 = vsel %vm1171, 1, 0
        %v1204 = vsel %vm1172, 1, 0
        %v1205 = vsel %vm1173, 1, 0
        %v1206 = vsel %vm1174, 1, 0
        %v1207 = vsel %vm1175, 1, 0
        %v1208 = vsel %vm1176, 1, 0
        %v1209 = vsel %vm1177, 1, 0
        %v1210 = vsel %vm1178, 1, 0
        %v1211 = vsel %vm1179, 1, 0
        %v1212 = vsel %vm1180, 1, 0
        %v1213 = vsel %vm1181, 1, 0
        %v1214 = vsel %vm1182, 1, 0
        %v1215 = vsel %vm1183, 1, 0
        %v1216 = vsel %vm1184, 1, 0
        %v1217 = vsel %vm1185, 1, 0
        %v1218 = vsel %vm1186, 1, 0
        %v1219 = vsel %vm1187, 1, 0
        %v1220 = vcvt.s32.f32 %v1188
        %v1221 = vcvt.s32.f32 %v1189
        %v1222 = vcvt.s32.f32 %v1190
        %v1223 = vcvt.s32.f32 %v1191
        %v1224 = vcvt.s32.f32 %v1192
        %v1225 = vcvt.s32.f32 %v1193
        %v1226 = vcvt.s32.f32 %v1194
        %v1227 = vcvt.s32.f32 %v1195
        %v1228 = vcvt.s32.f32 %v1196
        %v1229 = vcvt.s32.f32 %v1197
        %v1230 = vcvt.s32.f32 %v1198
        %v1231 = vcvt.s32.f32 %v1199
        %v1232 = vcvt.s32.f32 %v1200
        %v1233 = vcvt.s32.f32 %v1201
        %v1234 = vcvt.s32.f32 %v1202
        %v1235 = vcvt.s32.f32 %v1203
        %v1236 = vcvt.s32.f32 %v1204
        %v1237 = vcvt.s32.f32 %v1205
        %v1238 = vcvt.s32.f32 %v1206
        %v1239 = vcvt.s32.f32 %v1207
        %v1240 = vcvt.s32.f32 %v1208
        %v1241 = vcvt.s32.f32 %v1209
        %v1242 = vcvt.s32.f32 %v1210
        %v1243 = vcvt.s32.f32 %v1211
        %v1244 = vcvt.s32.f32 %v1212
        %v1245 = vcvt.s32.f32 %v1213
        %v1246 = vcvt.s32.f32 %v1214
        %v1247 = vcvt.s32.f32 %v1215
        %v1248 = vcvt.s32.f32 %v1216
        %v1249 = vcvt.s32.f32 %v1217
        %v1250 = vcvt.s32.f32 %v1218
        %v1251 = vcvt.s32.f32 %v1219
        %vm1252 = vcmp.ne.s32.totalorder %v1124, 15
        %vm1253 = vcmp.ne.s32.totalorder %v1125, 15
        %vm1254 = vcmp.ne.s32.totalorder %v1126, 15
        %vm1255 = vcmp.ne.s32.totalorder %v1127, 15
        %vm1256 = vcmp.ne.s32.totalorder %v1128, 15
        %vm1257 = vcmp.ne.s32.totalorder %v1129, 15
        %vm1258 = vcmp.ne.s32.totalorder %v1130, 15
        %vm1259 = vcmp.ne.s32.totalorder %v1131, 15
        %vm1260 = vcmp.ne.s32.totalorder %v1132, 15
        %vm1261 = vcmp.ne.s32.totalorder %v1133, 15
        %vm1262 = vcmp.ne.s32.totalorder %v1134, 15
        %vm1263 = vcmp.ne.s32.totalorder %v1135, 15
        %vm1264 = vcmp.ne.s32.totalorder %v1136, 15
        %vm1265 = vcmp.ne.s32.totalorder %v1137, 15
        %vm1266 = vcmp.ne.s32.totalorder %v1138, 15
        %vm1267 = vcmp.ne.s32.totalorder %v1139, 15
        %vm1268 = vcmp.ne.s32.totalorder %v1140, 15
        %vm1269 = vcmp.ne.s32.totalorder %v1141, 15
        %vm1270 = vcmp.ne.s32.totalorder %v1142, 15
        %vm1271 = vcmp.ne.s32.totalorder %v1143, 15
        %vm1272 = vcmp.ne.s32.totalorder %v1144, 15
        %vm1273 = vcmp.ne.s32.totalorder %v1145, 15
        %vm1274 = vcmp.ne.s32.totalorder %v1146, 15
        %vm1275 = vcmp.ne.s32.totalorder %v1147, 15
        %vm1276 = vcmp.ne.s32.totalorder %v1148, 15
        %vm1277 = vcmp.ne.s32.totalorder %v1149, 15
        %vm1278 = vcmp.ne.s32.totalorder %v1150, 15
        %vm1279 = vcmp.ne.s32.totalorder %v1151, 15
        %vm1280 = vcmp.ne.s32.totalorder %v1152, 15
        %vm1281 = vcmp.ne.s32.totalorder %v1153, 15
        %vm1282 = vcmp.ne.s32.totalorder %v1154, 15
        %vm1283 = vcmp.ne.s32.totalorder %v1155, 15
        %v1284 = vsel %vm1252, 1, 0
        %v1285 = vsel %vm1253, 1, 0
        %v1286 = vsel %vm1254, 1, 0
        %v1287 = vsel %vm1255, 1, 0
        %v1288 = vsel %vm1256, 1, 0
        %v1289 = vsel %vm1257, 1, 0
        %v1290 = vsel %vm1258, 1, 0
        %v1291 = vsel %vm1259, 1, 0
        %v1292 = vsel %vm1260, 1, 0
        %v1293 = vsel %vm1261, 1, 0
        %v1294 = vsel %vm1262, 1, 0
        %v1295 = vsel %vm1263, 1, 0
        %v1296 = vsel %vm1264, 1, 0
        %v1297 = vsel %vm1265, 1, 0
        %v1298 = vsel %vm1266, 1, 0
        %v1299 = vsel %vm1267, 1, 0
        %v1300 = vsel %vm1268, 1, 0
        %v1301 = vsel %vm1269, 1, 0
        %v1302 = vsel %vm1270, 1, 0
        %v1303 = vsel %vm1271, 1, 0
        %v1304 = vsel %vm1272, 1, 0
        %v1305 = vsel %vm1273, 1, 0
        %v1306 = vsel %vm1274, 1, 0
        %v1307 = vsel %vm1275, 1, 0
        %v1308 = vsel %vm1276, 1, 0
        %v1309 = vsel %vm1277, 1, 0
        %v1310 = vsel %vm1278, 1, 0
        %v1311 = vsel %vm1279, 1, 0
        %v1312 = vsel %vm1280, 1, 0
        %v1313 = vsel %vm1281, 1, 0
        %v1314 = vsel %vm1282, 1, 0
        %v1315 = vsel %vm1283, 1, 0
        %v1316 = vcvt.s32.f32 %v1284
        %v1317 = vcvt.s32.f32 %v1285
        %v1318 = vcvt.s32.f32 %v1286
        %v1319 = vcvt.s32.f32 %v1287
        %v1320 = vcvt.s32.f32 %v1288
        %v1321 = vcvt.s32.f32 %v1289
        %v1322 = vcvt.s32.f32 %v1290
        %v1323 = vcvt.s32.f32 %v1291
        %v1324 = vcvt.s32.f32 %v1292
        %v1325 = vcvt.s32.f32 %v1293
        %v1326 = vcvt.s32.f32 %v1294
        %v1327 = vcvt.s32.f32 %v1295
        %v1328 = vcvt.s32.f32 %v1296
        %v1329 = vcvt.s32.f32 %v1297
        %v1330 = vcvt.s32.f32 %v1298
        %v1331 = vcvt.s32.f32 %v1299
        %v1332 = vcvt.s32.f32 %v1300
        %v1333 = vcvt.s32.f32 %v1301
        %v1334 = vcvt.s32.f32 %v1302
        %v1335 = vcvt.s32.f32 %v1303
        %v1336 = vcvt.s32.f32 %v1304
        %v1337 = vcvt.s32.f32 %v1305
        %v1338 = vcvt.s32.f32 %v1306
        %v1339 = vcvt.s32.f32 %v1307
        %v1340 = vcvt.s32.f32 %v1308
        %v1341 = vcvt.s32.f32 %v1309
        %v1342 = vcvt.s32.f32 %v1310
        %v1343 = vcvt.s32.f32 %v1311
        %v1344 = vcvt.s32.f32 %v1312
        %v1345 = vcvt.s32.f32 %v1313
        %v1346 = vcvt.s32.f32 %v1314
        %v1347 = vcvt.s32.f32 %v1315
        %v1348 = vld [vmem:[%s629] sm:$0xf]
        %v1349 = vld [vmem:[%s629 + $0x4] sm:$0xf]
        %v1350 = vld [vmem:[%s629 + $0x8] sm:$0xf]
        %v1351 = vld [vmem:[%s629 + $0xc] sm:$0xf]
        %v1352 = vld [vmem:[%s629 + $0x10] sm:$0xf]
        %v1353 = vld [vmem:[%s629 + $0x14] sm:$0xf]
        %v1354 = vld [vmem:[%s629 + $0x18] sm:$0xf]
        %v1355 = vld [vmem:[%s629 + $0x1c] sm:$0xf]
        %v1356 = vld [vmem:[%s629 + $0x20] sm:$0xf]
        %v1357 = vld [vmem:[%s629 + $0x24] sm:$0xf]
        %v1358 = vld [vmem:[%s629 + $0x28] sm:$0xf]
        %v1359 = vld [vmem:[%s629 + $0x2c] sm:$0xf]
        %v1360 = vld [vmem:[%s629 + $0x30] sm:$0xf]
        %v1361 = vld [vmem:[%s629 + $0x34] sm:$0xf]
        %v1362 = vld [vmem:[%s629 + $0x38] sm:$0xf]
        %v1363 = vld [vmem:[%s629 + $0x3c] sm:$0xf]
        %v1364 = vld [vmem:[%s629 + $0x40] sm:$0xf]
        %v1365 = vld [vmem:[%s629 + $0x44] sm:$0xf]
        %v1366 = vld [vmem:[%s629 + $0x48] sm:$0xf]
        %v1367 = vld [vmem:[%s629 + $0x4c] sm:$0xf]
        %v1368 = vld [vmem:[%s629 + $0x50] sm:$0xf]
        %v1369 = vld [vmem:[%s629 + $0x54] sm:$0xf]
        %v1370 = vld [vmem:[%s629 + $0x58] sm:$0xf]
        %v1371 = vld [vmem:[%s629 + $0x5c] sm:$0xf]
        %v1372 = vld [vmem:[%s629 + $0x60] sm:$0xf]
        %v1373 = vld [vmem:[%s629 + $0x64] sm:$0xf]
        %v1374 = vld [vmem:[%s629 + $0x68] sm:$0xf]
        %v1375 = vld [vmem:[%s629 + $0x6c] sm:$0xf]
        %v1376 = vld [vmem:[%s629 + $0x70] sm:$0xf]
        %v1377 = vld [vmem:[%s629 + $0x74] sm:$0xf]
        %v1378 = vld [vmem:[%s629 + $0x78] sm:$0xf]
        %v1379 = vld [vmem:[%s629 + $0x7c] sm:$0xf]
        %v1380 = vld [vmem:[#allocation6] sm:$0xf]
        %v1381 = vld [vmem:[#allocation6 + $0x4] sm:$0xf]
        %v1382 = vld [vmem:[#allocation6 + $0x8] sm:$0xf]
        %v1383 = vld [vmem:[#allocation6 + $0xc] sm:$0xf]
        %v1384 = vld [vmem:[#allocation6 + $0x10] sm:$0xf]
        %v1385 = vld [vmem:[#allocation6 + $0x14] sm:$0xf]
        %v1386 = vld [vmem:[#allocation6 + $0x18] sm:$0xf]
        %v1387 = vld [vmem:[#allocation6 + $0x1c] sm:$0xf]
        %v1388 = vld [vmem:[#allocation6 + $0x20] sm:$0xf]
        %v1389 = vld [vmem:[#allocation6 + $0x24] sm:$0xf]
        %v1390 = vld [vmem:[#allocation6 + $0x28] sm:$0xf]
        %v1391 = vld [vmem:[#allocation6 + $0x2c] sm:$0xf]
        %v1392 = vld [vmem:[#allocation6 + $0x30] sm:$0xf]
        %v1393 = vld [vmem:[#allocation6 + $0x34] sm:$0xf]
        %v1394 = vld [vmem:[#allocation6 + $0x38] sm:$0xf]
        %v1395 = vld [vmem:[#allocation6 + $0x3c] sm:$0xf]
        %v1428 = vunpack.c.l.b16 %v1348
        %v1429 = vunpack.c.l.b16 %v1349
        %v1430 = vunpack.c.l.b16 %v1350
        %v1431 = vunpack.c.l.b16 %v1351
        %v1432 = vunpack.c.l.b16 %v1352
        %v1433 = vunpack.c.l.b16 %v1353
        %v1434 = vunpack.c.l.b16 %v1354
        %v1435 = vunpack.c.l.b16 %v1355
        %v1436 = vunpack.c.l.b16 %v1356
        %v1437 = vunpack.c.l.b16 %v1357
        %v1438 = vunpack.c.l.b16 %v1358
        %v1439 = vunpack.c.l.b16 %v1359
        %v1440 = vunpack.c.l.b16 %v1360
        %v1441 = vunpack.c.l.b16 %v1361
        %v1442 = vunpack.c.l.b16 %v1362
        %v1443 = vunpack.c.l.b16 %v1363
        %v1444 = vunpack.c.l.b16 %v1364
        %v1445 = vunpack.c.l.b16 %v1365
        %v1446 = vunpack.c.l.b16 %v1366
        %v1447 = vunpack.c.l.b16 %v1367
        %v1448 = vunpack.c.l.b16 %v1368
        %v1449 = vunpack.c.l.b16 %v1369
        %v1450 = vunpack.c.l.b16 %v1370
        %v1451 = vunpack.c.l.b16 %v1371
        %v1452 = vunpack.c.l.b16 %v1372
        %v1453 = vunpack.c.l.b16 %v1373
        %v1454 = vunpack.c.l.b16 %v1374
        %v1455 = vunpack.c.l.b16 %v1375
        %v1456 = vunpack.c.l.b16 %v1376
        %v1457 = vunpack.c.l.b16 %v1377
        %v1458 = vunpack.c.l.b16 %v1378
        %v1459 = vunpack.c.l.b16 %v1379
        %v1460 = vpack.c.b16 %v1429, %v1428
        %v1461 = vpack.c.b16 %v1431, %v1430
        %v1462 = vpack.c.b16 %v1433, %v1432
        %v1463 = vpack.c.b16 %v1435, %v1434
        %v1464 = vpack.c.b16 %v1437, %v1436
        %v1465 = vpack.c.b16 %v1439, %v1438
        %v1466 = vpack.c.b16 %v1441, %v1440
        %v1467 = vpack.c.b16 %v1443, %v1442
        %v1468 = vpack.c.b16 %v1445, %v1444
        %v1469 = vpack.c.b16 %v1447, %v1446
        %v1470 = vpack.c.b16 %v1449, %v1448
        %v1471 = vpack.c.b16 %v1451, %v1450
        %v1472 = vpack.c.b16 %v1453, %v1452
        %v1473 = vpack.c.b16 %v1455, %v1454
        %v1474 = vpack.c.b16 %v1457, %v1456
        %v1475 = vpack.c.b16 %v1459, %v1458
        %v1508 = vunpack.c.l.b16 %v1380
        %v1509 = vunpack.c.l.b16 %v1381
        %v1510 = vunpack.c.l.b16 %v1382
        %v1511 = vunpack.c.l.b16 %v1383
        %v1512 = vunpack.c.l.b16 %v1384
        %v1513 = vunpack.c.l.b16 %v1385
        %v1514 = vunpack.c.l.b16 %v1386
        %v1515 = vunpack.c.l.b16 %v1387
        %v1516 = vunpack.c.l.b16 %v1388
        %v1517 = vunpack.c.l.b16 %v1389
        %v1518 = vunpack.c.l.b16 %v1390
        %v1519 = vunpack.c.l.b16 %v1391
        %v1520 = vunpack.c.l.b16 %v1392
        %v1521 = vunpack.c.l.b16 %v1393
        %v1522 = vunpack.c.l.b16 %v1394
        %v1523 = vunpack.c.l.b16 %v1395
        %v1524 = vpack.c.b16 %v1509, %v1508
        %v1525 = vpack.c.b16 %v1511, %v1510
        %v1526 = vpack.c.b16 %v1513, %v1512
        %v1527 = vpack.c.b16 %v1515, %v1514
        %v1528 = vpack.c.b16 %v1517, %v1516
        %v1529 = vpack.c.b16 %v1519, %v1518
        %v1530 = vpack.c.b16 %v1521, %v1520
        %v1531 = vpack.c.b16 %v1523, %v1522
        %1540 = vmatprep.subr.bf16.mxu0 0
        %1541 = vmatpush1.bf16.msra.mxu0 %v1524
        %1542 = vmatprep.subr.bf16.mxu0 0
        %1543 = vmatpush1.bf16.msra.mxu0 %v1525
        %1544 = vmatprep.subr.bf16.mxu0 0
        %1545 = vmatpush1.bf16.msra.mxu0 %v1526
        %1546 = vmatprep.subr.bf16.mxu0 0
        %1547 = vmatpush1.bf16.msra.mxu0 %v1527
        %1548 = vmatprep.subr.bf16.mxu0 0
        %1549 = vmatpush1.bf16.msra.mxu0 %v1528
        %1550 = vmatprep.subr.bf16.mxu0 0
        %1551 = vmatpush1.bf16.msra.mxu0 %v1529
        %1552 = vmatprep.subr.bf16.mxu0 0
        %1553 = vmatpush1.bf16.msra.mxu0 %v1530
        %1554 = vmatprep.subr.bf16.mxu0 0
        %1555 = vmatpush1.bf16.msra.mxu0 %v1531
        %1556 = vmatprep.subr.bf16.mxu0 0
        %1557 = vmatpush1.bf16.msra.mxu0 0
        %1558 = vmatprep.subr.bf16.mxu0 0
        %1559 = vmatpush1.bf16.msra.mxu0 0
        %1560 = vmatprep.subr.bf16.mxu0 0
        %1561 = vmatpush1.bf16.msra.mxu0 0
        %1562 = vmatprep.subr.bf16.mxu0 0
        %1563 = vmatpush1.bf16.msra.mxu0 0
        %1564 = vmatprep.subr.bf16.mxu0 0
        %1565 = vmatpush1.bf16.msra.mxu0 0
        %1566 = vmatprep.subr.bf16.mxu0 0
        %1567 = vmatpush1.bf16.msra.mxu0 0
        %1568 = vmatprep.subr.bf16.mxu0 0
        %1569 = vmatpush1.bf16.msra.mxu0 0
        %1570 = vmatprep.subr.bf16.mxu0 0
        %1571 = vmatpush1.bf16.msra.mxu0 0
        %1572 = vmatprep.mubr.bf16.mxu0 0
        %1573 = vmatmul.mubr.bf16.gmra.mrb[0].mxu0 %v1460
        %v1574 = vpop.f32.mrb[0].mxu0
        %v1575 = vadd.f32 0.0, %v1574
        %v1576 = vpop.f32.mrb[0].mxu0
        %v1577 = vpop.f32.mrb[0].mxu0
        %v1578 = vadd.f32 0.0, %v1577
        %v1579 = vpop.f32.mrb[0].mxu0
        %1580 = vmatprep.mubr.bf16.mxu0 0
        %1581 = vmatmul.mubr.bf16.gmra.mrb[0].mxu0 %v1461
        %v1582 = vpop.f32.mrb[0].mxu0
        %v1583 = vadd.f32 0.0, %v1582
        %v1584 = vpop.f32.mrb[0].mxu0
        %v1585 = vpop.f32.mrb[0].mxu0
        %v1586 = vadd.f32 0.0, %v1585
        %v1587 = vpop.f32.mrb[0].mxu0
        %1588 = vmatprep.mubr.bf16.mxu0 0
        %1589 = vmatmul.mubr.bf16.gmra.mrb[0].mxu0 %v1462
        %v1590 = vpop.f32.mrb[0].mxu0
        %v1591 = vadd.f32 0.0, %v1590
        %v1592 = vpop.f32.mrb[0].mxu0
        %v1593 = vpop.f32.mrb[0].mxu0
        %v1594 = vadd.f32 0.0, %v1593
        %v1595 = vpop.f32.mrb[0].mxu0
        %1596 = vmatprep.mubr.bf16.mxu0 0
        %1597 = vmatmul.mubr.bf16.gmra.mrb[0].mxu0 %v1463
        %v1598 = vpop.f32.mrb[0].mxu0
        %v1599 = vadd.f32 0.0, %v1598
        %v1600 = vpop.f32.mrb[0].mxu0
        %v1601 = vpop.f32.mrb[0].mxu0
        %v1602 = vadd.f32 0.0, %v1601
        %v1603 = vpop.f32.mrb[0].mxu0
        %1604 = vmatprep.mubr.bf16.mxu0 0
        %1605 = vmatmul.mubr.bf16.gmra.mrb[0].mxu0 %v1464
        %v1606 = vpop.f32.mrb[0].mxu0
        %v1607 = vadd.f32 0.0, %v1606
        %v1608 = vpop.f32.mrb[0].mxu0
        %v1609 = vpop.f32.mrb[0].mxu0
        %v1610 = vadd.f32 0.0, %v1609
        %v1611 = vpop.f32.mrb[0].mxu0
        %1612 = vmatprep.mubr.bf16.mxu0 0
        %1613 = vmatmul.mubr.bf16.gmra.mrb[0].mxu0 %v1465
        %v1614 = vpop.f32.mrb[0].mxu0
        %v1615 = vadd.f32 0.0, %v1614
        %v1616 = vpop.f32.mrb[0].mxu0
        %v1617 = vpop.f32.mrb[0].mxu0
        %v1618 = vadd.f32 0.0, %v1617
        %v1619 = vpop.f32.mrb[0].mxu0
        %1620 = vmatprep.mubr.bf16.mxu0 0
        %1621 = vmatmul.mubr.bf16.gmra.mrb[0].mxu0 %v1466
        %v1622 = vpop.f32.mrb[0].mxu0
        %v1623 = vadd.f32 0.0, %v1622
        %v1624 = vpop.f32.mrb[0].mxu0
        %v1625 = vpop.f32.mrb[0].mxu0
        %v1626 = vadd.f32 0.0, %v1625
        %v1627 = vpop.f32.mrb[0].mxu0
        %1628 = vmatprep.mubr.bf16.mxu0 0
        %1629 = vmatmul.mubr.bf16.gmra.mrb[0].mxu0 %v1467
        %v1630 = vpop.f32.mrb[0].mxu0
        %v1631 = vadd.f32 0.0, %v1630
        %v1632 = vpop.f32.mrb[0].mxu0
        %v1633 = vpop.f32.mrb[0].mxu0
        %v1634 = vadd.f32 0.0, %v1633
        %v1635 = vpop.f32.mrb[0].mxu0
        %1636 = vmatprep.mubr.bf16.mxu0 0
        %1637 = vmatmul.mubr.bf16.gmra.mrb[0].mxu0 %v1468
        %v1638 = vpop.f32.mrb[0].mxu0
        %v1639 = vadd.f32 0.0, %v1638
        %v1640 = vpop.f32.mrb[0].mxu0
        %v1641 = vpop.f32.mrb[0].mxu0
        %v1642 = vadd.f32 0.0, %v1641
        %v1643 = vpop.f32.mrb[0].mxu0
        %1644 = vmatprep.mubr.bf16.mxu0 0
        %1645 = vmatmul.mubr.bf16.gmra.mrb[0].mxu0 %v1469
        %v1646 = vpop.f32.mrb[0].mxu0
        %v1647 = vadd.f32 0.0, %v1646
        %v1648 = vpop.f32.mrb[0].mxu0
        %v1649 = vpop.f32.mrb[0].mxu0
        %v1650 = vadd.f32 0.0, %v1649
        %v1651 = vpop.f32.mrb[0].mxu0
        %1652 = vmatprep.mubr.bf16.mxu0 0
        %1653 = vmatmul.mubr.bf16.gmra.mrb[0].mxu0 %v1470
        %v1654 = vpop.f32.mrb[0].mxu0
        %v1655 = vadd.f32 0.0, %v1654
        %v1656 = vpop.f32.mrb[0].mxu0
        %v1657 = vpop.f32.mrb[0].mxu0
        %v1658 = vadd.f32 0.0, %v1657
        %v1659 = vpop.f32.mrb[0].mxu0
        %1660 = vmatprep.mubr.bf16.mxu0 0
        %1661 = vmatmul.mubr.bf16.gmra.mrb[0].mxu0 %v1471
        %v1662 = vpop.f32.mrb[0].mxu0
        %v1663 = vadd.f32 0.0, %v1662
        %v1664 = vpop.f32.mrb[0].mxu0
        %v1665 = vpop.f32.mrb[0].mxu0
        %v1666 = vadd.f32 0.0, %v1665
        %v1667 = vpop.f32.mrb[0].mxu0
        %1668 = vmatprep.mubr.bf16.mxu0 0
        %1669 = vmatmul.mubr.bf16.gmra.mrb[0].mxu0 %v1472
        %v1670 = vpop.f32.mrb[0].mxu0
        %v1671 = vadd.f32 0.0, %v1670
        %v1672 = vpop.f32.mrb[0].mxu0
        %v1673 = vpop.f32.mrb[0].mxu0
        %v1674 = vadd.f32 0.0, %v1673
        %v1675 = vpop.f32.mrb[0].mxu0
        %1676 = vmatprep.mubr.bf16.mxu0 0
        %1677 = vmatmul.mubr.bf16.gmra.mrb[0].mxu0 %v1473
        %v1678 = vpop.f32.mrb[0].mxu0
        %v1679 = vadd.f32 0.0, %v1678
        %v1680 = vpop.f32.mrb[0].mxu0
        %v1681 = vpop.f32.mrb[0].mxu0
        %v1682 = vadd.f32 0.0, %v1681
        %v1683 = vpop.f32.mrb[0].mxu0
        %1684 = vmatprep.mubr.bf16.mxu0 0
        %1685 = vmatmul.mubr.bf16.gmra.mrb[0].mxu0 %v1474
        %v1686 = vpop.f32.mrb[0].mxu0
        %v1687 = vadd.f32 0.0, %v1686
        %v1688 = vpop.f32.mrb[0].mxu0
        %v1689 = vpop.f32.mrb[0].mxu0
        %v1690 = vadd.f32 0.0, %v1689
        %v1691 = vpop.f32.mrb[0].mxu0
        %1692 = vmatprep.mubr.bf16.mxu0 0
        %1693 = vmatmul.mubr.bf16.gmra.mrb[0].mxu0 %v1475
        %v1694 = vpop.f32.mrb[0].mxu0
        %v1695 = vadd.f32 0.0, %v1694
        %v1696 = vpop.f32.mrb[0].mxu0
        %v1697 = vpop.f32.mrb[0].mxu0
        %v1698 = vadd.f32 0.0, %v1697
        %v1699 = vpop.f32.mrb[0].mxu0
        %1700 = vdwg.mxu0
        %v1701 = vld [vmem:[%s2] sm:$0x1]
        %v1703 = vlaneseq
        %v1704 = vshrl.u32 %v1703, 7
        %v1705 = vsub.s32 0, %v1704
        %v1706 = vrot.slane %v1701, %v1705
        %v1708 = vmul.f32 %v1575, %v1706
        %v1709 = vmul.f32 %v1578, %v1706
        %v1710 = vmul.f32 %v1583, %v1706
        %v1711 = vmul.f32 %v1586, %v1706
        %v1712 = vmul.f32 %v1591, %v1706
        %v1713 = vmul.f32 %v1594, %v1706
        %v1714 = vmul.f32 %v1599, %v1706
        %v1715 = vmul.f32 %v1602, %v1706
        %v1716 = vmul.f32 %v1607, %v1706
        %v1717 = vmul.f32 %v1610, %v1706
        %v1718 = vmul.f32 %v1615, %v1706
        %v1719 = vmul.f32 %v1618, %v1706
        %v1720 = vmul.f32 %v1623, %v1706
        %v1721 = vmul.f32 %v1626, %v1706
        %v1722 = vmul.f32 %v1631, %v1706
        %v1723 = vmul.f32 %v1634, %v1706
        %v1724 = vmul.f32 %v1639, %v1706
        %v1725 = vmul.f32 %v1642, %v1706
        %v1726 = vmul.f32 %v1647, %v1706
        %v1727 = vmul.f32 %v1650, %v1706
        %v1728 = vmul.f32 %v1655, %v1706
        %v1729 = vmul.f32 %v1658, %v1706
        %v1730 = vmul.f32 %v1663, %v1706
        %v1731 = vmul.f32 %v1666, %v1706
        %v1732 = vmul.f32 %v1671, %v1706
        %v1733 = vmul.f32 %v1674, %v1706
        %v1734 = vmul.f32 %v1679, %v1706
        %v1735 = vmul.f32 %v1682, %v1706
        %v1736 = vmul.f32 %v1687, %v1706
        %v1737 = vmul.f32 %v1690, %v1706
        %v1738 = vmul.f32 %v1695, %v1706
        %v1739 = vmul.f32 %v1698, %v1706
        %v1740 = vld [vmem:[%s3] sm:$0x1]
        %v1742 = vlaneseq
        %v1743 = vshrl.u32 %v1742, 7
        %v1744 = vsub.s32 0, %v1743
        %v1745 = vrot.slane %v1740, %v1744
        %v1747 = vadd.f32 %v1708, %v1745
        %v1748 = vadd.f32 %v1709, %v1745
        %v1749 = vadd.f32 %v1710, %v1745
        %v1750 = vadd.f32 %v1711, %v1745
        %v1751 = vadd.f32 %v1712, %v1745
        %v1752 = vadd.f32 %v1713, %v1745
        %v1753 = vadd.f32 %v1714, %v1745
        %v1754 = vadd.f32 %v1715, %v1745
        %v1755 = vadd.f32 %v1716, %v1745
        %v1756 = vadd.f32 %v1717, %v1745
        %v1757 = vadd.f32 %v1718, %v1745
        %v1758 = vadd.f32 %v1719, %v1745
        %v1759 = vadd.f32 %v1720, %v1745
        %v1760 = vadd.f32 %v1721, %v1745
        %v1761 = vadd.f32 %v1722, %v1745
        %v1762 = vadd.f32 %v1723, %v1745
        %v1763 = vadd.f32 %v1724, %v1745
        %v1764 = vadd.f32 %v1725, %v1745
        %v1765 = vadd.f32 %v1726, %v1745
        %v1766 = vadd.f32 %v1727, %v1745
        %v1767 = vadd.f32 %v1728, %v1745
        %v1768 = vadd.f32 %v1729, %v1745
        %v1769 = vadd.f32 %v1730, %v1745
        %v1770 = vadd.f32 %v1731, %v1745
        %v1771 = vadd.f32 %v1732, %v1745
        %v1772 = vadd.f32 %v1733, %v1745
        %v1773 = vadd.f32 %v1734, %v1745
        %v1774 = vadd.f32 %v1735, %v1745
        %v1775 = vadd.f32 %v1736, %v1745
        %v1776 = vadd.f32 %v1737, %v1745
        %v1777 = vadd.f32 %v1738, %v1745
        %v1778 = vadd.f32 %v1739, %v1745
        %v1779 = vsub.f32 0.0, %v1747
        %v1780 = vsub.f32 0.0, %v1748
        %v1781 = vsub.f32 0.0, %v1749
        %v1782 = vsub.f32 0.0, %v1750
        %v1783 = vsub.f32 0.0, %v1751
        %v1784 = vsub.f32 0.0, %v1752
        %v1785 = vsub.f32 0.0, %v1753
        %v1786 = vsub.f32 0.0, %v1754
        %v1787 = vsub.f32 0.0, %v1755
        %v1788 = vsub.f32 0.0, %v1756
        %v1789 = vsub.f32 0.0, %v1757
        %v1790 = vsub.f32 0.0, %v1758
        %v1791 = vsub.f32 0.0, %v1759
        %v1792 = vsub.f32 0.0, %v1760
        %v1793 = vsub.f32 0.0, %v1761
        %v1794 = vsub.f32 0.0, %v1762
        %v1795 = vsub.f32 0.0, %v1763
        %v1796 = vsub.f32 0.0, %v1764
        %v1797 = vsub.f32 0.0, %v1765
        %v1798 = vsub.f32 0.0, %v1766
        %v1799 = vsub.f32 0.0, %v1767
        %v1800 = vsub.f32 0.0, %v1768
        %v1801 = vsub.f32 0.0, %v1769
        %v1802 = vsub.f32 0.0, %v1770
        %v1803 = vsub.f32 0.0, %v1771
        %v1804 = vsub.f32 0.0, %v1772
        %v1805 = vsub.f32 0.0, %v1773
        %v1806 = vsub.f32 0.0, %v1774
        %v1807 = vsub.f32 0.0, %v1775
        %v1808 = vsub.f32 0.0, %v1776
        %v1809 = vsub.f32 0.0, %v1777
        %v1810 = vsub.f32 0.0, %v1778
        %v1811 = vmul.f32 %v1779, 1.442695
        %v1812 = vpow.pop %v1811
        %v1813 = vmul.f32 %v1780, 1.442695
        %v1814 = vpow.pop %v1813
        %v1815 = vmul.f32 %v1781, 1.442695
        %v1816 = vpow.pop %v1815
        %v1817 = vmul.f32 %v1782, 1.442695
        %v1818 = vpow.pop %v1817
        %v1819 = vmul.f32 %v1783, 1.442695
        %v1820 = vpow.pop %v1819
        %v1821 = vmul.f32 %v1784, 1.442695
        %v1822 = vpow.pop %v1821
        %v1823 = vmul.f32 %v1785, 1.442695
        %v1824 = vpow.pop %v1823
        %v1825 = vmul.f32 %v1786, 1.442695
        %v1826 = vpow.pop %v1825
        %v1827 = vmul.f32 %v1787, 1.442695
        %v1828 = vpow.pop %v1827
        %v1829 = vmul.f32 %v1788, 1.442695
        %v1830 = vpow.pop %v1829
        %v1831 = vmul.f32 %v1789, 1.442695
        %v1832 = vpow.pop %v1831
        %v1833 = vmul.f32 %v1790, 1.442695
        %v1834 = vpow.pop %v1833
        %v1835 = vmul.f32 %v1791, 1.442695
        %v1836 = vpow.pop %v1835
        %v1837 = vmul.f32 %v1792, 1.442695
        %v1838 = vpow.pop %v1837
        %v1839 = vmul.f32 %v1793, 1.442695
        %v1840 = vpow.pop %v1839
        %v1841 = vmul.f32 %v1794, 1.442695
        %v1842 = vpow.pop %v1841
        %v1843 = vmul.f32 %v1795, 1.442695
        %v1844 = vpow.pop %v1843
        %v1845 = vmul.f32 %v1796, 1.442695
        %v1846 = vpow.pop %v1845
        %v1847 = vmul.f32 %v1797, 1.442695
        %v1848 = vpow.pop %v1847
        %v1849 = vmul.f32 %v1798, 1.442695
        %v1850 = vpow.pop %v1849
        %v1851 = vmul.f32 %v1799, 1.442695
        %v1852 = vpow.pop %v1851
        %v1853 = vmul.f32 %v1800, 1.442695
        %v1854 = vpow.pop %v1853
        %v1855 = vmul.f32 %v1801, 1.442695
        %v1856 = vpow.pop %v1855
        %v1857 = vmul.f32 %v1802, 1.442695
        %v1858 = vpow.pop %v1857
        %v1859 = vmul.f32 %v1803, 1.442695
        %v1860 = vpow.pop %v1859
        %v1861 = vmul.f32 %v1804, 1.442695
        %v1862 = vpow.pop %v1861
        %v1863 = vmul.f32 %v1805, 1.442695
        %v1864 = vpow.pop %v1863
        %v1865 = vmul.f32 %v1806, 1.442695
        %v1866 = vpow.pop %v1865
        %v1867 = vmul.f32 %v1807, 1.442695
        %v1868 = vpow.pop %v1867
        %v1869 = vmul.f32 %v1808, 1.442695
        %v1870 = vpow.pop %v1869
        %v1871 = vmul.f32 %v1809, 1.442695
        %v1872 = vpow.pop %v1871
        %v1873 = vmul.f32 %v1810, 1.442695
        %v1874 = vpow.pop %v1873
        %v1875 = vadd.f32 %v1812, 1.0
        %v1876 = vadd.f32 %v1814, 1.0
        %v1877 = vadd.f32 %v1816, 1.0
        %v1878 = vadd.f32 %v1818, 1.0
        %v1879 = vadd.f32 %v1820, 1.0
        %v1880 = vadd.f32 %v1822, 1.0
        %v1881 = vadd.f32 %v1824, 1.0
        %v1882 = vadd.f32 %v1826, 1.0
        %v1883 = vadd.f32 %v1828, 1.0
        %v1884 = vadd.f32 %v1830, 1.0
        %v1885 = vadd.f32 %v1832, 1.0
        %v1886 = vadd.f32 %v1834, 1.0
        %v1887 = vadd.f32 %v1836, 1.0
        %v1888 = vadd.f32 %v1838, 1.0
        %v1889 = vadd.f32 %v1840, 1.0
        %v1890 = vadd.f32 %v1842, 1.0
        %v1891 = vadd.f32 %v1844, 1.0
        %v1892 = vadd.f32 %v1846, 1.0
        %v1893 = vadd.f32 %v1848, 1.0
        %v1894 = vadd.f32 %v1850, 1.0
        %v1895 = vadd.f32 %v1852, 1.0
        %v1896 = vadd.f32 %v1854, 1.0
        %v1897 = vadd.f32 %v1856, 1.0
        %v1898 = vadd.f32 %v1858, 1.0
        %v1899 = vadd.f32 %v1860, 1.0
        %v1900 = vadd.f32 %v1862, 1.0
        %v1901 = vadd.f32 %v1864, 1.0
        %v1902 = vadd.f32 %v1866, 1.0
        %v1903 = vadd.f32 %v1868, 1.0
        %v1904 = vadd.f32 %v1870, 1.0
        %v1905 = vadd.f32 %v1872, 1.0
        %v1906 = vadd.f32 %v1874, 1.0
        %v1907 = vrcp.pop %v1875
        %v1908 = vrcp.pop %v1876
        %v1909 = vrcp.pop %v1877
        %v1910 = vrcp.pop %v1878
        %v1911 = vrcp.pop %v1879
        %v1912 = vrcp.pop %v1880
        %v1913 = vrcp.pop %v1881
        %v1914 = vrcp.pop %v1882
        %v1915 = vrcp.pop %v1883
        %v1916 = vrcp.pop %v1884
        %v1917 = vrcp.pop %v1885
        %v1918 = vrcp.pop %v1886
        %v1919 = vrcp.pop %v1887
        %v1920 = vrcp.pop %v1888
        %v1921 = vrcp.pop %v1889
        %v1922 = vrcp.pop %v1890
        %v1923 = vrcp.pop %v1891
        %v1924 = vrcp.pop %v1892
        %v1925 = vrcp.pop %v1893
        %v1926 = vrcp.pop %v1894
        %v1927 = vrcp.pop %v1895
        %v1928 = vrcp.pop %v1896
        %v1929 = vrcp.pop %v1897
        %v1930 = vrcp.pop %v1898
        %v1931 = vrcp.pop %v1899
        %v1932 = vrcp.pop %v1900
        %v1933 = vrcp.pop %v1901
        %v1934 = vrcp.pop %v1902
        %v1935 = vrcp.pop %v1903
        %v1936 = vrcp.pop %v1904
        %v1937 = vrcp.pop %v1905
        %v1938 = vrcp.pop %v1906
        %v1939 = vmul.f32 %v1747, %v1907
        %v1940 = vmul.f32 %v1748, %v1908
        %v1941 = vmul.f32 %v1749, %v1909
        %v1942 = vmul.f32 %v1750, %v1910
        %v1943 = vmul.f32 %v1751, %v1911
        %v1944 = vmul.f32 %v1752, %v1912
        %v1945 = vmul.f32 %v1753, %v1913
        %v1946 = vmul.f32 %v1754, %v1914
        %v1947 = vmul.f32 %v1755, %v1915
        %v1948 = vmul.f32 %v1756, %v1916
        %v1949 = vmul.f32 %v1757, %v1917
        %v1950 = vmul.f32 %v1758, %v1918
        %v1951 = vmul.f32 %v1759, %v1919
        %v1952 = vmul.f32 %v1760, %v1920
        %v1953 = vmul.f32 %v1761, %v1921
        %v1954 = vmul.f32 %v1762, %v1922
        %v1955 = vmul.f32 %v1763, %v1923
        %v1956 = vmul.f32 %v1764, %v1924
        %v1957 = vmul.f32 %v1765, %v1925
        %v1958 = vmul.f32 %v1766, %v1926
        %v1959 = vmul.f32 %v1767, %v1927
        %v1960 = vmul.f32 %v1768, %v1928
        %v1961 = vmul.f32 %v1769, %v1929
        %v1962 = vmul.f32 %v1770, %v1930
        %v1963 = vmul.f32 %v1771, %v1931
        %v1964 = vmul.f32 %v1772, %v1932
        %v1965 = vmul.f32 %v1773, %v1933
        %v1966 = vmul.f32 %v1774, %v1934
        %v1967 = vmul.f32 %v1775, %v1935
        %v1968 = vmul.f32 %v1776, %v1936
        %v1969 = vmul.f32 %v1777, %v1937
        %v1970 = vmul.f32 %v1778, %v1938
        loop: start=0, step=1, limit=2
        $region125: #{tpu_custom_call.1} parent=95 // loop_pre_header
          _
        $region126: #{tpu_custom_call.1} parent=95 // loop_header
          %s1972 = sphi 0, %s1976
          %p1973 = scmp.ge.s32.totalorder %s1972, 2
          %v1977 = vphi %v1939, %v4945
          %v1978 = vphi %v1940, %v4946
          %v1979 = vphi %v1941, %v4947
          %v1980 = vphi %v1942, %v4948
          %v1981 = vphi %v1943, %v4949
          %v1982 = vphi %v1944, %v4950
          %v1983 = vphi %v1945, %v4951
          %v1984 = vphi %v1946, %v4952
          %v1985 = vphi %v1947, %v4953
          %v1986 = vphi %v1948, %v4954
          %v1987 = vphi %v1949, %v4955
          %v1988 = vphi %v1950, %v4956
          %v1989 = vphi %v1951, %v4957
          %v1990 = vphi %v1952, %v4958
          %v1991 = vphi %v1953, %v4959
          %v1992 = vphi %v1954, %v4960
          %v1993 = vphi %v1955, %v4961
          %v1994 = vphi %v1956, %v4962
          %v1995 = vphi %v1957, %v4963
          %v1996 = vphi %v1958, %v4964
          %v1997 = vphi %v1959, %v4965
          %v1998 = vphi %v1960, %v4966
          %v1999 = vphi %v1961, %v4967
          %v2000 = vphi %v1962, %v4968
          %v2001 = vphi %v1963, %v4969
          %v2002 = vphi %v1964, %v4970
          %v2003 = vphi %v1965, %v4971
          %v2004 = vphi %v1966, %v4972
          %v2005 = vphi %v1967, %v4973
          %v2006 = vphi %v1968, %v4974
          %v2007 = vphi %v1969, %v4975
          %v2008 = vphi %v1970, %v4976
        $region127: #{tpu_custom_call.1} parent=95 // loop_header_branch
          %1975 = sbr.rel (%p1973) target = $region131
        $region128: #{tpu_custom_call.1} parent=95 // loop_body
          %s2009 = smul.u32 %s1972, 16
          %s2010 = smul.addr %s2009, 4
          %s2011 = scalar_lea.vmem [#allocation8], %s2010
          %v2012 = vld [vmem:[%s2011] sm:$0xf]
          %v2013 = vld [vmem:[%s2011 + $0x4] sm:$0xf]
          %v2014 = vld [vmem:[%s2011 + $0x8] sm:$0xf]
          %v2015 = vld [vmem:[%s2011 + $0xc] sm:$0xf]
          %v2016 = vld [vmem:[%s2011 + $0x10] sm:$0xf]
          %v2017 = vld [vmem:[%s2011 + $0x14] sm:$0xf]
          %v2018 = vld [vmem:[%s2011 + $0x18] sm:$0xf]
          %v2019 = vld [vmem:[%s2011 + $0x1c] sm:$0xf]
          %v2020 = vld [vmem:[%s2011 + $0x20] sm:$0xf]
          %v2021 = vld [vmem:[%s2011 + $0x24] sm:$0xf]
          %v2022 = vld [vmem:[%s2011 + $0x28] sm:$0xf]
          %v2023 = vld [vmem:[%s2011 + $0x2c] sm:$0xf]
          %v2024 = vld [vmem:[%s2011 + $0x30] sm:$0xf]
          %v2025 = vld [vmem:[%s2011 + $0x34] sm:$0xf]
          %v2026 = vld [vmem:[%s2011 + $0x38] sm:$0xf]
          %v2027 = vld [vmem:[%s2011 + $0x3c] sm:$0xf]
          %v2028 = vpack.c.bf16 %v1978, %v1977
          %v2029 = vpack.c.bf16 %v1980, %v1979
          %v2030 = vpack.c.bf16 %v1982, %v1981
          %v2031 = vpack.c.bf16 %v1984, %v1983
          %v2032 = vpack.c.bf16 %v1986, %v1985
          %v2033 = vpack.c.bf16 %v1988, %v1987
          %v2034 = vpack.c.bf16 %v1990, %v1989
          %v2035 = vpack.c.bf16 %v1992, %v1991
          %v2036 = vpack.c.bf16 %v1994, %v1993
          %v2037 = vpack.c.bf16 %v1996, %v1995
          %v2038 = vpack.c.bf16 %v1998, %v1997
          %v2039 = vpack.c.bf16 %v2000, %v1999
          %v2040 = vpack.c.bf16 %v2002, %v2001
          %v2041 = vpack.c.bf16 %v2004, %v2003
          %v2042 = vpack.c.bf16 %v2006, %v2005
          %v2043 = vpack.c.bf16 %v2008, %v2007
          %v2060 = vunpack.c.l.b16 %v2012
          %v2061 = vunpack.c.l.b16 %v2013
          %v2062 = vunpack.c.l.b16 %v2014
          %v2063 = vunpack.c.l.b16 %v2015
          %v2064 = vunpack.c.l.b16 %v2016
          %v2065 = vunpack.c.l.b16 %v2017
          %v2066 = vunpack.c.l.b16 %v2018
          %v2067 = vunpack.c.l.b16 %v2019
          %v2068 = vunpack.c.l.b16 %v2020
          %v2069 = vunpack.c.l.b16 %v2021
          %v2070 = vunpack.c.l.b16 %v2022
          %v2071 = vunpack.c.l.b16 %v2023
          %v2072 = vunpack.c.l.b16 %v2024
          %v2073 = vunpack.c.l.b16 %v2025
          %v2074 = vunpack.c.l.b16 %v2026
          %v2075 = vunpack.c.l.b16 %v2027
          %v2076 = vpack.c.b16 %v2061, %v2060
          %v2077 = vpack.c.b16 %v2063, %v2062
          %v2078 = vpack.c.b16 %v2065, %v2064
          %v2079 = vpack.c.b16 %v2067, %v2066
          %v2080 = vpack.c.b16 %v2069, %v2068
          %v2081 = vpack.c.b16 %v2071, %v2070
          %v2082 = vpack.c.b16 %v2073, %v2072
          %v2083 = vpack.c.b16 %v2075, %v2074
          %2092 = vmatprep.subr.bf16.mxu0 0
          %2093 = vmatpush1.bf16.msra.mxu0 %v2076
          %2094 = vmatprep.subr.bf16.mxu0 0
          %2095 = vmatpush1.bf16.msra.mxu0 %v2077
          %2096 = vmatprep.subr.bf16.mxu0 0
          %2097 = vmatpush1.bf16.msra.mxu0 %v2078
          %2098 = vmatprep.subr.bf16.mxu0 0
          %2099 = vmatpush1.bf16.msra.mxu0 %v2079
          %2100 = vmatprep.subr.bf16.mxu0 0
          %2101 = vmatpush1.bf16.msra.mxu0 %v2080
          %2102 = vmatprep.subr.bf16.mxu0 0
          %2103 = vmatpush1.bf16.msra.mxu0 %v2081
          %2104 = vmatprep.subr.bf16.mxu0 0
          %2105 = vmatpush1.bf16.msra.mxu0 %v2082
          %2106 = vmatprep.subr.bf16.mxu0 0
          %2107 = vmatpush1.bf16.msra.mxu0 %v2083
          %2108 = vmatprep.subr.bf16.mxu0 0
          %2109 = vmatpush1.bf16.msra.mxu0 0
          %2110 = vmatprep.subr.bf16.mxu0 0
          %2111 = vmatpush1.bf16.msra.mxu0 0
          %2112 = vmatprep.subr.bf16.mxu0 0
          %2113 = vmatpush1.bf16.msra.mxu0 0
          %2114 = vmatprep.subr.bf16.mxu0 0
          %2115 = vmatpush1.bf16.msra.mxu0 0
          %2116 = vmatprep.subr.bf16.mxu0 0
          %2117 = vmatpush1.bf16.msra.mxu0 0
          %2118 = vmatprep.subr.bf16.mxu0 0
          %2119 = vmatpush1.bf16.msra.mxu0 0
          %2120 = vmatprep.subr.bf16.mxu0 0
          %2121 = vmatpush1.bf16.msra.mxu0 0
          %2122 = vmatprep.subr.bf16.mxu0 0
          %2123 = vmatpush1.bf16.msra.mxu0 0
          %2124 = vmatprep.mubr.bf16.mxu0 0
          %2125 = vmatmul.mubr.bf16.gmra.mrb[0].mxu0 %v2028
          %v2126 = vpop.f32.mrb[0].mxu0
          %v2127 = vadd.f32 0.0, %v2126
          %v2128 = vpop.f32.mrb[0].mxu0
          %v2129 = vpop.f32.mrb[0].mxu0
          %v2130 = vadd.f32 0.0, %v2129
          %v2131 = vpop.f32.mrb[0].mxu0
          %2132 = vmatprep.mubr.bf16.mxu0 0
          %2133 = vmatmul.mubr.bf16.gmra.mrb[0].mxu0 %v2029
          %v2134 = vpop.f32.mrb[0].mxu0
          %v2135 = vadd.f32 0.0, %v2134
          %v2136 = vpop.f32.mrb[0].mxu0
          %v2137 = vpop.f32.mrb[0].mxu0
          %v2138 = vadd.f32 0.0, %v2137
          %v2139 = vpop.f32.mrb[0].mxu0
          %2140 = vmatprep.mubr.bf16.mxu0 0
          %2141 = vmatmul.mubr.bf16.gmra.mrb[0].mxu0 %v2030
          %v2142 = vpop.f32.mrb[0].mxu0
          %v2143 = vadd.f32 0.0, %v2142
          %v2144 = vpop.f32.mrb[0].mxu0
          %v2145 = vpop.f32.mrb[0].mxu0
          %v2146 = vadd.f32 0.0, %v2145
          %v2147 = vpop.f32.mrb[0].mxu0
          %2148 = vmatprep.mubr.bf16.mxu0 0
          %2149 = vmatmul.mubr.bf16.gmra.mrb[0].mxu0 %v2031
          %v2150 = vpop.f32.mrb[0].mxu0
          %v2151 = vadd.f32 0.0, %v2150
          %v2152 = vpop.f32.mrb[0].mxu0
          %v2153 = vpop.f32.mrb[0].mxu0
          %v2154 = vadd.f32 0.0, %v2153
          %v2155 = vpop.f32.mrb[0].mxu0
          %2156 = vmatprep.mubr.bf16.mxu0 0
          %2157 = vmatmul.mubr.bf16.gmra.mrb[0].mxu0 %v2032
          %v2158 = vpop.f32.mrb[0].mxu0
          %v2159 = vadd.f32 0.0, %v2158
          %v2160 = vpop.f32.mrb[0].mxu0
          %v2161 = vpop.f32.mrb[0].mxu0
          %v2162 = vadd.f32 0.0, %v2161
          %v2163 = vpop.f32.mrb[0].mxu0
          %2164 = vmatprep.mubr.bf16.mxu0 0
          %2165 = vmatmul.mubr.bf16.gmra.mrb[0].mxu0 %v2033
          %v2166 = vpop.f32.mrb[0].mxu0
          %v2167 = vadd.f32 0.0, %v2166
          %v2168 = vpop.f32.mrb[0].mxu0
          %v2169 = vpop.f32.mrb[0].mxu0
          %v2170 = vadd.f32 0.0, %v2169
          %v2171 = vpop.f32.mrb[0].mxu0
          %2172 = vmatprep.mubr.bf16.mxu0 0
          %2173 = vmatmul.mubr.bf16.gmra.mrb[0].mxu0 %v2034
          %v2174 = vpop.f32.mrb[0].mxu0
          %v2175 = vadd.f32 0.0, %v2174
          %v2176 = vpop.f32.mrb[0].mxu0
          %v2177 = vpop.f32.mrb[0].mxu0
          %v2178 = vadd.f32 0.0, %v2177
          %v2179 = vpop.f32.mrb[0].mxu0
          %2180 = vmatprep.mubr.bf16.mxu0 0
          %2181 = vmatmul.mubr.bf16.gmra.mrb[0].mxu0 %v2035
          %v2182 = vpop.f32.mrb[0].mxu0
          %v2183 = vadd.f32 0.0, %v2182
          %v2184 = vpop.f32.mrb[0].mxu0
          %v2185 = vpop.f32.mrb[0].mxu0
          %v2186 = vadd.f32 0.0, %v2185
          %v2187 = vpop.f32.mrb[0].mxu0
          %2188 = vmatprep.mubr.bf16.mxu0 0
          %2189 = vmatmul.mubr.bf16.gmra.mrb[0].mxu0 %v2036
          %v2190 = vpop.f32.mrb[0].mxu0
          %v2191 = vadd.f32 0.0, %v2190
          %v2192 = vpop.f32.mrb[0].mxu0
          %v2193 = vpop.f32.mrb[0].mxu0
          %v2194 = vadd.f32 0.0, %v2193
          %v2195 = vpop.f32.mrb[0].mxu0
          %2196 = vmatprep.mubr.bf16.mxu0 0
          %2197 = vmatmul.mubr.bf16.gmra.mrb[0].mxu0 %v2037
          %v2198 = vpop.f32.mrb[0].mxu0
          %v2199 = vadd.f32 0.0, %v2198
          %v2200 = vpop.f32.mrb[0].mxu0
          %v2201 = vpop.f32.mrb[0].mxu0
          %v2202 = vadd.f32 0.0, %v2201
          %v2203 = vpop.f32.mrb[0].mxu0
          %2204 = vmatprep.mubr.bf16.mxu0 0
          %2205 = vmatmul.mubr.bf16.gmra.mrb[0].mxu0 %v2038
          %v2206 = vpop.f32.mrb[0].mxu0
          %v2207 = vadd.f32 0.0, %v2206
          %v2208 = vpop.f32.mrb[0].mxu0
          %v2209 = vpop.f32.mrb[0].mxu0
          %v2210 = vadd.f32 0.0, %v2209
          %v2211 = vpop.f32.mrb[0].mxu0
          %2212 = vmatprep.mubr.bf16.mxu0 0
          %2213 = vmatmul.mubr.bf16.gmra.mrb[0].mxu0 %v2039
          %v2214 = vpop.f32.mrb[0].mxu0
          %v2215 = vadd.f32 0.0, %v2214
          %v2216 = vpop.f32.mrb[0].mxu0
          %v2217 = vpop.f32.mrb[0].mxu0
          %v2218 = vadd.f32 0.0, %v2217
          %v2219 = vpop.f32.mrb[0].mxu0
          %2220 = vmatprep.mubr.bf16.mxu0 0
          %2221 = vmatmul.mubr.bf16.gmra.mrb[0].mxu0 %v2040
          %v2222 = vpop.f32.mrb[0].mxu0
          %v2223 = vadd.f32 0.0, %v2222
          %v2224 = vpop.f32.mrb[0].mxu0
          %v2225 = vpop.f32.mrb[0].mxu0
          %v2226 = vadd.f32 0.0, %v2225
          %v2227 = vpop.f32.mrb[0].mxu0
          %2228 = vmatprep.mubr.bf16.mxu0 0
          %2229 = vmatmul.mubr.bf16.gmra.mrb[0].mxu0 %v2041
          %v2230 = vpop.f32.mrb[0].mxu0
          %v2231 = vadd.f32 0.0, %v2230
          %v2232 = vpop.f32.mrb[0].mxu0
          %v2233 = vpop.f32.mrb[0].mxu0
          %v2234 = vadd.f32 0.0, %v2233
          %v2235 = vpop.f32.mrb[0].mxu0
          %2236 = vmatprep.mubr.bf16.mxu0 0
          %2237 = vmatmul.mubr.bf16.gmra.mrb[0].mxu0 %v2042
          %v2238 = vpop.f32.mrb[0].mxu0
          %v2239 = vadd.f32 0.0, %v2238
          %v2240 = vpop.f32.mrb[0].mxu0
          %v2241 = vpop.f32.mrb[0].mxu0
          %v2242 = vadd.f32 0.0, %v2241
          %v2243 = vpop.f32.mrb[0].mxu0
          %2244 = vmatprep.mubr.bf16.mxu0 0
          %2245 = vmatmul.mubr.bf16.gmra.mrb[0].mxu0 %v2043
          %v2246 = vpop.f32.mrb[0].mxu0
          %v2247 = vadd.f32 0.0, %v2246
          %v2248 = vpop.f32.mrb[0].mxu0
          %v2249 = vpop.f32.mrb[0].mxu0
          %v2250 = vadd.f32 0.0, %v2249
          %v2251 = vpop.f32.mrb[0].mxu0
          %2252 = vdwg.mxu0
          %s2253 = scalar_lea.vmem %s5, %s1972
          %v2254 = vld [vmem:[%s2253] sm:$0x1]
          %v2256 = vlaneseq
          %v2257 = vshrl.u32 %v2256, 7
          %v2258 = vsub.s32 0, %v2257
          %v2259 = vrot.slane %v2254, %v2258
          %v2261 = vmul.f32 %v2127, %v2259
          %v2262 = vmul.f32 %v2130, %v2259
          %v2263 = vmul.f32 %v2135, %v2259
          %v2264 = vmul.f32 %v2138, %v2259
          %v2265 = vmul.f32 %v2143, %v2259
          %v2266 = vmul.f32 %v2146, %v2259
          %v2267 = vmul.f32 %v2151, %v2259
          %v2268 = vmul.f32 %v2154, %v2259
          %v2269 = vmul.f32 %v2159, %v2259
          %v2270 = vmul.f32 %v2162, %v2259
          %v2271 = vmul.f32 %v2167, %v2259
          %v2272 = vmul.f32 %v2170, %v2259
          %v2273 = vmul.f32 %v2175, %v2259
          %v2274 = vmul.f32 %v2178, %v2259
          %v2275 = vmul.f32 %v2183, %v2259
          %v2276 = vmul.f32 %v2186, %v2259
          %v2277 = vmul.f32 %v2191, %v2259
          %v2278 = vmul.f32 %v2194, %v2259
          %v2279 = vmul.f32 %v2199, %v2259
          %v2280 = vmul.f32 %v2202, %v2259
          %v2281 = vmul.f32 %v2207, %v2259
          %v2282 = vmul.f32 %v2210, %v2259
          %v2283 = vmul.f32 %v2215, %v2259
          %v2284 = vmul.f32 %v2218, %v2259
          %v2285 = vmul.f32 %v2223, %v2259
          %v2286 = vmul.f32 %v2226, %v2259
          %v2287 = vmul.f32 %v2231, %v2259
          %v2288 = vmul.f32 %v2234, %v2259
          %v2289 = vmul.f32 %v2239, %v2259
          %v2290 = vmul.f32 %v2242, %v2259
          %v2291 = vmul.f32 %v2247, %v2259
          %v2292 = vmul.f32 %v2250, %v2259
          %s2293 = scalar_lea.vmem %s6, %s1972
          %v2294 = vld [vmem:[%s2293] sm:$0x1]
          %v2296 = vlaneseq
          %v2297 = vshrl.u32 %v2296, 7
          %v2298 = vsub.s32 0, %v2297
          %v2299 = vrot.slane %v2294, %v2298
          %v2301 = vadd.f32 %v2261, %v2299
          %v2302 = vadd.f32 %v2262, %v2299
          %v2303 = vadd.f32 %v2263, %v2299
          %v2304 = vadd.f32 %v2264, %v2299
          %v2305 = vadd.f32 %v2265, %v2299
          %v2306 = vadd.f32 %v2266, %v2299
          %v2307 = vadd.f32 %v2267, %v2299
          %v2308 = vadd.f32 %v2268, %v2299
          %v2309 = vadd.f32 %v2269, %v2299
          %v2310 = vadd.f32 %v2270, %v2299
          %v2311 = vadd.f32 %v2271, %v2299
          %v2312 = vadd.f32 %v2272, %v2299
          %v2313 = vadd.f32 %v2273, %v2299
          %v2314 = vadd.f32 %v2274, %v2299
          %v2315 = vadd.f32 %v2275, %v2299
          %v2316 = vadd.f32 %v2276, %v2299
          %v2317 = vadd.f32 %v2277, %v2299
          %v2318 = vadd.f32 %v2278, %v2299
          %v2319 = vadd.f32 %v2279, %v2299
          %v2320 = vadd.f32 %v2280, %v2299
          %v2321 = vadd.f32 %v2281, %v2299
          %v2322 = vadd.f32 %v2282, %v2299
          %v2323 = vadd.f32 %v2283, %v2299
          %v2324 = vadd.f32 %v2284, %v2299
          %v2325 = vadd.f32 %v2285, %v2299
          %v2326 = vadd.f32 %v2286, %v2299
          %v2327 = vadd.f32 %v2287, %v2299
          %v2328 = vadd.f32 %v2288, %v2299
          %v2329 = vadd.f32 %v2289, %v2299
          %v2330 = vadd.f32 %v2290, %v2299
          %v2331 = vadd.f32 %v2291, %v2299
          %v2332 = vadd.f32 %v2292, %v2299
          %v2333 = vsub.f32 0.0, %v2301
          %v2334 = vsub.f32 0.0, %v2302
          %v2335 = vsub.f32 0.0, %v2303
          %v2336 = vsub.f32 0.0, %v2304
          %v2337 = vsub.f32 0.0, %v2305
          %v2338 = vsub.f32 0.0, %v2306
          %v2339 = vsub.f32 0.0, %v2307
          %v2340 = vsub.f32 0.0, %v2308
          %v2341 = vsub.f32 0.0, %v2309
          %v2342 = vsub.f32 0.0, %v2310
          %v2343 = vsub.f32 0.0, %v2311
          %v2344 = vsub.f32 0.0, %v2312
          %v2345 = vsub.f32 0.0, %v2313
          %v2346 = vsub.f32 0.0, %v2314
          %v2347 = vsub.f32 0.0, %v2315
          %v2348 = vsub.f32 0.0, %v2316
          %v2349 = vsub.f32 0.0, %v2317
          %v2350 = vsub.f32 0.0, %v2318
          %v2351 = vsub.f32 0.0, %v2319
          %v2352 = vsub.f32 0.0, %v2320
          %v2353 = vsub.f32 0.0, %v2321
          %v2354 = vsub.f32 0.0, %v2322
          %v2355 = vsub.f32 0.0, %v2323
          %v2356 = vsub.f32 0.0, %v2324
          %v2357 = vsub.f32 0.0, %v2325
          %v2358 = vsub.f32 0.0, %v2326
          %v2359 = vsub.f32 0.0, %v2327
          %v2360 = vsub.f32 0.0, %v2328
          %v2361 = vsub.f32 0.0, %v2329
          %v2362 = vsub.f32 0.0, %v2330
          %v2363 = vsub.f32 0.0, %v2331
          %v2364 = vsub.f32 0.0, %v2332
          %v2365 = vmul.f32 %v2333, 1.442695
          %v2366 = vpow.pop %v2365
          %v2367 = vmul.f32 %v2334, 1.442695
          %v2368 = vpow.pop %v2367
          %v2369 = vmul.f32 %v2335, 1.442695
          %v2370 = vpow.pop %v2369
          %v2371 = vmul.f32 %v2336, 1.442695
          %v2372 = vpow.pop %v2371
          %v2373 = vmul.f32 %v2337, 1.442695
          %v2374 = vpow.pop %v2373
          %v2375 = vmul.f32 %v2338, 1.442695
          %v2376 = vpow.pop %v2375
          %v2377 = vmul.f32 %v2339, 1.442695
          %v2378 = vpow.pop %v2377
          %v2379 = vmul.f32 %v2340, 1.442695
          %v2380 = vpow.pop %v2379
          %v2381 = vmul.f32 %v2341, 1.442695
          %v2382 = vpow.pop %v2381
          %v2383 = vmul.f32 %v2342, 1.442695
          %v2384 = vpow.pop %v2383
          %v2385 = vmul.f32 %v2343, 1.442695
          %v2386 = vpow.pop %v2385
          %v2387 = vmul.f32 %v2344, 1.442695
          %v2388 = vpow.pop %v2387
          %v2389 = vmul.f32 %v2345, 1.442695
          %v2390 = vpow.pop %v2389
          %v2391 = vmul.f32 %v2346, 1.442695
          %v2392 = vpow.pop %v2391
          %v2393 = vmul.f32 %v2347, 1.442695
          %v2394 = vpow.pop %v2393
          %v2395 = vmul.f32 %v2348, 1.442695
          %v2396 = vpow.pop %v2395
          %v2397 = vmul.f32 %v2349, 1.442695
          %v2398 = vpow.pop %v2397
          %v2399 = vmul.f32 %v2350, 1.442695
          %v2400 = vpow.pop %v2399
          %v2401 = vmul.f32 %v2351, 1.442695
          %v2402 = vpow.pop %v2401
          %v2403 = vmul.f32 %v2352, 1.442695
          %v2404 = vpow.pop %v2403
          %v2405 = vmul.f32 %v2353, 1.442695
          %v2406 = vpow.pop %v2405
          %v2407 = vmul.f32 %v2354, 1.442695
          %v2408 = vpow.pop %v2407
          %v2409 = vmul.f32 %v2355, 1.442695
          %v2410 = vpow.pop %v2409
          %v2411 = vmul.f32 %v2356, 1.442695
          %v2412 = vpow.pop %v2411
          %v2413 = vmul.f32 %v2357, 1.442695
          %v2414 = vpow.pop %v2413
          %v2415 = vmul.f32 %v2358, 1.442695
          %v2416 = vpow.pop %v2415
          %v2417 = vmul.f32 %v2359, 1.442695
          %v2418 = vpow.pop %v2417
          %v2419 = vmul.f32 %v2360, 1.442695
          %v2420 = vpow.pop %v2419
          %v2421 = vmul.f32 %v2361, 1.442695
          %v2422 = vpow.pop %v2421
          %v2423 = vmul.f32 %v2362, 1.442695
          %v2424 = vpow.pop %v2423
          %v2425 = vmul.f32 %v2363, 1.442695
          %v2426 = vpow.pop %v2425
          %v2427 = vmul.f32 %v2364, 1.442695
          %v2428 = vpow.pop %v2427
          %v2429 = vadd.f32 %v2366, 1.0
          %v2430 = vadd.f32 %v2368, 1.0
          %v2431 = vadd.f32 %v2370, 1.0
          %v2432 = vadd.f32 %v2372, 1.0
          %v2433 = vadd.f32 %v2374, 1.0
          %v2434 = vadd.f32 %v2376, 1.0
          %v2435 = vadd.f32 %v2378, 1.0
          %v2436 = vadd.f32 %v2380, 1.0
          %v2437 = vadd.f32 %v2382, 1.0
          %v2438 = vadd.f32 %v2384, 1.0
          %v2439 = vadd.f32 %v2386, 1.0
          %v2440 = vadd.f32 %v2388, 1.0
          %v2441 = vadd.f32 %v2390, 1.0
          %v2442 = vadd.f32 %v2392, 1.0
          %v2443 = vadd.f32 %v2394, 1.0
          %v2444 = vadd.f32 %v2396, 1.0
          %v2445 = vadd.f32 %v2398, 1.0
          %v2446 = vadd.f32 %v2400, 1.0
          %v2447 = vadd.f32 %v2402, 1.0
          %v2448 = vadd.f32 %v2404, 1.0
          %v2449 = vadd.f32 %v2406, 1.0
          %v2450 = vadd.f32 %v2408, 1.0
          %v2451 = vadd.f32 %v2410, 1.0
          %v2452 = vadd.f32 %v2412, 1.0
          %v2453 = vadd.f32 %v2414, 1.0
          %v2454 = vadd.f32 %v2416, 1.0
          %v2455 = vadd.f32 %v2418, 1.0
          %v2456 = vadd.f32 %v2420, 1.0
          %v2457 = vadd.f32 %v2422, 1.0
          %v2458 = vadd.f32 %v2424, 1.0
          %v2459 = vadd.f32 %v2426, 1.0
          %v2460 = vadd.f32 %v2428, 1.0
          %v2461 = vrcp.pop %v2429
          %v2462 = vrcp.pop %v2430
          %v2463 = vrcp.pop %v2431
          %v2464 = vrcp.pop %v2432
          %v2465 = vrcp.pop %v2433
          %v2466 = vrcp.pop %v2434
          %v2467 = vrcp.pop %v2435
          %v2468 = vrcp.pop %v2436
          %v2469 = vrcp.pop %v2437
          %v2470 = vrcp.pop %v2438
          %v2471 = vrcp.pop %v2439
          %v2472 = vrcp.pop %v2440
          %v2473 = vrcp.pop %v2441
          %v2474 = vrcp.pop %v2442
          %v2475 = vrcp.pop %v2443
          %v2476 = vrcp.pop %v2444
          %v2477 = vrcp.pop %v2445
          %v2478 = vrcp.pop %v2446
          %v2479 = vrcp.pop %v2447
          %v2480 = vrcp.pop %v2448
          %v2481 = vrcp.pop %v2449
          %v2482 = vrcp.pop %v2450
          %v2483 = vrcp.pop %v2451
          %v2484 = vrcp.pop %v2452
          %v2485 = vrcp.pop %v2453
          %v2486 = vrcp.pop %v2454
          %v2487 = vrcp.pop %v2455
          %v2488 = vrcp.pop %v2456
          %v2489 = vrcp.pop %v2457
          %v2490 = vrcp.pop %v2458
          %v2491 = vrcp.pop %v2459
          %v2492 = vrcp.pop %v2460
          %v2493 = vmul.f32 %v2301, %v2461
          %v2494 = vmul.f32 %v2302, %v2462
          %v2495 = vmul.f32 %v2303, %v2463
          %v2496 = vmul.f32 %v2304, %v2464
          %v2497 = vmul.f32 %v2305, %v2465
          %v2498 = vmul.f32 %v2306, %v2466
          %v2499 = vmul.f32 %v2307, %v2467
          %v2500 = vmul.f32 %v2308, %v2468
          %v2501 = vmul.f32 %v2309, %v2469
          %v2502 = vmul.f32 %v2310, %v2470
          %v2503 = vmul.f32 %v2311, %v2471
          %v2504 = vmul.f32 %v2312, %v2472
          %v2505 = vmul.f32 %v2313, %v2473
          %v2506 = vmul.f32 %v2314, %v2474
          %v2507 = vmul.f32 %v2315, %v2475
          %v2508 = vmul.f32 %v2316, %v2476
          %v2509 = vmul.f32 %v2317, %v2477
          %v2510 = vmul.f32 %v2318, %v2478
          %v2511 = vmul.f32 %v2319, %v2479
          %v2512 = vmul.f32 %v2320, %v2480
          %v2513 = vmul.f32 %v2321, %v2481
          %v2514 = vmul.f32 %v2322, %v2482
          %v2515 = vmul.f32 %v2323, %v2483
          %v2516 = vmul.f32 %v2324, %v2484
          %v2517 = vmul.f32 %v2325, %v2485
          %v2518 = vmul.f32 %v2326, %v2486
          %v2519 = vmul.f32 %v2327, %v2487
          %v2520 = vmul.f32 %v2328, %v2488
          %v2521 = vmul.f32 %v2329, %v2489
          %v2522 = vmul.f32 %v2330, %v2490
          %v2523 = vmul.f32 %v2331, %v2491
          %v2524 = vmul.f32 %v2332, %v2492
          %v2525 = vpack.c.bf16 %v2494, %v2493
          %v2526 = vpack.c.bf16 %v2496, %v2495
          %v2527 = vpack.c.bf16 %v2498, %v2497
          %v2528 = vpack.c.bf16 %v2500, %v2499
          %v2529 = vpack.c.bf16 %v2502, %v2501
          %v2530 = vpack.c.bf16 %v2504, %v2503
          %v2531 = vpack.c.bf16 %v2506, %v2505
          %v2532 = vpack.c.bf16 %v2508, %v2507
          %v2533 = vpack.c.bf16 %v2510, %v2509
          %v2534 = vpack.c.bf16 %v2512, %v2511
          %v2535 = vpack.c.bf16 %v2514, %v2513
          %v2536 = vpack.c.bf16 %v2516, %v2515
          %v2537 = vpack.c.bf16 %v2518, %v2517
          %v2538 = vpack.c.bf16 %v2520, %v2519
          %v2539 = vpack.c.bf16 %v2522, %v2521
          %v2540 = vpack.c.bf16 %v2524, %v2523
          %2541 = vst [vmem:[#allocation2 + $0x20] sm:$0xff] %v2525
          %2542 = vst [vmem:[#allocation2 + $0x38] sm:$0xff] %v2526
          %2543 = vst [vmem:[#allocation2 + $0x50] sm:$0xff] %v2527
          %2544 = vst [vmem:[#allocation2 + $0x68] sm:$0xff] %v2528
          %2545 = vst [vmem:[#allocation2 + $0x80] sm:$0xff] %v2529
          %2546 = vst [vmem:[#allocation2 + $0x98] sm:$0xff] %v2530
          %2547 = vst [vmem:[#allocation2 + $0xb0] sm:$0xff] %v2531
          %2548 = vst [vmem:[#allocation2 + $0xc8] sm:$0xff] %v2532
          %2549 = vst [vmem:[#allocation2 + $0xe0] sm:$0xff] %v2533
          %2550 = vst [vmem:[#allocation2 + $0xf8] sm:$0xff] %v2534
          %2551 = vst [vmem:[#allocation2 + $0x110] sm:$0xff] %v2535
          %2552 = vst [vmem:[#allocation2 + $0x128] sm:$0xff] %v2536
          %2553 = vst [vmem:[#allocation2 + $0x140] sm:$0xff] %v2537
          %2554 = vst [vmem:[#allocation2 + $0x158] sm:$0xff] %v2538
          %2555 = vst [vmem:[#allocation2 + $0x170] sm:$0xff] %v2539
          %2556 = vst [vmem:[#allocation2 + $0x188] sm:$0xff] %v2540
          %v2557 = vmul.f32 %v2493, %v1316
          %v2558 = vmul.f32 %v2494, %v1317
          %v2559 = vmul.f32 %v2495, %v1318
          %v2560 = vmul.f32 %v2496, %v1319
          %v2561 = vmul.f32 %v2497, %v1320
          %v2562 = vmul.f32 %v2498, %v1321
          %v2563 = vmul.f32 %v2499, %v1322
          %v2564 = vmul.f32 %v2500, %v1323
          %v2565 = vmul.f32 %v2501, %v1324
          %v2566 = vmul.f32 %v2502, %v1325
          %v2567 = vmul.f32 %v2503, %v1326
          %v2568 = vmul.f32 %v2504, %v1327
          %v2569 = vmul.f32 %v2505, %v1328
          %v2570 = vmul.f32 %v2506, %v1329
          %v2571 = vmul.f32 %v2507, %v1330
          %v2572 = vmul.f32 %v2508, %v1331
          %v2573 = vmul.f32 %v2509, %v1332
          %v2574 = vmul.f32 %v2510, %v1333
          %v2575 = vmul.f32 %v2511, %v1334
          %v2576 = vmul.f32 %v2512, %v1335
          %v2577 = vmul.f32 %v2513, %v1336
          %v2578 = vmul.f32 %v2514, %v1337
          %v2579 = vmul.f32 %v2515, %v1338
          %v2580 = vmul.f32 %v2516, %v1339
          %v2581 = vmul.f32 %v2517, %v1340
          %v2582 = vmul.f32 %v2518, %v1341
          %v2583 = vmul.f32 %v2519, %v1342
          %v2584 = vmul.f32 %v2520, %v1343
          %v2585 = vmul.f32 %v2521, %v1344
          %v2586 = vmul.f32 %v2522, %v1345
          %v2587 = vmul.f32 %v2523, %v1346
          %v2588 = vmul.f32 %v2524, %v1347
          %v2589 = vpack.c.bf16 %v2558, %v2557
          %v2590 = vpack.c.bf16 %v2560, %v2559
          %v2591 = vpack.c.bf16 %v2562, %v2561
          %v2592 = vpack.c.bf16 %v2564, %v2563
          %v2593 = vpack.c.bf16 %v2566, %v2565
          %v2594 = vpack.c.bf16 %v2568, %v2567
          %v2595 = vpack.c.bf16 %v2570, %v2569
          %v2596 = vpack.c.bf16 %v2572, %v2571
          %v2597 = vpack.c.bf16 %v2574, %v2573
          %v2598 = vpack.c.bf16 %v2576, %v2575
          %v2599 = vpack.c.bf16 %v2578, %v2577
          %v2600 = vpack.c.bf16 %v2580, %v2579
          %v2601 = vpack.c.bf16 %v2582, %v2581
          %v2602 = vpack.c.bf16 %v2584, %v2583
          %v2603 = vpack.c.bf16 %v2586, %v2585
          %v2604 = vpack.c.bf16 %v2588, %v2587
          %v2606 = vshrl.u32 %v2589, 16
          %v2608 = vrot.slane %v2606, 7
          %v2609 = vshll.u32 %v2589, 16
          %v2611 = vor.u32 %v2608, %v2609
          %v2613 = vshrl.u32 %v2590, 16
          %v2615 = vrot.slane %v2613, 7
          %v2616 = vshll.u32 %v2590, 16
          %v2618 = vor.u32 %v2615, %v2616
          %v2619 = vsel %vm713, %v2608, %v2618
          %v2621 = vshrl.u32 %v2591, 16
          %v2623 = vrot.slane %v2621, 7
          %v2624 = vshll.u32 %v2591, 16
          %v2626 = vor.u32 %v2623, %v2624
          %v2627 = vsel %vm713, %v2615, %v2626
          %v2629 = vshrl.u32 %v2592, 16
          %v2631 = vrot.slane %v2629, 7
          %v2632 = vshll.u32 %v2592, 16
          %v2634 = vor.u32 %v2631, %v2632
          %v2635 = vsel %vm713, %v2623, %v2634
          %v2637 = vshrl.u32 %v2593, 16
          %v2639 = vrot.slane %v2637, 7
          %v2640 = vshll.u32 %v2593, 16
          %v2642 = vor.u32 %v2639, %v2640
          %v2643 = vsel %vm713, %v2631, %v2642
          %v2645 = vshrl.u32 %v2594, 16
          %v2647 = vrot.slane %v2645, 7
          %v2648 = vshll.u32 %v2594, 16
          %v2650 = vor.u32 %v2647, %v2648
          %v2651 = vsel %vm713, %v2639, %v2650
          %v2653 = vshrl.u32 %v2595, 16
          %v2655 = vrot.slane %v2653, 7
          %v2656 = vshll.u32 %v2595, 16
          %v2658 = vor.u32 %v2655, %v2656
          %v2659 = vsel %vm713, %v2647, %v2658
          %v2661 = vshrl.u32 %v2596, 16
          %v2663 = vrot.slane %v2661, 7
          %v2664 = vshll.u32 %v2596, 16
          %v2666 = vor.u32 %v2663, %v2664
          %v2667 = vsel %vm713, %v2655, %v2666
          %v2669 = vshrl.u32 %v2597, 16
          %v2671 = vrot.slane %v2669, 7
          %v2672 = vshll.u32 %v2597, 16
          %v2674 = vor.u32 %v2671, %v2672
          %v2675 = vsel %vm713, %v2663, %v2674
          %v2677 = vshrl.u32 %v2598, 16
          %v2679 = vrot.slane %v2677, 7
          %v2680 = vshll.u32 %v2598, 16
          %v2682 = vor.u32 %v2679, %v2680
          %v2683 = vsel %vm713, %v2671, %v2682
          %v2685 = vshrl.u32 %v2599, 16
          %v2687 = vrot.slane %v2685, 7
          %v2688 = vshll.u32 %v2599, 16
          %v2690 = vor.u32 %v2687, %v2688
          %v2691 = vsel %vm713, %v2679, %v2690
          %v2693 = vshrl.u32 %v2600, 16
          %v2695 = vrot.slane %v2693, 7
          %v2696 = vshll.u32 %v2600, 16
          %v2698 = vor.u32 %v2695, %v2696
          %v2699 = vsel %vm713, %v2687, %v2698
          %v2701 = vshrl.u32 %v2601, 16
          %v2703 = vrot.slane %v2701, 7
          %v2704 = vshll.u32 %v2601, 16
          %v2706 = vor.u32 %v2703, %v2704
          %v2707 = vsel %vm713, %v2695, %v2706
          %v2709 = vshrl.u32 %v2602, 16
          %v2711 = vrot.slane %v2709, 7
          %v2712 = vshll.u32 %v2602, 16
          %v2714 = vor.u32 %v2711, %v2712
          %v2715 = vsel %vm713, %v2703, %v2714
          %v2717 = vshrl.u32 %v2603, 16
          %v2719 = vrot.slane %v2717, 7
          %v2720 = vshll.u32 %v2603, 16
          %v2722 = vor.u32 %v2719, %v2720
          %v2723 = vsel %vm713, %v2711, %v2722
          %v2725 = vshrl.u32 %v2604, 16
          %v2727 = vrot.slane %v2725, 7
          %v2728 = vshll.u32 %v2604, 16
          %v2730 = vor.u32 %v2727, %v2728
          %v2731 = vsel %vm713, %v2719, %v2730
          %vm2749 = vcmask 1047552
          %vm2750 = vsmask.f32 7938
          %vm2751 = vmand %vm2749, %vm2750
          %v2752 = vld [vmem:[#allocation2 + $0x18] sm:$0xff]
          %v2753 = vsel %vm2751, %v2611, %v2752
          %2754 = vst [vmem:[#allocation2 + $0x18] sm:$0xff] %v2753
          %2755 = vst [vmem:[#allocation2 + $0x30] sm:$0xff] %v2619
          %2756 = vst [vmem:[#allocation2 + $0x48] sm:$0xff] %v2627
          %2757 = vst [vmem:[#allocation2 + $0x60] sm:$0xff] %v2635
          %2758 = vst [vmem:[#allocation2 + $0x78] sm:$0xff] %v2643
          %2759 = vst [vmem:[#allocation2 + $0x90] sm:$0xff] %v2651
          %2760 = vst [vmem:[#allocation2 + $0xa8] sm:$0xff] %v2659
          %2761 = vst [vmem:[#allocation2 + $0xc0] sm:$0xff] %v2667
          %2762 = vst [vmem:[#allocation2 + $0xd8] sm:$0xff] %v2675
          %2763 = vst [vmem:[#allocation2 + $0xf0] sm:$0xff] %v2683
          %2764 = vst [vmem:[#allocation2 + $0x108] sm:$0xff] %v2691
          %2765 = vst [vmem:[#allocation2 + $0x120] sm:$0xff] %v2699
          %2766 = vst [vmem:[#allocation2 + $0x138] sm:$0xff] %v2707
          %2767 = vst [vmem:[#allocation2 + $0x150] sm:$0xff] %v2715
          %2768 = vst [vmem:[#allocation2 + $0x168] sm:$0xff] %v2723
          %2769 = vst [vmem:[#allocation2 + $0x180] sm:$0xff] %v2731
          %v2770 = vld [vmem:[#allocation2 + $0x198] sm:$0x1]
          %v2771 = vsel %vm714, %v2727, %v2770
          %2772 = vst [vmem:[#allocation2 + $0x198] sm:$0x1] %v2771
          %v2773 = vmul.f32 %v2493, %v1220
          %v2774 = vmul.f32 %v2494, %v1221
          %v2775 = vmul.f32 %v2495, %v1222
          %v2776 = vmul.f32 %v2496, %v1223
          %v2777 = vmul.f32 %v2497, %v1224
          %v2778 = vmul.f32 %v2498, %v1225
          %v2779 = vmul.f32 %v2499, %v1226
          %v2780 = vmul.f32 %v2500, %v1227
          %v2781 = vmul.f32 %v2501, %v1228
          %v2782 = vmul.f32 %v2502, %v1229
          %v2783 = vmul.f32 %v2503, %v1230
          %v2784 = vmul.f32 %v2504, %v1231
          %v2785 = vmul.f32 %v2505, %v1232
          %v2786 = vmul.f32 %v2506, %v1233
          %v2787 = vmul.f32 %v2507, %v1234
          %v2788 = vmul.f32 %v2508, %v1235
          %v2789 = vmul.f32 %v2509, %v1236
          %v2790 = vmul.f32 %v2510, %v1237
          %v2791 = vmul.f32 %v2511, %v1238
          %v2792 = vmul.f32 %v2512, %v1239
          %v2793 = vmul.f32 %v2513, %v1240
          %v2794 = vmul.f32 %v2514, %v1241
          %v2795 = vmul.f32 %v2515, %v1242
          %v2796 = vmul.f32 %v2516, %v1243
          %v2797 = vmul.f32 %v2517, %v1244
          %v2798 = vmul.f32 %v2518, %v1245
          %v2799 = vmul.f32 %v2519, %v1246
          %v2800 = vmul.f32 %v2520, %v1247
          %v2801 = vmul.f32 %v2521, %v1248
          %v2802 = vmul.f32 %v2522, %v1249
          %v2803 = vmul.f32 %v2523, %v1250
          %v2804 = vmul.f32 %v2524, %v1251
          %v2805 = vpack.c.bf16 %v2774, %v2773
          %v2806 = vpack.c.bf16 %v2776, %v2775
          %v2807 = vpack.c.bf16 %v2778, %v2777
          %v2808 = vpack.c.bf16 %v2780, %v2779
          %v2809 = vpack.c.bf16 %v2782, %v2781
          %v2810 = vpack.c.bf16 %v2784, %v2783
          %v2811 = vpack.c.bf16 %v2786, %v2785
          %v2812 = vpack.c.bf16 %v2788, %v2787
          %v2813 = vpack.c.bf16 %v2790, %v2789
          %v2814 = vpack.c.bf16 %v2792, %v2791
          %v2815 = vpack.c.bf16 %v2794, %v2793
          %v2816 = vpack.c.bf16 %v2796, %v2795
          %v2817 = vpack.c.bf16 %v2798, %v2797
          %v2818 = vpack.c.bf16 %v2800, %v2799
          %v2819 = vpack.c.bf16 %v2802, %v2801
          %v2820 = vpack.c.bf16 %v2804, %v2803
          %vm2821 = vsmask.f32 7424
          %v2823 = vshll.u32 %v2805, 16
          %v2825 = vrot.slane %v2823, 1
          %v2826 = vshrl.u32 %v2805, 16
          %v2828 = vor.u32 %v2826, %v2825
          %v2830 = vshll.u32 %v2806, 16
          %v2832 = vrot.slane %v2830, 1
          %v2833 = vsel %vm2821, %v2828, %v2832
          %v2834 = vshrl.u32 %v2806, 16
          %v2836 = vor.u32 %v2834, %v2832
          %v2838 = vshll.u32 %v2807, 16
          %v2840 = vrot.slane %v2838, 1
          %v2841 = vsel %vm2821, %v2836, %v2840
          %v2842 = vshrl.u32 %v2807, 16
          %v2844 = vor.u32 %v2842, %v2840
          %v2846 = vshll.u32 %v2808, 16
          %v2848 = vrot.slane %v2846, 1
          %v2849 = vsel %vm2821, %v2844, %v2848
          %v2850 = vshrl.u32 %v2808, 16
          %v2852 = vor.u32 %v2850, %v2848
          %v2854 = vshll.u32 %v2809, 16
          %v2856 = vrot.slane %v2854, 1
          %v2857 = vsel %vm2821, %v2852, %v2856
          %v2858 = vshrl.u32 %v2809, 16
          %v2860 = vor.u32 %v2858, %v2856
          %v2862 = vshll.u32 %v2810, 16
          %v2864 = vrot.slane %v2862, 1
          %v2865 = vsel %vm2821, %v2860, %v2864
          %v2866 = vshrl.u32 %v2810, 16
          %v2868 = vor.u32 %v2866, %v2864
          %v2870 = vshll.u32 %v2811, 16
          %v2872 = vrot.slane %v2870, 1
          %v2873 = vsel %vm2821, %v2868, %v2872
          %v2874 = vshrl.u32 %v2811, 16
          %v2876 = vor.u32 %v2874, %v2872
          %v2878 = vshll.u32 %v2812, 16
          %v2880 = vrot.slane %v2878, 1
          %v2881 = vsel %vm2821, %v2876, %v2880
          %v2882 = vshrl.u32 %v2812, 16
          %v2884 = vor.u32 %v2882, %v2880
          %v2886 = vshll.u32 %v2813, 16
          %v2888 = vrot.slane %v2886, 1
          %v2889 = vsel %vm2821, %v2884, %v2888
          %v2890 = vshrl.u32 %v2813, 16
          %v2892 = vor.u32 %v2890, %v2888
          %v2894 = vshll.u32 %v2814, 16
          %v2896 = vrot.slane %v2894, 1
          %v2897 = vsel %vm2821, %v2892, %v2896
          %v2898 = vshrl.u32 %v2814, 16
          %v2900 = vor.u32 %v2898, %v2896
          %v2902 = vshll.u32 %v2815, 16
          %v2904 = vrot.slane %v2902, 1
          %v2905 = vsel %vm2821, %v2900, %v2904
          %v2906 = vshrl.u32 %v2815, 16
          %v2908 = vor.u32 %v2906, %v2904
          %v2910 = vshll.u32 %v2816, 16
          %v2912 = vrot.slane %v2910, 1
          %v2913 = vsel %vm2821, %v2908, %v2912
          %v2914 = vshrl.u32 %v2816, 16
          %v2916 = vor.u32 %v2914, %v2912
          %v2918 = vshll.u32 %v2817, 16
          %v2920 = vrot.slane %v2918, 1
          %v2921 = vsel %vm2821, %v2916, %v2920
          %v2922 = vshrl.u32 %v2817, 16
          %v2924 = vor.u32 %v2922, %v2920
          %v2926 = vshll.u32 %v2818, 16
          %v2928 = vrot.slane %v2926, 1
          %v2929 = vsel %vm2821, %v2924, %v2928
          %v2930 = vshrl.u32 %v2818, 16
          %v2932 = vor.u32 %v2930, %v2928
          %v2934 = vshll.u32 %v2819, 16
          %v2936 = vrot.slane %v2934, 1
          %v2937 = vsel %vm2821, %v2932, %v2936
          %v2938 = vshrl.u32 %v2819, 16
          %v2940 = vor.u32 %v2938, %v2936
          %v2942 = vshll.u32 %v2820, 16
          %v2944 = vrot.slane %v2942, 1
          %v2945 = vsel %vm2821, %v2940, %v2944
          %v2946 = vshrl.u32 %v2820, 16
          %v2948 = vor.u32 %v2946, %v2944
          %v2966 = vld [vmem:[#allocation2 + $0x10] sm:$0x80]
          %v2967 = vsel %vm726, %v2825, %v2966
          %2968 = vst [vmem:[#allocation2 + $0x10] sm:$0x80] %v2967
          %2969 = vst [vmem:[#allocation2 + $0x28] sm:$0xff] %v2833
          %2970 = vst [vmem:[#allocation2 + $0x40] sm:$0xff] %v2841
          %2971 = vst [vmem:[#allocation2 + $0x58] sm:$0xff] %v2849
          %2972 = vst [vmem:[#allocation2 + $0x70] sm:$0xff] %v2857
          %2973 = vst [vmem:[#allocation2 + $0x88] sm:$0xff] %v2865
          %2974 = vst [vmem:[#allocation2 + $0xa0] sm:$0xff] %v2873
          %2975 = vst [vmem:[#allocation2 + $0xb8] sm:$0xff] %v2881
          %2976 = vst [vmem:[#allocation2 + $0xd0] sm:$0xff] %v2889
          %2977 = vst [vmem:[#allocation2 + $0xe8] sm:$0xff] %v2897
          %2978 = vst [vmem:[#allocation2 + $0x100] sm:$0xff] %v2905
          %2979 = vst [vmem:[#allocation2 + $0x118] sm:$0xff] %v2913
          %2980 = vst [vmem:[#allocation2 + $0x130] sm:$0xff] %v2921
          %2981 = vst [vmem:[#allocation2 + $0x148] sm:$0xff] %v2929
          %2982 = vst [vmem:[#allocation2 + $0x160] sm:$0xff] %v2937
          %2983 = vst [vmem:[#allocation2 + $0x178] sm:$0xff] %v2945
          %vm2984 = vmand %vm2749, %vm2821
          %v2985 = vld [vmem:[#allocation2 + $0x190] sm:$0xff]
          %v2986 = vsel %vm2984, %v2948, %v2985
          %2987 = vst [vmem:[#allocation2 + $0x190] sm:$0xff] %v2986
          %v2988 = vld [vmem:[#allocation2] sm:$0xff]
          %v2989 = vld [vmem:[#allocation2 + $0x8] sm:$0xff]
          %v2990 = vld [vmem:[#allocation2 + $0x10] sm:$0xff]
          %v2991 = vld [vmem:[#allocation2 + $0x18] sm:$0xff]
          %v2992 = vld [vmem:[#allocation2 + $0x20] sm:$0xff]
          %v2993 = vld [vmem:[#allocation2 + $0x28] sm:$0xff]
          %v2994 = vld [vmem:[#allocation2 + $0x30] sm:$0xff]
          %v2995 = vld [vmem:[#allocation2 + $0x38] sm:$0xff]
          %v2996 = vld [vmem:[#allocation2 + $0x40] sm:$0xff]
          %v2997 = vld [vmem:[#allocation2 + $0x48] sm:$0xff]
          %v2998 = vld [vmem:[#allocation2 + $0x50] sm:$0xff]
          %v2999 = vld [vmem:[#allocation2 + $0x58] sm:$0xff]
          %v3000 = vld [vmem:[#allocation2 + $0x60] sm:$0xff]
          %v3001 = vld [vmem:[#allocation2 + $0x68] sm:$0xff]
          %v3002 = vld [vmem:[#allocation2 + $0x70] sm:$0xff]
          %v3003 = vld [vmem:[#allocation2 + $0x78] sm:$0xff]
          %v3004 = vld [vmem:[#allocation2 + $0x80] sm:$0xff]
          %v3005 = vld [vmem:[#allocation2 + $0x88] sm:$0xff]
          %v3006 = vld [vmem:[#allocation2 + $0x90] sm:$0xff]
          %v3007 = vld [vmem:[#allocation2 + $0x98] sm:$0xff]
          %v3008 = vld [vmem:[#allocation2 + $0xa0] sm:$0xff]
          %v3009 = vld [vmem:[#allocation2 + $0xa8] sm:$0xff]
          %v3010 = vld [vmem:[#allocation2 + $0xb0] sm:$0xff]
          %v3011 = vld [vmem:[#allocation2 + $0xb8] sm:$0xff]
          %v3012 = vld [vmem:[#allocation2 + $0xc0] sm:$0xff]
          %v3013 = vld [vmem:[#allocation2 + $0xc8] sm:$0xff]
          %v3014 = vld [vmem:[#allocation2 + $0xd0] sm:$0xff]
          %v3015 = vld [vmem:[#allocation2 + $0xd8] sm:$0xff]
          %v3016 = vld [vmem:[#allocation2 + $0xe0] sm:$0xff]
          %v3017 = vld [vmem:[#allocation2 + $0xe8] sm:$0xff]
          %v3018 = vld [vmem:[#allocation2 + $0xf0] sm:$0xff]
          %v3019 = vld [vmem:[#allocation2 + $0xf8] sm:$0xff]
          %v3020 = vld [vmem:[#allocation2 + $0x100] sm:$0xff]
          %v3021 = vld [vmem:[#allocation2 + $0x108] sm:$0xff]
          %v3022 = vld [vmem:[#allocation2 + $0x110] sm:$0xff]
          %v3023 = vld [vmem:[#allocation2 + $0x118] sm:$0xff]
          %v3024 = vld [vmem:[#allocation2 + $0x120] sm:$0xff]
          %v3025 = vld [vmem:[#allocation2 + $0x128] sm:$0xff]
          %v3026 = vld [vmem:[#allocation2 + $0x130] sm:$0xff]
          %v3027 = vld [vmem:[#allocation2 + $0x138] sm:$0xff]
          %v3028 = vld [vmem:[#allocation2 + $0x140] sm:$0xff]
          %v3029 = vld [vmem:[#allocation2 + $0x148] sm:$0xff]
          %v3030 = vld [vmem:[#allocation2 + $0x150] sm:$0xff]
          %v3031 = vld [vmem:[#allocation2 + $0x158] sm:$0xff]
          %v3032 = vld [vmem:[#allocation2 + $0x160] sm:$0xff]
          %v3033 = vld [vmem:[#allocation2 + $0x168] sm:$0xff]
          %v3034 = vld [vmem:[#allocation2 + $0x170] sm:$0xff]
          %v3035 = vld [vmem:[#allocation2 + $0x178] sm:$0xff]
          %s3036 = smul.u32 %s1972, 3
          %s3037 = smul.u32 %s3036, 48
          %s3038 = smul.addr %s3037, 4
          %s3039 = scalar_lea.vmem [#allocation9], %s3038
          %v3040 = vld [vmem:[%s3039] sm:$0xf]
          %v3041 = vld [vmem:[%s3039 + $0x4] sm:$0xf]
          %v3042 = vld [vmem:[%s3039 + $0x8] sm:$0xf]
          %v3043 = vld [vmem:[%s3039 + $0xc] sm:$0xf]
          %v3044 = vld [vmem:[%s3039 + $0x10] sm:$0xf]
          %v3045 = vld [vmem:[%s3039 + $0x14] sm:$0xf]
          %v3046 = vld [vmem:[%s3039 + $0x18] sm:$0xf]
          %v3047 = vld [vmem:[%s3039 + $0x1c] sm:$0xf]
          %v3048 = vld [vmem:[%s3039 + $0x20] sm:$0xf]
          %v3049 = vld [vmem:[%s3039 + $0x24] sm:$0xf]
          %v3050 = vld [vmem:[%s3039 + $0x28] sm:$0xf]
          %v3051 = vld [vmem:[%s3039 + $0x2c] sm:$0xf]
          %v3052 = vld [vmem:[%s3039 + $0x30] sm:$0xf]
          %v3053 = vld [vmem:[%s3039 + $0x34] sm:$0xf]
          %v3054 = vld [vmem:[%s3039 + $0x38] sm:$0xf]
          %v3055 = vld [vmem:[%s3039 + $0x3c] sm:$0xf]
          %v3056 = vld [vmem:[%s3039 + $0x40] sm:$0xf]
          %v3057 = vld [vmem:[%s3039 + $0x44] sm:$0xf]
          %v3058 = vld [vmem:[%s3039 + $0x48] sm:$0xf]
          %v3059 = vld [vmem:[%s3039 + $0x4c] sm:$0xf]
          %v3060 = vld [vmem:[%s3039 + $0x50] sm:$0xf]
          %v3061 = vld [vmem:[%s3039 + $0x54] sm:$0xf]
          %v3062 = vld [vmem:[%s3039 + $0x58] sm:$0xf]
          %v3063 = vld [vmem:[%s3039 + $0x5c] sm:$0xf]
          %v3064 = vld [vmem:[%s3039 + $0x60] sm:$0xf]
          %v3065 = vld [vmem:[%s3039 + $0x64] sm:$0xf]
          %v3066 = vld [vmem:[%s3039 + $0x68] sm:$0xf]
          %v3067 = vld [vmem:[%s3039 + $0x6c] sm:$0xf]
          %v3068 = vld [vmem:[%s3039 + $0x70] sm:$0xf]
          %v3069 = vld [vmem:[%s3039 + $0x74] sm:$0xf]
          %v3070 = vld [vmem:[%s3039 + $0x78] sm:$0xf]
          %v3071 = vld [vmem:[%s3039 + $0x7c] sm:$0xf]
          %v3072 = vld [vmem:[%s3039 + $0x80] sm:$0xf]
          %v3073 = vld [vmem:[%s3039 + $0x84] sm:$0xf]
          %v3074 = vld [vmem:[%s3039 + $0x88] sm:$0xf]
          %v3075 = vld [vmem:[%s3039 + $0x8c] sm:$0xf]
          %v3076 = vld [vmem:[%s3039 + $0x90] sm:$0xf]
          %v3077 = vld [vmem:[%s3039 + $0x94] sm:$0xf]
          %v3078 = vld [vmem:[%s3039 + $0x98] sm:$0xf]
          %v3079 = vld [vmem:[%s3039 + $0x9c] sm:$0xf]
          %v3080 = vld [vmem:[%s3039 + $0xa0] sm:$0xf]
          %v3081 = vld [vmem:[%s3039 + $0xa4] sm:$0xf]
          %v3082 = vld [vmem:[%s3039 + $0xa8] sm:$0xf]
          %v3083 = vld [vmem:[%s3039 + $0xac] sm:$0xf]
          %v3084 = vld [vmem:[%s3039 + $0xb0] sm:$0xf]
          %v3085 = vld [vmem:[%s3039 + $0xb4] sm:$0xf]
          %v3086 = vld [vmem:[%s3039 + $0xb8] sm:$0xf]
          %v3087 = vld [vmem:[%s3039 + $0xbc] sm:$0xf]
          %v3088 = vld [vmem:[#allocation2 + $0x180] sm:$0xff]
          %v3089 = vld [vmem:[#allocation2 + $0x188] sm:$0xff]
          %v3090 = vld [vmem:[#allocation2 + $0x190] sm:$0xff]
          %s3091 = sadd.s32 %s3036, 1
          %s3092 = smul.u32 %s3091, 48
          %s3093 = smul.addr %s3092, 4
          %s3094 = scalar_lea.vmem [#allocation9], %s3093
          %v3095 = vld [vmem:[%s3094] sm:$0xf]
          %v3096 = vld [vmem:[%s3094 + $0x4] sm:$0xf]
          %v3097 = vld [vmem:[%s3094 + $0x8] sm:$0xf]
          %v3098 = vld [vmem:[%s3094 + $0xc] sm:$0xf]
          %v3099 = vld [vmem:[%s3094 + $0x10] sm:$0xf]
          %v3100 = vld [vmem:[%s3094 + $0x14] sm:$0xf]
          %v3101 = vld [vmem:[%s3094 + $0x18] sm:$0xf]
          %v3102 = vld [vmem:[%s3094 + $0x1c] sm:$0xf]
          %v3103 = vld [vmem:[%s3094 + $0x20] sm:$0xf]
          %v3104 = vld [vmem:[%s3094 + $0x24] sm:$0xf]
          %v3105 = vld [vmem:[%s3094 + $0x28] sm:$0xf]
          %v3106 = vld [vmem:[%s3094 + $0x2c] sm:$0xf]
          %v3107 = vld [vmem:[%s3094 + $0x30] sm:$0xf]
          %v3108 = vld [vmem:[%s3094 + $0x34] sm:$0xf]
          %v3109 = vld [vmem:[%s3094 + $0x38] sm:$0xf]
          %v3110 = vld [vmem:[%s3094 + $0x3c] sm:$0xf]
          %v3111 = vld [vmem:[%s3094 + $0x40] sm:$0xf]
          %v3112 = vld [vmem:[%s3094 + $0x44] sm:$0xf]
          %v3113 = vld [vmem:[%s3094 + $0x48] sm:$0xf]
          %v3114 = vld [vmem:[%s3094 + $0x4c] sm:$0xf]
          %v3115 = vld [vmem:[%s3094 + $0x50] sm:$0xf]
          %v3116 = vld [vmem:[%s3094 + $0x54] sm:$0xf]
          %v3117 = vld [vmem:[%s3094 + $0x58] sm:$0xf]
          %v3118 = vld [vmem:[%s3094 + $0x5c] sm:$0xf]
          %v3119 = vld [vmem:[%s3094 + $0x60] sm:$0xf]
          %v3120 = vld [vmem:[%s3094 + $0x64] sm:$0xf]
          %v3121 = vld [vmem:[%s3094 + $0x68] sm:$0xf]
          %v3122 = vld [vmem:[%s3094 + $0x6c] sm:$0xf]
          %v3123 = vld [vmem:[%s3094 + $0x70] sm:$0xf]
          %v3124 = vld [vmem:[%s3094 + $0x74] sm:$0xf]
          %v3125 = vld [vmem:[%s3094 + $0x78] sm:$0xf]
          %v3126 = vld [vmem:[%s3094 + $0x7c] sm:$0xf]
          %v3127 = vld [vmem:[%s3094 + $0x80] sm:$0xf]
          %v3128 = vld [vmem:[%s3094 + $0x84] sm:$0xf]
          %v3129 = vld [vmem:[%s3094 + $0x88] sm:$0xf]
          %v3130 = vld [vmem:[%s3094 + $0x8c] sm:$0xf]
          %v3131 = vld [vmem:[%s3094 + $0x90] sm:$0xf]
          %v3132 = vld [vmem:[%s3094 + $0x94] sm:$0xf]
          %v3133 = vld [vmem:[%s3094 + $0x98] sm:$0xf]
          %v3134 = vld [vmem:[%s3094 + $0x9c] sm:$0xf]
          %v3135 = vld [vmem:[%s3094 + $0xa0] sm:$0xf]
          %v3136 = vld [vmem:[%s3094 + $0xa4] sm:$0xf]
          %v3137 = vld [vmem:[%s3094 + $0xa8] sm:$0xf]
          %v3138 = vld [vmem:[%s3094 + $0xac] sm:$0xf]
          %v3139 = vld [vmem:[%s3094 + $0xb0] sm:$0xf]
          %v3140 = vld [vmem:[%s3094 + $0xb4] sm:$0xf]
          %v3141 = vld [vmem:[%s3094 + $0xb8] sm:$0xf]
          %v3142 = vld [vmem:[%s3094 + $0xbc] sm:$0xf]
          %v3191 = vunpack.c.l.b16 %v3095
          %v3192 = vunpack.c.l.b16 %v3096
          %v3193 = vunpack.c.l.b16 %v3097
          %v3194 = vunpack.c.l.b16 %v3098
          %v3195 = vunpack.c.l.b16 %v3099
          %v3196 = vunpack.c.l.b16 %v3100
          %v3197 = vunpack.c.l.b16 %v3101
          %v3198 = vunpack.c.l.b16 %v3102
          %v3199 = vunpack.c.l.b16 %v3103
          %v3200 = vunpack.c.l.b16 %v3104
          %v3201 = vunpack.c.l.b16 %v3105
          %v3202 = vunpack.c.l.b16 %v3106
          %v3203 = vunpack.c.l.b16 %v3107
          %v3204 = vunpack.c.l.b16 %v3108
          %v3205 = vunpack.c.l.b16 %v3109
          %v3206 = vunpack.c.l.b16 %v3110
          %v3207 = vunpack.c.l.b16 %v3111
          %v3208 = vunpack.c.l.b16 %v3112
          %v3209 = vunpack.c.l.b16 %v3113
          %v3210 = vunpack.c.l.b16 %v3114
          %v3211 = vunpack.c.l.b16 %v3115
          %v3212 = vunpack.c.l.b16 %v3116
          %v3213 = vunpack.c.l.b16 %v3117
          %v3214 = vunpack.c.l.b16 %v3118
          %v3215 = vunpack.c.l.b16 %v3119
          %v3216 = vunpack.c.l.b16 %v3120
          %v3217 = vunpack.c.l.b16 %v3121
          %v3218 = vunpack.c.l.b16 %v3122
          %v3219 = vunpack.c.l.b16 %v3123
          %v3220 = vunpack.c.l.b16 %v3124
          %v3221 = vunpack.c.l.b16 %v3125
          %v3222 = vunpack.c.l.b16 %v3126
          %v3223 = vunpack.c.l.b16 %v3127
          %v3224 = vunpack.c.l.b16 %v3128
          %v3225 = vunpack.c.l.b16 %v3129
          %v3226 = vunpack.c.l.b16 %v3130
          %v3227 = vunpack.c.l.b16 %v3131
          %v3228 = vunpack.c.l.b16 %v3132
          %v3229 = vunpack.c.l.b16 %v3133
          %v3230 = vunpack.c.l.b16 %v3134
          %v3231 = vunpack.c.l.b16 %v3135
          %v3232 = vunpack.c.l.b16 %v3136
          %v3233 = vunpack.c.l.b16 %v3137
          %v3234 = vunpack.c.l.b16 %v3138
          %v3235 = vunpack.c.l.b16 %v3139
          %v3236 = vunpack.c.l.b16 %v3140
          %v3237 = vunpack.c.l.b16 %v3141
          %v3238 = vunpack.c.l.b16 %v3142
          %v3239 = vpack.c.b16 %v3192, %v3191
          %v3240 = vpack.c.b16 %v3194, %v3193
          %v3241 = vpack.c.b16 %v3196, %v3195
          %v3242 = vpack.c.b16 %v3198, %v3197
          %v3243 = vpack.c.b16 %v3200, %v3199
          %v3244 = vpack.c.b16 %v3202, %v3201
          %v3245 = vpack.c.b16 %v3204, %v3203
          %v3246 = vpack.c.b16 %v3206, %v3205
          %v3247 = vpack.c.b16 %v3208, %v3207
          %v3248 = vpack.c.b16 %v3210, %v3209
          %v3249 = vpack.c.b16 %v3212, %v3211
          %v3250 = vpack.c.b16 %v3214, %v3213
          %v3251 = vpack.c.b16 %v3216, %v3215
          %v3252 = vpack.c.b16 %v3218, %v3217
          %v3253 = vpack.c.b16 %v3220, %v3219
          %v3254 = vpack.c.b16 %v3222, %v3221
          %v3255 = vpack.c.b16 %v3224, %v3223
          %v3256 = vpack.c.b16 %v3226, %v3225
          %v3257 = vpack.c.b16 %v3228, %v3227
          %v3258 = vpack.c.b16 %v3230, %v3229
          %v3259 = vpack.c.b16 %v3232, %v3231
          %v3260 = vpack.c.b16 %v3234, %v3233
          %v3261 = vpack.c.b16 %v3236, %v3235
          %v3262 = vpack.c.b16 %v3238, %v3237
          %3287 = vmatprep.subr.bf16.mxu0 0
          %3288 = vmatpush1.bf16.msra.mxu0 %v3239
          %3289 = vmatprep.subr.bf16.mxu0 0
          %3290 = vmatpush1.bf16.msra.mxu0 %v3240
          %3291 = vmatprep.subr.bf16.mxu0 0
          %3292 = vmatpush1.bf16.msra.mxu0 %v3241
          %3293 = vmatprep.subr.bf16.mxu0 0
          %3294 = vmatpush1.bf16.msra.mxu0 %v3242
          %3295 = vmatprep.subr.bf16.mxu0 0
          %3296 = vmatpush1.bf16.msra.mxu0 %v3243
          %3297 = vmatprep.subr.bf16.mxu0 0
          %3298 = vmatpush1.bf16.msra.mxu0 %v3244
          %3299 = vmatprep.subr.bf16.mxu0 0
          %3300 = vmatpush1.bf16.msra.mxu0 %v3245
          %3301 = vmatprep.subr.bf16.mxu0 0
          %3302 = vmatpush1.bf16.msra.mxu0 %v3246
          %3303 = vmatprep.subr.bf16.mxu0 0
          %3304 = vmatpush1.bf16.msra.mxu0 %v3247
          %3305 = vmatprep.subr.bf16.mxu0 0
          %3306 = vmatpush1.bf16.msra.mxu0 %v3248
          %3307 = vmatprep.subr.bf16.mxu0 0
          %3308 = vmatpush1.bf16.msra.mxu0 %v3249
          %3309 = vmatprep.subr.bf16.mxu0 0
          %3310 = vmatpush1.bf16.msra.mxu0 %v3250
          %3311 = vmatprep.subr.bf16.mxu0 0
          %3312 = vmatpush1.bf16.msra.mxu0 %v3251
          %3313 = vmatprep.subr.bf16.mxu0 0
          %3314 = vmatpush1.bf16.msra.mxu0 %v3252
          %3315 = vmatprep.subr.bf16.mxu0 0
          %3316 = vmatpush1.bf16.msra.mxu0 %v3253
          %3317 = vmatprep.subr.bf16.mxu0 0
          %3318 = vmatpush1.bf16.msra.mxu0 %v3254
          %3319 = vmatprep.mubr.bf16.mxu0 %v2992
          %3320 = vmatmul.mubr.bf16.gmra.mrb[0].mxu0 %v2991
          %v3321 = vpop.f32.mrb[0].mxu0
          %v3322 = vadd.f32 0.0, %v3321
          %v3323 = vpop.f32.mrb[0].mxu0
          %v3324 = vpop.f32.mrb[0].mxu0
          %v3325 = vadd.f32 0.0, %v3324
          %v3326 = vpop.f32.mrb[0].mxu0
          %3327 = vmatprep.mubr.bf16.mxu0 %v2995
          %3328 = vmatmul.mubr.bf16.gmra.mrb[0].mxu0 %v2994
          %v3329 = vpop.f32.mrb[0].mxu0
          %v3330 = vadd.f32 0.0, %v3329
          %v3331 = vpop.f32.mrb[0].mxu0
          %v3332 = vpop.f32.mrb[0].mxu0
          %v3333 = vadd.f32 0.0, %v3332
          %v3334 = vpop.f32.mrb[0].mxu0
          %3335 = vmatprep.mubr.bf16.mxu0 %v2998
          %3336 = vmatmul.mubr.bf16.gmra.mrb[0].mxu0 %v2997
          %v3337 = vpop.f32.mrb[0].mxu0
          %v3338 = vadd.f32 0.0, %v3337
          %v3339 = vpop.f32.mrb[0].mxu0
          %v3340 = vpop.f32.mrb[0].mxu0
          %v3341 = vadd.f32 0.0, %v3340
          %v3342 = vpop.f32.mrb[0].mxu0
          %3343 = vmatprep.mubr.bf16.mxu0 %v3001
          %3344 = vmatmul.mubr.bf16.gmra.mrb[0].mxu0 %v3000
          %v3345 = vpop.f32.mrb[0].mxu0
          %v3346 = vadd.f32 0.0, %v3345
          %v3347 = vpop.f32.mrb[0].mxu0
          %v3348 = vpop.f32.mrb[0].mxu0
          %v3349 = vadd.f32 0.0, %v3348
          %v3350 = vpop.f32.mrb[0].mxu0
          %3351 = vmatprep.mubr.bf16.mxu0 %v3004
          %3352 = vmatmul.mubr.bf16.gmra.mrb[0].mxu0 %v3003
          %v3353 = vpop.f32.mrb[0].mxu0
          %v3354 = vadd.f32 0.0, %v3353
          %v3355 = vpop.f32.mrb[0].mxu0
          %v3356 = vpop.f32.mrb[0].mxu0
          %v3357 = vadd.f32 0.0, %v3356
          %v3358 = vpop.f32.mrb[0].mxu0
          %3359 = vmatprep.mubr.bf16.mxu0 %v3007
          %3360 = vmatmul.mubr.bf16.gmra.mrb[0].mxu0 %v3006
          %v3361 = vpop.f32.mrb[0].mxu0
          %v3362 = vadd.f32 0.0, %v3361
          %v3363 = vpop.f32.mrb[0].mxu0
          %v3364 = vpop.f32.mrb[0].mxu0
          %v3365 = vadd.f32 0.0, %v3364
          %v3366 = vpop.f32.mrb[0].mxu0
          %3367 = vmatprep.mubr.bf16.mxu0 %v3010
          %3368 = vmatmul.mubr.bf16.gmra.mrb[0].mxu0 %v3009
          %v3369 = vpop.f32.mrb[0].mxu0
          %v3370 = vadd.f32 0.0, %v3369
          %v3371 = vpop.f32.mrb[0].mxu0
          %v3372 = vpop.f32.mrb[0].mxu0
          %v3373 = vadd.f32 0.0, %v3372
          %v3374 = vpop.f32.mrb[0].mxu0
          %3375 = vmatprep.mubr.bf16.mxu0 %v3013
          %3376 = vmatmul.mubr.bf16.gmra.mrb[0].mxu0 %v3012
          %v3377 = vpop.f32.mrb[0].mxu0
          %v3378 = vadd.f32 0.0, %v3377
          %v3379 = vpop.f32.mrb[0].mxu0
          %v3380 = vpop.f32.mrb[0].mxu0
          %v3381 = vadd.f32 0.0, %v3380
          %v3382 = vpop.f32.mrb[0].mxu0
          %3383 = vmatprep.mubr.bf16.mxu0 %v3016
          %3384 = vmatmul.mubr.bf16.gmra.mrb[0].mxu0 %v3015
          %v3385 = vpop.f32.mrb[0].mxu0
          %v3386 = vadd.f32 0.0, %v3385
          %v3387 = vpop.f32.mrb[0].mxu0
          %v3388 = vpop.f32.mrb[0].mxu0
          %v3389 = vadd.f32 0.0, %v3388
          %v3390 = vpop.f32.mrb[0].mxu0
          %3391 = vmatprep.mubr.bf16.mxu0 %v3019
          %3392 = vmatmul.mubr.bf16.gmra.mrb[0].mxu0 %v3018
          %v3393 = vpop.f32.mrb[0].mxu0
          %v3394 = vadd.f32 0.0, %v3393
          %v3395 = vpop.f32.mrb[0].mxu0
          %v3396 = vpop.f32.mrb[0].mxu0
          %v3397 = vadd.f32 0.0, %v3396
          %v3398 = vpop.f32.mrb[0].mxu0
          %3399 = vmatprep.mubr.bf16.mxu0 %v3022
          %3400 = vmatmul.mubr.bf16.gmra.mrb[0].mxu0 %v3021
          %v3401 = vpop.f32.mrb[0].mxu0
          %v3402 = vadd.f32 0.0, %v3401
          %v3403 = vpop.f32.mrb[0].mxu0
          %v3404 = vpop.f32.mrb[0].mxu0
          %v3405 = vadd.f32 0.0, %v3404
          %v3406 = vpop.f32.mrb[0].mxu0
          %3407 = vmatprep.mubr.bf16.mxu0 %v3025
          %3408 = vmatmul.mubr.bf16.gmra.mrb[0].mxu0 %v3024
          %v3409 = vpop.f32.mrb[0].mxu0
          %v3410 = vadd.f32 0.0, %v3409
          %v3411 = vpop.f32.mrb[0].mxu0
          %v3412 = vpop.f32.mrb[0].mxu0
          %v3413 = vadd.f32 0.0, %v3412
          %v3414 = vpop.f32.mrb[0].mxu0
          %3415 = vmatprep.mubr.bf16.mxu0 %v3028
          %3416 = vmatmul.mubr.bf16.gmra.mrb[0].mxu0 %v3027
          %v3417 = vpop.f32.mrb[0].mxu0
          %v3418 = vadd.f32 0.0, %v3417
          %v3419 = vpop.f32.mrb[0].mxu0
          %v3420 = vpop.f32.mrb[0].mxu0
          %v3421 = vadd.f32 0.0, %v3420
          %v3422 = vpop.f32.mrb[0].mxu0
          %3423 = vmatprep.mubr.bf16.mxu0 %v3031
          %3424 = vmatmul.mubr.bf16.gmra.mrb[0].mxu0 %v3030
          %v3425 = vpop.f32.mrb[0].mxu0
          %v3426 = vadd.f32 0.0, %v3425
          %v3427 = vpop.f32.mrb[0].mxu0
          %v3428 = vpop.f32.mrb[0].mxu0
          %v3429 = vadd.f32 0.0, %v3428
          %v3430 = vpop.f32.mrb[0].mxu0
          %3431 = vmatprep.mubr.bf16.mxu0 %v3034
          %3432 = vmatmul.mubr.bf16.gmra.mrb[0].mxu0 %v3033
          %v3433 = vpop.f32.mrb[0].mxu0
          %v3434 = vadd.f32 0.0, %v3433
          %v3435 = vpop.f32.mrb[0].mxu0
          %v3436 = vpop.f32.mrb[0].mxu0
          %v3437 = vadd.f32 0.0, %v3436
          %v3438 = vpop.f32.mrb[0].mxu0
          %3439 = vmatprep.mubr.bf16.mxu0 %v3089
          %3440 = vmatmul.mubr.bf16.gmra.mrb[0].mxu0 %v3088
          %v3441 = vpop.f32.mrb[0].mxu0
          %v3442 = vadd.f32 0.0, %v3441
          %v3443 = vpop.f32.mrb[0].mxu0
          %v3444 = vpop.f32.mrb[0].mxu0
          %v3445 = vadd.f32 0.0, %v3444
          %v3446 = vpop.f32.mrb[0].mxu0
          %3447 = vdwg.mxu0
          %3448 = vmatprep.subr.bf16.mxu0 0
          %3449 = vmatpush1.bf16.msra.mxu0 %v3255
          %3450 = vmatprep.subr.bf16.mxu0 0
          %3451 = vmatpush1.bf16.msra.mxu0 %v3256
          %3452 = vmatprep.subr.bf16.mxu0 0
          %3453 = vmatpush1.bf16.msra.mxu0 %v3257
          %3454 = vmatprep.subr.bf16.mxu0 0
          %3455 = vmatpush1.bf16.msra.mxu0 %v3258
          %3456 = vmatprep.subr.bf16.mxu0 0
          %3457 = vmatpush1.bf16.msra.mxu0 %v3259
          %3458 = vmatprep.subr.bf16.mxu0 0
          %3459 = vmatpush1.bf16.msra.mxu0 %v3260
          %3460 = vmatprep.subr.bf16.mxu0 0
          %3461 = vmatpush1.bf16.msra.mxu0 %v3261
          %3462 = vmatprep.subr.bf16.mxu0 0
          %3463 = vmatpush1.bf16.msra.mxu0 %v3262
          %3464 = vmatprep.subr.bf16.mxu0 0
          %3465 = vmatpush1.bf16.msra.mxu0 0
          %3466 = vmatprep.subr.bf16.mxu0 0
          %3467 = vmatpush1.bf16.msra.mxu0 0
          %3468 = vmatprep.subr.bf16.mxu0 0
          %3469 = vmatpush1.bf16.msra.mxu0 0
          %3470 = vmatprep.subr.bf16.mxu0 0
          %3471 = vmatpush1.bf16.msra.mxu0 0
          %3472 = vmatprep.subr.bf16.mxu0 0
          %3473 = vmatpush1.bf16.msra.mxu0 0
          %3474 = vmatprep.subr.bf16.mxu0 0
          %3475 = vmatpush1.bf16.msra.mxu0 0
          %3476 = vmatprep.subr.bf16.mxu0 0
          %3477 = vmatpush1.bf16.msra.mxu0 0
          %3478 = vmatprep.subr.bf16.mxu0 0
          %3479 = vmatpush1.bf16.msra.mxu0 0
          %3480 = vmatprep.mubr.bf16.mxu0 0
          %3481 = vmatmul.mubr.bf16.gmra.mrb[0].mxu0 %v2993
          %v3482 = vpop.f32.mrb[0].mxu0
          %v3483 = vadd.f32 %v3322, %v3482
          %v3484 = vpop.f32.mrb[0].mxu0
          %v3485 = vpop.f32.mrb[0].mxu0
          %v3486 = vadd.f32 %v3325, %v3485
          %v3487 = vpop.f32.mrb[0].mxu0
          %3488 = vmatprep.mubr.bf16.mxu0 0
          %3489 = vmatmul.mubr.bf16.gmra.mrb[0].mxu0 %v2996
          %v3490 = vpop.f32.mrb[0].mxu0
          %v3491 = vadd.f32 %v3330, %v3490
          %v3492 = vpop.f32.mrb[0].mxu0
          %v3493 = vpop.f32.mrb[0].mxu0
          %v3494 = vadd.f32 %v3333, %v3493
          %v3495 = vpop.f32.mrb[0].mxu0
          %3496 = vmatprep.mubr.bf16.mxu0 0
          %3497 = vmatmul.mubr.bf16.gmra.mrb[0].mxu0 %v2999
          %v3498 = vpop.f32.mrb[0].mxu0
          %v3499 = vadd.f32 %v3338, %v3498
          %v3500 = vpop.f32.mrb[0].mxu0
          %v3501 = vpop.f32.mrb[0].mxu0
          %v3502 = vadd.f32 %v3341, %v3501
          %v3503 = vpop.f32.mrb[0].mxu0
          %3504 = vmatprep.mubr.bf16.mxu0 0
          %3505 = vmatmul.mubr.bf16.gmra.mrb[0].mxu0 %v3002
          %v3506 = vpop.f32.mrb[0].mxu0
          %v3507 = vadd.f32 %v3346, %v3506
          %v3508 = vpop.f32.mrb[0].mxu0
          %v3509 = vpop.f32.mrb[0].mxu0
          %v3510 = vadd.f32 %v3349, %v3509
          %v3511 = vpop.f32.mrb[0].mxu0
          %3512 = vmatprep.mubr.bf16.mxu0 0
          %3513 = vmatmul.mubr.bf16.gmra.mrb[0].mxu0 %v3005
          %v3514 = vpop.f32.mrb[0].mxu0
          %v3515 = vadd.f32 %v3354, %v3514
          %v3516 = vpop.f32.mrb[0].mxu0
          %v3517 = vpop.f32.mrb[0].mxu0
          %v3518 = vadd.f32 %v3357, %v3517
          %v3519 = vpop.f32.mrb[0].mxu0
          %3520 = vmatprep.mubr.bf16.mxu0 0
          %3521 = vmatmul.mubr.bf16.gmra.mrb[0].mxu0 %v3008
          %v3522 = vpop.f32.mrb[0].mxu0
          %v3523 = vadd.f32 %v3362, %v3522
          %v3524 = vpop.f32.mrb[0].mxu0
          %v3525 = vpop.f32.mrb[0].mxu0
          %v3526 = vadd.f32 %v3365, %v3525
          %v3527 = vpop.f32.mrb[0].mxu0
          %3528 = vmatprep.mubr.bf16.mxu0 0
          %3529 = vmatmul.mubr.bf16.gmra.mrb[0].mxu0 %v3011
          %v3530 = vpop.f32.mrb[0].mxu0
          %v3531 = vadd.f32 %v3370, %v3530
          %v3532 = vpop.f32.mrb[0].mxu0
          %v3533 = vpop.f32.mrb[0].mxu0
          %v3534 = vadd.f32 %v3373, %v3533
          %v3535 = vpop.f32.mrb[0].mxu0
          %3536 = vmatprep.mubr.bf16.mxu0 0
          %3537 = vmatmul.mubr.bf16.gmra.mrb[0].mxu0 %v3014
          %v3538 = vpop.f32.mrb[0].mxu0
          %v3539 = vadd.f32 %v3378, %v3538
          %v3540 = vpop.f32.mrb[0].mxu0
          %v3541 = vpop.f32.mrb[0].mxu0
          %v3542 = vadd.f32 %v3381, %v3541
          %v3543 = vpop.f32.mrb[0].mxu0
          %3544 = vmatprep.mubr.bf16.mxu0 0
          %3545 = vmatmul.mubr.bf16.gmra.mrb[0].mxu0 %v3017
          %v3546 = vpop.f32.mrb[0].mxu0
          %v3547 = vadd.f32 %v3386, %v3546
          %v3548 = vpop.f32.mrb[0].mxu0
          %v3549 = vpop.f32.mrb[0].mxu0
          %v3550 = vadd.f32 %v3389, %v3549
          %v3551 = vpop.f32.mrb[0].mxu0
          %3552 = vmatprep.mubr.bf16.mxu0 0
          %3553 = vmatmul.mubr.bf16.gmra.mrb[0].mxu0 %v3020
          %v3554 = vpop.f32.mrb[0].mxu0
          %v3555 = vadd.f32 %v3394, %v3554
          %v3556 = vpop.f32.mrb[0].mxu0
          %v3557 = vpop.f32.mrb[0].mxu0
          %v3558 = vadd.f32 %v3397, %v3557
          %v3559 = vpop.f32.mrb[0].mxu0
          %3560 = vmatprep.mubr.bf16.mxu0 0
          %3561 = vmatmul.mubr.bf16.gmra.mrb[0].mxu0 %v3023
          %v3562 = vpop.f32.mrb[0].mxu0
          %v3563 = vadd.f32 %v3402, %v3562
          %v3564 = vpop.f32.mrb[0].mxu0
          %v3565 = vpop.f32.mrb[0].mxu0
          %v3566 = vadd.f32 %v3405, %v3565
          %v3567 = vpop.f32.mrb[0].mxu0
          %3568 = vmatprep.mubr.bf16.mxu0 0
          %3569 = vmatmul.mubr.bf16.gmra.mrb[0].mxu0 %v3026
          %v3570 = vpop.f32.mrb[0].mxu0
          %v3571 = vadd.f32 %v3410, %v3570
          %v3572 = vpop.f32.mrb[0].mxu0
          %v3573 = vpop.f32.mrb[0].mxu0
          %v3574 = vadd.f32 %v3413, %v3573
          %v3575 = vpop.f32.mrb[0].mxu0
          %3576 = vmatprep.mubr.bf16.mxu0 0
          %3577 = vmatmul.mubr.bf16.gmra.mrb[0].mxu0 %v3029
          %v3578 = vpop.f32.mrb[0].mxu0
          %v3579 = vadd.f32 %v3418, %v3578
          %v3580 = vpop.f32.mrb[0].mxu0
          %v3581 = vpop.f32.mrb[0].mxu0
          %v3582 = vadd.f32 %v3421, %v3581
          %v3583 = vpop.f32.mrb[0].mxu0
          %3584 = vmatprep.mubr.bf16.mxu0 0
          %3585 = vmatmul.mubr.bf16.gmra.mrb[0].mxu0 %v3032
          %v3586 = vpop.f32.mrb[0].mxu0
          %v3587 = vadd.f32 %v3426, %v3586
          %v3588 = vpop.f32.mrb[0].mxu0
          %v3589 = vpop.f32.mrb[0].mxu0
          %v3590 = vadd.f32 %v3429, %v3589
          %v3591 = vpop.f32.mrb[0].mxu0
          %3592 = vmatprep.mubr.bf16.mxu0 0
          %3593 = vmatmul.mubr.bf16.gmra.mrb[0].mxu0 %v3035
          %v3594 = vpop.f32.mrb[0].mxu0
          %v3595 = vadd.f32 %v3434, %v3594
          %v3596 = vpop.f32.mrb[0].mxu0
          %v3597 = vpop.f32.mrb[0].mxu0
          %v3598 = vadd.f32 %v3437, %v3597
          %v3599 = vpop.f32.mrb[0].mxu0
          %3600 = vmatprep.mubr.bf16.mxu0 0
          %3601 = vmatmul.mubr.bf16.gmra.mrb[0].mxu0 %v3090
          %v3602 = vpop.f32.mrb[0].mxu0
          %v3603 = vadd.f32 %v3442, %v3602
          %v3604 = vpop.f32.mrb[0].mxu0
          %v3605 = vpop.f32.mrb[0].mxu0
          %v3606 = vadd.f32 %v3445, %v3605
          %v3607 = vpop.f32.mrb[0].mxu0
          %3608 = vdwg.mxu0
          %v3657 = vunpack.c.l.b16 %v3040
          %v3658 = vunpack.c.l.b16 %v3041
          %v3659 = vunpack.c.l.b16 %v3042
          %v3660 = vunpack.c.l.b16 %v3043
          %v3661 = vunpack.c.l.b16 %v3044
          %v3662 = vunpack.c.l.b16 %v3045
          %v3663 = vunpack.c.l.b16 %v3046
          %v3664 = vunpack.c.l.b16 %v3047
          %v3665 = vunpack.c.l.b16 %v3048
          %v3666 = vunpack.c.l.b16 %v3049
          %v3667 = vunpack.c.l.b16 %v3050
          %v3668 = vunpack.c.l.b16 %v3051
          %v3669 = vunpack.c.l.b16 %v3052
          %v3670 = vunpack.c.l.b16 %v3053
          %v3671 = vunpack.c.l.b16 %v3054
          %v3672 = vunpack.c.l.b16 %v3055
          %v3673 = vunpack.c.l.b16 %v3056
          %v3674 = vunpack.c.l.b16 %v3057
          %v3675 = vunpack.c.l.b16 %v3058
          %v3676 = vunpack.c.l.b16 %v3059
          %v3677 = vunpack.c.l.b16 %v3060
          %v3678 = vunpack.c.l.b16 %v3061
          %v3679 = vunpack.c.l.b16 %v3062
          %v3680 = vunpack.c.l.b16 %v3063
          %v3681 = vunpack.c.l.b16 %v3064
          %v3682 = vunpack.c.l.b16 %v3065
          %v3683 = vunpack.c.l.b16 %v3066
          %v3684 = vunpack.c.l.b16 %v3067
          %v3685 = vunpack.c.l.b16 %v3068
          %v3686 = vunpack.c.l.b16 %v3069
          %v3687 = vunpack.c.l.b16 %v3070
          %v3688 = vunpack.c.l.b16 %v3071
          %v3689 = vunpack.c.l.b16 %v3072
          %v3690 = vunpack.c.l.b16 %v3073
          %v3691 = vunpack.c.l.b16 %v3074
          %v3692 = vunpack.c.l.b16 %v3075
          %v3693 = vunpack.c.l.b16 %v3076
          %v3694 = vunpack.c.l.b16 %v3077
          %v3695 = vunpack.c.l.b16 %v3078
          %v3696 = vunpack.c.l.b16 %v3079
          %v3697 = vunpack.c.l.b16 %v3080
          %v3698 = vunpack.c.l.b16 %v3081
          %v3699 = vunpack.c.l.b16 %v3082
          %v3700 = vunpack.c.l.b16 %v3083
          %v3701 = vunpack.c.l.b16 %v3084
          %v3702 = vunpack.c.l.b16 %v3085
          %v3703 = vunpack.c.l.b16 %v3086
          %v3704 = vunpack.c.l.b16 %v3087
          %v3705 = vpack.c.b16 %v3658, %v3657
          %v3706 = vpack.c.b16 %v3660, %v3659
          %v3707 = vpack.c.b16 %v3662, %v3661
          %v3708 = vpack.c.b16 %v3664, %v3663
          %v3709 = vpack.c.b16 %v3666, %v3665
          %v3710 = vpack.c.b16 %v3668, %v3667
          %v3711 = vpack.c.b16 %v3670, %v3669
          %v3712 = vpack.c.b16 %v3672, %v3671
          %v3713 = vpack.c.b16 %v3674, %v3673
          %v3714 = vpack.c.b16 %v3676, %v3675
          %v3715 = vpack.c.b16 %v3678, %v3677
          %v3716 = vpack.c.b16 %v3680, %v3679
          %v3717 = vpack.c.b16 %v3682, %v3681
          %v3718 = vpack.c.b16 %v3684, %v3683
          %v3719 = vpack.c.b16 %v3686, %v3685
          %v3720 = vpack.c.b16 %v3688, %v3687
          %v3721 = vpack.c.b16 %v3690, %v3689
          %v3722 = vpack.c.b16 %v3692, %v3691
          %v3723 = vpack.c.b16 %v3694, %v3693
          %v3724 = vpack.c.b16 %v3696, %v3695
          %v3725 = vpack.c.b16 %v3698, %v3697
          %v3726 = vpack.c.b16 %v3700, %v3699
          %v3727 = vpack.c.b16 %v3702, %v3701
          %v3728 = vpack.c.b16 %v3704, %v3703
          %3753 = vmatprep.subr.bf16.mxu0 0
          %3754 = vmatpush1.bf16.msra.mxu0 %v3705
          %3755 = vmatprep.subr.bf16.mxu0 0
          %3756 = vmatpush1.bf16.msra.mxu0 %v3706
          %3757 = vmatprep.subr.bf16.mxu0 0
          %3758 = vmatpush1.bf16.msra.mxu0 %v3707
          %3759 = vmatprep.subr.bf16.mxu0 0
          %3760 = vmatpush1.bf16.msra.mxu0 %v3708
          %3761 = vmatprep.subr.bf16.mxu0 0
          %3762 = vmatpush1.bf16.msra.mxu0 %v3709
          %3763 = vmatprep.subr.bf16.mxu0 0
          %3764 = vmatpush1.bf16.msra.mxu0 %v3710
          %3765 = vmatprep.subr.bf16.mxu0 0
          %3766 = vmatpush1.bf16.msra.mxu0 %v3711
          %3767 = vmatprep.subr.bf16.mxu0 0
          %3768 = vmatpush1.bf16.msra.mxu0 %v3712
          %3769 = vmatprep.subr.bf16.mxu0 0
          %3770 = vmatpush1.bf16.msra.mxu0 %v3713
          %3771 = vmatprep.subr.bf16.mxu0 0
          %3772 = vmatpush1.bf16.msra.mxu0 %v3714
          %3773 = vmatprep.subr.bf16.mxu0 0
          %3774 = vmatpush1.bf16.msra.mxu0 %v3715
          %3775 = vmatprep.subr.bf16.mxu0 0
          %3776 = vmatpush1.bf16.msra.mxu0 %v3716
          %3777 = vmatprep.subr.bf16.mxu0 0
          %3778 = vmatpush1.bf16.msra.mxu0 %v3717
          %3779 = vmatprep.subr.bf16.mxu0 0
          %3780 = vmatpush1.bf16.msra.mxu0 %v3718
          %3781 = vmatprep.subr.bf16.mxu0 0
          %3782 = vmatpush1.bf16.msra.mxu0 %v3719
          %3783 = vmatprep.subr.bf16.mxu0 0
          %3784 = vmatpush1.bf16.msra.mxu0 %v3720
          %3785 = vmatprep.mubr.bf16.mxu0 %v2989
          %3786 = vmatmul.mubr.bf16.gmra.mrb[0].mxu0 %v2988
          %v3787 = vpop.f32.mrb[0].mxu0
          %v3788 = vadd.f32 %v3483, %v3787
          %v3789 = vpop.f32.mrb[0].mxu0
          %v3790 = vpop.f32.mrb[0].mxu0
          %v3791 = vadd.f32 %v3486, %v3790
          %v3792 = vpop.f32.mrb[0].mxu0
          %3793 = vmatprep.mubr.bf16.mxu0 %v2992
          %3794 = vmatmul.mubr.bf16.gmra.mrb[0].mxu0 %v2991
          %v3795 = vpop.f32.mrb[0].mxu0
          %v3796 = vadd.f32 %v3491, %v3795
          %v3797 = vpop.f32.mrb[0].mxu0
          %v3798 = vpop.f32.mrb[0].mxu0
          %v3799 = vadd.f32 %v3494, %v3798
          %v3800 = vpop.f32.mrb[0].mxu0
          %3801 = vmatprep.mubr.bf16.mxu0 %v2995
          %3802 = vmatmul.mubr.bf16.gmra.mrb[0].mxu0 %v2994
          %v3803 = vpop.f32.mrb[0].mxu0
          %v3804 = vadd.f32 %v3499, %v3803
          %v3805 = vpop.f32.mrb[0].mxu0
          %v3806 = vpop.f32.mrb[0].mxu0
          %v3807 = vadd.f32 %v3502, %v3806
          %v3808 = vpop.f32.mrb[0].mxu0
          %3809 = vmatprep.mubr.bf16.mxu0 %v2998
          %3810 = vmatmul.mubr.bf16.gmra.mrb[0].mxu0 %v2997
          %v3811 = vpop.f32.mrb[0].mxu0
          %v3812 = vadd.f32 %v3507, %v3811
          %v3813 = vpop.f32.mrb[0].mxu0
          %v3814 = vpop.f32.mrb[0].mxu0
          %v3815 = vadd.f32 %v3510, %v3814
          %v3816 = vpop.f32.mrb[0].mxu0
          %3817 = vmatprep.mubr.bf16.mxu0 %v3001
          %3818 = vmatmul.mubr.bf16.gmra.mrb[0].mxu0 %v3000
          %v3819 = vpop.f32.mrb[0].mxu0
          %v3820 = vadd.f32 %v3515, %v3819
          %v3821 = vpop.f32.mrb[0].mxu0
          %v3822 = vpop.f32.mrb[0].mxu0
          %v3823 = vadd.f32 %v3518, %v3822
          %v3824 = vpop.f32.mrb[0].mxu0
          %3825 = vmatprep.mubr.bf16.mxu0 %v3004
          %3826 = vmatmul.mubr.bf16.gmra.mrb[0].mxu0 %v3003
          %v3827 = vpop.f32.mrb[0].mxu0
          %v3828 = vadd.f32 %v3523, %v3827
          %v3829 = vpop.f32.mrb[0].mxu0
          %v3830 = vpop.f32.mrb[0].mxu0
          %v3831 = vadd.f32 %v3526, %v3830
          %v3832 = vpop.f32.mrb[0].mxu0
          %3833 = vmatprep.mubr.bf16.mxu0 %v3007
          %3834 = vmatmul.mubr.bf16.gmra.mrb[0].mxu0 %v3006
          %v3835 = vpop.f32.mrb[0].mxu0
          %v3836 = vadd.f32 %v3531, %v3835
          %v3837 = vpop.f32.mrb[0].mxu0
          %v3838 = vpop.f32.mrb[0].mxu0
          %v3839 = vadd.f32 %v3534, %v3838
          %v3840 = vpop.f32.mrb[0].mxu0
          %3841 = vmatprep.mubr.bf16.mxu0 %v3010
          %3842 = vmatmul.mubr.bf16.gmra.mrb[0].mxu0 %v3009
          %v3843 = vpop.f32.mrb[0].mxu0
          %v3844 = vadd.f32 %v3539, %v3843
          %v3845 = vpop.f32.mrb[0].mxu0
          %v3846 = vpop.f32.mrb[0].mxu0
          %v3847 = vadd.f32 %v3542, %v3846
          %v3848 = vpop.f32.mrb[0].mxu0
          %3849 = vmatprep.mubr.bf16.mxu0 %v3013
          %3850 = vmatmul.mubr.bf16.gmra.mrb[0].mxu0 %v3012
          %v3851 = vpop.f32.mrb[0].mxu0
          %v3852 = vadd.f32 %v3547, %v3851
          %v3853 = vpop.f32.mrb[0].mxu0
          %v3854 = vpop.f32.mrb[0].mxu0
          %v3855 = vadd.f32 %v3550, %v3854
          %v3856 = vpop.f32.mrb[0].mxu0
          %3857 = vmatprep.mubr.bf16.mxu0 %v3016
          %3858 = vmatmul.mubr.bf16.gmra.mrb[0].mxu0 %v3015
          %v3859 = vpop.f32.mrb[0].mxu0
          %v3860 = vadd.f32 %v3555, %v3859
          %v3861 = vpop.f32.mrb[0].mxu0
          %v3862 = vpop.f32.mrb[0].mxu0
          %v3863 = vadd.f32 %v3558, %v3862
          %v3864 = vpop.f32.mrb[0].mxu0
          %3865 = vmatprep.mubr.bf16.mxu0 %v3019
          %3866 = vmatmul.mubr.bf16.gmra.mrb[0].mxu0 %v3018
          %v3867 = vpop.f32.mrb[0].mxu0
          %v3868 = vadd.f32 %v3563, %v3867
          %v3869 = vpop.f32.mrb[0].mxu0
          %v3870 = vpop.f32.mrb[0].mxu0
          %v3871 = vadd.f32 %v3566, %v3870
          %v3872 = vpop.f32.mrb[0].mxu0
          %3873 = vmatprep.mubr.bf16.mxu0 %v3022
          %3874 = vmatmul.mubr.bf16.gmra.mrb[0].mxu0 %v3021
          %v3875 = vpop.f32.mrb[0].mxu0
          %v3876 = vadd.f32 %v3571, %v3875
          %v3877 = vpop.f32.mrb[0].mxu0
          %v3878 = vpop.f32.mrb[0].mxu0
          %v3879 = vadd.f32 %v3574, %v3878
          %v3880 = vpop.f32.mrb[0].mxu0
          %3881 = vmatprep.mubr.bf16.mxu0 %v3025
          %3882 = vmatmul.mubr.bf16.gmra.mrb[0].mxu0 %v3024
          %v3883 = vpop.f32.mrb[0].mxu0
          %v3884 = vadd.f32 %v3579, %v3883
          %v3885 = vpop.f32.mrb[0].mxu0
          %v3886 = vpop.f32.mrb[0].mxu0
          %v3887 = vadd.f32 %v3582, %v3886
          %v3888 = vpop.f32.mrb[0].mxu0
          %3889 = vmatprep.mubr.bf16.mxu0 %v3028
          %3890 = vmatmul.mubr.bf16.gmra.mrb[0].mxu0 %v3027
          %v3891 = vpop.f32.mrb[0].mxu0
          %v3892 = vadd.f32 %v3587, %v3891
          %v3893 = vpop.f32.mrb[0].mxu0
          %v3894 = vpop.f32.mrb[0].mxu0
          %v3895 = vadd.f32 %v3590, %v3894
          %v3896 = vpop.f32.mrb[0].mxu0
          %3897 = vmatprep.mubr.bf16.mxu0 %v3031
          %3898 = vmatmul.mubr.bf16.gmra.mrb[0].mxu0 %v3030
          %v3899 = vpop.f32.mrb[0].mxu0
          %v3900 = vadd.f32 %v3595, %v3899
          %v3901 = vpop.f32.mrb[0].mxu0
          %v3902 = vpop.f32.mrb[0].mxu0
          %v3903 = vadd.f32 %v3598, %v3902
          %v3904 = vpop.f32.mrb[0].mxu0
          %3905 = vmatprep.mubr.bf16.mxu0 %v3034
          %3906 = vmatmul.mubr.bf16.gmra.mrb[0].mxu0 %v3033
          %v3907 = vpop.f32.mrb[0].mxu0
          %v3908 = vadd.f32 %v3603, %v3907
          %v3909 = vpop.f32.mrb[0].mxu0
          %v3910 = vpop.f32.mrb[0].mxu0
          %v3911 = vadd.f32 %v3606, %v3910
          %v3912 = vpop.f32.mrb[0].mxu0
          %3913 = vdwg.mxu0
          %3914 = vmatprep.subr.bf16.mxu0 0
          %3915 = vmatpush1.bf16.msra.mxu0 %v3721
          %3916 = vmatprep.subr.bf16.mxu0 0
          %3917 = vmatpush1.bf16.msra.mxu0 %v3722
          %3918 = vmatprep.subr.bf16.mxu0 0
          %3919 = vmatpush1.bf16.msra.mxu0 %v3723
          %3920 = vmatprep.subr.bf16.mxu0 0
          %3921 = vmatpush1.bf16.msra.mxu0 %v3724
          %3922 = vmatprep.subr.bf16.mxu0 0
          %3923 = vmatpush1.bf16.msra.mxu0 %v3725
          %3924 = vmatprep.subr.bf16.mxu0 0
          %3925 = vmatpush1.bf16.msra.mxu0 %v3726
          %3926 = vmatprep.subr.bf16.mxu0 0
          %3927 = vmatpush1.bf16.msra.mxu0 %v3727
          %3928 = vmatprep.subr.bf16.mxu0 0
          %3929 = vmatpush1.bf16.msra.mxu0 %v3728
          %3930 = vmatprep.subr.bf16.mxu0 0
          %3931 = vmatpush1.bf16.msra.mxu0 0
          %3932 = vmatprep.subr.bf16.mxu0 0
          %3933 = vmatpush1.bf16.msra.mxu0 0
          %3934 = vmatprep.subr.bf16.mxu0 0
          %3935 = vmatpush1.bf16.msra.mxu0 0
          %3936 = vmatprep.subr.bf16.mxu0 0
          %3937 = vmatpush1.bf16.msra.mxu0 0
          %3938 = vmatprep.subr.bf16.mxu0 0
          %3939 = vmatpush1.bf16.msra.mxu0 0
          %3940 = vmatprep.subr.bf16.mxu0 0
          %3941 = vmatpush1.bf16.msra.mxu0 0
          %3942 = vmatprep.subr.bf16.mxu0 0
          %3943 = vmatpush1.bf16.msra.mxu0 0
          %3944 = vmatprep.subr.bf16.mxu0 0
          %3945 = vmatpush1.bf16.msra.mxu0 0
          %3946 = vmatprep.mubr.bf16.mxu0 0
          %3947 = vmatmul.mubr.bf16.gmra.mrb[0].mxu0 %v2990
          %v3948 = vpop.f32.mrb[0].mxu0
          %v3949 = vadd.f32 %v3788, %v3948
          %v3950 = vpop.f32.mrb[0].mxu0
          %v3951 = vpop.f32.mrb[0].mxu0
          %v3952 = vadd.f32 %v3791, %v3951
          %v3953 = vpop.f32.mrb[0].mxu0
          %3954 = vmatprep.mubr.bf16.mxu0 0
          %3955 = vmatmul.mubr.bf16.gmra.mrb[0].mxu0 %v2993
          %v3956 = vpop.f32.mrb[0].mxu0
          %v3957 = vadd.f32 %v3796, %v3956
          %v3958 = vpop.f32.mrb[0].mxu0
          %v3959 = vpop.f32.mrb[0].mxu0
          %v3960 = vadd.f32 %v3799, %v3959
          %v3961 = vpop.f32.mrb[0].mxu0
          %3962 = vmatprep.mubr.bf16.mxu0 0
          %3963 = vmatmul.mubr.bf16.gmra.mrb[0].mxu0 %v2996
          %v3964 = vpop.f32.mrb[0].mxu0
          %v3965 = vadd.f32 %v3804, %v3964
          %v3966 = vpop.f32.mrb[0].mxu0
          %v3967 = vpop.f32.mrb[0].mxu0
          %v3968 = vadd.f32 %v3807, %v3967
          %v3969 = vpop.f32.mrb[0].mxu0
          %3970 = vmatprep.mubr.bf16.mxu0 0
          %3971 = vmatmul.mubr.bf16.gmra.mrb[0].mxu0 %v2999
          %v3972 = vpop.f32.mrb[0].mxu0
          %v3973 = vadd.f32 %v3812, %v3972
          %v3974 = vpop.f32.mrb[0].mxu0
          %v3975 = vpop.f32.mrb[0].mxu0
          %v3976 = vadd.f32 %v3815, %v3975
          %v3977 = vpop.f32.mrb[0].mxu0
          %3978 = vmatprep.mubr.bf16.mxu0 0
          %3979 = vmatmul.mubr.bf16.gmra.mrb[0].mxu0 %v3002
          %v3980 = vpop.f32.mrb[0].mxu0
          %v3981 = vadd.f32 %v3820, %v3980
          %v3982 = vpop.f32.mrb[0].mxu0
          %v3983 = vpop.f32.mrb[0].mxu0
          %v3984 = vadd.f32 %v3823, %v3983
          %v3985 = vpop.f32.mrb[0].mxu0
          %3986 = vmatprep.mubr.bf16.mxu0 0
          %3987 = vmatmul.mubr.bf16.gmra.mrb[0].mxu0 %v3005
          %v3988 = vpop.f32.mrb[0].mxu0
          %v3989 = vadd.f32 %v3828, %v3988
          %v3990 = vpop.f32.mrb[0].mxu0
          %v3991 = vpop.f32.mrb[0].mxu0
          %v3992 = vadd.f32 %v3831, %v3991
          %v3993 = vpop.f32.mrb[0].mxu0
          %3994 = vmatprep.mubr.bf16.mxu0 0
          %3995 = vmatmul.mubr.bf16.gmra.mrb[0].mxu0 %v3008
          %v3996 = vpop.f32.mrb[0].mxu0
          %v3997 = vadd.f32 %v3836, %v3996
          %v3998 = vpop.f32.mrb[0].mxu0
          %v3999 = vpop.f32.mrb[0].mxu0
          %v4000 = vadd.f32 %v3839, %v3999
          %v4001 = vpop.f32.mrb[0].mxu0
          %4002 = vmatprep.mubr.bf16.mxu0 0
          %4003 = vmatmul.mubr.bf16.gmra.mrb[0].mxu0 %v3011
          %v4004 = vpop.f32.mrb[0].mxu0
          %v4005 = vadd.f32 %v3844, %v4004
          %v4006 = vpop.f32.mrb[0].mxu0
          %v4007 = vpop.f32.mrb[0].mxu0
          %v4008 = vadd.f32 %v3847, %v4007
          %v4009 = vpop.f32.mrb[0].mxu0
          %4010 = vmatprep.mubr.bf16.mxu0 0
          %4011 = vmatmul.mubr.bf16.gmra.mrb[0].mxu0 %v3014
          %v4012 = vpop.f32.mrb[0].mxu0
          %v4013 = vadd.f32 %v3852, %v4012
          %v4014 = vpop.f32.mrb[0].mxu0
          %v4015 = vpop.f32.mrb[0].mxu0
          %v4016 = vadd.f32 %v3855, %v4015
          %v4017 = vpop.f32.mrb[0].mxu0
          %4018 = vmatprep.mubr.bf16.mxu0 0
          %4019 = vmatmul.mubr.bf16.gmra.mrb[0].mxu0 %v3017
          %v4020 = vpop.f32.mrb[0].mxu0
          %v4021 = vadd.f32 %v3860, %v4020
          %v4022 = vpop.f32.mrb[0].mxu0
          %v4023 = vpop.f32.mrb[0].mxu0
          %v4024 = vadd.f32 %v3863, %v4023
          %v4025 = vpop.f32.mrb[0].mxu0
          %4026 = vmatprep.mubr.bf16.mxu0 0
          %4027 = vmatmul.mubr.bf16.gmra.mrb[0].mxu0 %v3020
          %v4028 = vpop.f32.mrb[0].mxu0
          %v4029 = vadd.f32 %v3868, %v4028
          %v4030 = vpop.f32.mrb[0].mxu0
          %v4031 = vpop.f32.mrb[0].mxu0
          %v4032 = vadd.f32 %v3871, %v4031
          %v4033 = vpop.f32.mrb[0].mxu0
          %4034 = vmatprep.mubr.bf16.mxu0 0
          %4035 = vmatmul.mubr.bf16.gmra.mrb[0].mxu0 %v3023
          %v4036 = vpop.f32.mrb[0].mxu0
          %v4037 = vadd.f32 %v3876, %v4036
          %v4038 = vpop.f32.mrb[0].mxu0
          %v4039 = vpop.f32.mrb[0].mxu0
          %v4040 = vadd.f32 %v3879, %v4039
          %v4041 = vpop.f32.mrb[0].mxu0
          %4042 = vmatprep.mubr.bf16.mxu0 0
          %4043 = vmatmul.mubr.bf16.gmra.mrb[0].mxu0 %v3026
          %v4044 = vpop.f32.mrb[0].mxu0
          %v4045 = vadd.f32 %v3884, %v4044
          %v4046 = vpop.f32.mrb[0].mxu0
          %v4047 = vpop.f32.mrb[0].mxu0
          %v4048 = vadd.f32 %v3887, %v4047
          %v4049 = vpop.f32.mrb[0].mxu0
          %4050 = vmatprep.mubr.bf16.mxu0 0
          %4051 = vmatmul.mubr.bf16.gmra.mrb[0].mxu0 %v3029
          %v4052 = vpop.f32.mrb[0].mxu0
          %v4053 = vadd.f32 %v3892, %v4052
          %v4054 = vpop.f32.mrb[0].mxu0
          %v4055 = vpop.f32.mrb[0].mxu0
          %v4056 = vadd.f32 %v3895, %v4055
          %v4057 = vpop.f32.mrb[0].mxu0
          %4058 = vmatprep.mubr.bf16.mxu0 0
          %4059 = vmatmul.mubr.bf16.gmra.mrb[0].mxu0 %v3032
          %v4060 = vpop.f32.mrb[0].mxu0
          %v4061 = vadd.f32 %v3900, %v4060
          %v4062 = vpop.f32.mrb[0].mxu0
          %v4063 = vpop.f32.mrb[0].mxu0
          %v4064 = vadd.f32 %v3903, %v4063
          %v4065 = vpop.f32.mrb[0].mxu0
          %4066 = vmatprep.mubr.bf16.mxu0 0
          %4067 = vmatmul.mubr.bf16.gmra.mrb[0].mxu0 %v3035
          %v4068 = vpop.f32.mrb[0].mxu0
          %v4069 = vadd.f32 %v3908, %v4068
          %v4070 = vpop.f32.mrb[0].mxu0
          %v4071 = vpop.f32.mrb[0].mxu0
          %v4072 = vadd.f32 %v3911, %v4071
          %v4073 = vpop.f32.mrb[0].mxu0
          %4074 = vdwg.mxu0
          %v4075 = vld [vmem:[#allocation2 + $0x30] sm:$0xff]
          %v4076 = vld [vmem:[#allocation2 + $0x38] sm:$0xff]
          %v4077 = vld [vmem:[#allocation2 + $0x40] sm:$0xff]
          %v4078 = vld [vmem:[#allocation2 + $0x48] sm:$0xff]
          %v4079 = vld [vmem:[#allocation2 + $0x50] sm:$0xff]
          %v4080 = vld [vmem:[#allocation2 + $0x58] sm:$0xff]
          %v4081 = vld [vmem:[#allocation2 + $0x60] sm:$0xff]
          %v4082 = vld [vmem:[#allocation2 + $0x68] sm:$0xff]
          %v4083 = vld [vmem:[#allocation2 + $0x70] sm:$0xff]
          %v4084 = vld [vmem:[#allocation2 + $0x78] sm:$0xff]
          %v4085 = vld [vmem:[#allocation2 + $0x80] sm:$0xff]
          %v4086 = vld [vmem:[#allocation2 + $0x88] sm:$0xff]
          %v4087 = vld [vmem:[#allocation2 + $0x90] sm:$0xff]
          %v4088 = vld [vmem:[#allocation2 + $0x98] sm:$0xff]
          %v4089 = vld [vmem:[#allocation2 + $0xa0] sm:$0xff]
          %v4090 = vld [vmem:[#allocation2 + $0xa8] sm:$0xff]
          %v4091 = vld [vmem:[#allocation2 + $0xb0] sm:$0xff]
          %v4092 = vld [vmem:[#allocation2 + $0xb8] sm:$0xff]
          %v4093 = vld [vmem:[#allocation2 + $0xc0] sm:$0xff]
          %v4094 = vld [vmem:[#allocation2 + $0xc8] sm:$0xff]
          %v4095 = vld [vmem:[#allocation2 + $0xd0] sm:$0xff]
          %v4096 = vld [vmem:[#allocation2 + $0xd8] sm:$0xff]
          %v4097 = vld [vmem:[#allocation2 + $0xe0] sm:$0xff]
          %v4098 = vld [vmem:[#allocation2 + $0xe8] sm:$0xff]
          %v4099 = vld [vmem:[#allocation2 + $0xf0] sm:$0xff]
          %v4100 = vld [vmem:[#allocation2 + $0xf8] sm:$0xff]
          %v4101 = vld [vmem:[#allocation2 + $0x100] sm:$0xff]
          %v4102 = vld [vmem:[#allocation2 + $0x108] sm:$0xff]
          %v4103 = vld [vmem:[#allocation2 + $0x110] sm:$0xff]
          %v4104 = vld [vmem:[#allocation2 + $0x118] sm:$0xff]
          %v4105 = vld [vmem:[#allocation2 + $0x120] sm:$0xff]
          %v4106 = vld [vmem:[#allocation2 + $0x128] sm:$0xff]
          %v4107 = vld [vmem:[#allocation2 + $0x130] sm:$0xff]
          %v4108 = vld [vmem:[#allocation2 + $0x138] sm:$0xff]
          %v4109 = vld [vmem:[#allocation2 + $0x140] sm:$0xff]
          %v4110 = vld [vmem:[#allocation2 + $0x148] sm:$0xff]
          %v4111 = vld [vmem:[#allocation2 + $0x150] sm:$0xff]
          %v4112 = vld [vmem:[#allocation2 + $0x158] sm:$0xff]
          %v4113 = vld [vmem:[#allocation2 + $0x160] sm:$0xff]
          %v4114 = vld [vmem:[#allocation2 + $0x168] sm:$0xff]
          %v4115 = vld [vmem:[#allocation2 + $0x170] sm:$0xff]
          %v4116 = vld [vmem:[#allocation2 + $0x178] sm:$0xff]
          %v4117 = vld [vmem:[#allocation2 + $0x180] sm:$0xff]
          %v4118 = vld [vmem:[#allocation2 + $0x188] sm:$0xff]
          %v4119 = vld [vmem:[#allocation2 + $0x190] sm:$0xff]
          %v4120 = vld [vmem:[#allocation2 + $0x198] sm:$0xff]
          %v4121 = vld [vmem:[#allocation2 + $0x1a0] sm:$0xff]
          %v4122 = vld [vmem:[#allocation2 + $0x1a8] sm:$0xff]
          %s4123 = sadd.s32 %s3036, 2
          %s4124 = smul.u32 %s4123, 48
          %s4125 = smul.addr %s4124, 4
          %s4126 = scalar_lea.vmem [#allocation9], %s4125
          %v4127 = vld [vmem:[%s4126] sm:$0xf]
          %v4128 = vld [vmem:[%s4126 + $0x4] sm:$0xf]
          %v4129 = vld [vmem:[%s4126 + $0x8] sm:$0xf]
          %v4130 = vld [vmem:[%s4126 + $0xc] sm:$0xf]
          %v4131 = vld [vmem:[%s4126 + $0x10] sm:$0xf]
          %v4132 = vld [vmem:[%s4126 + $0x14] sm:$0xf]
          %v4133 = vld [vmem:[%s4126 + $0x18] sm:$0xf]
          %v4134 = vld [vmem:[%s4126 + $0x1c] sm:$0xf]
          %v4135 = vld [vmem:[%s4126 + $0x20] sm:$0xf]
          %v4136 = vld [vmem:[%s4126 + $0x24] sm:$0xf]
          %v4137 = vld [vmem:[%s4126 + $0x28] sm:$0xf]
          %v4138 = vld [vmem:[%s4126 + $0x2c] sm:$0xf]
          %v4139 = vld [vmem:[%s4126 + $0x30] sm:$0xf]
          %v4140 = vld [vmem:[%s4126 + $0x34] sm:$0xf]
          %v4141 = vld [vmem:[%s4126 + $0x38] sm:$0xf]
          %v4142 = vld [vmem:[%s4126 + $0x3c] sm:$0xf]
          %v4143 = vld [vmem:[%s4126 + $0x40] sm:$0xf]
          %v4144 = vld [vmem:[%s4126 + $0x44] sm:$0xf]
          %v4145 = vld [vmem:[%s4126 + $0x48] sm:$0xf]
          %v4146 = vld [vmem:[%s4126 + $0x4c] sm:$0xf]
          %v4147 = vld [vmem:[%s4126 + $0x50] sm:$0xf]
          %v4148 = vld [vmem:[%s4126 + $0x54] sm:$0xf]
          %v4149 = vld [vmem:[%s4126 + $0x58] sm:$0xf]
          %v4150 = vld [vmem:[%s4126 + $0x5c] sm:$0xf]
          %v4151 = vld [vmem:[%s4126 + $0x60] sm:$0xf]
          %v4152 = vld [vmem:[%s4126 + $0x64] sm:$0xf]
          %v4153 = vld [vmem:[%s4126 + $0x68] sm:$0xf]
          %v4154 = vld [vmem:[%s4126 + $0x6c] sm:$0xf]
          %v4155 = vld [vmem:[%s4126 + $0x70] sm:$0xf]
          %v4156 = vld [vmem:[%s4126 + $0x74] sm:$0xf]
          %v4157 = vld [vmem:[%s4126 + $0x78] sm:$0xf]
          %v4158 = vld [vmem:[%s4126 + $0x7c] sm:$0xf]
          %v4159 = vld [vmem:[%s4126 + $0x80] sm:$0xf]
          %v4160 = vld [vmem:[%s4126 + $0x84] sm:$0xf]
          %v4161 = vld [vmem:[%s4126 + $0x88] sm:$0xf]
          %v4162 = vld [vmem:[%s4126 + $0x8c] sm:$0xf]
          %v4163 = vld [vmem:[%s4126 + $0x90] sm:$0xf]
          %v4164 = vld [vmem:[%s4126 + $0x94] sm:$0xf]
          %v4165 = vld [vmem:[%s4126 + $0x98] sm:$0xf]
          %v4166 = vld [vmem:[%s4126 + $0x9c] sm:$0xf]
          %v4167 = vld [vmem:[%s4126 + $0xa0] sm:$0xf]
          %v4168 = vld [vmem:[%s4126 + $0xa4] sm:$0xf]
          %v4169 = vld [vmem:[%s4126 + $0xa8] sm:$0xf]
          %v4170 = vld [vmem:[%s4126 + $0xac] sm:$0xf]
          %v4171 = vld [vmem:[%s4126 + $0xb0] sm:$0xf]
          %v4172 = vld [vmem:[%s4126 + $0xb4] sm:$0xf]
          %v4173 = vld [vmem:[%s4126 + $0xb8] sm:$0xf]
          %v4174 = vld [vmem:[%s4126 + $0xbc] sm:$0xf]
          %v4223 = vunpack.c.l.b16 %v4127
          %v4224 = vunpack.c.l.b16 %v4128
          %v4225 = vunpack.c.l.b16 %v4129
          %v4226 = vunpack.c.l.b16 %v4130
          %v4227 = vunpack.c.l.b16 %v4131
          %v4228 = vunpack.c.l.b16 %v4132
          %v4229 = vunpack.c.l.b16 %v4133
          %v4230 = vunpack.c.l.b16 %v4134
          %v4231 = vunpack.c.l.b16 %v4135
          %v4232 = vunpack.c.l.b16 %v4136
          %v4233 = vunpack.c.l.b16 %v4137
          %v4234 = vunpack.c.l.b16 %v4138
          %v4235 = vunpack.c.l.b16 %v4139
          %v4236 = vunpack.c.l.b16 %v4140
          %v4237 = vunpack.c.l.b16 %v4141
          %v4238 = vunpack.c.l.b16 %v4142
          %v4239 = vunpack.c.l.b16 %v4143
          %v4240 = vunpack.c.l.b16 %v4144
          %v4241 = vunpack.c.l.b16 %v4145
          %v4242 = vunpack.c.l.b16 %v4146
          %v4243 = vunpack.c.l.b16 %v4147
          %v4244 = vunpack.c.l.b16 %v4148
          %v4245 = vunpack.c.l.b16 %v4149
          %v4246 = vunpack.c.l.b16 %v4150
          %v4247 = vunpack.c.l.b16 %v4151
          %v4248 = vunpack.c.l.b16 %v4152
          %v4249 = vunpack.c.l.b16 %v4153
          %v4250 = vunpack.c.l.b16 %v4154
          %v4251 = vunpack.c.l.b16 %v4155
          %v4252 = vunpack.c.l.b16 %v4156
          %v4253 = vunpack.c.l.b16 %v4157
          %v4254 = vunpack.c.l.b16 %v4158
          %v4255 = vunpack.c.l.b16 %v4159
          %v4256 = vunpack.c.l.b16 %v4160
          %v4257 = vunpack.c.l.b16 %v4161
          %v4258 = vunpack.c.l.b16 %v4162
          %v4259 = vunpack.c.l.b16 %v4163
          %v4260 = vunpack.c.l.b16 %v4164
          %v4261 = vunpack.c.l.b16 %v4165
          %v4262 = vunpack.c.l.b16 %v4166
          %v4263 = vunpack.c.l.b16 %v4167
          %v4264 = vunpack.c.l.b16 %v4168
          %v4265 = vunpack.c.l.b16 %v4169
          %v4266 = vunpack.c.l.b16 %v4170
          %v4267 = vunpack.c.l.b16 %v4171
          %v4268 = vunpack.c.l.b16 %v4172
          %v4269 = vunpack.c.l.b16 %v4173
          %v4270 = vunpack.c.l.b16 %v4174
          %v4271 = vpack.c.b16 %v4224, %v4223
          %v4272 = vpack.c.b16 %v4226, %v4225
          %v4273 = vpack.c.b16 %v4228, %v4227
          %v4274 = vpack.c.b16 %v4230, %v4229
          %v4275 = vpack.c.b16 %v4232, %v4231
          %v4276 = vpack.c.b16 %v4234, %v4233
          %v4277 = vpack.c.b16 %v4236, %v4235
          %v4278 = vpack.c.b16 %v4238, %v4237
          %v4279 = vpack.c.b16 %v4240, %v4239
          %v4280 = vpack.c.b16 %v4242, %v4241
          %v4281 = vpack.c.b16 %v4244, %v4243
          %v4282 = vpack.c.b16 %v4246, %v4245
          %v4283 = vpack.c.b16 %v4248, %v4247
          %v4284 = vpack.c.b16 %v4250, %v4249
          %v4285 = vpack.c.b16 %v4252, %v4251
          %v4286 = vpack.c.b16 %v4254, %v4253
          %v4287 = vpack.c.b16 %v4256, %v4255
          %v4288 = vpack.c.b16 %v4258, %v4257
          %v4289 = vpack.c.b16 %v4260, %v4259
          %v4290 = vpack.c.b16 %v4262, %v4261
          %v4291 = vpack.c.b16 %v4264, %v4263
          %v4292 = vpack.c.b16 %v4266, %v4265
          %v4293 = vpack.c.b16 %v4268, %v4267
          %v4294 = vpack.c.b16 %v4270, %v4269
          %4319 = vmatprep.subr.bf16.mxu0 0
          %4320 = vmatpush1.bf16.msra.mxu0 %v4271
          %4321 = vmatprep.subr.bf16.mxu0 0
          %4322 = vmatpush1.bf16.msra.mxu0 %v4272
          %4323 = vmatprep.subr.bf16.mxu0 0
          %4324 = vmatpush1.bf16.msra.mxu0 %v4273
          %4325 = vmatprep.subr.bf16.mxu0 0
          %4326 = vmatpush1.bf16.msra.mxu0 %v4274
          %4327 = vmatprep.subr.bf16.mxu0 0
          %4328 = vmatpush1.bf16.msra.mxu0 %v4275
          %4329 = vmatprep.subr.bf16.mxu0 0
          %4330 = vmatpush1.bf16.msra.mxu0 %v4276
          %4331 = vmatprep.subr.bf16.mxu0 0
          %4332 = vmatpush1.bf16.msra.mxu0 %v4277
          %4333 = vmatprep.subr.bf16.mxu0 0
          %4334 = vmatpush1.bf16.msra.mxu0 %v4278
          %4335 = vmatprep.subr.bf16.mxu0 0
          %4336 = vmatpush1.bf16.msra.mxu0 %v4279
          %4337 = vmatprep.subr.bf16.mxu0 0
          %4338 = vmatpush1.bf16.msra.mxu0 %v4280
          %4339 = vmatprep.subr.bf16.mxu0 0
          %4340 = vmatpush1.bf16.msra.mxu0 %v4281
          %4341 = vmatprep.subr.bf16.mxu0 0
          %4342 = vmatpush1.bf16.msra.mxu0 %v4282
          %4343 = vmatprep.subr.bf16.mxu0 0
          %4344 = vmatpush1.bf16.msra.mxu0 %v4283
          %4345 = vmatprep.subr.bf16.mxu0 0
          %4346 = vmatpush1.bf16.msra.mxu0 %v4284
          %4347 = vmatprep.subr.bf16.mxu0 0
          %4348 = vmatpush1.bf16.msra.mxu0 %v4285
          %4349 = vmatprep.subr.bf16.mxu0 0
          %4350 = vmatpush1.bf16.msra.mxu0 %v4286
          %4351 = vmatprep.mubr.bf16.mxu0 %v4076
          %4352 = vmatmul.mubr.bf16.gmra.mrb[0].mxu0 %v4075
          %v4353 = vpop.f32.mrb[0].mxu0
          %v4354 = vadd.f32 0.0, %v4353
          %v4355 = vpop.f32.mrb[0].mxu0
          %v4356 = vpop.f32.mrb[0].mxu0
          %v4357 = vadd.f32 0.0, %v4356
          %v4358 = vpop.f32.mrb[0].mxu0
          %4359 = vmatprep.mubr.bf16.mxu0 %v4079
          %4360 = vmatmul.mubr.bf16.gmra.mrb[0].mxu0 %v4078
          %v4361 = vpop.f32.mrb[0].mxu0
          %v4362 = vadd.f32 0.0, %v4361
          %v4363 = vpop.f32.mrb[0].mxu0
          %v4364 = vpop.f32.mrb[0].mxu0
          %v4365 = vadd.f32 0.0, %v4364
          %v4366 = vpop.f32.mrb[0].mxu0
          %4367 = vmatprep.mubr.bf16.mxu0 %v4082
          %4368 = vmatmul.mubr.bf16.gmra.mrb[0].mxu0 %v4081
          %v4369 = vpop.f32.mrb[0].mxu0
          %v4370 = vadd.f32 0.0, %v4369
          %v4371 = vpop.f32.mrb[0].mxu0
          %v4372 = vpop.f32.mrb[0].mxu0
          %v4373 = vadd.f32 0.0, %v4372
          %v4374 = vpop.f32.mrb[0].mxu0
          %4375 = vmatprep.mubr.bf16.mxu0 %v4085
          %4376 = vmatmul.mubr.bf16.gmra.mrb[0].mxu0 %v4084
          %v4377 = vpop.f32.mrb[0].mxu0
          %v4378 = vadd.f32 0.0, %v4377
          %v4379 = vpop.f32.mrb[0].mxu0
          %v4380 = vpop.f32.mrb[0].mxu0
          %v4381 = vadd.f32 0.0, %v4380
          %v4382 = vpop.f32.mrb[0].mxu0
          %4383 = vmatprep.mubr.bf16.mxu0 %v4088
          %4384 = vmatmul.mubr.bf16.gmra.mrb[0].mxu0 %v4087
          %v4385 = vpop.f32.mrb[0].mxu0
          %v4386 = vadd.f32 0.0, %v4385
          %v4387 = vpop.f32.mrb[0].mxu0
          %v4388 = vpop.f32.mrb[0].mxu0
          %v4389 = vadd.f32 0.0, %v4388
          %v4390 = vpop.f32.mrb[0].mxu0
          %4391 = vmatprep.mubr.bf16.mxu0 %v4091
          %4392 = vmatmul.mubr.bf16.gmra.mrb[0].mxu0 %v4090
          %v4393 = vpop.f32.mrb[0].mxu0
          %v4394 = vadd.f32 0.0, %v4393
          %v4395 = vpop.f32.mrb[0].mxu0
          %v4396 = vpop.f32.mrb[0].mxu0
          %v4397 = vadd.f32 0.0, %v4396
          %v4398 = vpop.f32.mrb[0].mxu0
          %4399 = vmatprep.mubr.bf16.mxu0 %v4094
          %4400 = vmatmul.mubr.bf16.gmra.mrb[0].mxu0 %v4093
          %v4401 = vpop.f32.mrb[0].mxu0
          %v4402 = vadd.f32 0.0, %v4401
          %v4403 = vpop.f32.mrb[0].mxu0
          %v4404 = vpop.f32.mrb[0].mxu0
          %v4405 = vadd.f32 0.0, %v4404
          %v4406 = vpop.f32.mrb[0].mxu0
          %4407 = vmatprep.mubr.bf16.mxu0 %v4097
          %4408 = vmatmul.mubr.bf16.gmra.mrb[0].mxu0 %v4096
          %v4409 = vpop.f32.mrb[0].mxu0
          %v4410 = vadd.f32 0.0, %v4409
          %v4411 = vpop.f32.mrb[0].mxu0
          %v4412 = vpop.f32.mrb[0].mxu0
          %v4413 = vadd.f32 0.0, %v4412
          %v4414 = vpop.f32.mrb[0].mxu0
          %4415 = vmatprep.mubr.bf16.mxu0 %v4100
          %4416 = vmatmul.mubr.bf16.gmra.mrb[0].mxu0 %v4099
          %v4417 = vpop.f32.mrb[0].mxu0
          %v4418 = vadd.f32 0.0, %v4417
          %v4419 = vpop.f32.mrb[0].mxu0
          %v4420 = vpop.f32.mrb[0].mxu0
          %v4421 = vadd.f32 0.0, %v4420
          %v4422 = vpop.f32.mrb[0].mxu0
          %4423 = vmatprep.mubr.bf16.mxu0 %v4103
          %4424 = vmatmul.mubr.bf16.gmra.mrb[0].mxu0 %v4102
          %v4425 = vpop.f32.mrb[0].mxu0
          %v4426 = vadd.f32 0.0, %v4425
          %v4427 = vpop.f32.mrb[0].mxu0
          %v4428 = vpop.f32.mrb[0].mxu0
          %v4429 = vadd.f32 0.0, %v4428
          %v4430 = vpop.f32.mrb[0].mxu0
          %4431 = vmatprep.mubr.bf16.mxu0 %v4106
          %4432 = vmatmul.mubr.bf16.gmra.mrb[0].mxu0 %v4105
          %v4433 = vpop.f32.mrb[0].mxu0
          %v4434 = vadd.f32 0.0, %v4433
          %v4435 = vpop.f32.mrb[0].mxu0
          %v4436 = vpop.f32.mrb[0].mxu0
          %v4437 = vadd.f32 0.0, %v4436
          %v4438 = vpop.f32.mrb[0].mxu0
          %4439 = vmatprep.mubr.bf16.mxu0 %v4109
          %4440 = vmatmul.mubr.bf16.gmra.mrb[0].mxu0 %v4108
          %v4441 = vpop.f32.mrb[0].mxu0
          %v4442 = vadd.f32 0.0, %v4441
          %v4443 = vpop.f32.mrb[0].mxu0
          %v4444 = vpop.f32.mrb[0].mxu0
          %v4445 = vadd.f32 0.0, %v4444
          %v4446 = vpop.f32.mrb[0].mxu0
          %4447 = vmatprep.mubr.bf16.mxu0 %v4112
          %4448 = vmatmul.mubr.bf16.gmra.mrb[0].mxu0 %v4111
          %v4449 = vpop.f32.mrb[0].mxu0
          %v4450 = vadd.f32 0.0, %v4449
          %v4451 = vpop.f32.mrb[0].mxu0
          %v4452 = vpop.f32.mrb[0].mxu0
          %v4453 = vadd.f32 0.0, %v4452
          %v4454 = vpop.f32.mrb[0].mxu0
          %4455 = vmatprep.mubr.bf16.mxu0 %v4115
          %4456 = vmatmul.mubr.bf16.gmra.mrb[0].mxu0 %v4114
          %v4457 = vpop.f32.mrb[0].mxu0
          %v4458 = vadd.f32 0.0, %v4457
          %v4459 = vpop.f32.mrb[0].mxu0
          %v4460 = vpop.f32.mrb[0].mxu0
          %v4461 = vadd.f32 0.0, %v4460
          %v4462 = vpop.f32.mrb[0].mxu0
          %4463 = vmatprep.mubr.bf16.mxu0 %v4118
          %4464 = vmatmul.mubr.bf16.gmra.mrb[0].mxu0 %v4117
          %v4465 = vpop.f32.mrb[0].mxu0
          %v4466 = vadd.f32 0.0, %v4465
          %v4467 = vpop.f32.mrb[0].mxu0
          %v4468 = vpop.f32.mrb[0].mxu0
          %v4469 = vadd.f32 0.0, %v4468
          %v4470 = vpop.f32.mrb[0].mxu0
          %4471 = vmatprep.mubr.bf16.mxu0 %v4121
          %4472 = vmatmul.mubr.bf16.gmra.mrb[0].mxu0 %v4120
          %v4473 = vpop.f32.mrb[0].mxu0
          %v4474 = vadd.f32 0.0, %v4473
          %v4475 = vpop.f32.mrb[0].mxu0
          %v4476 = vpop.f32.mrb[0].mxu0
          %v4477 = vadd.f32 0.0, %v4476
          %v4478 = vpop.f32.mrb[0].mxu0
          %4479 = vdwg.mxu0
          %4480 = vmatprep.subr.bf16.mxu0 0
          %4481 = vmatpush1.bf16.msra.mxu0 %v4287
          %4482 = vmatprep.subr.bf16.mxu0 0
          %4483 = vmatpush1.bf16.msra.mxu0 %v4288
          %4484 = vmatprep.subr.bf16.mxu0 0
          %4485 = vmatpush1.bf16.msra.mxu0 %v4289
          %4486 = vmatprep.subr.bf16.mxu0 0
          %4487 = vmatpush1.bf16.msra.mxu0 %v4290
          %4488 = vmatprep.subr.bf16.mxu0 0
          %4489 = vmatpush1.bf16.msra.mxu0 %v4291
          %4490 = vmatprep.subr.bf16.mxu0 0
          %4491 = vmatpush1.bf16.msra.mxu0 %v4292
          %4492 = vmatprep.subr.bf16.mxu0 0
          %4493 = vmatpush1.bf16.msra.mxu0 %v4293
          %4494 = vmatprep.subr.bf16.mxu0 0
          %4495 = vmatpush1.bf16.msra.mxu0 %v4294
          %4496 = vmatprep.subr.bf16.mxu0 0
          %4497 = vmatpush1.bf16.msra.mxu0 0
          %4498 = vmatprep.subr.bf16.mxu0 0
          %4499 = vmatpush1.bf16.msra.mxu0 0
          %4500 = vmatprep.subr.bf16.mxu0 0
          %4501 = vmatpush1.bf16.msra.mxu0 0
          %4502 = vmatprep.subr.bf16.mxu0 0
          %4503 = vmatpush1.bf16.msra.mxu0 0
          %4504 = vmatprep.subr.bf16.mxu0 0
          %4505 = vmatpush1.bf16.msra.mxu0 0
          %4506 = vmatprep.subr.bf16.mxu0 0
          %4507 = vmatpush1.bf16.msra.mxu0 0
          %4508 = vmatprep.subr.bf16.mxu0 0
          %4509 = vmatpush1.bf16.msra.mxu0 0
          %4510 = vmatprep.subr.bf16.mxu0 0
          %4511 = vmatpush1.bf16.msra.mxu0 0
          %4512 = vmatprep.mubr.bf16.mxu0 0
          %4513 = vmatmul.mubr.bf16.gmra.mrb[0].mxu0 %v4077
          %v4514 = vpop.f32.mrb[0].mxu0
          %v4515 = vadd.f32 %v4354, %v4514
          %v4516 = vpop.f32.mrb[0].mxu0
          %v4517 = vpop.f32.mrb[0].mxu0
          %v4518 = vadd.f32 %v4357, %v4517
          %v4519 = vpop.f32.mrb[0].mxu0
          %4520 = vmatprep.mubr.bf16.mxu0 0
          %4521 = vmatmul.mubr.bf16.gmra.mrb[0].mxu0 %v4080
          %v4522 = vpop.f32.mrb[0].mxu0
          %v4523 = vadd.f32 %v4362, %v4522
          %v4524 = vpop.f32.mrb[0].mxu0
          %v4525 = vpop.f32.mrb[0].mxu0
          %v4526 = vadd.f32 %v4365, %v4525
          %v4527 = vpop.f32.mrb[0].mxu0
          %4528 = vmatprep.mubr.bf16.mxu0 0
          %4529 = vmatmul.mubr.bf16.gmra.mrb[0].mxu0 %v4083
          %v4530 = vpop.f32.mrb[0].mxu0
          %v4531 = vadd.f32 %v4370, %v4530
          %v4532 = vpop.f32.mrb[0].mxu0
          %v4533 = vpop.f32.mrb[0].mxu0
          %v4534 = vadd.f32 %v4373, %v4533
          %v4535 = vpop.f32.mrb[0].mxu0
          %4536 = vmatprep.mubr.bf16.mxu0 0
          %4537 = vmatmul.mubr.bf16.gmra.mrb[0].mxu0 %v4086
          %v4538 = vpop.f32.mrb[0].mxu0
          %v4539 = vadd.f32 %v4378, %v4538
          %v4540 = vpop.f32.mrb[0].mxu0
          %v4541 = vpop.f32.mrb[0].mxu0
          %v4542 = vadd.f32 %v4381, %v4541
          %v4543 = vpop.f32.mrb[0].mxu0
          %4544 = vmatprep.mubr.bf16.mxu0 0
          %4545 = vmatmul.mubr.bf16.gmra.mrb[0].mxu0 %v4089
          %v4546 = vpop.f32.mrb[0].mxu0
          %v4547 = vadd.f32 %v4386, %v4546
          %v4548 = vpop.f32.mrb[0].mxu0
          %v4549 = vpop.f32.mrb[0].mxu0
          %v4550 = vadd.f32 %v4389, %v4549
          %v4551 = vpop.f32.mrb[0].mxu0
          %4552 = vmatprep.mubr.bf16.mxu0 0
          %4553 = vmatmul.mubr.bf16.gmra.mrb[0].mxu0 %v4092
          %v4554 = vpop.f32.mrb[0].mxu0
          %v4555 = vadd.f32 %v4394, %v4554
          %v4556 = vpop.f32.mrb[0].mxu0
          %v4557 = vpop.f32.mrb[0].mxu0
          %v4558 = vadd.f32 %v4397, %v4557
          %v4559 = vpop.f32.mrb[0].mxu0
          %4560 = vmatprep.mubr.bf16.mxu0 0
          %4561 = vmatmul.mubr.bf16.gmra.mrb[0].mxu0 %v4095
          %v4562 = vpop.f32.mrb[0].mxu0
          %v4563 = vadd.f32 %v4402, %v4562
          %v4564 = vpop.f32.mrb[0].mxu0
          %v4565 = vpop.f32.mrb[0].mxu0
          %v4566 = vadd.f32 %v4405, %v4565
          %v4567 = vpop.f32.mrb[0].mxu0
          %4568 = vmatprep.mubr.bf16.mxu0 0
          %4569 = vmatmul.mubr.bf16.gmra.mrb[0].mxu0 %v4098
          %v4570 = vpop.f32.mrb[0].mxu0
          %v4571 = vadd.f32 %v4410, %v4570
          %v4572 = vpop.f32.mrb[0].mxu0
          %v4573 = vpop.f32.mrb[0].mxu0
          %v4574 = vadd.f32 %v4413, %v4573
          %v4575 = vpop.f32.mrb[0].mxu0
          %4576 = vmatprep.mubr.bf16.mxu0 0
          %4577 = vmatmul.mubr.bf16.gmra.mrb[0].mxu0 %v4101
          %v4578 = vpop.f32.mrb[0].mxu0
          %v4579 = vadd.f32 %v4418, %v4578
          %v4580 = vpop.f32.mrb[0].mxu0
          %v4581 = vpop.f32.mrb[0].mxu0
          %v4582 = vadd.f32 %v4421, %v4581
          %v4583 = vpop.f32.mrb[0].mxu0
          %4584 = vmatprep.mubr.bf16.mxu0 0
          %4585 = vmatmul.mubr.bf16.gmra.mrb[0].mxu0 %v4104
          %v4586 = vpop.f32.mrb[0].mxu0
          %v4587 = vadd.f32 %v4426, %v4586
          %v4588 = vpop.f32.mrb[0].mxu0
          %v4589 = vpop.f32.mrb[0].mxu0
          %v4590 = vadd.f32 %v4429, %v4589
          %v4591 = vpop.f32.mrb[0].mxu0
          %4592 = vmatprep.mubr.bf16.mxu0 0
          %4593 = vmatmul.mubr.bf16.gmra.mrb[0].mxu0 %v4107
          %v4594 = vpop.f32.mrb[0].mxu0
          %v4595 = vadd.f32 %v4434, %v4594
          %v4596 = vpop.f32.mrb[0].mxu0
          %v4597 = vpop.f32.mrb[0].mxu0
          %v4598 = vadd.f32 %v4437, %v4597
          %v4599 = vpop.f32.mrb[0].mxu0
          %4600 = vmatprep.mubr.bf16.mxu0 0
          %4601 = vmatmul.mubr.bf16.gmra.mrb[0].mxu0 %v4110
          %v4602 = vpop.f32.mrb[0].mxu0
          %v4603 = vadd.f32 %v4442, %v4602
          %v4604 = vpop.f32.mrb[0].mxu0
          %v4605 = vpop.f32.mrb[0].mxu0
          %v4606 = vadd.f32 %v4445, %v4605
          %v4607 = vpop.f32.mrb[0].mxu0
          %4608 = vmatprep.mubr.bf16.mxu0 0
          %4609 = vmatmul.mubr.bf16.gmra.mrb[0].mxu0 %v4113
          %v4610 = vpop.f32.mrb[0].mxu0
          %v4611 = vadd.f32 %v4450, %v4610
          %v4612 = vpop.f32.mrb[0].mxu0
          %v4613 = vpop.f32.mrb[0].mxu0
          %v4614 = vadd.f32 %v4453, %v4613
          %v4615 = vpop.f32.mrb[0].mxu0
          %4616 = vmatprep.mubr.bf16.mxu0 0
          %4617 = vmatmul.mubr.bf16.gmra.mrb[0].mxu0 %v4116
          %v4618 = vpop.f32.mrb[0].mxu0
          %v4619 = vadd.f32 %v4458, %v4618
          %v4620 = vpop.f32.mrb[0].mxu0
          %v4621 = vpop.f32.mrb[0].mxu0
          %v4622 = vadd.f32 %v4461, %v4621
          %v4623 = vpop.f32.mrb[0].mxu0
          %4624 = vmatprep.mubr.bf16.mxu0 0
          %4625 = vmatmul.mubr.bf16.gmra.mrb[0].mxu0 %v4119
          %v4626 = vpop.f32.mrb[0].mxu0
          %v4627 = vadd.f32 %v4466, %v4626
          %v4628 = vpop.f32.mrb[0].mxu0
          %v4629 = vpop.f32.mrb[0].mxu0
          %v4630 = vadd.f32 %v4469, %v4629
          %v4631 = vpop.f32.mrb[0].mxu0
          %4632 = vmatprep.mubr.bf16.mxu0 0
          %4633 = vmatmul.mubr.bf16.gmra.mrb[0].mxu0 %v4122
          %v4634 = vpop.f32.mrb[0].mxu0
          %v4635 = vadd.f32 %v4474, %v4634
          %v4636 = vpop.f32.mrb[0].mxu0
          %v4637 = vpop.f32.mrb[0].mxu0
          %v4638 = vadd.f32 %v4477, %v4637
          %v4639 = vpop.f32.mrb[0].mxu0
          %4640 = vdwg.mxu0
          %v4641 = vadd.f32 %v3949, %v4515
          %v4642 = vadd.f32 %v3952, %v4518
          %v4643 = vadd.f32 %v3957, %v4523
          %v4644 = vadd.f32 %v3960, %v4526
          %v4645 = vadd.f32 %v3965, %v4531
          %v4646 = vadd.f32 %v3968, %v4534
          %v4647 = vadd.f32 %v3973, %v4539
          %v4648 = vadd.f32 %v3976, %v4542
          %v4649 = vadd.f32 %v3981, %v4547
          %v4650 = vadd.f32 %v3984, %v4550
          %v4651 = vadd.f32 %v3989, %v4555
          %v4652 = vadd.f32 %v3992, %v4558
          %v4653 = vadd.f32 %v3997, %v4563
          %v4654 = vadd.f32 %v4000, %v4566
          %v4655 = vadd.f32 %v4005, %v4571
          %v4656 = vadd.f32 %v4008, %v4574
          %v4657 = vadd.f32 %v4013, %v4579
          %v4658 = vadd.f32 %v4016, %v4582
          %v4659 = vadd.f32 %v4021, %v4587
          %v4660 = vadd.f32 %v4024, %v4590
          %v4661 = vadd.f32 %v4029, %v4595
          %v4662 = vadd.f32 %v4032, %v4598
          %v4663 = vadd.f32 %v4037, %v4603
          %v4664 = vadd.f32 %v4040, %v4606
          %v4665 = vadd.f32 %v4045, %v4611
          %v4666 = vadd.f32 %v4048, %v4614
          %v4667 = vadd.f32 %v4053, %v4619
          %v4668 = vadd.f32 %v4056, %v4622
          %v4669 = vadd.f32 %v4061, %v4627
          %v4670 = vadd.f32 %v4064, %v4630
          %v4671 = vadd.f32 %v4069, %v4635
          %v4672 = vadd.f32 %v4072, %v4638
          %s4673 = scalar_lea.vmem %s8, %s1972
          %v4674 = vld [vmem:[%s4673] sm:$0x1]
          %v4676 = vlaneseq
          %v4677 = vshrl.u32 %v4676, 7
          %v4678 = vsub.s32 0, %v4677
          %v4679 = vrot.slane %v4674, %v4678
          %v4681 = vmul.f32 %v4641, %v4679
          %v4682 = vmul.f32 %v4642, %v4679
          %v4683 = vmul.f32 %v4643, %v4679
          %v4684 = vmul.f32 %v4644, %v4679
          %v4685 = vmul.f32 %v4645, %v4679
          %v4686 = vmul.f32 %v4646, %v4679
          %v4687 = vmul.f32 %v4647, %v4679
          %v4688 = vmul.f32 %v4648, %v4679
          %v4689 = vmul.f32 %v4649, %v4679
          %v4690 = vmul.f32 %v4650, %v4679
          %v4691 = vmul.f32 %v4651, %v4679
          %v4692 = vmul.f32 %v4652, %v4679
          %v4693 = vmul.f32 %v4653, %v4679
          %v4694 = vmul.f32 %v4654, %v4679
          %v4695 = vmul.f32 %v4655, %v4679
          %v4696 = vmul.f32 %v4656, %v4679
          %v4697 = vmul.f32 %v4657, %v4679
          %v4698 = vmul.f32 %v4658, %v4679
          %v4699 = vmul.f32 %v4659, %v4679
          %v4700 = vmul.f32 %v4660, %v4679
          %v4701 = vmul.f32 %v4661, %v4679
          %v4702 = vmul.f32 %v4662, %v4679
          %v4703 = vmul.f32 %v4663, %v4679
          %v4704 = vmul.f32 %v4664, %v4679
          %v4705 = vmul.f32 %v4665, %v4679
          %v4706 = vmul.f32 %v4666, %v4679
          %v4707 = vmul.f32 %v4667, %v4679
          %v4708 = vmul.f32 %v4668, %v4679
          %v4709 = vmul.f32 %v4669, %v4679
          %v4710 = vmul.f32 %v4670, %v4679
          %v4711 = vmul.f32 %v4671, %v4679
          %v4712 = vmul.f32 %v4672, %v4679
          %s4713 = scalar_lea.vmem %s9, %s1972
          %v4714 = vld [vmem:[%s4713] sm:$0x1]
          %v4716 = vlaneseq
          %v4717 = vshrl.u32 %v4716, 7
          %v4718 = vsub.s32 0, %v4717
          %v4719 = vrot.slane %v4714, %v4718
          %v4721 = vadd.f32 %v4681, %v4719
          %v4722 = vadd.f32 %v4682, %v4719
          %v4723 = vadd.f32 %v4683, %v4719
          %v4724 = vadd.f32 %v4684, %v4719
          %v4725 = vadd.f32 %v4685, %v4719
          %v4726 = vadd.f32 %v4686, %v4719
          %v4727 = vadd.f32 %v4687, %v4719
          %v4728 = vadd.f32 %v4688, %v4719
          %v4729 = vadd.f32 %v4689, %v4719
          %v4730 = vadd.f32 %v4690, %v4719
          %v4731 = vadd.f32 %v4691, %v4719
          %v4732 = vadd.f32 %v4692, %v4719
          %v4733 = vadd.f32 %v4693, %v4719
          %v4734 = vadd.f32 %v4694, %v4719
          %v4735 = vadd.f32 %v4695, %v4719
          %v4736 = vadd.f32 %v4696, %v4719
          %v4737 = vadd.f32 %v4697, %v4719
          %v4738 = vadd.f32 %v4698, %v4719
          %v4739 = vadd.f32 %v4699, %v4719
          %v4740 = vadd.f32 %v4700, %v4719
          %v4741 = vadd.f32 %v4701, %v4719
          %v4742 = vadd.f32 %v4702, %v4719
          %v4743 = vadd.f32 %v4703, %v4719
          %v4744 = vadd.f32 %v4704, %v4719
          %v4745 = vadd.f32 %v4705, %v4719
          %v4746 = vadd.f32 %v4706, %v4719
          %v4747 = vadd.f32 %v4707, %v4719
          %v4748 = vadd.f32 %v4708, %v4719
          %v4749 = vadd.f32 %v4709, %v4719
          %v4750 = vadd.f32 %v4710, %v4719
          %v4751 = vadd.f32 %v4711, %v4719
          %v4752 = vadd.f32 %v4712, %v4719
          %v4753 = vsub.f32 0.0, %v4721
          %v4754 = vsub.f32 0.0, %v4722
          %v4755 = vsub.f32 0.0, %v4723
          %v4756 = vsub.f32 0.0, %v4724
          %v4757 = vsub.f32 0.0, %v4725
          %v4758 = vsub.f32 0.0, %v4726
          %v4759 = vsub.f32 0.0, %v4727
          %v4760 = vsub.f32 0.0, %v4728
          %v4761 = vsub.f32 0.0, %v4729
          %v4762 = vsub.f32 0.0, %v4730
          %v4763 = vsub.f32 0.0, %v4731
          %v4764 = vsub.f32 0.0, %v4732
          %v4765 = vsub.f32 0.0, %v4733
          %v4766 = vsub.f32 0.0, %v4734
          %v4767 = vsub.f32 0.0, %v4735
          %v4768 = vsub.f32 0.0, %v4736
          %v4769 = vsub.f32 0.0, %v4737
          %v4770 = vsub.f32 0.0, %v4738
          %v4771 = vsub.f32 0.0, %v4739
          %v4772 = vsub.f32 0.0, %v4740
          %v4773 = vsub.f32 0.0, %v4741
          %v4774 = vsub.f32 0.0, %v4742
          %v4775 = vsub.f32 0.0, %v4743
          %v4776 = vsub.f32 0.0, %v4744
          %v4777 = vsub.f32 0.0, %v4745
          %v4778 = vsub.f32 0.0, %v4746
          %v4779 = vsub.f32 0.0, %v4747
          %v4780 = vsub.f32 0.0, %v4748
          %v4781 = vsub.f32 0.0, %v4749
          %v4782 = vsub.f32 0.0, %v4750
          %v4783 = vsub.f32 0.0, %v4751
          %v4784 = vsub.f32 0.0, %v4752
          %v4785 = vmul.f32 %v4753, 1.442695
          %v4786 = vpow.pop %v4785
          %v4787 = vmul.f32 %v4754, 1.442695
          %v4788 = vpow.pop %v4787
          %v4789 = vmul.f32 %v4755, 1.442695
          %v4790 = vpow.pop %v4789
          %v4791 = vmul.f32 %v4756, 1.442695
          %v4792 = vpow.pop %v4791
          %v4793 = vmul.f32 %v4757, 1.442695
          %v4794 = vpow.pop %v4793
          %v4795 = vmul.f32 %v4758, 1.442695
          %v4796 = vpow.pop %v4795
          %v4797 = vmul.f32 %v4759, 1.442695
          %v4798 = vpow.pop %v4797
          %v4799 = vmul.f32 %v4760, 1.442695
          %v4800 = vpow.pop %v4799
          %v4801 = vmul.f32 %v4761, 1.442695
          %v4802 = vpow.pop %v4801
          %v4803 = vmul.f32 %v4762, 1.442695
          %v4804 = vpow.pop %v4803
          %v4805 = vmul.f32 %v4763, 1.442695
          %v4806 = vpow.pop %v4805
          %v4807 = vmul.f32 %v4764, 1.442695
          %v4808 = vpow.pop %v4807
          %v4809 = vmul.f32 %v4765, 1.442695
          %v4810 = vpow.pop %v4809
          %v4811 = vmul.f32 %v4766, 1.442695
          %v4812 = vpow.pop %v4811
          %v4813 = vmul.f32 %v4767, 1.442695
          %v4814 = vpow.pop %v4813
          %v4815 = vmul.f32 %v4768, 1.442695
          %v4816 = vpow.pop %v4815
          %v4817 = vmul.f32 %v4769, 1.442695
          %v4818 = vpow.pop %v4817
          %v4819 = vmul.f32 %v4770, 1.442695
          %v4820 = vpow.pop %v4819
          %v4821 = vmul.f32 %v4771, 1.442695
          %v4822 = vpow.pop %v4821
          %v4823 = vmul.f32 %v4772, 1.442695
          %v4824 = vpow.pop %v4823
          %v4825 = vmul.f32 %v4773, 1.442695
          %v4826 = vpow.pop %v4825
          %v4827 = vmul.f32 %v4774, 1.442695
          %v4828 = vpow.pop %v4827
          %v4829 = vmul.f32 %v4775, 1.442695
          %v4830 = vpow.pop %v4829
          %v4831 = vmul.f32 %v4776, 1.442695
          %v4832 = vpow.pop %v4831
          %v4833 = vmul.f32 %v4777, 1.442695
          %v4834 = vpow.pop %v4833
          %v4835 = vmul.f32 %v4778, 1.442695
          %v4836 = vpow.pop %v4835
          %v4837 = vmul.f32 %v4779, 1.442695
          %v4838 = vpow.pop %v4837
          %v4839 = vmul.f32 %v4780, 1.442695
          %v4840 = vpow.pop %v4839
          %v4841 = vmul.f32 %v4781, 1.442695
          %v4842 = vpow.pop %v4841
          %v4843 = vmul.f32 %v4782, 1.442695
          %v4844 = vpow.pop %v4843
          %v4845 = vmul.f32 %v4783, 1.442695
          %v4846 = vpow.pop %v4845
          %v4847 = vmul.f32 %v4784, 1.442695
          %v4848 = vpow.pop %v4847
          %v4849 = vadd.f32 %v4786, 1.0
          %v4850 = vadd.f32 %v4788, 1.0
          %v4851 = vadd.f32 %v4790, 1.0
          %v4852 = vadd.f32 %v4792, 1.0
          %v4853 = vadd.f32 %v4794, 1.0
          %v4854 = vadd.f32 %v4796, 1.0
          %v4855 = vadd.f32 %v4798, 1.0
          %v4856 = vadd.f32 %v4800, 1.0
          %v4857 = vadd.f32 %v4802, 1.0
          %v4858 = vadd.f32 %v4804, 1.0
          %v4859 = vadd.f32 %v4806, 1.0
          %v4860 = vadd.f32 %v4808, 1.0
          %v4861 = vadd.f32 %v4810, 1.0
          %v4862 = vadd.f32 %v4812, 1.0
          %v4863 = vadd.f32 %v4814, 1.0
          %v4864 = vadd.f32 %v4816, 1.0
          %v4865 = vadd.f32 %v4818, 1.0
          %v4866 = vadd.f32 %v4820, 1.0
          %v4867 = vadd.f32 %v4822, 1.0
          %v4868 = vadd.f32 %v4824, 1.0
          %v4869 = vadd.f32 %v4826, 1.0
          %v4870 = vadd.f32 %v4828, 1.0
          %v4871 = vadd.f32 %v4830, 1.0
          %v4872 = vadd.f32 %v4832, 1.0
          %v4873 = vadd.f32 %v4834, 1.0
          %v4874 = vadd.f32 %v4836, 1.0
          %v4875 = vadd.f32 %v4838, 1.0
          %v4876 = vadd.f32 %v4840, 1.0
          %v4877 = vadd.f32 %v4842, 1.0
          %v4878 = vadd.f32 %v4844, 1.0
          %v4879 = vadd.f32 %v4846, 1.0
          %v4880 = vadd.f32 %v4848, 1.0
          %v4881 = vrcp.pop %v4849
          %v4882 = vrcp.pop %v4850
          %v4883 = vrcp.pop %v4851
          %v4884 = vrcp.pop %v4852
          %v4885 = vrcp.pop %v4853
          %v4886 = vrcp.pop %v4854
          %v4887 = vrcp.pop %v4855
          %v4888 = vrcp.pop %v4856
          %v4889 = vrcp.pop %v4857
          %v4890 = vrcp.pop %v4858
          %v4891 = vrcp.pop %v4859
          %v4892 = vrcp.pop %v4860
          %v4893 = vrcp.pop %v4861
          %v4894 = vrcp.pop %v4862
          %v4895 = vrcp.pop %v4863
          %v4896 = vrcp.pop %v4864
          %v4897 = vrcp.pop %v4865
          %v4898 = vrcp.pop %v4866
          %v4899 = vrcp.pop %v4867
          %v4900 = vrcp.pop %v4868
          %v4901 = vrcp.pop %v4869
          %v4902 = vrcp.pop %v4870
          %v4903 = vrcp.pop %v4871
          %v4904 = vrcp.pop %v4872
          %v4905 = vrcp.pop %v4873
          %v4906 = vrcp.pop %v4874
          %v4907 = vrcp.pop %v4875
          %v4908 = vrcp.pop %v4876
          %v4909 = vrcp.pop %v4877
          %v4910 = vrcp.pop %v4878
          %v4911 = vrcp.pop %v4879
          %v4912 = vrcp.pop %v4880
          %v4913 = vmul.f32 %v4721, %v4881
          %v4914 = vmul.f32 %v4722, %v4882
          %v4915 = vmul.f32 %v4723, %v4883
          %v4916 = vmul.f32 %v4724, %v4884
          %v4917 = vmul.f32 %v4725, %v4885
          %v4918 = vmul.f32 %v4726, %v4886
          %v4919 = vmul.f32 %v4727, %v4887
          %v4920 = vmul.f32 %v4728, %v4888
          %v4921 = vmul.f32 %v4729, %v4889
          %v4922 = vmul.f32 %v4730, %v4890
          %v4923 = vmul.f32 %v4731, %v4891
          %v4924 = vmul.f32 %v4732, %v4892
          %v4925 = vmul.f32 %v4733, %v4893
          %v4926 = vmul.f32 %v4734, %v4894
          %v4927 = vmul.f32 %v4735, %v4895
          %v4928 = vmul.f32 %v4736, %v4896
          %v4929 = vmul.f32 %v4737, %v4897
          %v4930 = vmul.f32 %v4738, %v4898
          %v4931 = vmul.f32 %v4739, %v4899
          %v4932 = vmul.f32 %v4740, %v4900
          %v4933 = vmul.f32 %v4741, %v4901
          %v4934 = vmul.f32 %v4742, %v4902
          %v4935 = vmul.f32 %v4743, %v4903
          %v4936 = vmul.f32 %v4744, %v4904
          %v4937 = vmul.f32 %v4745, %v4905
          %v4938 = vmul.f32 %v4746, %v4906
          %v4939 = vmul.f32 %v4747, %v4907
          %v4940 = vmul.f32 %v4748, %v4908
          %v4941 = vmul.f32 %v4749, %v4909
          %v4942 = vmul.f32 %v4750, %v4910
          %v4943 = vmul.f32 %v4751, %v4911
          %v4944 = vmul.f32 %v4752, %v4912
          %v4945 = vadd.f32 %v4913, %v1977
          %v4946 = vadd.f32 %v4914, %v1978
          %v4947 = vadd.f32 %v4915, %v1979
          %v4948 = vadd.f32 %v4916, %v1980
          %v4949 = vadd.f32 %v4917, %v1981
          %v4950 = vadd.f32 %v4918, %v1982
          %v4951 = vadd.f32 %v4919, %v1983
          %v4952 = vadd.f32 %v4920, %v1984
          %v4953 = vadd.f32 %v4921, %v1985
          %v4954 = vadd.f32 %v4922, %v1986
          %v4955 = vadd.f32 %v4923, %v1987
          %v4956 = vadd.f32 %v4924, %v1988
          %v4957 = vadd.f32 %v4925, %v1989
          %v4958 = vadd.f32 %v4926, %v1990
          %v4959 = vadd.f32 %v4927, %v1991
          %v4960 = vadd.f32 %v4928, %v1992
          %v4961 = vadd.f32 %v4929, %v1993
          %v4962 = vadd.f32 %v4930, %v1994
          %v4963 = vadd.f32 %v4931, %v1995
          %v4964 = vadd.f32 %v4932, %v1996
          %v4965 = vadd.f32 %v4933, %v1997
          %v4966 = vadd.f32 %v4934, %v1998
          %v4967 = vadd.f32 %v4935, %v1999
          %v4968 = vadd.f32 %v4936, %v2000
          %v4969 = vadd.f32 %v4937, %v2001
          %v4970 = vadd.f32 %v4938, %v2002
          %v4971 = vadd.f32 %v4939, %v2003
          %v4972 = vadd.f32 %v4940, %v2004
          %v4973 = vadd.f32 %v4941, %v2005
          %v4974 = vadd.f32 %v4942, %v2006
          %v4975 = vadd.f32 %v4943, %v2007
          %v4976 = vadd.f32 %v4944, %v2008
        $region129: #{tpu_custom_call.1} parent=95 // loop_footer
          %s1976 = sadd.s32 1, %s1972
        $region130: #{tpu_custom_call.1} parent=95 // loop_footer_branch
          %1971 = sbr.rel target = $region126
        $region131: #{tpu_custom_call.1} parent=95 // loop_exit
          _
        %v4977 = vld [vmem:[#allocation11] sm:$0xf]
        %v4978 = vld [vmem:[#allocation11 + $0x4] sm:$0xf]
        %v4979 = vld [vmem:[#allocation11 + $0x8] sm:$0xf]
        %v4980 = vld [vmem:[#allocation11 + $0xc] sm:$0xf]
        %v4981 = vld [vmem:[#allocation11 + $0x10] sm:$0xf]
        %v4982 = vld [vmem:[#allocation11 + $0x14] sm:$0xf]
        %v4983 = vld [vmem:[#allocation11 + $0x18] sm:$0xf]
        %v4984 = vld [vmem:[#allocation11 + $0x1c] sm:$0xf]
        %v4985 = vld [vmem:[#allocation11 + $0x20] sm:$0xf]
        %v4986 = vld [vmem:[#allocation11 + $0x24] sm:$0xf]
        %v4987 = vld [vmem:[#allocation11 + $0x28] sm:$0xf]
        %v4988 = vld [vmem:[#allocation11 + $0x2c] sm:$0xf]
        %v4989 = vld [vmem:[#allocation11 + $0x30] sm:$0xf]
        %v4990 = vld [vmem:[#allocation11 + $0x34] sm:$0xf]
        %v4991 = vld [vmem:[#allocation11 + $0x38] sm:$0xf]
        %v4992 = vld [vmem:[#allocation11 + $0x3c] sm:$0xf]
        %v4993 = vpack.c.bf16 %v1978, %v1977
        %v4994 = vpack.c.bf16 %v1980, %v1979
        %v4995 = vpack.c.bf16 %v1982, %v1981
        %v4996 = vpack.c.bf16 %v1984, %v1983
        %v4997 = vpack.c.bf16 %v1986, %v1985
        %v4998 = vpack.c.bf16 %v1988, %v1987
        %v4999 = vpack.c.bf16 %v1990, %v1989
        %v5000 = vpack.c.bf16 %v1992, %v1991
        %v5001 = vpack.c.bf16 %v1994, %v1993
        %v5002 = vpack.c.bf16 %v1996, %v1995
        %v5003 = vpack.c.bf16 %v1998, %v1997
        %v5004 = vpack.c.bf16 %v2000, %v1999
        %v5005 = vpack.c.bf16 %v2002, %v2001
        %v5006 = vpack.c.bf16 %v2004, %v2003
        %v5007 = vpack.c.bf16 %v2006, %v2005
        %v5008 = vpack.c.bf16 %v2008, %v2007
        %v5025 = vunpack.c.l.b16 %v4977
        %v5026 = vunpack.c.l.b16 %v4978
        %v5027 = vunpack.c.l.b16 %v4979
        %v5028 = vunpack.c.l.b16 %v4980
        %v5029 = vunpack.c.l.b16 %v4981
        %v5030 = vunpack.c.l.b16 %v4982
        %v5031 = vunpack.c.l.b16 %v4983
        %v5032 = vunpack.c.l.b16 %v4984
        %v5033 = vunpack.c.l.b16 %v4985
        %v5034 = vunpack.c.l.b16 %v4986
        %v5035 = vunpack.c.l.b16 %v4987
        %v5036 = vunpack.c.l.b16 %v4988
        %v5037 = vunpack.c.l.b16 %v4989
        %v5038 = vunpack.c.l.b16 %v4990
        %v5039 = vunpack.c.l.b16 %v4991
        %v5040 = vunpack.c.l.b16 %v4992
        %v5041 = vpack.c.b16 %v5026, %v5025
        %v5042 = vpack.c.b16 %v5028, %v5027
        %v5043 = vpack.c.b16 %v5030, %v5029
        %v5044 = vpack.c.b16 %v5032, %v5031
        %v5045 = vpack.c.b16 %v5034, %v5033
        %v5046 = vpack.c.b16 %v5036, %v5035
        %v5047 = vpack.c.b16 %v5038, %v5037
        %v5048 = vpack.c.b16 %v5040, %v5039
        %5057 = vmatprep.subr.bf16.mxu0 0
        %5058 = vmatpush1.bf16.msra.mxu0 %v5041
        %5059 = vmatprep.subr.bf16.mxu0 0
        %5060 = vmatpush1.bf16.msra.mxu0 %v5042
        %5061 = vmatprep.subr.bf16.mxu0 0
        %5062 = vmatpush1.bf16.msra.mxu0 %v5043
        %5063 = vmatprep.subr.bf16.mxu0 0
        %5064 = vmatpush1.bf16.msra.mxu0 %v5044
        %5065 = vmatprep.subr.bf16.mxu0 0
        %5066 = vmatpush1.bf16.msra.mxu0 %v5045
        %5067 = vmatprep.subr.bf16.mxu0 0
        %5068 = vmatpush1.bf16.msra.mxu0 %v5046
        %5069 = vmatprep.subr.bf16.mxu0 0
        %5070 = vmatpush1.bf16.msra.mxu0 %v5047
        %5071 = vmatprep.subr.bf16.mxu0 0
        %5072 = vmatpush1.bf16.msra.mxu0 %v5048
        %5073 = vmatprep.subr.bf16.mxu0 0
        %5074 = vmatpush1.bf16.msra.mxu0 0
        %5075 = vmatprep.subr.bf16.mxu0 0
        %5076 = vmatpush1.bf16.msra.mxu0 0
        %5077 = vmatprep.subr.bf16.mxu0 0
        %5078 = vmatpush1.bf16.msra.mxu0 0
        %5079 = vmatprep.subr.bf16.mxu0 0
        %5080 = vmatpush1.bf16.msra.mxu0 0
        %5081 = vmatprep.subr.bf16.mxu0 0
        %5082 = vmatpush1.bf16.msra.mxu0 0
        %5083 = vmatprep.subr.bf16.mxu0 0
        %5084 = vmatpush1.bf16.msra.mxu0 0
        %5085 = vmatprep.subr.bf16.mxu0 0
        %5086 = vmatpush1.bf16.msra.mxu0 0
        %5087 = vmatprep.subr.bf16.mxu0 0
        %5088 = vmatpush1.bf16.msra.mxu0 0
        %5089 = vmatprep.mubr.bf16.mxu0 0
        %5090 = vmatmul.mubr.bf16.gmra.mrb[0].mxu0 %v4993
        %v5091 = vpop.f32.mrb[0].mxu0
        %v5092 = vadd.f32 0.0, %v5091
        %v5093 = vpop.f32.mrb[0].mxu0
        %v5094 = vpop.f32.mrb[0].mxu0
        %v5095 = vadd.f32 0.0, %v5094
        %v5096 = vpop.f32.mrb[0].mxu0
        %5097 = vmatprep.mubr.bf16.mxu0 0
        %5098 = vmatmul.mubr.bf16.gmra.mrb[0].mxu0 %v4994
        %v5099 = vpop.f32.mrb[0].mxu0
        %v5100 = vadd.f32 0.0, %v5099
        %v5101 = vpop.f32.mrb[0].mxu0
        %v5102 = vpop.f32.mrb[0].mxu0
        %v5103 = vadd.f32 0.0, %v5102
        %v5104 = vpop.f32.mrb[0].mxu0
        %5105 = vmatprep.mubr.bf16.mxu0 0
        %5106 = vmatmul.mubr.bf16.gmra.mrb[0].mxu0 %v4995
        %v5107 = vpop.f32.mrb[0].mxu0
        %v5108 = vadd.f32 0.0, %v5107
        %v5109 = vpop.f32.mrb[0].mxu0
        %v5110 = vpop.f32.mrb[0].mxu0
        %v5111 = vadd.f32 0.0, %v5110
        %v5112 = vpop.f32.mrb[0].mxu0
        %5113 = vmatprep.mubr.bf16.mxu0 0
        %5114 = vmatmul.mubr.bf16.gmra.mrb[0].mxu0 %v4996
        %v5115 = vpop.f32.mrb[0].mxu0
        %v5116 = vadd.f32 0.0, %v5115
        %v5117 = vpop.f32.mrb[0].mxu0
        %v5118 = vpop.f32.mrb[0].mxu0
        %v5119 = vadd.f32 0.0, %v5118
        %v5120 = vpop.f32.mrb[0].mxu0
        %5121 = vmatprep.mubr.bf16.mxu0 0
        %5122 = vmatmul.mubr.bf16.gmra.mrb[0].mxu0 %v4997
        %v5123 = vpop.f32.mrb[0].mxu0
        %v5124 = vadd.f32 0.0, %v5123
        %v5125 = vpop.f32.mrb[0].mxu0
        %v5126 = vpop.f32.mrb[0].mxu0
        %v5127 = vadd.f32 0.0, %v5126
        %v5128 = vpop.f32.mrb[0].mxu0
        %5129 = vmatprep.mubr.bf16.mxu0 0
        %5130 = vmatmul.mubr.bf16.gmra.mrb[0].mxu0 %v4998
        %v5131 = vpop.f32.mrb[0].mxu0
        %v5132 = vadd.f32 0.0, %v5131
        %v5133 = vpop.f32.mrb[0].mxu0
        %v5134 = vpop.f32.mrb[0].mxu0
        %v5135 = vadd.f32 0.0, %v5134
        %v5136 = vpop.f32.mrb[0].mxu0
        %5137 = vmatprep.mubr.bf16.mxu0 0
        %5138 = vmatmul.mubr.bf16.gmra.mrb[0].mxu0 %v4999
        %v5139 = vpop.f32.mrb[0].mxu0
        %v5140 = vadd.f32 0.0, %v5139
        %v5141 = vpop.f32.mrb[0].mxu0
        %v5142 = vpop.f32.mrb[0].mxu0
        %v5143 = vadd.f32 0.0, %v5142
        %v5144 = vpop.f32.mrb[0].mxu0
        %5145 = vmatprep.mubr.bf16.mxu0 0
        %5146 = vmatmul.mubr.bf16.gmra.mrb[0].mxu0 %v5000
        %v5147 = vpop.f32.mrb[0].mxu0
        %v5148 = vadd.f32 0.0, %v5147
        %v5149 = vpop.f32.mrb[0].mxu0
        %v5150 = vpop.f32.mrb[0].mxu0
        %v5151 = vadd.f32 0.0, %v5150
        %v5152 = vpop.f32.mrb[0].mxu0
        %5153 = vmatprep.mubr.bf16.mxu0 0
        %5154 = vmatmul.mubr.bf16.gmra.mrb[0].mxu0 %v5001
        %v5155 = vpop.f32.mrb[0].mxu0
        %v5156 = vadd.f32 0.0, %v5155
        %v5157 = vpop.f32.mrb[0].mxu0
        %v5158 = vpop.f32.mrb[0].mxu0
        %v5159 = vadd.f32 0.0, %v5158
        %v5160 = vpop.f32.mrb[0].mxu0
        %5161 = vmatprep.mubr.bf16.mxu0 0
        %5162 = vmatmul.mubr.bf16.gmra.mrb[0].mxu0 %v5002
        %v5163 = vpop.f32.mrb[0].mxu0
        %v5164 = vadd.f32 0.0, %v5163
        %v5165 = vpop.f32.mrb[0].mxu0
        %v5166 = vpop.f32.mrb[0].mxu0
        %v5167 = vadd.f32 0.0, %v5166
        %v5168 = vpop.f32.mrb[0].mxu0
        %5169 = vmatprep.mubr.bf16.mxu0 0
        %5170 = vmatmul.mubr.bf16.gmra.mrb[0].mxu0 %v5003
        %v5171 = vpop.f32.mrb[0].mxu0
        %v5172 = vadd.f32 0.0, %v5171
        %v5173 = vpop.f32.mrb[0].mxu0
        %v5174 = vpop.f32.mrb[0].mxu0
        %v5175 = vadd.f32 0.0, %v5174
        %v5176 = vpop.f32.mrb[0].mxu0
        %5177 = vmatprep.mubr.bf16.mxu0 0
        %5178 = vmatmul.mubr.bf16.gmra.mrb[0].mxu0 %v5004
        %v5179 = vpop.f32.mrb[0].mxu0
        %v5180 = vadd.f32 0.0, %v5179
        %v5181 = vpop.f32.mrb[0].mxu0
        %v5182 = vpop.f32.mrb[0].mxu0
        %v5183 = vadd.f32 0.0, %v5182
        %v5184 = vpop.f32.mrb[0].mxu0
        %5185 = vmatprep.mubr.bf16.mxu0 0
        %5186 = vmatmul.mubr.bf16.gmra.mrb[0].mxu0 %v5005
        %v5187 = vpop.f32.mrb[0].mxu0
        %v5188 = vadd.f32 0.0, %v5187
        %v5189 = vpop.f32.mrb[0].mxu0
        %v5190 = vpop.f32.mrb[0].mxu0
        %v5191 = vadd.f32 0.0, %v5190
        %v5192 = vpop.f32.mrb[0].mxu0
        %5193 = vmatprep.mubr.bf16.mxu0 0
        %5194 = vmatmul.mubr.bf16.gmra.mrb[0].mxu0 %v5006
        %v5195 = vpop.f32.mrb[0].mxu0
        %v5196 = vadd.f32 0.0, %v5195
        %v5197 = vpop.f32.mrb[0].mxu0
        %v5198 = vpop.f32.mrb[0].mxu0
        %v5199 = vadd.f32 0.0, %v5198
        %v5200 = vpop.f32.mrb[0].mxu0
        %5201 = vmatprep.mubr.bf16.mxu0 0
        %5202 = vmatmul.mubr.bf16.gmra.mrb[0].mxu0 %v5007
        %v5203 = vpop.f32.mrb[0].mxu0
        %v5204 = vadd.f32 0.0, %v5203
        %v5205 = vpop.f32.mrb[0].mxu0
        %v5206 = vpop.f32.mrb[0].mxu0
        %v5207 = vadd.f32 0.0, %v5206
        %v5208 = vpop.f32.mrb[0].mxu0
        %5209 = vmatprep.mubr.bf16.mxu0 0
        %5210 = vmatmul.mubr.bf16.gmra.mrb[0].mxu0 %v5008
        %v5211 = vpop.f32.mrb[0].mxu0
        %v5212 = vadd.f32 0.0, %v5211
        %v5213 = vpop.f32.mrb[0].mxu0
        %v5214 = vpop.f32.mrb[0].mxu0
        %v5215 = vadd.f32 0.0, %v5214
        %v5216 = vpop.f32.mrb[0].mxu0
        %5217 = vdwg.mxu0
        %v5218 = vld [vmem:[%s12] sm:$0x1]
        %v5220 = vlaneseq
        %v5221 = vshrl.u32 %v5220, 7
        %v5222 = vsub.s32 0, %v5221
        %v5223 = vrot.slane %v5218, %v5222
        %v5225 = vmul.f32 %v5092, %v5223
        %v5226 = vmul.f32 %v5095, %v5223
        %v5227 = vmul.f32 %v5100, %v5223
        %v5228 = vmul.f32 %v5103, %v5223
        %v5229 = vmul.f32 %v5108, %v5223
        %v5230 = vmul.f32 %v5111, %v5223
        %v5231 = vmul.f32 %v5116, %v5223
        %v5232 = vmul.f32 %v5119, %v5223
        %v5233 = vmul.f32 %v5124, %v5223
        %v5234 = vmul.f32 %v5127, %v5223
        %v5235 = vmul.f32 %v5132, %v5223
        %v5236 = vmul.f32 %v5135, %v5223
        %v5237 = vmul.f32 %v5140, %v5223
        %v5238 = vmul.f32 %v5143, %v5223
        %v5239 = vmul.f32 %v5148, %v5223
        %v5240 = vmul.f32 %v5151, %v5223
        %v5241 = vmul.f32 %v5156, %v5223
        %v5242 = vmul.f32 %v5159, %v5223
        %v5243 = vmul.f32 %v5164, %v5223
        %v5244 = vmul.f32 %v5167, %v5223
        %v5245 = vmul.f32 %v5172, %v5223
        %v5246 = vmul.f32 %v5175, %v5223
        %v5247 = vmul.f32 %v5180, %v5223
        %v5248 = vmul.f32 %v5183, %v5223
        %v5249 = vmul.f32 %v5188, %v5223
        %v5250 = vmul.f32 %v5191, %v5223
        %v5251 = vmul.f32 %v5196, %v5223
        %v5252 = vmul.f32 %v5199, %v5223
        %v5253 = vmul.f32 %v5204, %v5223
        %v5254 = vmul.f32 %v5207, %v5223
        %v5255 = vmul.f32 %v5212, %v5223
        %v5256 = vmul.f32 %v5215, %v5223
        %v5257 = vld [vmem:[%s13] sm:$0x1]
        %v5259 = vlaneseq
        %v5260 = vshrl.u32 %v5259, 7
        %v5261 = vsub.s32 0, %v5260
        %v5262 = vrot.slane %v5257, %v5261
        %v5264 = vadd.f32 %v5225, %v5262
        %v5265 = vadd.f32 %v5226, %v5262
        %v5266 = vadd.f32 %v5227, %v5262
        %v5267 = vadd.f32 %v5228, %v5262
        %v5268 = vadd.f32 %v5229, %v5262
        %v5269 = vadd.f32 %v5230, %v5262
        %v5270 = vadd.f32 %v5231, %v5262
        %v5271 = vadd.f32 %v5232, %v5262
        %v5272 = vadd.f32 %v5233, %v5262
        %v5273 = vadd.f32 %v5234, %v5262
        %v5274 = vadd.f32 %v5235, %v5262
        %v5275 = vadd.f32 %v5236, %v5262
        %v5276 = vadd.f32 %v5237, %v5262
        %v5277 = vadd.f32 %v5238, %v5262
        %v5278 = vadd.f32 %v5239, %v5262
        %v5279 = vadd.f32 %v5240, %v5262
        %v5280 = vadd.f32 %v5241, %v5262
        %v5281 = vadd.f32 %v5242, %v5262
        %v5282 = vadd.f32 %v5243, %v5262
        %v5283 = vadd.f32 %v5244, %v5262
        %v5284 = vadd.f32 %v5245, %v5262
        %v5285 = vadd.f32 %v5246, %v5262
        %v5286 = vadd.f32 %v5247, %v5262
        %v5287 = vadd.f32 %v5248, %v5262
        %v5288 = vadd.f32 %v5249, %v5262
        %v5289 = vadd.f32 %v5250, %v5262
        %v5290 = vadd.f32 %v5251, %v5262
        %v5291 = vadd.f32 %v5252, %v5262
        %v5292 = vadd.f32 %v5253, %v5262
        %v5293 = vadd.f32 %v5254, %v5262
        %v5294 = vadd.f32 %v5255, %v5262
        %v5295 = vadd.f32 %v5256, %v5262
        %v5296 = vsub.f32 0.0, %v5264
        %v5297 = vsub.f32 0.0, %v5265
        %v5298 = vsub.f32 0.0, %v5266
        %v5299 = vsub.f32 0.0, %v5267
        %v5300 = vsub.f32 0.0, %v5268
        %v5301 = vsub.f32 0.0, %v5269
        %v5302 = vsub.f32 0.0, %v5270
        %v5303 = vsub.f32 0.0, %v5271
        %v5304 = vsub.f32 0.0, %v5272
        %v5305 = vsub.f32 0.0, %v5273
        %v5306 = vsub.f32 0.0, %v5274
        %v5307 = vsub.f32 0.0, %v5275
        %v5308 = vsub.f32 0.0, %v5276
        %v5309 = vsub.f32 0.0, %v5277
        %v5310 = vsub.f32 0.0, %v5278
        %v5311 = vsub.f32 0.0, %v5279
        %v5312 = vsub.f32 0.0, %v5280
        %v5313 = vsub.f32 0.0, %v5281
        %v5314 = vsub.f32 0.0, %v5282
        %v5315 = vsub.f32 0.0, %v5283
        %v5316 = vsub.f32 0.0, %v5284
        %v5317 = vsub.f32 0.0, %v5285
        %v5318 = vsub.f32 0.0, %v5286
        %v5319 = vsub.f32 0.0, %v5287
        %v5320 = vsub.f32 0.0, %v5288
        %v5321 = vsub.f32 0.0, %v5289
        %v5322 = vsub.f32 0.0, %v5290
        %v5323 = vsub.f32 0.0, %v5291
        %v5324 = vsub.f32 0.0, %v5292
        %v5325 = vsub.f32 0.0, %v5293
        %v5326 = vsub.f32 0.0, %v5294
        %v5327 = vsub.f32 0.0, %v5295
        %v5328 = vmul.f32 %v5296, 1.442695
        %v5329 = vpow.pop %v5328
        %v5330 = vmul.f32 %v5297, 1.442695
        %v5331 = vpow.pop %v5330
        %v5332 = vmul.f32 %v5298, 1.442695
        %v5333 = vpow.pop %v5332
        %v5334 = vmul.f32 %v5299, 1.442695
        %v5335 = vpow.pop %v5334
        %v5336 = vmul.f32 %v5300, 1.442695
        %v5337 = vpow.pop %v5336
        %v5338 = vmul.f32 %v5301, 1.442695
        %v5339 = vpow.pop %v5338
        %v5340 = vmul.f32 %v5302, 1.442695
        %v5341 = vpow.pop %v5340
        %v5342 = vmul.f32 %v5303, 1.442695
        %v5343 = vpow.pop %v5342
        %v5344 = vmul.f32 %v5304, 1.442695
        %v5345 = vpow.pop %v5344
        %v5346 = vmul.f32 %v5305, 1.442695
        %v5347 = vpow.pop %v5346
        %v5348 = vmul.f32 %v5306, 1.442695
        %v5349 = vpow.pop %v5348
        %v5350 = vmul.f32 %v5307, 1.442695
        %v5351 = vpow.pop %v5350
        %v5352 = vmul.f32 %v5308, 1.442695
        %v5353 = vpow.pop %v5352
        %v5354 = vmul.f32 %v5309, 1.442695
        %v5355 = vpow.pop %v5354
        %v5356 = vmul.f32 %v5310, 1.442695
        %v5357 = vpow.pop %v5356
        %v5358 = vmul.f32 %v5311, 1.442695
        %v5359 = vpow.pop %v5358
        %v5360 = vmul.f32 %v5312, 1.442695
        %v5361 = vpow.pop %v5360
        %v5362 = vmul.f32 %v5313, 1.442695
        %v5363 = vpow.pop %v5362
        %v5364 = vmul.f32 %v5314, 1.442695
        %v5365 = vpow.pop %v5364
        %v5366 = vmul.f32 %v5315, 1.442695
        %v5367 = vpow.pop %v5366
        %v5368 = vmul.f32 %v5316, 1.442695
        %v5369 = vpow.pop %v5368
        %v5370 = vmul.f32 %v5317, 1.442695
        %v5371 = vpow.pop %v5370
        %v5372 = vmul.f32 %v5318, 1.442695
        %v5373 = vpow.pop %v5372
        %v5374 = vmul.f32 %v5319, 1.442695
        %v5375 = vpow.pop %v5374
        %v5376 = vmul.f32 %v5320, 1.442695
        %v5377 = vpow.pop %v5376
        %v5378 = vmul.f32 %v5321, 1.442695
        %v5379 = vpow.pop %v5378
        %v5380 = vmul.f32 %v5322, 1.442695
        %v5381 = vpow.pop %v5380
        %v5382 = vmul.f32 %v5323, 1.442695
        %v5383 = vpow.pop %v5382
        %v5384 = vmul.f32 %v5324, 1.442695
        %v5385 = vpow.pop %v5384
        %v5386 = vmul.f32 %v5325, 1.442695
        %v5387 = vpow.pop %v5386
        %v5388 = vmul.f32 %v5326, 1.442695
        %v5389 = vpow.pop %v5388
        %v5390 = vmul.f32 %v5327, 1.442695
        %v5391 = vpow.pop %v5390
        %v5392 = vadd.f32 %v5329, 1.0
        %v5393 = vadd.f32 %v5331, 1.0
        %v5394 = vadd.f32 %v5333, 1.0
        %v5395 = vadd.f32 %v5335, 1.0
        %v5396 = vadd.f32 %v5337, 1.0
        %v5397 = vadd.f32 %v5339, 1.0
        %v5398 = vadd.f32 %v5341, 1.0
        %v5399 = vadd.f32 %v5343, 1.0
        %v5400 = vadd.f32 %v5345, 1.0
        %v5401 = vadd.f32 %v5347, 1.0
        %v5402 = vadd.f32 %v5349, 1.0
        %v5403 = vadd.f32 %v5351, 1.0
        %v5404 = vadd.f32 %v5353, 1.0
        %v5405 = vadd.f32 %v5355, 1.0
        %v5406 = vadd.f32 %v5357, 1.0
        %v5407 = vadd.f32 %v5359, 1.0
        %v5408 = vadd.f32 %v5361, 1.0
        %v5409 = vadd.f32 %v5363, 1.0
        %v5410 = vadd.f32 %v5365, 1.0
        %v5411 = vadd.f32 %v5367, 1.0
        %v5412 = vadd.f32 %v5369, 1.0
        %v5413 = vadd.f32 %v5371, 1.0
        %v5414 = vadd.f32 %v5373, 1.0
        %v5415 = vadd.f32 %v5375, 1.0
        %v5416 = vadd.f32 %v5377, 1.0
        %v5417 = vadd.f32 %v5379, 1.0
        %v5418 = vadd.f32 %v5381, 1.0
        %v5419 = vadd.f32 %v5383, 1.0
        %v5420 = vadd.f32 %v5385, 1.0
        %v5421 = vadd.f32 %v5387, 1.0
        %v5422 = vadd.f32 %v5389, 1.0
        %v5423 = vadd.f32 %v5391, 1.0
        %v5424 = vrcp.pop %v5392
        %v5425 = vrcp.pop %v5393
        %v5426 = vrcp.pop %v5394
        %v5427 = vrcp.pop %v5395
        %v5428 = vrcp.pop %v5396
        %v5429 = vrcp.pop %v5397
        %v5430 = vrcp.pop %v5398
        %v5431 = vrcp.pop %v5399
        %v5432 = vrcp.pop %v5400
        %v5433 = vrcp.pop %v5401
        %v5434 = vrcp.pop %v5402
        %v5435 = vrcp.pop %v5403
        %v5436 = vrcp.pop %v5404
        %v5437 = vrcp.pop %v5405
        %v5438 = vrcp.pop %v5406
        %v5439 = vrcp.pop %v5407
        %v5440 = vrcp.pop %v5408
        %v5441 = vrcp.pop %v5409
        %v5442 = vrcp.pop %v5410
        %v5443 = vrcp.pop %v5411
        %v5444 = vrcp.pop %v5412
        %v5445 = vrcp.pop %v5413
        %v5446 = vrcp.pop %v5414
        %v5447 = vrcp.pop %v5415
        %v5448 = vrcp.pop %v5416
        %v5449 = vrcp.pop %v5417
        %v5450 = vrcp.pop %v5418
        %v5451 = vrcp.pop %v5419
        %v5452 = vrcp.pop %v5420
        %v5453 = vrcp.pop %v5421
        %v5454 = vrcp.pop %v5422
        %v5455 = vrcp.pop %v5423
        %v5456 = vmul.f32 %v5264, %v5424
        %v5457 = vmul.f32 %v5265, %v5425
        %v5458 = vmul.f32 %v5266, %v5426
        %v5459 = vmul.f32 %v5267, %v5427
        %v5460 = vmul.f32 %v5268, %v5428
        %v5461 = vmul.f32 %v5269, %v5429
        %v5462 = vmul.f32 %v5270, %v5430
        %v5463 = vmul.f32 %v5271, %v5431
        %v5464 = vmul.f32 %v5272, %v5432
        %v5465 = vmul.f32 %v5273, %v5433
        %v5466 = vmul.f32 %v5274, %v5434
        %v5467 = vmul.f32 %v5275, %v5435
        %v5468 = vmul.f32 %v5276, %v5436
        %v5469 = vmul.f32 %v5277, %v5437
        %v5470 = vmul.f32 %v5278, %v5438
        %v5471 = vmul.f32 %v5279, %v5439
        %v5472 = vmul.f32 %v5280, %v5440
        %v5473 = vmul.f32 %v5281, %v5441
        %v5474 = vmul.f32 %v5282, %v5442
        %v5475 = vmul.f32 %v5283, %v5443
        %v5476 = vmul.f32 %v5284, %v5444
        %v5477 = vmul.f32 %v5285, %v5445
        %v5478 = vmul.f32 %v5286, %v5446
        %v5479 = vmul.f32 %v5287, %v5447
        %v5480 = vmul.f32 %v5288, %v5448
        %v5481 = vmul.f32 %v5289, %v5449
        %v5482 = vmul.f32 %v5290, %v5450
        %v5483 = vmul.f32 %v5291, %v5451
        %v5484 = vmul.f32 %v5292, %v5452
        %v5485 = vmul.f32 %v5293, %v5453
        %v5486 = vmul.f32 %v5294, %v5454
        %v5487 = vmul.f32 %v5295, %v5455
        %v5488 = vld [vmem:[#allocation12] sm:$0xf]
        %v5489 = vld [vmem:[#allocation12 + $0x4] sm:$0xf]
        %v5490 = vld [vmem:[#allocation12 + $0x8] sm:$0xf]
        %v5491 = vld [vmem:[#allocation12 + $0xc] sm:$0xf]
        %v5492 = vld [vmem:[#allocation12 + $0x10] sm:$0xf]
        %v5493 = vld [vmem:[#allocation12 + $0x14] sm:$0xf]
        %v5494 = vld [vmem:[#allocation12 + $0x18] sm:$0xf]
        %v5495 = vld [vmem:[#allocation12 + $0x1c] sm:$0xf]
        %v5496 = vld [vmem:[#allocation12 + $0x20] sm:$0xf]
        %v5497 = vld [vmem:[#allocation12 + $0x24] sm:$0xf]
        %v5498 = vld [vmem:[#allocation12 + $0x28] sm:$0xf]
        %v5499 = vld [vmem:[#allocation12 + $0x2c] sm:$0xf]
        %v5500 = vld [vmem:[#allocation12 + $0x30] sm:$0xf]
        %v5501 = vld [vmem:[#allocation12 + $0x34] sm:$0xf]
        %v5502 = vld [vmem:[#allocation12 + $0x38] sm:$0xf]
        %v5503 = vld [vmem:[#allocation12 + $0x3c] sm:$0xf]
        %v5520 = vunpack.c.l.b16 %v5488
        %v5521 = vunpack.c.l.b16 %v5489
        %v5522 = vunpack.c.l.b16 %v5490
        %v5523 = vunpack.c.l.b16 %v5491
        %v5524 = vunpack.c.l.b16 %v5492
        %v5525 = vunpack.c.l.b16 %v5493
        %v5526 = vunpack.c.l.b16 %v5494
        %v5527 = vunpack.c.l.b16 %v5495
        %v5528 = vunpack.c.l.b16 %v5496
        %v5529 = vunpack.c.l.b16 %v5497
        %v5530 = vunpack.c.l.b16 %v5498
        %v5531 = vunpack.c.l.b16 %v5499
        %v5532 = vunpack.c.l.b16 %v5500
        %v5533 = vunpack.c.l.b16 %v5501
        %v5534 = vunpack.c.l.b16 %v5502
        %v5535 = vunpack.c.l.b16 %v5503
        %v5536 = vpack.c.b16 %v5521, %v5520
        %v5537 = vpack.c.b16 %v5523, %v5522
        %v5538 = vpack.c.b16 %v5525, %v5524
        %v5539 = vpack.c.b16 %v5527, %v5526
        %v5540 = vpack.c.b16 %v5529, %v5528
        %v5541 = vpack.c.b16 %v5531, %v5530
        %v5542 = vpack.c.b16 %v5533, %v5532
        %v5543 = vpack.c.b16 %v5535, %v5534
        %5552 = vmatprep.subr.bf16.mxu0 0
        %5553 = vmatpush1.bf16.msra.mxu0 %v5536
        %5554 = vmatprep.subr.bf16.mxu0 0
        %5555 = vmatpush1.bf16.msra.mxu0 %v5537
        %5556 = vmatprep.subr.bf16.mxu0 0
        %5557 = vmatpush1.bf16.msra.mxu0 %v5538
        %5558 = vmatprep.subr.bf16.mxu0 0
        %5559 = vmatpush1.bf16.msra.mxu0 %v5539
        %5560 = vmatprep.subr.bf16.mxu0 0
        %5561 = vmatpush1.bf16.msra.mxu0 %v5540
        %5562 = vmatprep.subr.bf16.mxu0 0
        %5563 = vmatpush1.bf16.msra.mxu0 %v5541
        %5564 = vmatprep.subr.bf16.mxu0 0
        %5565 = vmatpush1.bf16.msra.mxu0 %v5542
        %5566 = vmatprep.subr.bf16.mxu0 0
        %5567 = vmatpush1.bf16.msra.mxu0 %v5543
        %5568 = vmatprep.subr.bf16.mxu0 0
        %5569 = vmatpush1.bf16.msra.mxu0 0
        %5570 = vmatprep.subr.bf16.mxu0 0
        %5571 = vmatpush1.bf16.msra.mxu0 0
        %5572 = vmatprep.subr.bf16.mxu0 0
        %5573 = vmatpush1.bf16.msra.mxu0 0
        %5574 = vmatprep.subr.bf16.mxu0 0
        %5575 = vmatpush1.bf16.msra.mxu0 0
        %5576 = vmatprep.subr.bf16.mxu0 0
        %5577 = vmatpush1.bf16.msra.mxu0 0
        %5578 = vmatprep.subr.bf16.mxu0 0
        %5579 = vmatpush1.bf16.msra.mxu0 0
        %5580 = vmatprep.subr.bf16.mxu0 0
        %5581 = vmatpush1.bf16.msra.mxu0 0
        %5582 = vmatprep.subr.bf16.mxu0 0
        %5583 = vmatpush1.bf16.msra.mxu0 0
        %5584 = vmatprep.mubr.bf16.mxu0 0
        %5585 = vmatmul.mubr.bf16.gmra.mrb[0].mxu0 %v1460
        %v5586 = vpop.f32.mrb[0].mxu0
        %v5587 = vadd.f32 0.0, %v5586
        %v5588 = vpop.f32.mrb[0].mxu0
        %v5589 = vpop.f32.mrb[0].mxu0
        %v5590 = vadd.f32 0.0, %v5589
        %v5591 = vpop.f32.mrb[0].mxu0
        %5592 = vmatprep.mubr.bf16.mxu0 0
        %5593 = vmatmul.mubr.bf16.gmra.mrb[0].mxu0 %v1461
        %v5594 = vpop.f32.mrb[0].mxu0
        %v5595 = vadd.f32 0.0, %v5594
        %v5596 = vpop.f32.mrb[0].mxu0
        %v5597 = vpop.f32.mrb[0].mxu0
        %v5598 = vadd.f32 0.0, %v5597
        %v5599 = vpop.f32.mrb[0].mxu0
        %5600 = vmatprep.mubr.bf16.mxu0 0
        %5601 = vmatmul.mubr.bf16.gmra.mrb[0].mxu0 %v1462
        %v5602 = vpop.f32.mrb[0].mxu0
        %v5603 = vadd.f32 0.0, %v5602
        %v5604 = vpop.f32.mrb[0].mxu0
        %v5605 = vpop.f32.mrb[0].mxu0
        %v5606 = vadd.f32 0.0, %v5605
        %v5607 = vpop.f32.mrb[0].mxu0
        %5608 = vmatprep.mubr.bf16.mxu0 0
        %5609 = vmatmul.mubr.bf16.gmra.mrb[0].mxu0 %v1463
        %v5610 = vpop.f32.mrb[0].mxu0
        %v5611 = vadd.f32 0.0, %v5610
        %v5612 = vpop.f32.mrb[0].mxu0
        %v5613 = vpop.f32.mrb[0].mxu0
        %v5614 = vadd.f32 0.0, %v5613
        %v5615 = vpop.f32.mrb[0].mxu0
        %5616 = vmatprep.mubr.bf16.mxu0 0
        %5617 = vmatmul.mubr.bf16.gmra.mrb[0].mxu0 %v1464
        %v5618 = vpop.f32.mrb[0].mxu0
        %v5619 = vadd.f32 0.0, %v5618
        %v5620 = vpop.f32.mrb[0].mxu0
        %v5621 = vpop.f32.mrb[0].mxu0
        %v5622 = vadd.f32 0.0, %v5621
        %v5623 = vpop.f32.mrb[0].mxu0
        %5624 = vmatprep.mubr.bf16.mxu0 0
        %5625 = vmatmul.mubr.bf16.gmra.mrb[0].mxu0 %v1465
        %v5626 = vpop.f32.mrb[0].mxu0
        %v5627 = vadd.f32 0.0, %v5626
        %v5628 = vpop.f32.mrb[0].mxu0
        %v5629 = vpop.f32.mrb[0].mxu0
        %v5630 = vadd.f32 0.0, %v5629
        %v5631 = vpop.f32.mrb[0].mxu0
        %5632 = vmatprep.mubr.bf16.mxu0 0
        %5633 = vmatmul.mubr.bf16.gmra.mrb[0].mxu0 %v1466
        %v5634 = vpop.f32.mrb[0].mxu0
        %v5635 = vadd.f32 0.0, %v5634
        %v5636 = vpop.f32.mrb[0].mxu0
        %v5637 = vpop.f32.mrb[0].mxu0
        %v5638 = vadd.f32 0.0, %v5637
        %v5639 = vpop.f32.mrb[0].mxu0
        %5640 = vmatprep.mubr.bf16.mxu0 0
        %5641 = vmatmul.mubr.bf16.gmra.mrb[0].mxu0 %v1467
        %v5642 = vpop.f32.mrb[0].mxu0
        %v5643 = vadd.f32 0.0, %v5642
        %v5644 = vpop.f32.mrb[0].mxu0
        %v5645 = vpop.f32.mrb[0].mxu0
        %v5646 = vadd.f32 0.0, %v5645
        %v5647 = vpop.f32.mrb[0].mxu0
        %5648 = vmatprep.mubr.bf16.mxu0 0
        %5649 = vmatmul.mubr.bf16.gmra.mrb[0].mxu0 %v1468
        %v5650 = vpop.f32.mrb[0].mxu0
        %v5651 = vadd.f32 0.0, %v5650
        %v5652 = vpop.f32.mrb[0].mxu0
        %v5653 = vpop.f32.mrb[0].mxu0
        %v5654 = vadd.f32 0.0, %v5653
        %v5655 = vpop.f32.mrb[0].mxu0
        %5656 = vmatprep.mubr.bf16.mxu0 0
        %5657 = vmatmul.mubr.bf16.gmra.mrb[0].mxu0 %v1469
        %v5658 = vpop.f32.mrb[0].mxu0
        %v5659 = vadd.f32 0.0, %v5658
        %v5660 = vpop.f32.mrb[0].mxu0
        %v5661 = vpop.f32.mrb[0].mxu0
        %v5662 = vadd.f32 0.0, %v5661
        %v5663 = vpop.f32.mrb[0].mxu0
        %5664 = vmatprep.mubr.bf16.mxu0 0
        %5665 = vmatmul.mubr.bf16.gmra.mrb[0].mxu0 %v1470
        %v5666 = vpop.f32.mrb[0].mxu0
        %v5667 = vadd.f32 0.0, %v5666
        %v5668 = vpop.f32.mrb[0].mxu0
        %v5669 = vpop.f32.mrb[0].mxu0
        %v5670 = vadd.f32 0.0, %v5669
        %v5671 = vpop.f32.mrb[0].mxu0
        %5672 = vmatprep.mubr.bf16.mxu0 0
        %5673 = vmatmul.mubr.bf16.gmra.mrb[0].mxu0 %v1471
        %v5674 = vpop.f32.mrb[0].mxu0
        %v5675 = vadd.f32 0.0, %v5674
        %v5676 = vpop.f32.mrb[0].mxu0
        %v5677 = vpop.f32.mrb[0].mxu0
        %v5678 = vadd.f32 0.0, %v5677
        %v5679 = vpop.f32.mrb[0].mxu0
        %5680 = vmatprep.mubr.bf16.mxu0 0
        %5681 = vmatmul.mubr.bf16.gmra.mrb[0].mxu0 %v1472
        %v5682 = vpop.f32.mrb[0].mxu0
        %v5683 = vadd.f32 0.0, %v5682
        %v5684 = vpop.f32.mrb[0].mxu0
        %v5685 = vpop.f32.mrb[0].mxu0
        %v5686 = vadd.f32 0.0, %v5685
        %v5687 = vpop.f32.mrb[0].mxu0
        %5688 = vmatprep.mubr.bf16.mxu0 0
        %5689 = vmatmul.mubr.bf16.gmra.mrb[0].mxu0 %v1473
        %v5690 = vpop.f32.mrb[0].mxu0
        %v5691 = vadd.f32 0.0, %v5690
        %v5692 = vpop.f32.mrb[0].mxu0
        %v5693 = vpop.f32.mrb[0].mxu0
        %v5694 = vadd.f32 0.0, %v5693
        %v5695 = vpop.f32.mrb[0].mxu0
        %5696 = vmatprep.mubr.bf16.mxu0 0
        %5697 = vmatmul.mubr.bf16.gmra.mrb[0].mxu0 %v1474
        %v5698 = vpop.f32.mrb[0].mxu0
        %v5699 = vadd.f32 0.0, %v5698
        %v5700 = vpop.f32.mrb[0].mxu0
        %v5701 = vpop.f32.mrb[0].mxu0
        %v5702 = vadd.f32 0.0, %v5701
        %v5703 = vpop.f32.mrb[0].mxu0
        %5704 = vmatprep.mubr.bf16.mxu0 0
        %5705 = vmatmul.mubr.bf16.gmra.mrb[0].mxu0 %v1475
        %v5706 = vpop.f32.mrb[0].mxu0
        %v5707 = vadd.f32 0.0, %v5706
        %v5708 = vpop.f32.mrb[0].mxu0
        %v5709 = vpop.f32.mrb[0].mxu0
        %v5710 = vadd.f32 0.0, %v5709
        %v5711 = vpop.f32.mrb[0].mxu0
        %5712 = vdwg.mxu0
        %v5713 = vld [vmem:[%s14] sm:$0x1]
        %v5715 = vlaneseq
        %v5716 = vshrl.u32 %v5715, 7
        %v5717 = vsub.s32 0, %v5716
        %v5718 = vrot.slane %v5713, %v5717
        %v5720 = vmul.f32 %v5587, %v5718
        %v5721 = vmul.f32 %v5590, %v5718
        %v5722 = vmul.f32 %v5595, %v5718
        %v5723 = vmul.f32 %v5598, %v5718
        %v5724 = vmul.f32 %v5603, %v5718
        %v5725 = vmul.f32 %v5606, %v5718
        %v5726 = vmul.f32 %v5611, %v5718
        %v5727 = vmul.f32 %v5614, %v5718
        %v5728 = vmul.f32 %v5619, %v5718
        %v5729 = vmul.f32 %v5622, %v5718
        %v5730 = vmul.f32 %v5627, %v5718
        %v5731 = vmul.f32 %v5630, %v5718
        %v5732 = vmul.f32 %v5635, %v5718
        %v5733 = vmul.f32 %v5638, %v5718
        %v5734 = vmul.f32 %v5643, %v5718
        %v5735 = vmul.f32 %v5646, %v5718
        %v5736 = vmul.f32 %v5651, %v5718
        %v5737 = vmul.f32 %v5654, %v5718
        %v5738 = vmul.f32 %v5659, %v5718
        %v5739 = vmul.f32 %v5662, %v5718
        %v5740 = vmul.f32 %v5667, %v5718
        %v5741 = vmul.f32 %v5670, %v5718
        %v5742 = vmul.f32 %v5675, %v5718
        %v5743 = vmul.f32 %v5678, %v5718
        %v5744 = vmul.f32 %v5683, %v5718
        %v5745 = vmul.f32 %v5686, %v5718
        %v5746 = vmul.f32 %v5691, %v5718
        %v5747 = vmul.f32 %v5694, %v5718
        %v5748 = vmul.f32 %v5699, %v5718
        %v5749 = vmul.f32 %v5702, %v5718
        %v5750 = vmul.f32 %v5707, %v5718
        %v5751 = vmul.f32 %v5710, %v5718
        %v5752 = vld [vmem:[%s15] sm:$0x1]
        %v5754 = vlaneseq
        %v5755 = vshrl.u32 %v5754, 7
        %v5756 = vsub.s32 0, %v5755
        %v5757 = vrot.slane %v5752, %v5756
        %v5759 = vadd.f32 %v5720, %v5757
        %v5760 = vadd.f32 %v5721, %v5757
        %v5761 = vadd.f32 %v5722, %v5757
        %v5762 = vadd.f32 %v5723, %v5757
        %v5763 = vadd.f32 %v5724, %v5757
        %v5764 = vadd.f32 %v5725, %v5757
        %v5765 = vadd.f32 %v5726, %v5757
        %v5766 = vadd.f32 %v5727, %v5757
        %v5767 = vadd.f32 %v5728, %v5757
        %v5768 = vadd.f32 %v5729, %v5757
        %v5769 = vadd.f32 %v5730, %v5757
        %v5770 = vadd.f32 %v5731, %v5757
        %v5771 = vadd.f32 %v5732, %v5757
        %v5772 = vadd.f32 %v5733, %v5757
        %v5773 = vadd.f32 %v5734, %v5757
        %v5774 = vadd.f32 %v5735, %v5757
        %v5775 = vadd.f32 %v5736, %v5757
        %v5776 = vadd.f32 %v5737, %v5757
        %v5777 = vadd.f32 %v5738, %v5757
        %v5778 = vadd.f32 %v5739, %v5757
        %v5779 = vadd.f32 %v5740, %v5757
        %v5780 = vadd.f32 %v5741, %v5757
        %v5781 = vadd.f32 %v5742, %v5757
        %v5782 = vadd.f32 %v5743, %v5757
        %v5783 = vadd.f32 %v5744, %v5757
        %v5784 = vadd.f32 %v5745, %v5757
        %v5785 = vadd.f32 %v5746, %v5757
        %v5786 = vadd.f32 %v5747, %v5757
        %v5787 = vadd.f32 %v5748, %v5757
        %v5788 = vadd.f32 %v5749, %v5757
        %v5789 = vadd.f32 %v5750, %v5757
        %v5790 = vadd.f32 %v5751, %v5757
        %v5791 = vsub.f32 0.0, %v5759
        %v5792 = vsub.f32 0.0, %v5760
        %v5793 = vsub.f32 0.0, %v5761
        %v5794 = vsub.f32 0.0, %v5762
        %v5795 = vsub.f32 0.0, %v5763
        %v5796 = vsub.f32 0.0, %v5764
        %v5797 = vsub.f32 0.0, %v5765
        %v5798 = vsub.f32 0.0, %v5766
        %v5799 = vsub.f32 0.0, %v5767
        %v5800 = vsub.f32 0.0, %v5768
        %v5801 = vsub.f32 0.0, %v5769
        %v5802 = vsub.f32 0.0, %v5770
        %v5803 = vsub.f32 0.0, %v5771
        %v5804 = vsub.f32 0.0, %v5772
        %v5805 = vsub.f32 0.0, %v5773
        %v5806 = vsub.f32 0.0, %v5774
        %v5807 = vsub.f32 0.0, %v5775
        %v5808 = vsub.f32 0.0, %v5776
        %v5809 = vsub.f32 0.0, %v5777
        %v5810 = vsub.f32 0.0, %v5778
        %v5811 = vsub.f32 0.0, %v5779
        %v5812 = vsub.f32 0.0, %v5780
        %v5813 = vsub.f32 0.0, %v5781
        %v5814 = vsub.f32 0.0, %v5782
        %v5815 = vsub.f32 0.0, %v5783
        %v5816 = vsub.f32 0.0, %v5784
        %v5817 = vsub.f32 0.0, %v5785
        %v5818 = vsub.f32 0.0, %v5786
        %v5819 = vsub.f32 0.0, %v5787
        %v5820 = vsub.f32 0.0, %v5788
        %v5821 = vsub.f32 0.0, %v5789
        %v5822 = vsub.f32 0.0, %v5790
        %v5823 = vmul.f32 %v5791, 1.442695
        %v5824 = vpow.pop %v5823
        %v5825 = vmul.f32 %v5792, 1.442695
        %v5826 = vpow.pop %v5825
        %v5827 = vmul.f32 %v5793, 1.442695
        %v5828 = vpow.pop %v5827
        %v5829 = vmul.f32 %v5794, 1.442695
        %v5830 = vpow.pop %v5829
        %v5831 = vmul.f32 %v5795, 1.442695
        %v5832 = vpow.pop %v5831
        %v5833 = vmul.f32 %v5796, 1.442695
        %v5834 = vpow.pop %v5833
        %v5835 = vmul.f32 %v5797, 1.442695
        %v5836 = vpow.pop %v5835
        %v5837 = vmul.f32 %v5798, 1.442695
        %v5838 = vpow.pop %v5837
        %v5839 = vmul.f32 %v5799, 1.442695
        %v5840 = vpow.pop %v5839
        %v5841 = vmul.f32 %v5800, 1.442695
        %v5842 = vpow.pop %v5841
        %v5843 = vmul.f32 %v5801, 1.442695
        %v5844 = vpow.pop %v5843
        %v5845 = vmul.f32 %v5802, 1.442695
        %v5846 = vpow.pop %v5845
        %v5847 = vmul.f32 %v5803, 1.442695
        %v5848 = vpow.pop %v5847
        %v5849 = vmul.f32 %v5804, 1.442695
        %v5850 = vpow.pop %v5849
        %v5851 = vmul.f32 %v5805, 1.442695
        %v5852 = vpow.pop %v5851
        %v5853 = vmul.f32 %v5806, 1.442695
        %v5854 = vpow.pop %v5853
        %v5855 = vmul.f32 %v5807, 1.442695
        %v5856 = vpow.pop %v5855
        %v5857 = vmul.f32 %v5808, 1.442695
        %v5858 = vpow.pop %v5857
        %v5859 = vmul.f32 %v5809, 1.442695
        %v5860 = vpow.pop %v5859
        %v5861 = vmul.f32 %v5810, 1.442695
        %v5862 = vpow.pop %v5861
        %v5863 = vmul.f32 %v5811, 1.442695
        %v5864 = vpow.pop %v5863
        %v5865 = vmul.f32 %v5812, 1.442695
        %v5866 = vpow.pop %v5865
        %v5867 = vmul.f32 %v5813, 1.442695
        %v5868 = vpow.pop %v5867
        %v5869 = vmul.f32 %v5814, 1.442695
        %v5870 = vpow.pop %v5869
        %v5871 = vmul.f32 %v5815, 1.442695
        %v5872 = vpow.pop %v5871
        %v5873 = vmul.f32 %v5816, 1.442695
        %v5874 = vpow.pop %v5873
        %v5875 = vmul.f32 %v5817, 1.442695
        %v5876 = vpow.pop %v5875
        %v5877 = vmul.f32 %v5818, 1.442695
        %v5878 = vpow.pop %v5877
        %v5879 = vmul.f32 %v5819, 1.442695
        %v5880 = vpow.pop %v5879
        %v5881 = vmul.f32 %v5820, 1.442695
        %v5882 = vpow.pop %v5881
        %v5883 = vmul.f32 %v5821, 1.442695
        %v5884 = vpow.pop %v5883
        %v5885 = vmul.f32 %v5822, 1.442695
        %v5886 = vpow.pop %v5885
        %v5887 = vadd.f32 %v5824, 1.0
        %v5888 = vadd.f32 %v5826, 1.0
        %v5889 = vadd.f32 %v5828, 1.0
        %v5890 = vadd.f32 %v5830, 1.0
        %v5891 = vadd.f32 %v5832, 1.0
        %v5892 = vadd.f32 %v5834, 1.0
        %v5893 = vadd.f32 %v5836, 1.0
        %v5894 = vadd.f32 %v5838, 1.0
        %v5895 = vadd.f32 %v5840, 1.0
        %v5896 = vadd.f32 %v5842, 1.0
        %v5897 = vadd.f32 %v5844, 1.0
        %v5898 = vadd.f32 %v5846, 1.0
        %v5899 = vadd.f32 %v5848, 1.0
        %v5900 = vadd.f32 %v5850, 1.0
        %v5901 = vadd.f32 %v5852, 1.0
        %v5902 = vadd.f32 %v5854, 1.0
        %v5903 = vadd.f32 %v5856, 1.0
        %v5904 = vadd.f32 %v5858, 1.0
        %v5905 = vadd.f32 %v5860, 1.0
        %v5906 = vadd.f32 %v5862, 1.0
        %v5907 = vadd.f32 %v5864, 1.0
        %v5908 = vadd.f32 %v5866, 1.0
        %v5909 = vadd.f32 %v5868, 1.0
        %v5910 = vadd.f32 %v5870, 1.0
        %v5911 = vadd.f32 %v5872, 1.0
        %v5912 = vadd.f32 %v5874, 1.0
        %v5913 = vadd.f32 %v5876, 1.0
        %v5914 = vadd.f32 %v5878, 1.0
        %v5915 = vadd.f32 %v5880, 1.0
        %v5916 = vadd.f32 %v5882, 1.0
        %v5917 = vadd.f32 %v5884, 1.0
        %v5918 = vadd.f32 %v5886, 1.0
        %v5919 = vrcp.pop %v5887
        %v5920 = vrcp.pop %v5888
        %v5921 = vrcp.pop %v5889
        %v5922 = vrcp.pop %v5890
        %v5923 = vrcp.pop %v5891
        %v5924 = vrcp.pop %v5892
        %v5925 = vrcp.pop %v5893
        %v5926 = vrcp.pop %v5894
        %v5927 = vrcp.pop %v5895
        %v5928 = vrcp.pop %v5896
        %v5929 = vrcp.pop %v5897
        %v5930 = vrcp.pop %v5898
        %v5931 = vrcp.pop %v5899
        %v5932 = vrcp.pop %v5900
        %v5933 = vrcp.pop %v5901
        %v5934 = vrcp.pop %v5902
        %v5935 = vrcp.pop %v5903
        %v5936 = vrcp.pop %v5904
        %v5937 = vrcp.pop %v5905
        %v5938 = vrcp.pop %v5906
        %v5939 = vrcp.pop %v5907
        %v5940 = vrcp.pop %v5908
        %v5941 = vrcp.pop %v5909
        %v5942 = vrcp.pop %v5910
        %v5943 = vrcp.pop %v5911
        %v5944 = vrcp.pop %v5912
        %v5945 = vrcp.pop %v5913
        %v5946 = vrcp.pop %v5914
        %v5947 = vrcp.pop %v5915
        %v5948 = vrcp.pop %v5916
        %v5949 = vrcp.pop %v5917
        %v5950 = vrcp.pop %v5918
        %v5951 = vmul.f32 %v5759, %v5919
        %v5952 = vmul.f32 %v5760, %v5920
        %v5953 = vmul.f32 %v5761, %v5921
        %v5954 = vmul.f32 %v5762, %v5922
        %v5955 = vmul.f32 %v5763, %v5923
        %v5956 = vmul.f32 %v5764, %v5924
        %v5957 = vmul.f32 %v5765, %v5925
        %v5958 = vmul.f32 %v5766, %v5926
        %v5959 = vmul.f32 %v5767, %v5927
        %v5960 = vmul.f32 %v5768, %v5928
        %v5961 = vmul.f32 %v5769, %v5929
        %v5962 = vmul.f32 %v5770, %v5930
        %v5963 = vmul.f32 %v5771, %v5931
        %v5964 = vmul.f32 %v5772, %v5932
        %v5965 = vmul.f32 %v5773, %v5933
        %v5966 = vmul.f32 %v5774, %v5934
        %v5967 = vmul.f32 %v5775, %v5935
        %v5968 = vmul.f32 %v5776, %v5936
        %v5969 = vmul.f32 %v5777, %v5937
        %v5970 = vmul.f32 %v5778, %v5938
        %v5971 = vmul.f32 %v5779, %v5939
        %v5972 = vmul.f32 %v5780, %v5940
        %v5973 = vmul.f32 %v5781, %v5941
        %v5974 = vmul.f32 %v5782, %v5942
        %v5975 = vmul.f32 %v5783, %v5943
        %v5976 = vmul.f32 %v5784, %v5944
        %v5977 = vmul.f32 %v5785, %v5945
        %v5978 = vmul.f32 %v5786, %v5946
        %v5979 = vmul.f32 %v5787, %v5947
        %v5980 = vmul.f32 %v5788, %v5948
        %v5981 = vmul.f32 %v5789, %v5949
        %v5982 = vmul.f32 %v5790, %v5950
        %v5983 = vpack.c.bf16 %v5457, %v5456
        %v5984 = vpack.c.bf16 %v5459, %v5458
        %v5985 = vpack.c.bf16 %v5461, %v5460
        %v5986 = vpack.c.bf16 %v5463, %v5462
        %v5987 = vpack.c.bf16 %v5465, %v5464
        %v5988 = vpack.c.bf16 %v5467, %v5466
        %v5989 = vpack.c.bf16 %v5469, %v5468
        %v5990 = vpack.c.bf16 %v5471, %v5470
        %v5991 = vpack.c.bf16 %v5473, %v5472
        %v5992 = vpack.c.bf16 %v5475, %v5474
        %v5993 = vpack.c.bf16 %v5477, %v5476
        %v5994 = vpack.c.bf16 %v5479, %v5478
        %v5995 = vpack.c.bf16 %v5481, %v5480
        %v5996 = vpack.c.bf16 %v5483, %v5482
        %v5997 = vpack.c.bf16 %v5485, %v5484
        %v5998 = vpack.c.bf16 %v5487, %v5486
        %v5999 = vpack.c.bf16 %v5952, %v5951
        %v6000 = vpack.c.bf16 %v5954, %v5953
        %v6001 = vpack.c.bf16 %v5956, %v5955
        %v6002 = vpack.c.bf16 %v5958, %v5957
        %v6003 = vpack.c.bf16 %v5960, %v5959
        %v6004 = vpack.c.bf16 %v5962, %v5961
        %v6005 = vpack.c.bf16 %v5964, %v5963
        %v6006 = vpack.c.bf16 %v5966, %v5965
        %v6007 = vpack.c.bf16 %v5968, %v5967
        %v6008 = vpack.c.bf16 %v5970, %v5969
        %v6009 = vpack.c.bf16 %v5972, %v5971
        %v6010 = vpack.c.bf16 %v5974, %v5973
        %v6011 = vpack.c.bf16 %v5976, %v5975
        %v6012 = vpack.c.bf16 %v5978, %v5977
        %v6013 = vpack.c.bf16 %v5980, %v5979
        %v6014 = vpack.c.bf16 %v5982, %v5981
        %v6015 = vld [vmem:[#allocation14] sm:$0xf]
        %v6016 = vld [vmem:[#allocation14 + $0x4] sm:$0xf]
        %v6017 = vld [vmem:[#allocation14 + $0x8] sm:$0xf]
        %v6018 = vld [vmem:[#allocation14 + $0xc] sm:$0xf]
        %v6019 = vld [vmem:[#allocation14 + $0x10] sm:$0xf]
        %v6020 = vld [vmem:[#allocation14 + $0x14] sm:$0xf]
        %v6021 = vld [vmem:[#allocation14 + $0x18] sm:$0xf]
        %v6022 = vld [vmem:[#allocation14 + $0x1c] sm:$0xf]
        %v6023 = vld [vmem:[#allocation14 + $0x20] sm:$0xf]
        %v6024 = vld [vmem:[#allocation14 + $0x24] sm:$0xf]
        %v6025 = vld [vmem:[#allocation14 + $0x28] sm:$0xf]
        %v6026 = vld [vmem:[#allocation14 + $0x2c] sm:$0xf]
        %v6027 = vld [vmem:[#allocation14 + $0x30] sm:$0xf]
        %v6028 = vld [vmem:[#allocation14 + $0x34] sm:$0xf]
        %v6029 = vld [vmem:[#allocation14 + $0x38] sm:$0xf]
        %v6030 = vld [vmem:[#allocation14 + $0x3c] sm:$0xf]
        %v6031 = vld [vmem:[#allocation14 + $0x40] sm:$0xf]
        %v6032 = vld [vmem:[#allocation14 + $0x44] sm:$0xf]
        %v6033 = vld [vmem:[#allocation14 + $0x48] sm:$0xf]
        %v6034 = vld [vmem:[#allocation14 + $0x4c] sm:$0xf]
        %v6035 = vld [vmem:[#allocation14 + $0x50] sm:$0xf]
        %v6036 = vld [vmem:[#allocation14 + $0x54] sm:$0xf]
        %v6037 = vld [vmem:[#allocation14 + $0x58] sm:$0xf]
        %v6038 = vld [vmem:[#allocation14 + $0x5c] sm:$0xf]
        %v6039 = vld [vmem:[#allocation14 + $0x60] sm:$0xf]
        %v6040 = vld [vmem:[#allocation14 + $0x64] sm:$0xf]
        %v6041 = vld [vmem:[#allocation14 + $0x68] sm:$0xf]
        %v6042 = vld [vmem:[#allocation14 + $0x6c] sm:$0xf]
        %v6043 = vld [vmem:[#allocation14 + $0x70] sm:$0xf]
        %v6044 = vld [vmem:[#allocation14 + $0x74] sm:$0xf]
        %v6045 = vld [vmem:[#allocation14 + $0x78] sm:$0xf]
        %v6046 = vld [vmem:[#allocation14 + $0x7c] sm:$0xf]
        %v6079 = vunpack.c.l.b16 %v6015
        %v6080 = vunpack.c.l.b16 %v6016
        %v6081 = vunpack.c.l.b16 %v6017
        %v6082 = vunpack.c.l.b16 %v6018
        %v6083 = vunpack.c.l.b16 %v6019
        %v6084 = vunpack.c.l.b16 %v6020
        %v6085 = vunpack.c.l.b16 %v6021
        %v6086 = vunpack.c.l.b16 %v6022
        %v6087 = vunpack.c.l.b16 %v6023
        %v6088 = vunpack.c.l.b16 %v6024
        %v6089 = vunpack.c.l.b16 %v6025
        %v6090 = vunpack.c.l.b16 %v6026
        %v6091 = vunpack.c.l.b16 %v6027
        %v6092 = vunpack.c.l.b16 %v6028
        %v6093 = vunpack.c.l.b16 %v6029
        %v6094 = vunpack.c.l.b16 %v6030
        %v6095 = vunpack.c.l.b16 %v6031
        %v6096 = vunpack.c.l.b16 %v6032
        %v6097 = vunpack.c.l.b16 %v6033
        %v6098 = vunpack.c.l.b16 %v6034
        %v6099 = vunpack.c.l.b16 %v6035
        %v6100 = vunpack.c.l.b16 %v6036
        %v6101 = vunpack.c.l.b16 %v6037
        %v6102 = vunpack.c.l.b16 %v6038
        %v6103 = vunpack.c.l.b16 %v6039
        %v6104 = vunpack.c.l.b16 %v6040
        %v6105 = vunpack.c.l.b16 %v6041
        %v6106 = vunpack.c.l.b16 %v6042
        %v6107 = vunpack.c.l.b16 %v6043
        %v6108 = vunpack.c.l.b16 %v6044
        %v6109 = vunpack.c.l.b16 %v6045
        %v6110 = vunpack.c.l.b16 %v6046
        %v6111 = vpack.c.b16 %v6080, %v6079
        %v6112 = vpack.c.b16 %v6082, %v6081
        %v6113 = vpack.c.b16 %v6084, %v6083
        %v6114 = vpack.c.b16 %v6086, %v6085
        %v6115 = vpack.c.b16 %v6088, %v6087
        %v6116 = vpack.c.b16 %v6090, %v6089
        %v6117 = vpack.c.b16 %v6092, %v6091
        %v6118 = vpack.c.b16 %v6094, %v6093
        %v6119 = vpack.c.b16 %v6096, %v6095
        %v6120 = vpack.c.b16 %v6098, %v6097
        %v6121 = vpack.c.b16 %v6100, %v6099
        %v6122 = vpack.c.b16 %v6102, %v6101
        %v6123 = vpack.c.b16 %v6104, %v6103
        %v6124 = vpack.c.b16 %v6106, %v6105
        %v6125 = vpack.c.b16 %v6108, %v6107
        %v6126 = vpack.c.b16 %v6110, %v6109
        %6143 = vmatprep.subr.bf16.mxu0 0
        %6144 = vmatpush1.bf16.msra.mxu0 %v6111
        %6145 = vmatprep.subr.bf16.mxu0 0
        %6146 = vmatpush1.bf16.msra.mxu0 %v6112
        %6147 = vmatprep.subr.bf16.mxu0 0
        %6148 = vmatpush1.bf16.msra.mxu0 %v6113
        %6149 = vmatprep.subr.bf16.mxu0 0
        %6150 = vmatpush1.bf16.msra.mxu0 %v6114
        %6151 = vmatprep.subr.bf16.mxu0 0
        %6152 = vmatpush1.bf16.msra.mxu0 %v6115
        %6153 = vmatprep.subr.bf16.mxu0 0
        %6154 = vmatpush1.bf16.msra.mxu0 %v6116
        %6155 = vmatprep.subr.bf16.mxu0 0
        %6156 = vmatpush1.bf16.msra.mxu0 %v6117
        %6157 = vmatprep.subr.bf16.mxu0 0
        %6158 = vmatpush1.bf16.msra.mxu0 %v6118
        %6159 = vmatprep.subr.bf16.mxu0 0
        %6160 = vmatpush1.bf16.msra.mxu0 %v6119
        %6161 = vmatprep.subr.bf16.mxu0 0
        %6162 = vmatpush1.bf16.msra.mxu0 %v6120
        %6163 = vmatprep.subr.bf16.mxu0 0
        %6164 = vmatpush1.bf16.msra.mxu0 %v6121
        %6165 = vmatprep.subr.bf16.mxu0 0
        %6166 = vmatpush1.bf16.msra.mxu0 %v6122
        %6167 = vmatprep.subr.bf16.mxu0 0
        %6168 = vmatpush1.bf16.msra.mxu0 %v6123
        %6169 = vmatprep.subr.bf16.mxu0 0
        %6170 = vmatpush1.bf16.msra.mxu0 %v6124
        %6171 = vmatprep.subr.bf16.mxu0 0
        %6172 = vmatpush1.bf16.msra.mxu0 %v6125
        %6173 = vmatprep.subr.bf16.mxu0 0
        %6174 = vmatpush1.bf16.msra.mxu0 %v6126
        %6175 = vmatprep.mubr.bf16.mxu0 %v5999
        %6176 = vmatmul.mubr.bf16.gmra.mrb[0].mxu0 %v5983
        %v6177 = vpop.f32.mrb[0].mxu0
        %v6178 = vadd.f32 0.0, %v6177
        %v6179 = vpop.f32.mrb[0].mxu0
        %v6180 = vpop.f32.mrb[0].mxu0
        %v6181 = vadd.f32 0.0, %v6180
        %v6182 = vpop.f32.mrb[0].mxu0
        %6183 = vmatprep.mubr.bf16.mxu0 %v6000
        %6184 = vmatmul.mubr.bf16.gmra.mrb[0].mxu0 %v5984
        %v6185 = vpop.f32.mrb[0].mxu0
        %v6186 = vadd.f32 0.0, %v6185
        %v6187 = vpop.f32.mrb[0].mxu0
        %v6188 = vpop.f32.mrb[0].mxu0
        %v6189 = vadd.f32 0.0, %v6188
        %v6190 = vpop.f32.mrb[0].mxu0
        %6191 = vmatprep.mubr.bf16.mxu0 %v6001
        %6192 = vmatmul.mubr.bf16.gmra.mrb[0].mxu0 %v5985
        %v6193 = vpop.f32.mrb[0].mxu0
        %v6194 = vadd.f32 0.0, %v6193
        %v6195 = vpop.f32.mrb[0].mxu0
        %v6196 = vpop.f32.mrb[0].mxu0
        %v6197 = vadd.f32 0.0, %v6196
        %v6198 = vpop.f32.mrb[0].mxu0
        %6199 = vmatprep.mubr.bf16.mxu0 %v6002
        %6200 = vmatmul.mubr.bf16.gmra.mrb[0].mxu0 %v5986
        %v6201 = vpop.f32.mrb[0].mxu0
        %v6202 = vadd.f32 0.0, %v6201
        %v6203 = vpop.f32.mrb[0].mxu0
        %v6204 = vpop.f32.mrb[0].mxu0
        %v6205 = vadd.f32 0.0, %v6204
        %v6206 = vpop.f32.mrb[0].mxu0
        %6207 = vmatprep.mubr.bf16.mxu0 %v6003
        %6208 = vmatmul.mubr.bf16.gmra.mrb[0].mxu0 %v5987
        %v6209 = vpop.f32.mrb[0].mxu0
        %v6210 = vadd.f32 0.0, %v6209
        %v6211 = vpop.f32.mrb[0].mxu0
        %v6212 = vpop.f32.mrb[0].mxu0
        %v6213 = vadd.f32 0.0, %v6212
        %v6214 = vpop.f32.mrb[0].mxu0
        %6215 = vmatprep.mubr.bf16.mxu0 %v6004
        %6216 = vmatmul.mubr.bf16.gmra.mrb[0].mxu0 %v5988
        %v6217 = vpop.f32.mrb[0].mxu0
        %v6218 = vadd.f32 0.0, %v6217
        %v6219 = vpop.f32.mrb[0].mxu0
        %v6220 = vpop.f32.mrb[0].mxu0
        %v6221 = vadd.f32 0.0, %v6220
        %v6222 = vpop.f32.mrb[0].mxu0
        %6223 = vmatprep.mubr.bf16.mxu0 %v6005
        %6224 = vmatmul.mubr.bf16.gmra.mrb[0].mxu0 %v5989
        %v6225 = vpop.f32.mrb[0].mxu0
        %v6226 = vadd.f32 0.0, %v6225
        %v6227 = vpop.f32.mrb[0].mxu0
        %v6228 = vpop.f32.mrb[0].mxu0
        %v6229 = vadd.f32 0.0, %v6228
        %v6230 = vpop.f32.mrb[0].mxu0
        %6231 = vmatprep.mubr.bf16.mxu0 %v6006
        %6232 = vmatmul.mubr.bf16.gmra.mrb[0].mxu0 %v5990
        %v6233 = vpop.f32.mrb[0].mxu0
        %v6234 = vadd.f32 0.0, %v6233
        %v6235 = vpop.f32.mrb[0].mxu0
        %v6236 = vpop.f32.mrb[0].mxu0
        %v6237 = vadd.f32 0.0, %v6236
        %v6238 = vpop.f32.mrb[0].mxu0
        %6239 = vmatprep.mubr.bf16.mxu0 %v6007
        %6240 = vmatmul.mubr.bf16.gmra.mrb[0].mxu0 %v5991
        %v6241 = vpop.f32.mrb[0].mxu0
        %v6242 = vadd.f32 0.0, %v6241
        %v6243 = vpop.f32.mrb[0].mxu0
        %v6244 = vpop.f32.mrb[0].mxu0
        %v6245 = vadd.f32 0.0, %v6244
        %v6246 = vpop.f32.mrb[0].mxu0
        %6247 = vmatprep.mubr.bf16.mxu0 %v6008
        %6248 = vmatmul.mubr.bf16.gmra.mrb[0].mxu0 %v5992
        %v6249 = vpop.f32.mrb[0].mxu0
        %v6250 = vadd.f32 0.0, %v6249
        %v6251 = vpop.f32.mrb[0].mxu0
        %v6252 = vpop.f32.mrb[0].mxu0
        %v6253 = vadd.f32 0.0, %v6252
        %v6254 = vpop.f32.mrb[0].mxu0
        %6255 = vmatprep.mubr.bf16.mxu0 %v6009
        %6256 = vmatmul.mubr.bf16.gmra.mrb[0].mxu0 %v5993
        %v6257 = vpop.f32.mrb[0].mxu0
        %v6258 = vadd.f32 0.0, %v6257
        %v6259 = vpop.f32.mrb[0].mxu0
        %v6260 = vpop.f32.mrb[0].mxu0
        %v6261 = vadd.f32 0.0, %v6260
        %v6262 = vpop.f32.mrb[0].mxu0
        %6263 = vmatprep.mubr.bf16.mxu0 %v6010
        %6264 = vmatmul.mubr.bf16.gmra.mrb[0].mxu0 %v5994
        %v6265 = vpop.f32.mrb[0].mxu0
        %v6266 = vadd.f32 0.0, %v6265
        %v6267 = vpop.f32.mrb[0].mxu0
        %v6268 = vpop.f32.mrb[0].mxu0
        %v6269 = vadd.f32 0.0, %v6268
        %v6270 = vpop.f32.mrb[0].mxu0
        %6271 = vmatprep.mubr.bf16.mxu0 %v6011
        %6272 = vmatmul.mubr.bf16.gmra.mrb[0].mxu0 %v5995
        %v6273 = vpop.f32.mrb[0].mxu0
        %v6274 = vadd.f32 0.0, %v6273
        %v6275 = vpop.f32.mrb[0].mxu0
        %v6276 = vpop.f32.mrb[0].mxu0
        %v6277 = vadd.f32 0.0, %v6276
        %v6278 = vpop.f32.mrb[0].mxu0
        %6279 = vmatprep.mubr.bf16.mxu0 %v6012
        %6280 = vmatmul.mubr.bf16.gmra.mrb[0].mxu0 %v5996
        %v6281 = vpop.f32.mrb[0].mxu0
        %v6282 = vadd.f32 0.0, %v6281
        %v6283 = vpop.f32.mrb[0].mxu0
        %v6284 = vpop.f32.mrb[0].mxu0
        %v6285 = vadd.f32 0.0, %v6284
        %v6286 = vpop.f32.mrb[0].mxu0
        %6287 = vmatprep.mubr.bf16.mxu0 %v6013
        %6288 = vmatmul.mubr.bf16.gmra.mrb[0].mxu0 %v5997
        %v6289 = vpop.f32.mrb[0].mxu0
        %v6290 = vadd.f32 0.0, %v6289
        %v6291 = vpop.f32.mrb[0].mxu0
        %v6292 = vpop.f32.mrb[0].mxu0
        %v6293 = vadd.f32 0.0, %v6292
        %v6294 = vpop.f32.mrb[0].mxu0
        %6295 = vmatprep.mubr.bf16.mxu0 %v6014
        %6296 = vmatmul.mubr.bf16.gmra.mrb[0].mxu0 %v5998
        %v6297 = vpop.f32.mrb[0].mxu0
        %v6298 = vadd.f32 0.0, %v6297
        %v6299 = vpop.f32.mrb[0].mxu0
        %v6300 = vpop.f32.mrb[0].mxu0
        %v6301 = vadd.f32 0.0, %v6300
        %v6302 = vpop.f32.mrb[0].mxu0
        %6303 = vdwg.mxu0
        %v6304 = vld [vmem:[%s17] sm:$0x1]
        %v6306 = vlaneseq
        %v6307 = vshrl.u32 %v6306, 7
        %v6308 = vsub.s32 0, %v6307
        %v6309 = vrot.slane %v6304, %v6308
        %v6311 = vmul.f32 %v6178, %v6309
        %v6312 = vmul.f32 %v6181, %v6309
        %v6313 = vmul.f32 %v6186, %v6309
        %v6314 = vmul.f32 %v6189, %v6309
        %v6315 = vmul.f32 %v6194, %v6309
        %v6316 = vmul.f32 %v6197, %v6309
        %v6317 = vmul.f32 %v6202, %v6309
        %v6318 = vmul.f32 %v6205, %v6309
        %v6319 = vmul.f32 %v6210, %v6309
        %v6320 = vmul.f32 %v6213, %v6309
        %v6321 = vmul.f32 %v6218, %v6309
        %v6322 = vmul.f32 %v6221, %v6309
        %v6323 = vmul.f32 %v6226, %v6309
        %v6324 = vmul.f32 %v6229, %v6309
        %v6325 = vmul.f32 %v6234, %v6309
        %v6326 = vmul.f32 %v6237, %v6309
        %v6327 = vmul.f32 %v6242, %v6309
        %v6328 = vmul.f32 %v6245, %v6309
        %v6329 = vmul.f32 %v6250, %v6309
        %v6330 = vmul.f32 %v6253, %v6309
        %v6331 = vmul.f32 %v6258, %v6309
        %v6332 = vmul.f32 %v6261, %v6309
        %v6333 = vmul.f32 %v6266, %v6309
        %v6334 = vmul.f32 %v6269, %v6309
        %v6335 = vmul.f32 %v6274, %v6309
        %v6336 = vmul.f32 %v6277, %v6309
        %v6337 = vmul.f32 %v6282, %v6309
        %v6338 = vmul.f32 %v6285, %v6309
        %v6339 = vmul.f32 %v6290, %v6309
        %v6340 = vmul.f32 %v6293, %v6309
        %v6341 = vmul.f32 %v6298, %v6309
        %v6342 = vmul.f32 %v6301, %v6309
        %v6343 = vld [vmem:[%s18] sm:$0x1]
        %v6345 = vlaneseq
        %v6346 = vshrl.u32 %v6345, 7
        %v6347 = vsub.s32 0, %v6346
        %v6348 = vrot.slane %v6343, %v6347
        %v6350 = vadd.f32 %v6311, %v6348
        %v6351 = vadd.f32 %v6312, %v6348
        %v6352 = vadd.f32 %v6313, %v6348
        %v6353 = vadd.f32 %v6314, %v6348
        %v6354 = vadd.f32 %v6315, %v6348
        %v6355 = vadd.f32 %v6316, %v6348
        %v6356 = vadd.f32 %v6317, %v6348
        %v6357 = vadd.f32 %v6318, %v6348
        %v6358 = vadd.f32 %v6319, %v6348
        %v6359 = vadd.f32 %v6320, %v6348
        %v6360 = vadd.f32 %v6321, %v6348
        %v6361 = vadd.f32 %v6322, %v6348
        %v6362 = vadd.f32 %v6323, %v6348
        %v6363 = vadd.f32 %v6324, %v6348
        %v6364 = vadd.f32 %v6325, %v6348
        %v6365 = vadd.f32 %v6326, %v6348
        %v6366 = vadd.f32 %v6327, %v6348
        %v6367 = vadd.f32 %v6328, %v6348
        %v6368 = vadd.f32 %v6329, %v6348
        %v6369 = vadd.f32 %v6330, %v6348
        %v6370 = vadd.f32 %v6331, %v6348
        %v6371 = vadd.f32 %v6332, %v6348
        %v6372 = vadd.f32 %v6333, %v6348
        %v6373 = vadd.f32 %v6334, %v6348
        %v6374 = vadd.f32 %v6335, %v6348
        %v6375 = vadd.f32 %v6336, %v6348
        %v6376 = vadd.f32 %v6337, %v6348
        %v6377 = vadd.f32 %v6338, %v6348
        %v6378 = vadd.f32 %v6339, %v6348
        %v6379 = vadd.f32 %v6340, %v6348
        %v6380 = vadd.f32 %v6341, %v6348
        %v6381 = vadd.f32 %v6342, %v6348
        %v6382 = vsub.f32 0.0, %v6350
        %v6383 = vsub.f32 0.0, %v6351
        %v6384 = vsub.f32 0.0, %v6352
        %v6385 = vsub.f32 0.0, %v6353
        %v6386 = vsub.f32 0.0, %v6354
        %v6387 = vsub.f32 0.0, %v6355
        %v6388 = vsub.f32 0.0, %v6356
        %v6389 = vsub.f32 0.0, %v6357
        %v6390 = vsub.f32 0.0, %v6358
        %v6391 = vsub.f32 0.0, %v6359
        %v6392 = vsub.f32 0.0, %v6360
        %v6393 = vsub.f32 0.0, %v6361
        %v6394 = vsub.f32 0.0, %v6362
        %v6395 = vsub.f32 0.0, %v6363
        %v6396 = vsub.f32 0.0, %v6364
        %v6397 = vsub.f32 0.0, %v6365
        %v6398 = vsub.f32 0.0, %v6366
        %v6399 = vsub.f32 0.0, %v6367
        %v6400 = vsub.f32 0.0, %v6368
        %v6401 = vsub.f32 0.0, %v6369
        %v6402 = vsub.f32 0.0, %v6370
        %v6403 = vsub.f32 0.0, %v6371
        %v6404 = vsub.f32 0.0, %v6372
        %v6405 = vsub.f32 0.0, %v6373
        %v6406 = vsub.f32 0.0, %v6374
        %v6407 = vsub.f32 0.0, %v6375
        %v6408 = vsub.f32 0.0, %v6376
        %v6409 = vsub.f32 0.0, %v6377
        %v6410 = vsub.f32 0.0, %v6378
        %v6411 = vsub.f32 0.0, %v6379
        %v6412 = vsub.f32 0.0, %v6380
        %v6413 = vsub.f32 0.0, %v6381
        %v6414 = vmul.f32 %v6382, 1.442695
        %v6415 = vpow.pop %v6414
        %v6416 = vmul.f32 %v6383, 1.442695
        %v6417 = vpow.pop %v6416
        %v6418 = vmul.f32 %v6384, 1.442695
        %v6419 = vpow.pop %v6418
        %v6420 = vmul.f32 %v6385, 1.442695
        %v6421 = vpow.pop %v6420
        %v6422 = vmul.f32 %v6386, 1.442695
        %v6423 = vpow.pop %v6422
        %v6424 = vmul.f32 %v6387, 1.442695
        %v6425 = vpow.pop %v6424
        %v6426 = vmul.f32 %v6388, 1.442695
        %v6427 = vpow.pop %v6426
        %v6428 = vmul.f32 %v6389, 1.442695
        %v6429 = vpow.pop %v6428
        %v6430 = vmul.f32 %v6390, 1.442695
        %v6431 = vpow.pop %v6430
        %v6432 = vmul.f32 %v6391, 1.442695
        %v6433 = vpow.pop %v6432
        %v6434 = vmul.f32 %v6392, 1.442695
        %v6435 = vpow.pop %v6434
        %v6436 = vmul.f32 %v6393, 1.442695
        %v6437 = vpow.pop %v6436
        %v6438 = vmul.f32 %v6394, 1.442695
        %v6439 = vpow.pop %v6438
        %v6440 = vmul.f32 %v6395, 1.442695
        %v6441 = vpow.pop %v6440
        %v6442 = vmul.f32 %v6396, 1.442695
        %v6443 = vpow.pop %v6442
        %v6444 = vmul.f32 %v6397, 1.442695
        %v6445 = vpow.pop %v6444
        %v6446 = vmul.f32 %v6398, 1.442695
        %v6447 = vpow.pop %v6446
        %v6448 = vmul.f32 %v6399, 1.442695
        %v6449 = vpow.pop %v6448
        %v6450 = vmul.f32 %v6400, 1.442695
        %v6451 = vpow.pop %v6450
        %v6452 = vmul.f32 %v6401, 1.442695
        %v6453 = vpow.pop %v6452
        %v6454 = vmul.f32 %v6402, 1.442695
        %v6455 = vpow.pop %v6454
        %v6456 = vmul.f32 %v6403, 1.442695
        %v6457 = vpow.pop %v6456
        %v6458 = vmul.f32 %v6404, 1.442695
        %v6459 = vpow.pop %v6458
        %v6460 = vmul.f32 %v6405, 1.442695
        %v6461 = vpow.pop %v6460
        %v6462 = vmul.f32 %v6406, 1.442695
        %v6463 = vpow.pop %v6462
        %v6464 = vmul.f32 %v6407, 1.442695
        %v6465 = vpow.pop %v6464
        %v6466 = vmul.f32 %v6408, 1.442695
        %v6467 = vpow.pop %v6466
        %v6468 = vmul.f32 %v6409, 1.442695
        %v6469 = vpow.pop %v6468
        %v6470 = vmul.f32 %v6410, 1.442695
        %v6471 = vpow.pop %v6470
        %v6472 = vmul.f32 %v6411, 1.442695
        %v6473 = vpow.pop %v6472
        %v6474 = vmul.f32 %v6412, 1.442695
        %v6475 = vpow.pop %v6474
        %v6476 = vmul.f32 %v6413, 1.442695
        %v6477 = vpow.pop %v6476
        %v6478 = vadd.f32 %v6415, 1.0
        %v6479 = vadd.f32 %v6417, 1.0
        %v6480 = vadd.f32 %v6419, 1.0
        %v6481 = vadd.f32 %v6421, 1.0
        %v6482 = vadd.f32 %v6423, 1.0
        %v6483 = vadd.f32 %v6425, 1.0
        %v6484 = vadd.f32 %v6427, 1.0
        %v6485 = vadd.f32 %v6429, 1.0
        %v6486 = vadd.f32 %v6431, 1.0
        %v6487 = vadd.f32 %v6433, 1.0
        %v6488 = vadd.f32 %v6435, 1.0
        %v6489 = vadd.f32 %v6437, 1.0
        %v6490 = vadd.f32 %v6439, 1.0
        %v6491 = vadd.f32 %v6441, 1.0
        %v6492 = vadd.f32 %v6443, 1.0
        %v6493 = vadd.f32 %v6445, 1.0
        %v6494 = vadd.f32 %v6447, 1.0
        %v6495 = vadd.f32 %v6449, 1.0
        %v6496 = vadd.f32 %v6451, 1.0
        %v6497 = vadd.f32 %v6453, 1.0
        %v6498 = vadd.f32 %v6455, 1.0
        %v6499 = vadd.f32 %v6457, 1.0
        %v6500 = vadd.f32 %v6459, 1.0
        %v6501 = vadd.f32 %v6461, 1.0
        %v6502 = vadd.f32 %v6463, 1.0
        %v6503 = vadd.f32 %v6465, 1.0
        %v6504 = vadd.f32 %v6467, 1.0
        %v6505 = vadd.f32 %v6469, 1.0
        %v6506 = vadd.f32 %v6471, 1.0
        %v6507 = vadd.f32 %v6473, 1.0
        %v6508 = vadd.f32 %v6475, 1.0
        %v6509 = vadd.f32 %v6477, 1.0
        %v6510 = vrcp.pop %v6478
        %v6511 = vrcp.pop %v6479
        %v6512 = vrcp.pop %v6480
        %v6513 = vrcp.pop %v6481
        %v6514 = vrcp.pop %v6482
        %v6515 = vrcp.pop %v6483
        %v6516 = vrcp.pop %v6484
        %v6517 = vrcp.pop %v6485
        %v6518 = vrcp.pop %v6486
        %v6519 = vrcp.pop %v6487
        %v6520 = vrcp.pop %v6488
        %v6521 = vrcp.pop %v6489
        %v6522 = vrcp.pop %v6490
        %v6523 = vrcp.pop %v6491
        %v6524 = vrcp.pop %v6492
        %v6525 = vrcp.pop %v6493
        %v6526 = vrcp.pop %v6494
        %v6527 = vrcp.pop %v6495
        %v6528 = vrcp.pop %v6496
        %v6529 = vrcp.pop %v6497
        %v6530 = vrcp.pop %v6498
        %v6531 = vrcp.pop %v6499
        %v6532 = vrcp.pop %v6500
        %v6533 = vrcp.pop %v6501
        %v6534 = vrcp.pop %v6502
        %v6535 = vrcp.pop %v6503
        %v6536 = vrcp.pop %v6504
        %v6537 = vrcp.pop %v6505
        %v6538 = vrcp.pop %v6506
        %v6539 = vrcp.pop %v6507
        %v6540 = vrcp.pop %v6508
        %v6541 = vrcp.pop %v6509
        %v6542 = vmul.f32 %v6350, %v6510
        %v6543 = vmul.f32 %v6351, %v6511
        %v6544 = vmul.f32 %v6352, %v6512
        %v6545 = vmul.f32 %v6353, %v6513
        %v6546 = vmul.f32 %v6354, %v6514
        %v6547 = vmul.f32 %v6355, %v6515
        %v6548 = vmul.f32 %v6356, %v6516
        %v6549 = vmul.f32 %v6357, %v6517
        %v6550 = vmul.f32 %v6358, %v6518
        %v6551 = vmul.f32 %v6359, %v6519
        %v6552 = vmul.f32 %v6360, %v6520
        %v6553 = vmul.f32 %v6361, %v6521
        %v6554 = vmul.f32 %v6362, %v6522
        %v6555 = vmul.f32 %v6363, %v6523
        %v6556 = vmul.f32 %v6364, %v6524
        %v6557 = vmul.f32 %v6365, %v6525
        %v6558 = vmul.f32 %v6366, %v6526
        %v6559 = vmul.f32 %v6367, %v6527
        %v6560 = vmul.f32 %v6368, %v6528
        %v6561 = vmul.f32 %v6369, %v6529
        %v6562 = vmul.f32 %v6370, %v6530
        %v6563 = vmul.f32 %v6371, %v6531
        %v6564 = vmul.f32 %v6372, %v6532
        %v6565 = vmul.f32 %v6373, %v6533
        %v6566 = vmul.f32 %v6374, %v6534
        %v6567 = vmul.f32 %v6375, %v6535
        %v6568 = vmul.f32 %v6376, %v6536
        %v6569 = vmul.f32 %v6377, %v6537
        %v6570 = vmul.f32 %v6378, %v6538
        %v6571 = vmul.f32 %v6379, %v6539
        %v6572 = vmul.f32 %v6380, %v6540
        %v6573 = vmul.f32 %v6381, %v6541
        %6574 = vst [vmem:[%s707] sm:$0xff] %v6542
        %6575 = vst [vmem:[%s707 + $0x8] sm:$0xff] %v6543
        %6576 = vst [vmem:[%s707 + $0x10] sm:$0xff] %v6544
        %6577 = vst [vmem:[%s707 + $0x18] sm:$0xff] %v6545
        %6578 = vst [vmem:[%s707 + $0x20] sm:$0xff] %v6546
        %6579 = vst [vmem:[%s707 + $0x28] sm:$0xff] %v6547
        %6580 = vst [vmem:[%s707 + $0x30] sm:$0xff] %v6548
        %6581 = vst [vmem:[%s707 + $0x38] sm:$0xff] %v6549
        %6582 = vst [vmem:[%s707 + $0x40] sm:$0xff] %v6550
        %6583 = vst [vmem:[%s707 + $0x48] sm:$0xff] %v6551
        %6584 = vst [vmem:[%s707 + $0x50] sm:$0xff] %v6552
        %6585 = vst [vmem:[%s707 + $0x58] sm:$0xff] %v6553
        %6586 = vst [vmem:[%s707 + $0x60] sm:$0xff] %v6554
        %6587 = vst [vmem:[%s707 + $0x68] sm:$0xff] %v6555
        %6588 = vst [vmem:[%s707 + $0x70] sm:$0xff] %v6556
        %6589 = vst [vmem:[%s707 + $0x78] sm:$0xff] %v6557
        %6590 = vst [vmem:[%s707 + $0x80] sm:$0xff] %v6558
        %6591 = vst [vmem:[%s707 + $0x88] sm:$0xff] %v6559
        %6592 = vst [vmem:[%s707 + $0x90] sm:$0xff] %v6560
        %6593 = vst [vmem:[%s707 + $0x98] sm:$0xff] %v6561
        %6594 = vst [vmem:[%s707 + $0xa0] sm:$0xff] %v6562
        %6595 = vst [vmem:[%s707 + $0xa8] sm:$0xff] %v6563
        %6596 = vst [vmem:[%s707 + $0xb0] sm:$0xff] %v6564
        %6597 = vst [vmem:[%s707 + $0xb8] sm:$0xff] %v6565
        %6598 = vst [vmem:[%s707 + $0xc0] sm:$0xff] %v6566
        %6599 = vst [vmem:[%s707 + $0xc8] sm:$0xff] %v6567
        %6600 = vst [vmem:[%s707 + $0xd0] sm:$0xff] %v6568
        %6601 = vst [vmem:[%s707 + $0xd8] sm:$0xff] %v6569
        %6602 = vst [vmem:[%s707 + $0xe0] sm:$0xff] %v6570
        %6603 = vst [vmem:[%s707 + $0xe8] sm:$0xff] %v6571
        %6604 = vst [vmem:[%s707 + $0xf0] sm:$0xff] %v6572
        %6605 = vst [vmem:[%s707 + $0xf8] sm:$0xff] %v6573
        %s6606 = sand.u32 %s451, 1
        %s6607 = scalar_lea.sflag [#allocation5], %s6606
        %s6608 = sand.u32 %s451, 1
        %s6609 = smul.addr %s6608, 256
        %s6610 = scalar_lea.vmem [#allocation15], %s6609
        // Predicated region
        $region132: #{tpu_custom_call.1} parent=95 // pred_check
          %p6611 = pneg %p461
        $region133: #{tpu_custom_call.1} parent=95 // pred_check_branch
          %6613 = sbr.rel (%p6611) target = $region135
        $region134: #{tpu_custom_call.1} parent=95 // pred_region
          %s6615 = ssub.s32 4096, 4096
          %6616 = vsyncadd %s6607, %s6615
          %s6617 = smul.addr %s39, 32
          %s6618 = smul.addr %s6617, 128
          %s6619 = scalar_lea.hbm %s19, %s6618
          %s6620 = sshll.u32 %s6610, 4
          %s6621 = int_to_ptr.vmem [resolvable:$true] %s6620
          %6626 = dma.vmem_to_hbm [thread:$0]  %s6621, 4096, %s6619, %s6607, 128, 128, 8
        $region135: #{tpu_custom_call.1} parent=95 // pred_fallthru
          _
      $region96: #{tpu_custom_call.1} parent=5 // pred_fallthru
        _
      %p6627 = scmp.le.s32.totalorder 2, %s34
      // Predicated region
      $region136: #{tpu_custom_call.1} parent=5 // pred_check
        %p6628 = pneg %p6627
      $region137: #{tpu_custom_call.1} parent=5 // pred_check_branch
        %6630 = sbr.rel (%p6628) target = $region139
      $region138: #{tpu_custom_call.1} parent=5 // pred_region
        %s6631 = ssub.s32 %s34, 2
        // Predicated region
        $region140: #{tpu_custom_call.1} parent=138 // pred_check
          %p6632 = pneg %p467
        $region141: #{tpu_custom_call.1} parent=138 // pred_check_branch
          %6634 = sbr.rel (%p6632) target = $region143
        $region142: #{tpu_custom_call.1} parent=138 // pred_region
          %s6635 = sand.u32 %s452, 1
          %s6636 = scalar_lea.sflag [#allocation5], %s6635
          %s6637 = sand.u32 %s452, 1
          %s6638 = smul.addr %s6637, 256
          %s6639 = scalar_lea.vmem [#allocation15], %s6638
          %6640 = dma.done %s6636, 4096
        $region143: #{tpu_custom_call.1} parent=138 // pred_fallthru
          _
      $region139: #{tpu_custom_call.1} parent=5 // pred_fallthru
        _
    $region6: #{tpu_custom_call.1} parent=1 // loop_footer
      %s38 = sadd.s32 1, %s34
    $region7: #{tpu_custom_call.1} parent=1 // loop_footer_branch
      %33 = sbr.rel target = $region3
    $region8: #{tpu_custom_call.1} parent=1 // loop_exit
      _
    %6641 = vsyncpa [#allocation4], 1
    %s6642 = scalar_lea.sflag [#allocation4], 1
    %6643 = vsyncpa %s6642, 1
    %6644 = vsyncpa [#allocation7], 1
    %6645 = vsyncpa [#allocation10], 1
    %6646 = vsyncpa [#allocation13], 1
    %6647 = vsyncpa [#allocation5], 1
    %s6648 = scalar_lea.sflag [#allocation5], 1
    %6649 = vsyncpa %s6648, 1

</llo_original>
